<compile_context>
chip_gen: v6e
topology: v6e:2x2x1
jax: 0.10.0
libtpu: 0.0.40
codegen_flags: <defaults>
</compile_context>

<pallas_src>
import functools
import math

import jax
import jax.numpy as jnp
from jax.experimental import pallas as pl
from jax.experimental.pallas import tpu as pltpu

# Canonical ordering of the packed-parameter operands handed to the kernel.
_PARAM_ORDER = (
    "in_w", "in_b", "proj_w", "proj_b",
    # encoder layers
    "e_q_w", "e_q_b", "e_k_w", "e_k_b", "e_v_w", "e_v_b", "e_o_w", "e_o_b",
    "e_f1_w", "e_f1_b", "e_f2_w", "e_f2_b",
    "e_n1_g", "e_n1_b", "e_n2_g", "e_n2_b",
    # decoder layers (self-attn, cross-attn, ffn, norms)
    "d_q_w", "d_q_b", "d_k_w", "d_k_b", "d_v_w", "d_v_b", "d_o_w", "d_o_b",
    "d_cq_w", "d_cq_b", "d_ck_w", "d_ck_b", "d_cv_w", "d_cv_b", "d_co_w", "d_co_b",
    "d_f1_w", "d_f1_b", "d_f2_w", "d_f2_b",
    "d_n1_g", "d_n1_b", "d_n2_g", "d_n2_b", "d_n3_g", "d_n3_b",
    # final stack norms
    "enc_ng", "enc_nb", "dec_ng", "dec_nb",
)


# ---------------------------------------------------------------------------
# The fused whole-model kernel (one grid step == one batch element)
# ---------------------------------------------------------------------------
def _fused_forward_kernel(*refs, Ss, Ss_p, St, E, H, L, eps, inp_scale):
    # Operand layout: [enc, tgt, pe_src, pe_tgt, *params (_PARAM_ORDER), out]
    enc_ref, tgt_ref, pes_ref, pet_ref = refs[:4]
    p = dict(zip(_PARAM_ORDER, refs[4:4 + len(_PARAM_ORDER)]))
    out_ref = refs[-1]

    f32 = jnp.float32
    hd = E // H
    att_scale = 1.0 / math.sqrt(hd)

    def matmul(x, w, b):
        return jnp.dot(x, w, preferred_element_type=f32) + b

    def layernorm(x, g, b):
        mu = jnp.mean(x, axis=-1, keepdims=True)
        xm = x - mu
        var = jnp.mean(xm * xm, axis=-1, keepdims=True)
        return xm * jax.lax.rsqrt(var + eps) * g + b

    def head_mask(Sq):
        # (H*Sq, E) mask: row block h keeps only lanes of head h.
        c = jax.lax.broadcasted_iota(jnp.int32, (Sq, E), 1)
        blocks = [((c >= h * hd) & (c < (h + 1) * hd)).astype(f32)
                  for h in range(H)]
        return jnp.concatenate(blocks, axis=0)

    hm_src = head_mask(Ss_p)          # (H*Ss_p, E)
    hm_tgt = head_mask(St)            # (H*St,  E)

    # Key-padding bias for the (padded) encoder sequence: -1e9 on padded keys.
    if Ss_p > Ss:
        kcol = jax.lax.broadcasted_iota(jnp.int32, (1, Ss_p), 1)
        src_key_bias = jnp.where(kcol < Ss, 0.0, -1e9).astype(f32)   # (1, Ss_p)
    else:
        src_key_bias = None

    # Causal mask (finite large-negative), tiled along sublanes for the
    # head-stacked score layout.
    ri = jax.lax.broadcasted_iota(jnp.int32, (St, St), 0)
    ci = jax.lax.broadcasted_iota(jnp.int32, (St, St), 1)
    causal = jnp.where(ri >= ci, 0.0, -1e9).astype(f32)              # (St, St)
    causal_bias = jnp.concatenate([causal] * H, axis=0)              # (H*St, St)

    def attention(q, k, v, Sq, wo, bo, qmask, bias):
        # Head-stacked multi-head attention:
        #   q (Sq, E), k/v (Sk, E).  Tile Q along sublanes (one block per head)
        #   and mask each block to its head's lanes; then per-head scores fall
        #   out of a single (H*Sq, E) x (Sk, E)^T dot, one row-softmax, and a
        #   single (H*Sq, Sk) x (Sk, E) dot whose head lanes are re-collapsed.
        qs = jnp.concatenate([q] * H, axis=0) * qmask                 # (H*Sq, E)
        s = jax.lax.dot_general(qs, k, (((1,), (1,)), ((), ())),
                                preferred_element_type=f32) * att_scale
        if bias is not None:
            s = s + bias                                              # (H*Sq, Sk)
        m = jnp.max(s, axis=-1, keepdims=True)
        e = jnp.exp(s - m)
        pr = e / jnp.sum(e, axis=-1, keepdims=True)
        o = jnp.dot(pr, v, preferred_element_type=f32) * qmask        # (H*Sq, E)
        ctx = o[0:Sq]
        for h in range(1, H):                                         # collapse heads
            ctx = ctx + o[h * Sq:(h + 1) * Sq]                        # (Sq, E)
        return matmul(ctx, wo, bo)

    # ---------------- encoder ----------------
    x = matmul(enc_ref[0], p["in_w"][...], p["in_b"][...]) * inp_scale
    x = x + pes_ref[...]
    for l in range(L):
        q = matmul(x, p["e_q_w"][l], p["e_q_b"][l])
        k = matmul(x, p["e_k_w"][l], p["e_k_b"][l])
        v = matmul(x, p["e_v_w"][l], p["e_v_b"][l])
        a = attention(q, k, v, Ss_p, p["e_o_w"][l], p["e_o_b"][l],
                      hm_src, src_key_bias)
        x = layernorm(x + a, p["e_n1_g"][l], p["e_n1_b"][l])
        h1 = jnp.maximum(matmul(x, p["e_f1_w"][l], p["e_f1_b"][l]), 0.0)
        x = layernorm(x + matmul(h1, p["e_f2_w"][l], p["e_f2_b"][l]),
                      p["e_n2_g"][l], p["e_n2_b"][l])
    memory = layernorm(x, p["enc_ng"][...], p["enc_nb"][...])         # (Ss_p, E)

    # ---------------- decoder (teacher forcing) ----------------
    y = matmul(tgt_ref[0], p["in_w"][...], p["in_b"][...]) * inp_scale
    y = y + pet_ref[...]
    for l in range(L):
        # masked self-attention
        q = matmul(y, p["d_q_w"][l], p["d_q_b"][l])
        k = matmul(y, p["d_k_w"][l], p["d_k_b"][l])
        v = matmul(y, p["d_v_w"][l], p["d_v_b"][l])
        a = attention(q, k, v, St, p["d_o_w"][l], p["d_o_b"][l],
                      hm_tgt, causal_bias)
        y = layernorm(y + a, p["d_n1_g"][l], p["d_n1_b"][l])
        # cross-attention over encoder memory
        cq = matmul(y, p["d_cq_w"][l], p["d_cq_b"][l])
        ck = matmul(memory, p["d_ck_w"][l], p["d_ck_b"][l])
        cv = matmul(memory, p["d_cv_w"][l], p["d_cv_b"][l])
        c = attention(cq, ck, cv, St, p["d_co_w"][l], p["d_co_b"][l],
                      hm_tgt, src_key_bias)
        y = layernorm(y + c, p["d_n2_g"][l], p["d_n2_b"][l])
        # feed-forward
        h1 = jnp.maximum(matmul(y, p["d_f1_w"][l], p["d_f1_b"][l]), 0.0)
        y = layernorm(y + matmul(h1, p["d_f2_w"][l], p["d_f2_b"][l]),
                      p["d_n3_g"][l], p["d_n3_b"][l])
    y = layernorm(y, p["dec_ng"][...], p["dec_nb"][...])

    # Lane-dense final store: proj weight is zero-padded to 128 output lanes.
    out_ref[0] = matmul(y, p["proj_w"][...], p["proj_b"][...])


# ---------------------------------------------------------------------------
# Forward wrapper (one pallas_call, batch as a parallel grid axis)
# ---------------------------------------------------------------------------
def transformer_model_forward(params, encoder_inputs, decoder_inputs, *, num_heads):
    B, Ss, I = encoder_inputs.shape
    St = decoder_inputs.shape[1]
    E = params["in_w"].shape[1]
    L = params["e_q_w"].shape[0]
    P = params["proj_w"].shape[1]
    Ss_p = ((Ss + 7) // 8) * 8          # sublane-align the source sequence

    # Teacher-forcing target: last encoder frame + decoder_inputs[:-1].
    tgt = jnp.concatenate(
        [encoder_inputs[:, -1:, :], decoder_inputs[:, :-1, :]], axis=1)

    enc = encoder_inputs
    if Ss_p != Ss:
        enc = jnp.pad(enc, ((0, 0), (0, Ss_p - Ss), (0, 0)))

    # PE passed pre-sliced from the wrapper (no in-kernel tiling).
    pe_src = params["pe"][:Ss_p]
    pe_tgt = params["pe"][:St]

    param_ops = [params[name] for name in _PARAM_ORDER]

    def batch_spec(s1, s2):
        return pl.BlockSpec((1, s1, s2), lambda b: (b, 0, 0))

    def full_spec(arr):
        return pl.BlockSpec(arr.shape, lambda b, n=arr.ndim: (0,) * n)

    in_specs = ([batch_spec(Ss_p, I), batch_spec(St, I),
                 full_spec(pe_src), full_spec(pe_tgt)]
                + [full_spec(a) for a in param_ops])

    kernel = functools.partial(
        _fused_forward_kernel,
        Ss=Ss, Ss_p=Ss_p, St=St, E=E, H=num_heads, L=L,
        eps=1e-5, inp_scale=math.sqrt(E))

    out = pl.pallas_call(
        kernel,
        grid=(B,),
        out_shape=jax.ShapeDtypeStruct((B, St, P), jnp.float32),
        in_specs=in_specs,
        out_specs=pl.BlockSpec((1, St, P), lambda b: (b, 0, 0)),
        compiler_params=pltpu.CompilerParams(
            dimension_semantics=("parallel",),
            vmem_limit_bytes=32 * 1024 * 1024),
    )(enc, tgt, pe_src, pe_tgt, *param_ops)

    # (B, St, P) -> (B, St, input_size)
    return out[:, :, :I]


# ---------------------------------------------------------------------------
# Parameter packing (done ONCE; weights pre-transposed / stacked per layer)
# ---------------------------------------------------------------------------
def make_positional_encoding(max_len, d_model):
    position = jnp.arange(max_len, dtype=jnp.float32)[:, None]
    div_term = jnp.exp(
        jnp.arange(0, d_model, 2, dtype=jnp.float32)
        * (-math.log(10000.0) / d_model))
    pe = jnp.zeros((max_len, d_model), jnp.float32)
    pe = pe.at[:, 0::2].set(jnp.sin(position * div_term))
    pe = pe.at[:, 1::2].set(jnp.cos(position * div_term))
    return pe


def _uniform(key, shape, bound):
    return jax.random.uniform(key, shape, jnp.float32, -bound, bound)


def init_packed_params(key, input_size, hidden_dim, num_layers,
                       ff_dim=None, max_len=5000):
    E = hidden_dim
    F = hidden_dim if ff_dim is None else ff_dim   # torch layer uses dim_ff=hidden_dim
    I = input_size
    P = ((I + 127) // 128) * 128                   # lane-dense projection width
    L = num_layers

    n_linear = 2 + 16 * L                          # in, proj, 6/layer enc, 10/layer dec
    keys = iter(jax.random.split(key, 2 * n_linear))

    def lin(din, dout):
        bound = 1.0 / math.sqrt(din)
        return (_uniform(next(keys), (din, dout), bound),
                _uniform(next(keys), (1, dout), bound))

    def stack(din, dout):
        ws, bs = zip(*(lin(din, dout) for _ in range(L)))
        return jnp.stack(ws), jnp.stack(bs)

    params = {}
    # shared input embedding Linear (stored pre-transposed: x @ W)
    params["in_w"], params["in_b"] = lin(I, E)
    # output projection, zero-padded to P lanes for an unmasked store
    pw, pb = lin(E, I)
    params["proj_w"] = jnp.zeros((E, P), jnp.float32).at[:, :I].set(pw)
    params["proj_b"] = jnp.zeros((1, P), jnp.float32).at[:, :I].set(pb)

    # per-layer attention projections (separate Q/K/V/O to avoid lane slicing)
    for name in ("e_q", "e_k", "e_v", "e_o",
                 "d_q", "d_k", "d_v", "d_o",
                 "d_cq", "d_ck", "d_cv", "d_co"):
        params[name + "_w"], params[name + "_b"] = stack(E, E)

    # feed-forward
    params["e_f1_w"], params["e_f1_b"] = stack(E, F)
    params["e_f2_w"], params["e_f2_b"] = stack(F, E)
    params["d_f1_w"], params["d_f1_b"] = stack(E, F)
    params["d_f2_w"], params["d_f2_b"] = stack(F, E)

    # layernorms
    ones_l = jnp.ones((L, 1, E), jnp.float32)
    zeros_l = jnp.zeros((L, 1, E), jnp.float32)
    for name in ("e_n1", "e_n2", "d_n1", "d_n2", "d_n3"):
        params[name + "_g"] = ones_l
        params[name + "_b"] = zeros_l
    params["enc_ng"] = jnp.ones((1, E), jnp.float32)
    params["enc_nb"] = jnp.zeros((1, E), jnp.float32)
    params["dec_ng"] = jnp.ones((1, E), jnp.float32)
    params["dec_nb"] = jnp.zeros((1, E), jnp.float32)

    params["pe"] = make_positional_encoding(max_len, E)
    return params


# ---------------------------------------------------------------------------
if __name__ == "__main__":
    # Config consistent with the module:
    #   HUMAN_SIZE=54, one_hot with 1 action -> input_size = 55
    #   source_seq_len=8 (get_batch gives src len = source_seq_len-1 = 7)
    #   target_seq_len=8, hidden_dim=32, num_layers=2, num_heads=4, batch=2
    number_of_actions = 1
    input_size = 54 + number_of_actions
    source_seq_len, target_seq_len = 8, 8
    hidden_dim, num_layers, num_heads = 32, 2, 4
    batch = 2

    root = jax.random.PRNGKey(0)
    k_par, k_enc, k_dec = jax.random.split(root, 3)

    params = init_packed_params(k_par, input_size, hidden_dim, num_layers)

    encoder_inputs = jax.random.normal(
        k_enc, (batch, source_seq_len - 1, input_size), jnp.float32)
    decoder_inputs = jax.random.normal(
        k_dec, (batch, target_seq_len, input_size), jnp.float32)

    fwd = jax.jit(functools.partial(transformer_model_forward, num_heads=num_heads))
    out = fwd(params, encoder_inputs, decoder_inputs)
    out = jax.block_until_ready(out)

    assert out.shape == (batch, target_seq_len, input_size)
    assert bool(jnp.all(jnp.isfinite(out)))
    print("KERNEL_OK")
</pallas_src>

<mosaic_0001>
module attributes {stable_mosaic.version = 11 : i64} {
  func.func @_fused_forward_kernel(%arg0: i32, %arg1: memref<1x8x55xf32, #tpu.memory_space<vmem>>, %arg2: memref<1x8x55xf32, #tpu.memory_space<vmem>>, %arg3: memref<8x32xf32, #tpu.memory_space<vmem>>, %arg4: memref<8x32xf32, #tpu.memory_space<vmem>>, %arg5: memref<55x32xf32, #tpu.memory_space<vmem>>, %arg6: memref<1x32xf32, #tpu.memory_space<vmem>>, %arg7: memref<32x128xf32, #tpu.memory_space<vmem>>, %arg8: memref<1x128xf32, #tpu.memory_space<vmem>>, %arg9: memref<2x32x32xf32, #tpu.memory_space<vmem>>, %arg10: memref<2x1x32xf32, #tpu.memory_space<vmem>>, %arg11: memref<2x32x32xf32, #tpu.memory_space<vmem>>, %arg12: memref<2x1x32xf32, #tpu.memory_space<vmem>>, %arg13: memref<2x32x32xf32, #tpu.memory_space<vmem>>, %arg14: memref<2x1x32xf32, #tpu.memory_space<vmem>>, %arg15: memref<2x32x32xf32, #tpu.memory_space<vmem>>, %arg16: memref<2x1x32xf32, #tpu.memory_space<vmem>>, %arg17: memref<2x32x32xf32, #tpu.memory_space<vmem>>, %arg18: memref<2x1x32xf32, #tpu.memory_space<vmem>>, %arg19: memref<2x32x32xf32, #tpu.memory_space<vmem>>, %arg20: memref<2x1x32xf32, #tpu.memory_space<vmem>>, %arg21: memref<2x1x32xf32, #tpu.memory_space<vmem>>, %arg22: memref<2x1x32xf32, #tpu.memory_space<vmem>>, %arg23: memref<2x1x32xf32, #tpu.memory_space<vmem>>, %arg24: memref<2x1x32xf32, #tpu.memory_space<vmem>>, %arg25: memref<2x32x32xf32, #tpu.memory_space<vmem>>, %arg26: memref<2x1x32xf32, #tpu.memory_space<vmem>>, %arg27: memref<2x32x32xf32, #tpu.memory_space<vmem>>, %arg28: memref<2x1x32xf32, #tpu.memory_space<vmem>>, %arg29: memref<2x32x32xf32, #tpu.memory_space<vmem>>, %arg30: memref<2x1x32xf32, #tpu.memory_space<vmem>>, %arg31: memref<2x32x32xf32, #tpu.memory_space<vmem>>, %arg32: memref<2x1x32xf32, #tpu.memory_space<vmem>>, %arg33: memref<2x32x32xf32, #tpu.memory_space<vmem>>, %arg34: memref<2x1x32xf32, #tpu.memory_space<vmem>>, %arg35: memref<2x32x32xf32, #tpu.memory_space<vmem>>, %arg36: memref<2x1x32xf32, #tpu.memory_space<vmem>>, %arg37: memref<2x32x32xf32, #tpu.memory_space<vmem>>, %arg38: memref<2x1x32xf32, #tpu.memory_space<vmem>>, %arg39: memref<2x32x32xf32, #tpu.memory_space<vmem>>, %arg40: memref<2x1x32xf32, #tpu.memory_space<vmem>>, %arg41: memref<2x32x32xf32, #tpu.memory_space<vmem>>, %arg42: memref<2x1x32xf32, #tpu.memory_space<vmem>>, %arg43: memref<2x32x32xf32, #tpu.memory_space<vmem>>, %arg44: memref<2x1x32xf32, #tpu.memory_space<vmem>>, %arg45: memref<2x1x32xf32, #tpu.memory_space<vmem>>, %arg46: memref<2x1x32xf32, #tpu.memory_space<vmem>>, %arg47: memref<2x1x32xf32, #tpu.memory_space<vmem>>, %arg48: memref<2x1x32xf32, #tpu.memory_space<vmem>>, %arg49: memref<2x1x32xf32, #tpu.memory_space<vmem>>, %arg50: memref<2x1x32xf32, #tpu.memory_space<vmem>>, %arg51: memref<1x32xf32, #tpu.memory_space<vmem>>, %arg52: memref<1x32xf32, #tpu.memory_space<vmem>>, %arg53: memref<1x32xf32, #tpu.memory_space<vmem>>, %arg54: memref<1x32xf32, #tpu.memory_space<vmem>>, %arg55: memref<1x8x128xf32, #tpu.memory_space<vmem>>) attributes {dimension_semantics = [#tpu.dimension_semantics<parallel>], iteration_bounds = array<i64: 2>, scalar_prefetch = 0 : i64, scratch_operands = 0 : i64, tpu.core_type = #tpu.core_type<tc>, window_params = [{transform_indices = @transform_0, window_bounds = array<i64: 1, 8, 55>}, {transform_indices = @transform_1, window_bounds = array<i64: 1, 8, 55>}, {pipeline_mode = #tpu.pipeline_mode<synchronous>, transform_indices = @transform_2, window_bounds = array<i64: 8, 32>}, {pipeline_mode = #tpu.pipeline_mode<synchronous>, transform_indices = @transform_3, window_bounds = array<i64: 8, 32>}, {pipeline_mode = #tpu.pipeline_mode<synchronous>, transform_indices = @transform_4, window_bounds = array<i64: 55, 32>}, {pipeline_mode = #tpu.pipeline_mode<synchronous>, transform_indices = @transform_5, window_bounds = array<i64: 1, 32>}, {pipeline_mode = #tpu.pipeline_mode<synchronous>, transform_indices = @transform_6, window_bounds = array<i64: 32, 128>}, {pipeline_mode = #tpu.pipeline_mode<synchronous>, transform_indices = @transform_7, window_bounds = array<i64: 1, 128>}, {pipeline_mode = #tpu.pipeline_mode<synchronous>, transform_indices = @transform_8, window_bounds = array<i64: 2, 32, 32>}, {pipeline_mode = #tpu.pipeline_mode<synchronous>, transform_indices = @transform_9, window_bounds = array<i64: 2, 1, 32>}, {pipeline_mode = #tpu.pipeline_mode<synchronous>, transform_indices = @transform_10, window_bounds = array<i64: 2, 32, 32>}, {pipeline_mode = #tpu.pipeline_mode<synchronous>, transform_indices = @transform_11, window_bounds = array<i64: 2, 1, 32>}, {pipeline_mode = #tpu.pipeline_mode<synchronous>, transform_indices = @transform_12, window_bounds = array<i64: 2, 32, 32>}, {pipeline_mode = #tpu.pipeline_mode<synchronous>, transform_indices = @transform_13, window_bounds = array<i64: 2, 1, 32>}, {pipeline_mode = #tpu.pipeline_mode<synchronous>, transform_indices = @transform_14, window_bounds = array<i64: 2, 32, 32>}, {pipeline_mode = #tpu.pipeline_mode<synchronous>, transform_indices = @transform_15, window_bounds = array<i64: 2, 1, 32>}, {pipeline_mode = #tpu.pipeline_mode<synchronous>, transform_indices = @transform_16, window_bounds = array<i64: 2, 32, 32>}, {pipeline_mode = #tpu.pipeline_mode<synchronous>, transform_indices = @transform_17, window_bounds = array<i64: 2, 1, 32>}, {pipeline_mode = #tpu.pipeline_mode<synchronous>, transform_indices = @transform_18, window_bounds = array<i64: 2, 32, 32>}, {pipeline_mode = #tpu.pipeline_mode<synchronous>, transform_indices = @transform_19, window_bounds = array<i64: 2, 1, 32>}, {pipeline_mode = #tpu.pipeline_mode<synchronous>, transform_indices = @transform_20, window_bounds = array<i64: 2, 1, 32>}, {pipeline_mode = #tpu.pipeline_mode<synchronous>, transform_indices = @transform_21, window_bounds = array<i64: 2, 1, 32>}, {pipeline_mode = #tpu.pipeline_mode<synchronous>, transform_indices = @transform_22, window_bounds = array<i64: 2, 1, 32>}, {pipeline_mode = #tpu.pipeline_mode<synchronous>, transform_indices = @transform_23, window_bounds = array<i64: 2, 1, 32>}, {pipeline_mode = #tpu.pipeline_mode<synchronous>, transform_indices = @transform_24, window_bounds = array<i64: 2, 32, 32>}, {pipeline_mode = #tpu.pipeline_mode<synchronous>, transform_indices = @transform_25, window_bounds = array<i64: 2, 1, 32>}, {pipeline_mode = #tpu.pipeline_mode<synchronous>, transform_indices = @transform_26, window_bounds = array<i64: 2, 32, 32>}, {pipeline_mode = #tpu.pipeline_mode<synchronous>, transform_indices = @transform_27, window_bounds = array<i64: 2, 1, 32>}, {pipeline_mode = #tpu.pipeline_mode<synchronous>, transform_indices = @transform_28, window_bounds = array<i64: 2, 32, 32>}, {pipeline_mode = #tpu.pipeline_mode<synchronous>, transform_indices = @transform_29, window_bounds = array<i64: 2, 1, 32>}, {pipeline_mode = #tpu.pipeline_mode<synchronous>, transform_indices = @transform_30, window_bounds = array<i64: 2, 32, 32>}, {pipeline_mode = #tpu.pipeline_mode<synchronous>, transform_indices = @transform_31, window_bounds = array<i64: 2, 1, 32>}, {pipeline_mode = #tpu.pipeline_mode<synchronous>, transform_indices = @transform_32, window_bounds = array<i64: 2, 32, 32>}, {pipeline_mode = #tpu.pipeline_mode<synchronous>, transform_indices = @transform_33, window_bounds = array<i64: 2, 1, 32>}, {pipeline_mode = #tpu.pipeline_mode<synchronous>, transform_indices = @transform_34, window_bounds = array<i64: 2, 32, 32>}, {pipeline_mode = #tpu.pipeline_mode<synchronous>, transform_indices = @transform_35, window_bounds = array<i64: 2, 1, 32>}, {pipeline_mode = #tpu.pipeline_mode<synchronous>, transform_indices = @transform_36, window_bounds = array<i64: 2, 32, 32>}, {pipeline_mode = #tpu.pipeline_mode<synchronous>, transform_indices = @transform_37, window_bounds = array<i64: 2, 1, 32>}, {pipeline_mode = #tpu.pipeline_mode<synchronous>, transform_indices = @transform_38, window_bounds = array<i64: 2, 32, 32>}, {pipeline_mode = #tpu.pipeline_mode<synchronous>, transform_indices = @transform_39, window_bounds = array<i64: 2, 1, 32>}, {pipeline_mode = #tpu.pipeline_mode<synchronous>, transform_indices = @transform_40, window_bounds = array<i64: 2, 32, 32>}, {pipeline_mode = #tpu.pipeline_mode<synchronous>, transform_indices = @transform_41, window_bounds = array<i64: 2, 1, 32>}, {pipeline_mode = #tpu.pipeline_mode<synchronous>, transform_indices = @transform_42, window_bounds = array<i64: 2, 32, 32>}, {pipeline_mode = #tpu.pipeline_mode<synchronous>, transform_indices = @transform_43, window_bounds = array<i64: 2, 1, 32>}, {pipeline_mode = #tpu.pipeline_mode<synchronous>, transform_indices = @transform_44, window_bounds = array<i64: 2, 1, 32>}, {pipeline_mode = #tpu.pipeline_mode<synchronous>, transform_indices = @transform_45, window_bounds = array<i64: 2, 1, 32>}, {pipeline_mode = #tpu.pipeline_mode<synchronous>, transform_indices = @transform_46, window_bounds = array<i64: 2, 1, 32>}, {pipeline_mode = #tpu.pipeline_mode<synchronous>, transform_indices = @transform_47, window_bounds = array<i64: 2, 1, 32>}, {pipeline_mode = #tpu.pipeline_mode<synchronous>, transform_indices = @transform_48, window_bounds = array<i64: 2, 1, 32>}, {pipeline_mode = #tpu.pipeline_mode<synchronous>, transform_indices = @transform_49, window_bounds = array<i64: 2, 1, 32>}, {pipeline_mode = #tpu.pipeline_mode<synchronous>, transform_indices = @transform_50, window_bounds = array<i64: 1, 32>}, {pipeline_mode = #tpu.pipeline_mode<synchronous>, transform_indices = @transform_51, window_bounds = array<i64: 1, 32>}, {pipeline_mode = #tpu.pipeline_mode<synchronous>, transform_indices = @transform_52, window_bounds = array<i64: 1, 32>}, {pipeline_mode = #tpu.pipeline_mode<synchronous>, transform_indices = @transform_53, window_bounds = array<i64: 1, 32>}, {transform_indices = @transform_54, window_bounds = array<i64: 1, 8, 128>}]} {
    %0 = tpu.iota {dimensions = array<i32: 1>} : vector<8x32xi32>
    %c0_i32 = arith.constant 0 : i32
    %1 = vector.broadcast %c0_i32 : i32 to vector<8x32xi32>
    %2 = arith.cmpi sge, %0, %1 : vector<8x32xi32>
    %c8_i32 = arith.constant 8 : i32
    %3 = vector.broadcast %c8_i32 : i32 to vector<8x32xi32>
    %4 = arith.cmpi slt, %0, %3 : vector<8x32xi32>
    %5 = arith.andi %2, %4 : vector<8x32xi1>
    %6 = arith.extui %5 : vector<8x32xi1> to vector<8x32xi32>
    %7 = arith.sitofp %6 : vector<8x32xi32> to vector<8x32xf32>
    %c8_i32_0 = arith.constant 8 : i32
    %8 = vector.broadcast %c8_i32_0 : i32 to vector<8x32xi32>
    %9 = arith.cmpi sge, %0, %8 : vector<8x32xi32>
    %c16_i32 = arith.constant 16 : i32
    %10 = vector.broadcast %c16_i32 : i32 to vector<8x32xi32>
    %11 = arith.cmpi slt, %0, %10 : vector<8x32xi32>
    %12 = arith.andi %9, %11 : vector<8x32xi1>
    %13 = arith.extui %12 : vector<8x32xi1> to vector<8x32xi32>
    %14 = arith.sitofp %13 : vector<8x32xi32> to vector<8x32xf32>
    %c16_i32_1 = arith.constant 16 : i32
    %15 = vector.broadcast %c16_i32_1 : i32 to vector<8x32xi32>
    %16 = arith.cmpi sge, %0, %15 : vector<8x32xi32>
    %c24_i32 = arith.constant 24 : i32
    %17 = vector.broadcast %c24_i32 : i32 to vector<8x32xi32>
    %18 = arith.cmpi slt, %0, %17 : vector<8x32xi32>
    %19 = arith.andi %16, %18 : vector<8x32xi1>
    %20 = arith.extui %19 : vector<8x32xi1> to vector<8x32xi32>
    %21 = arith.sitofp %20 : vector<8x32xi32> to vector<8x32xf32>
    %c24_i32_2 = arith.constant 24 : i32
    %22 = vector.broadcast %c24_i32_2 : i32 to vector<8x32xi32>
    %23 = arith.cmpi sge, %0, %22 : vector<8x32xi32>
    %c32_i32 = arith.constant 32 : i32
    %24 = vector.broadcast %c32_i32 : i32 to vector<8x32xi32>
    %25 = arith.cmpi slt, %0, %24 : vector<8x32xi32>
    %26 = arith.andi %23, %25 : vector<8x32xi1>
    %27 = arith.extui %26 : vector<8x32xi1> to vector<8x32xi32>
    %28 = arith.sitofp %27 : vector<8x32xi32> to vector<8x32xf32>
    %29 = tpu.concatenate %7, %14, %21, %28 in 0 : vector<8x32xf32>, vector<8x32xf32>, vector<8x32xf32>, vector<8x32xf32> -> vector<32x32xf32>
    %30 = tpu.iota {dimensions = array<i32: 1>} : vector<8x32xi32>
    %c0_i32_3 = arith.constant 0 : i32
    %31 = vector.broadcast %c0_i32_3 : i32 to vector<8x32xi32>
    %32 = arith.cmpi sge, %30, %31 : vector<8x32xi32>
    %c8_i32_4 = arith.constant 8 : i32
    %33 = vector.broadcast %c8_i32_4 : i32 to vector<8x32xi32>
    %34 = arith.cmpi slt, %30, %33 : vector<8x32xi32>
    %35 = arith.andi %32, %34 : vector<8x32xi1>
    %36 = arith.extui %35 : vector<8x32xi1> to vector<8x32xi32>
    %37 = arith.sitofp %36 : vector<8x32xi32> to vector<8x32xf32>
    %c8_i32_5 = arith.constant 8 : i32
    %38 = vector.broadcast %c8_i32_5 : i32 to vector<8x32xi32>
    %39 = arith.cmpi sge, %30, %38 : vector<8x32xi32>
    %c16_i32_6 = arith.constant 16 : i32
    %40 = vector.broadcast %c16_i32_6 : i32 to vector<8x32xi32>
    %41 = arith.cmpi slt, %30, %40 : vector<8x32xi32>
    %42 = arith.andi %39, %41 : vector<8x32xi1>
    %43 = arith.extui %42 : vector<8x32xi1> to vector<8x32xi32>
    %44 = arith.sitofp %43 : vector<8x32xi32> to vector<8x32xf32>
    %c16_i32_7 = arith.constant 16 : i32
    %45 = vector.broadcast %c16_i32_7 : i32 to vector<8x32xi32>
    %46 = arith.cmpi sge, %30, %45 : vector<8x32xi32>
    %c24_i32_8 = arith.constant 24 : i32
    %47 = vector.broadcast %c24_i32_8 : i32 to vector<8x32xi32>
    %48 = arith.cmpi slt, %30, %47 : vector<8x32xi32>
    %49 = arith.andi %46, %48 : vector<8x32xi1>
    %50 = arith.extui %49 : vector<8x32xi1> to vector<8x32xi32>
    %51 = arith.sitofp %50 : vector<8x32xi32> to vector<8x32xf32>
    %c24_i32_9 = arith.constant 24 : i32
    %52 = vector.broadcast %c24_i32_9 : i32 to vector<8x32xi32>
    %53 = arith.cmpi sge, %30, %52 : vector<8x32xi32>
    %c32_i32_10 = arith.constant 32 : i32
    %54 = vector.broadcast %c32_i32_10 : i32 to vector<8x32xi32>
    %55 = arith.cmpi slt, %30, %54 : vector<8x32xi32>
    %56 = arith.andi %53, %55 : vector<8x32xi1>
    %57 = arith.extui %56 : vector<8x32xi1> to vector<8x32xi32>
    %58 = arith.sitofp %57 : vector<8x32xi32> to vector<8x32xf32>
    %59 = tpu.concatenate %37, %44, %51, %58 in 0 : vector<8x32xf32>, vector<8x32xf32>, vector<8x32xf32>, vector<8x32xf32> -> vector<32x32xf32>
    %60 = tpu.iota {dimensions = array<i32: 1>} : vector<1x8xi32>
    %c7_i32 = arith.constant 7 : i32
    %61 = vector.broadcast %c7_i32 : i32 to vector<1x8xi32>
    %62 = arith.cmpi slt, %60, %61 : vector<1x8xi32>
    %cst = arith.constant 0.000000e+00 : f32
    %cst_11 = arith.constant -1.000000e+09 : f32
    %63 = vector.broadcast %cst : f32 to vector<1x8xf32>
    %64 = vector.broadcast %cst_11 : f32 to vector<1x8xf32>
    %65 = arith.select %62, %63, %64 : vector<1x8xi1>, vector<1x8xf32>
    %66 = tpu.iota {dimensions = array<i32: 0>} : vector<8x8xi32>
    %67 = tpu.iota {dimensions = array<i32: 1>} : vector<8x8xi32>
    %68 = arith.cmpi sge, %66, %67 : vector<8x8xi32>
    %cst_12 = arith.constant 0.000000e+00 : f32
    %cst_13 = arith.constant -1.000000e+09 : f32
    %69 = vector.broadcast %cst_12 : f32 to vector<8x8xf32>
    %70 = vector.broadcast %cst_13 : f32 to vector<8x8xf32>
    %71 = arith.select %68, %69, %70 : vector<8x8xi1>, vector<8x8xf32>
    %72 = tpu.concatenate %71, %71, %71, %71 in 0 : vector<8x8xf32>, vector<8x8xf32>, vector<8x8xf32>, vector<8x8xf32> -> vector<32x8xf32>
    %c0 = arith.constant 0 : index
    %c0_14 = arith.constant 0 : index
    %c0_15 = arith.constant 0 : index
    %73 = vector.load %arg1[%c0, %c0_14, %c0_15] : memref<1x8x55xf32, #tpu.memory_space<vmem>>, vector<1x8x55xf32>
    %74 = vector.shape_cast %73 : vector<1x8x55xf32> to vector<8x55xf32>
    %c0_16 = arith.constant 0 : index
    %c0_17 = arith.constant 0 : index
    %75 = vector.load %arg5[%c0_16, %c0_17] : memref<55x32xf32, #tpu.memory_space<vmem>>, vector<55x32xf32>
    %c0_18 = arith.constant 0 : index
    %c0_19 = arith.constant 0 : index
    %76 = vector.load %arg6[%c0_18, %c0_19] : memref<1x32xf32, #tpu.memory_space<vmem>>, vector<1x32xf32>
    %cst_20 = arith.constant dense<0.000000e+00> : vector<8x32xf32>
    %77 = tpu.matmul %74, %75, %cst_20 {dimension_numbers = #tpu.dot_dimension_numbers<[1], [0], [0], [1], [0, 0, 1, 1], [], []>} : vector<8x55xf32>, vector<55x32xf32>, vector<8x32xf32> -> vector<8x32xf32>
    %78 = vector.broadcast %76 : vector<1x32xf32> to vector<8x32xf32>
    %79 = arith.addf %77, %78 : vector<8x32xf32>
    %cst_21 = arith.constant 5.65685415 : f32
    %80 = vector.broadcast %cst_21 : f32 to vector<8x32xf32>
    %81 = arith.mulf %79, %80 : vector<8x32xf32>
    %c0_22 = arith.constant 0 : index
    %c0_23 = arith.constant 0 : index
    %82 = vector.load %arg3[%c0_22, %c0_23] : memref<8x32xf32, #tpu.memory_space<vmem>>, vector<8x32xf32>
    %83 = arith.addf %81, %82 : vector<8x32xf32>
    %c0_24 = arith.constant 0 : index
    %c0_25 = arith.constant 0 : index
    %c0_26 = arith.constant 0 : index
    %84 = vector.load %arg9[%c0_24, %c0_25, %c0_26] : memref<2x32x32xf32, #tpu.memory_space<vmem>>, vector<1x32x32xf32>
    %85 = vector.shape_cast %84 : vector<1x32x32xf32> to vector<32x32xf32>
    %c0_27 = arith.constant 0 : index
    %c0_28 = arith.constant 0 : index
    %c0_29 = arith.constant 0 : index
    %86 = vector.load %arg10[%c0_27, %c0_28, %c0_29] : memref<2x1x32xf32, #tpu.memory_space<vmem>>, vector<1x1x32xf32>
    %87 = vector.shape_cast %86 : vector<1x1x32xf32> to vector<1x32xf32>
    %cst_30 = arith.constant dense<0.000000e+00> : vector<8x32xf32>
    %88 = tpu.matmul %83, %85, %cst_30 {dimension_numbers = #tpu.dot_dimension_numbers<[1], [0], [0], [1], [0, 0, 1, 1], [], []>} : vector<8x32xf32>, vector<32x32xf32>, vector<8x32xf32> -> vector<8x32xf32>
    %89 = vector.broadcast %87 : vector<1x32xf32> to vector<8x32xf32>
    %90 = arith.addf %88, %89 : vector<8x32xf32>
    %c0_31 = arith.constant 0 : index
    %c0_32 = arith.constant 0 : index
    %c0_33 = arith.constant 0 : index
    %91 = vector.load %arg11[%c0_31, %c0_32, %c0_33] : memref<2x32x32xf32, #tpu.memory_space<vmem>>, vector<1x32x32xf32>
    %92 = vector.shape_cast %91 : vector<1x32x32xf32> to vector<32x32xf32>
    %c0_34 = arith.constant 0 : index
    %c0_35 = arith.constant 0 : index
    %c0_36 = arith.constant 0 : index
    %93 = vector.load %arg12[%c0_34, %c0_35, %c0_36] : memref<2x1x32xf32, #tpu.memory_space<vmem>>, vector<1x1x32xf32>
    %94 = vector.shape_cast %93 : vector<1x1x32xf32> to vector<1x32xf32>
    %cst_37 = arith.constant dense<0.000000e+00> : vector<8x32xf32>
    %95 = tpu.matmul %83, %92, %cst_37 {dimension_numbers = #tpu.dot_dimension_numbers<[1], [0], [0], [1], [0, 0, 1, 1], [], []>} : vector<8x32xf32>, vector<32x32xf32>, vector<8x32xf32> -> vector<8x32xf32>
    %96 = vector.broadcast %94 : vector<1x32xf32> to vector<8x32xf32>
    %97 = arith.addf %95, %96 : vector<8x32xf32>
    %c0_38 = arith.constant 0 : index
    %c0_39 = arith.constant 0 : index
    %c0_40 = arith.constant 0 : index
    %98 = vector.load %arg13[%c0_38, %c0_39, %c0_40] : memref<2x32x32xf32, #tpu.memory_space<vmem>>, vector<1x32x32xf32>
    %99 = vector.shape_cast %98 : vector<1x32x32xf32> to vector<32x32xf32>
    %c0_41 = arith.constant 0 : index
    %c0_42 = arith.constant 0 : index
    %c0_43 = arith.constant 0 : index
    %100 = vector.load %arg14[%c0_41, %c0_42, %c0_43] : memref<2x1x32xf32, #tpu.memory_space<vmem>>, vector<1x1x32xf32>
    %101 = vector.shape_cast %100 : vector<1x1x32xf32> to vector<1x32xf32>
    %cst_44 = arith.constant dense<0.000000e+00> : vector<8x32xf32>
    %102 = tpu.matmul %83, %99, %cst_44 {dimension_numbers = #tpu.dot_dimension_numbers<[1], [0], [0], [1], [0, 0, 1, 1], [], []>} : vector<8x32xf32>, vector<32x32xf32>, vector<8x32xf32> -> vector<8x32xf32>
    %103 = vector.broadcast %101 : vector<1x32xf32> to vector<8x32xf32>
    %104 = arith.addf %102, %103 : vector<8x32xf32>
    %c0_45 = arith.constant 0 : index
    %c0_46 = arith.constant 0 : index
    %c0_47 = arith.constant 0 : index
    %105 = vector.load %arg15[%c0_45, %c0_46, %c0_47] : memref<2x32x32xf32, #tpu.memory_space<vmem>>, vector<1x32x32xf32>
    %106 = vector.shape_cast %105 : vector<1x32x32xf32> to vector<32x32xf32>
    %c0_48 = arith.constant 0 : index
    %c0_49 = arith.constant 0 : index
    %c0_50 = arith.constant 0 : index
    %107 = vector.load %arg16[%c0_48, %c0_49, %c0_50] : memref<2x1x32xf32, #tpu.memory_space<vmem>>, vector<1x1x32xf32>
    %108 = vector.shape_cast %107 : vector<1x1x32xf32> to vector<1x32xf32>
    %109 = tpu.concatenate %90, %90, %90, %90 in 0 : vector<8x32xf32>, vector<8x32xf32>, vector<8x32xf32>, vector<8x32xf32> -> vector<32x32xf32>
    %110 = arith.mulf %109, %29 : vector<32x32xf32>
    %cst_51 = arith.constant dense<0.000000e+00> : vector<32x8xf32>
    %111 = tpu.matmul %110, %97, %cst_51 {dimension_numbers = #tpu.dot_dimension_numbers<[1], [1], [0], [0], [0, 0, 1, 0], [], []>} : vector<32x32xf32>, vector<8x32xf32>, vector<32x8xf32> -> vector<32x8xf32>
    %cst_52 = arith.constant 0.353553385 : f32
    %112 = vector.broadcast %cst_52 : f32 to vector<32x8xf32>
    %113 = arith.mulf %111, %112 : vector<32x8xf32>
    %114 = vector.broadcast %65 : vector<1x8xf32> to vector<32x8xf32>
    %115 = arith.addf %113, %114 : vector<32x8xf32>
    %cst_53 = arith.constant dense<0xFF800000> : vector<32xf32>
    %116 = vector.multi_reduction <maximumf>, %115, %cst_53 [1] : vector<32x8xf32> to vector<32xf32>
    %117 = vector.shape_cast %116 : vector<32xf32> to vector<32x1xf32>
    %118 = vector.broadcast %117 : vector<32x1xf32> to vector<32x8xf32>
    %119 = arith.subf %115, %118 : vector<32x8xf32>
    %120 = math.exp %119 : vector<32x8xf32>
    %cst_54 = arith.constant dense<0.000000e+00> : vector<32xf32>
    %121 = vector.multi_reduction <add>, %120, %cst_54 [1] : vector<32x8xf32> to vector<32xf32>
    %122 = vector.shape_cast %121 : vector<32xf32> to vector<32x1xf32>
    %123 = vector.broadcast %122 : vector<32x1xf32> to vector<32x8xf32>
    %124 = arith.divf %120, %123 : vector<32x8xf32>
    %cst_55 = arith.constant dense<0.000000e+00> : vector<32x32xf32>
    %125 = tpu.matmul %124, %104, %cst_55 {dimension_numbers = #tpu.dot_dimension_numbers<[1], [0], [0], [1], [0, 0, 1, 1], [], []>} : vector<32x8xf32>, vector<8x32xf32>, vector<32x32xf32> -> vector<32x32xf32>
    %126 = arith.mulf %125, %29 : vector<32x32xf32>
    %127 = vector.extract_strided_slice %126 {offsets = [0, 0], sizes = [8, 32], strides = [1, 1]} : vector<32x32xf32> to vector<8x32xf32>
    %128 = vector.extract_strided_slice %126 {offsets = [8, 0], sizes = [8, 32], strides = [1, 1]} : vector<32x32xf32> to vector<8x32xf32>
    %129 = arith.addf %127, %128 : vector<8x32xf32>
    %130 = vector.extract_strided_slice %126 {offsets = [16, 0], sizes = [8, 32], strides = [1, 1]} : vector<32x32xf32> to vector<8x32xf32>
    %131 = arith.addf %129, %130 : vector<8x32xf32>
    %132 = vector.extract_strided_slice %126 {offsets = [24, 0], sizes = [8, 32], strides = [1, 1]} : vector<32x32xf32> to vector<8x32xf32>
    %133 = arith.addf %131, %132 : vector<8x32xf32>
    %cst_56 = arith.constant dense<0.000000e+00> : vector<8x32xf32>
    %134 = tpu.matmul %133, %106, %cst_56 {dimension_numbers = #tpu.dot_dimension_numbers<[1], [0], [0], [1], [0, 0, 1, 1], [], []>} : vector<8x32xf32>, vector<32x32xf32>, vector<8x32xf32> -> vector<8x32xf32>
    %135 = vector.broadcast %108 : vector<1x32xf32> to vector<8x32xf32>
    %136 = arith.addf %134, %135 : vector<8x32xf32>
    %137 = arith.addf %83, %136 : vector<8x32xf32>
    %c0_57 = arith.constant 0 : index
    %c0_58 = arith.constant 0 : index
    %c0_59 = arith.constant 0 : index
    %138 = vector.load %arg21[%c0_57, %c0_58, %c0_59] : memref<2x1x32xf32, #tpu.memory_space<vmem>>, vector<1x1x32xf32>
    %139 = vector.shape_cast %138 : vector<1x1x32xf32> to vector<1x32xf32>
    %c0_60 = arith.constant 0 : index
    %c0_61 = arith.constant 0 : index
    %c0_62 = arith.constant 0 : index
    %140 = vector.load %arg22[%c0_60, %c0_61, %c0_62] : memref<2x1x32xf32, #tpu.memory_space<vmem>>, vector<1x1x32xf32>
    %141 = vector.shape_cast %140 : vector<1x1x32xf32> to vector<1x32xf32>
    %cst_63 = arith.constant dense<0.000000e+00> : vector<8xf32>
    %142 = vector.multi_reduction <add>, %137, %cst_63 [1] : vector<8x32xf32> to vector<8xf32>
    %143 = vector.shape_cast %142 : vector<8xf32> to vector<8x1xf32>
    %cst_64 = arith.constant 3.200000e+01 : f32
    %144 = vector.broadcast %cst_64 : f32 to vector<8x1xf32>
    %145 = arith.divf %143, %144 : vector<8x1xf32>
    %146 = vector.broadcast %145 : vector<8x1xf32> to vector<8x32xf32>
    %147 = arith.subf %137, %146 : vector<8x32xf32>
    %148 = arith.mulf %147, %147 : vector<8x32xf32>
    %cst_65 = arith.constant dense<0.000000e+00> : vector<8xf32>
    %149 = vector.multi_reduction <add>, %148, %cst_65 [1] : vector<8x32xf32> to vector<8xf32>
    %150 = vector.shape_cast %149 : vector<8xf32> to vector<8x1xf32>
    %cst_66 = arith.constant 3.200000e+01 : f32
    %151 = vector.broadcast %cst_66 : f32 to vector<8x1xf32>
    %152 = arith.divf %150, %151 : vector<8x1xf32>
    %cst_67 = arith.constant 9.99999974E-6 : f32
    %153 = vector.broadcast %cst_67 : f32 to vector<8x1xf32>
    %154 = arith.addf %152, %153 : vector<8x1xf32>
    %155 = math.rsqrt %154 : vector<8x1xf32>
    %156 = vector.broadcast %155 : vector<8x1xf32> to vector<8x32xf32>
    %157 = arith.mulf %147, %156 : vector<8x32xf32>
    %158 = vector.broadcast %139 : vector<1x32xf32> to vector<8x32xf32>
    %159 = arith.mulf %157, %158 : vector<8x32xf32>
    %160 = vector.broadcast %141 : vector<1x32xf32> to vector<8x32xf32>
    %161 = arith.addf %159, %160 : vector<8x32xf32>
    %c0_68 = arith.constant 0 : index
    %c0_69 = arith.constant 0 : index
    %c0_70 = arith.constant 0 : index
    %162 = vector.load %arg17[%c0_68, %c0_69, %c0_70] : memref<2x32x32xf32, #tpu.memory_space<vmem>>, vector<1x32x32xf32>
    %163 = vector.shape_cast %162 : vector<1x32x32xf32> to vector<32x32xf32>
    %c0_71 = arith.constant 0 : index
    %c0_72 = arith.constant 0 : index
    %c0_73 = arith.constant 0 : index
    %164 = vector.load %arg18[%c0_71, %c0_72, %c0_73] : memref<2x1x32xf32, #tpu.memory_space<vmem>>, vector<1x1x32xf32>
    %165 = vector.shape_cast %164 : vector<1x1x32xf32> to vector<1x32xf32>
    %cst_74 = arith.constant dense<0.000000e+00> : vector<8x32xf32>
    %166 = tpu.matmul %161, %163, %cst_74 {dimension_numbers = #tpu.dot_dimension_numbers<[1], [0], [0], [1], [0, 0, 1, 1], [], []>} : vector<8x32xf32>, vector<32x32xf32>, vector<8x32xf32> -> vector<8x32xf32>
    %167 = vector.broadcast %165 : vector<1x32xf32> to vector<8x32xf32>
    %168 = arith.addf %166, %167 : vector<8x32xf32>
    %cst_75 = arith.constant 0.000000e+00 : f32
    %169 = vector.broadcast %cst_75 : f32 to vector<8x32xf32>
    %170 = arith.maximumf %168, %169 : vector<8x32xf32>
    %c0_76 = arith.constant 0 : index
    %c0_77 = arith.constant 0 : index
    %c0_78 = arith.constant 0 : index
    %171 = vector.load %arg19[%c0_76, %c0_77, %c0_78] : memref<2x32x32xf32, #tpu.memory_space<vmem>>, vector<1x32x32xf32>
    %172 = vector.shape_cast %171 : vector<1x32x32xf32> to vector<32x32xf32>
    %c0_79 = arith.constant 0 : index
    %c0_80 = arith.constant 0 : index
    %c0_81 = arith.constant 0 : index
    %173 = vector.load %arg20[%c0_79, %c0_80, %c0_81] : memref<2x1x32xf32, #tpu.memory_space<vmem>>, vector<1x1x32xf32>
    %174 = vector.shape_cast %173 : vector<1x1x32xf32> to vector<1x32xf32>
    %cst_82 = arith.constant dense<0.000000e+00> : vector<8x32xf32>
    %175 = tpu.matmul %170, %172, %cst_82 {dimension_numbers = #tpu.dot_dimension_numbers<[1], [0], [0], [1], [0, 0, 1, 1], [], []>} : vector<8x32xf32>, vector<32x32xf32>, vector<8x32xf32> -> vector<8x32xf32>
    %176 = vector.broadcast %174 : vector<1x32xf32> to vector<8x32xf32>
    %177 = arith.addf %175, %176 : vector<8x32xf32>
    %178 = arith.addf %161, %177 : vector<8x32xf32>
    %c0_83 = arith.constant 0 : index
    %c0_84 = arith.constant 0 : index
    %c0_85 = arith.constant 0 : index
    %179 = vector.load %arg23[%c0_83, %c0_84, %c0_85] : memref<2x1x32xf32, #tpu.memory_space<vmem>>, vector<1x1x32xf32>
    %180 = vector.shape_cast %179 : vector<1x1x32xf32> to vector<1x32xf32>
    %c0_86 = arith.constant 0 : index
    %c0_87 = arith.constant 0 : index
    %c0_88 = arith.constant 0 : index
    %181 = vector.load %arg24[%c0_86, %c0_87, %c0_88] : memref<2x1x32xf32, #tpu.memory_space<vmem>>, vector<1x1x32xf32>
    %182 = vector.shape_cast %181 : vector<1x1x32xf32> to vector<1x32xf32>
    %cst_89 = arith.constant dense<0.000000e+00> : vector<8xf32>
    %183 = vector.multi_reduction <add>, %178, %cst_89 [1] : vector<8x32xf32> to vector<8xf32>
    %184 = vector.shape_cast %183 : vector<8xf32> to vector<8x1xf32>
    %cst_90 = arith.constant 3.200000e+01 : f32
    %185 = vector.broadcast %cst_90 : f32 to vector<8x1xf32>
    %186 = arith.divf %184, %185 : vector<8x1xf32>
    %187 = vector.broadcast %186 : vector<8x1xf32> to vector<8x32xf32>
    %188 = arith.subf %178, %187 : vector<8x32xf32>
    %189 = arith.mulf %188, %188 : vector<8x32xf32>
    %cst_91 = arith.constant dense<0.000000e+00> : vector<8xf32>
    %190 = vector.multi_reduction <add>, %189, %cst_91 [1] : vector<8x32xf32> to vector<8xf32>
    %191 = vector.shape_cast %190 : vector<8xf32> to vector<8x1xf32>
    %cst_92 = arith.constant 3.200000e+01 : f32
    %192 = vector.broadcast %cst_92 : f32 to vector<8x1xf32>
    %193 = arith.divf %191, %192 : vector<8x1xf32>
    %cst_93 = arith.constant 9.99999974E-6 : f32
    %194 = vector.broadcast %cst_93 : f32 to vector<8x1xf32>
    %195 = arith.addf %193, %194 : vector<8x1xf32>
    %196 = math.rsqrt %195 : vector<8x1xf32>
    %197 = vector.broadcast %196 : vector<8x1xf32> to vector<8x32xf32>
    %198 = arith.mulf %188, %197 : vector<8x32xf32>
    %199 = vector.broadcast %180 : vector<1x32xf32> to vector<8x32xf32>
    %200 = arith.mulf %198, %199 : vector<8x32xf32>
    %201 = vector.broadcast %182 : vector<1x32xf32> to vector<8x32xf32>
    %202 = arith.addf %200, %201 : vector<8x32xf32>
    %c1 = arith.constant 1 : index
    %c0_94 = arith.constant 0 : index
    %c0_95 = arith.constant 0 : index
    %203 = vector.load %arg9[%c1, %c0_94, %c0_95] : memref<2x32x32xf32, #tpu.memory_space<vmem>>, vector<1x32x32xf32>
    %204 = vector.shape_cast %203 : vector<1x32x32xf32> to vector<32x32xf32>
    %c1_96 = arith.constant 1 : index
    %c0_97 = arith.constant 0 : index
    %c0_98 = arith.constant 0 : index
    %205 = vector.load %arg10[%c1_96, %c0_97, %c0_98] : memref<2x1x32xf32, #tpu.memory_space<vmem>>, vector<1x1x32xf32>
    %206 = vector.shape_cast %205 : vector<1x1x32xf32> to vector<1x32xf32>
    %cst_99 = arith.constant dense<0.000000e+00> : vector<8x32xf32>
    %207 = tpu.matmul %202, %204, %cst_99 {dimension_numbers = #tpu.dot_dimension_numbers<[1], [0], [0], [1], [0, 0, 1, 1], [], []>} : vector<8x32xf32>, vector<32x32xf32>, vector<8x32xf32> -> vector<8x32xf32>
    %208 = vector.broadcast %206 : vector<1x32xf32> to vector<8x32xf32>
    %209 = arith.addf %207, %208 : vector<8x32xf32>
    %c1_100 = arith.constant 1 : index
    %c0_101 = arith.constant 0 : index
    %c0_102 = arith.constant 0 : index
    %210 = vector.load %arg11[%c1_100, %c0_101, %c0_102] : memref<2x32x32xf32, #tpu.memory_space<vmem>>, vector<1x32x32xf32>
    %211 = vector.shape_cast %210 : vector<1x32x32xf32> to vector<32x32xf32>
    %c1_103 = arith.constant 1 : index
    %c0_104 = arith.constant 0 : index
    %c0_105 = arith.constant 0 : index
    %212 = vector.load %arg12[%c1_103, %c0_104, %c0_105] : memref<2x1x32xf32, #tpu.memory_space<vmem>>, vector<1x1x32xf32>
    %213 = vector.shape_cast %212 : vector<1x1x32xf32> to vector<1x32xf32>
    %cst_106 = arith.constant dense<0.000000e+00> : vector<8x32xf32>
    %214 = tpu.matmul %202, %211, %cst_106 {dimension_numbers = #tpu.dot_dimension_numbers<[1], [0], [0], [1], [0, 0, 1, 1], [], []>} : vector<8x32xf32>, vector<32x32xf32>, vector<8x32xf32> -> vector<8x32xf32>
    %215 = vector.broadcast %213 : vector<1x32xf32> to vector<8x32xf32>
    %216 = arith.addf %214, %215 : vector<8x32xf32>
    %c1_107 = arith.constant 1 : index
    %c0_108 = arith.constant 0 : index
    %c0_109 = arith.constant 0 : index
    %217 = vector.load %arg13[%c1_107, %c0_108, %c0_109] : memref<2x32x32xf32, #tpu.memory_space<vmem>>, vector<1x32x32xf32>
    %218 = vector.shape_cast %217 : vector<1x32x32xf32> to vector<32x32xf32>
    %c1_110 = arith.constant 1 : index
    %c0_111 = arith.constant 0 : index
    %c0_112 = arith.constant 0 : index
    %219 = vector.load %arg14[%c1_110, %c0_111, %c0_112] : memref<2x1x32xf32, #tpu.memory_space<vmem>>, vector<1x1x32xf32>
    %220 = vector.shape_cast %219 : vector<1x1x32xf32> to vector<1x32xf32>
    %cst_113 = arith.constant dense<0.000000e+00> : vector<8x32xf32>
    %221 = tpu.matmul %202, %218, %cst_113 {dimension_numbers = #tpu.dot_dimension_numbers<[1], [0], [0], [1], [0, 0, 1, 1], [], []>} : vector<8x32xf32>, vector<32x32xf32>, vector<8x32xf32> -> vector<8x32xf32>
    %222 = vector.broadcast %220 : vector<1x32xf32> to vector<8x32xf32>
    %223 = arith.addf %221, %222 : vector<8x32xf32>
    %c1_114 = arith.constant 1 : index
    %c0_115 = arith.constant 0 : index
    %c0_116 = arith.constant 0 : index
    %224 = vector.load %arg15[%c1_114, %c0_115, %c0_116] : memref<2x32x32xf32, #tpu.memory_space<vmem>>, vector<1x32x32xf32>
    %225 = vector.shape_cast %224 : vector<1x32x32xf32> to vector<32x32xf32>
    %c1_117 = arith.constant 1 : index
    %c0_118 = arith.constant 0 : index
    %c0_119 = arith.constant 0 : index
    %226 = vector.load %arg16[%c1_117, %c0_118, %c0_119] : memref<2x1x32xf32, #tpu.memory_space<vmem>>, vector<1x1x32xf32>
    %227 = vector.shape_cast %226 : vector<1x1x32xf32> to vector<1x32xf32>
    %228 = tpu.concatenate %209, %209, %209, %209 in 0 : vector<8x32xf32>, vector<8x32xf32>, vector<8x32xf32>, vector<8x32xf32> -> vector<32x32xf32>
    %229 = arith.mulf %228, %29 : vector<32x32xf32>
    %cst_120 = arith.constant dense<0.000000e+00> : vector<32x8xf32>
    %230 = tpu.matmul %229, %216, %cst_120 {dimension_numbers = #tpu.dot_dimension_numbers<[1], [1], [0], [0], [0, 0, 1, 0], [], []>} : vector<32x32xf32>, vector<8x32xf32>, vector<32x8xf32> -> vector<32x8xf32>
    %cst_121 = arith.constant 0.353553385 : f32
    %231 = vector.broadcast %cst_121 : f32 to vector<32x8xf32>
    %232 = arith.mulf %230, %231 : vector<32x8xf32>
    %233 = vector.broadcast %65 : vector<1x8xf32> to vector<32x8xf32>
    %234 = arith.addf %232, %233 : vector<32x8xf32>
    %cst_122 = arith.constant dense<0xFF800000> : vector<32xf32>
    %235 = vector.multi_reduction <maximumf>, %234, %cst_122 [1] : vector<32x8xf32> to vector<32xf32>
    %236 = vector.shape_cast %235 : vector<32xf32> to vector<32x1xf32>
    %237 = vector.broadcast %236 : vector<32x1xf32> to vector<32x8xf32>
    %238 = arith.subf %234, %237 : vector<32x8xf32>
    %239 = math.exp %238 : vector<32x8xf32>
    %cst_123 = arith.constant dense<0.000000e+00> : vector<32xf32>
    %240 = vector.multi_reduction <add>, %239, %cst_123 [1] : vector<32x8xf32> to vector<32xf32>
    %241 = vector.shape_cast %240 : vector<32xf32> to vector<32x1xf32>
    %242 = vector.broadcast %241 : vector<32x1xf32> to vector<32x8xf32>
    %243 = arith.divf %239, %242 : vector<32x8xf32>
    %cst_124 = arith.constant dense<0.000000e+00> : vector<32x32xf32>
    %244 = tpu.matmul %243, %223, %cst_124 {dimension_numbers = #tpu.dot_dimension_numbers<[1], [0], [0], [1], [0, 0, 1, 1], [], []>} : vector<32x8xf32>, vector<8x32xf32>, vector<32x32xf32> -> vector<32x32xf32>
    %245 = arith.mulf %244, %29 : vector<32x32xf32>
    %246 = vector.extract_strided_slice %245 {offsets = [0, 0], sizes = [8, 32], strides = [1, 1]} : vector<32x32xf32> to vector<8x32xf32>
    %247 = vector.extract_strided_slice %245 {offsets = [8, 0], sizes = [8, 32], strides = [1, 1]} : vector<32x32xf32> to vector<8x32xf32>
    %248 = arith.addf %246, %247 : vector<8x32xf32>
    %249 = vector.extract_strided_slice %245 {offsets = [16, 0], sizes = [8, 32], strides = [1, 1]} : vector<32x32xf32> to vector<8x32xf32>
    %250 = arith.addf %248, %249 : vector<8x32xf32>
    %251 = vector.extract_strided_slice %245 {offsets = [24, 0], sizes = [8, 32], strides = [1, 1]} : vector<32x32xf32> to vector<8x32xf32>
    %252 = arith.addf %250, %251 : vector<8x32xf32>
    %cst_125 = arith.constant dense<0.000000e+00> : vector<8x32xf32>
    %253 = tpu.matmul %252, %225, %cst_125 {dimension_numbers = #tpu.dot_dimension_numbers<[1], [0], [0], [1], [0, 0, 1, 1], [], []>} : vector<8x32xf32>, vector<32x32xf32>, vector<8x32xf32> -> vector<8x32xf32>
    %254 = vector.broadcast %227 : vector<1x32xf32> to vector<8x32xf32>
    %255 = arith.addf %253, %254 : vector<8x32xf32>
    %256 = arith.addf %202, %255 : vector<8x32xf32>
    %c1_126 = arith.constant 1 : index
    %c0_127 = arith.constant 0 : index
    %c0_128 = arith.constant 0 : index
    %257 = vector.load %arg21[%c1_126, %c0_127, %c0_128] : memref<2x1x32xf32, #tpu.memory_space<vmem>>, vector<1x1x32xf32>
    %258 = vector.shape_cast %257 : vector<1x1x32xf32> to vector<1x32xf32>
    %c1_129 = arith.constant 1 : index
    %c0_130 = arith.constant 0 : index
    %c0_131 = arith.constant 0 : index
    %259 = vector.load %arg22[%c1_129, %c0_130, %c0_131] : memref<2x1x32xf32, #tpu.memory_space<vmem>>, vector<1x1x32xf32>
    %260 = vector.shape_cast %259 : vector<1x1x32xf32> to vector<1x32xf32>
    %cst_132 = arith.constant dense<0.000000e+00> : vector<8xf32>
    %261 = vector.multi_reduction <add>, %256, %cst_132 [1] : vector<8x32xf32> to vector<8xf32>
    %262 = vector.shape_cast %261 : vector<8xf32> to vector<8x1xf32>
    %cst_133 = arith.constant 3.200000e+01 : f32
    %263 = vector.broadcast %cst_133 : f32 to vector<8x1xf32>
    %264 = arith.divf %262, %263 : vector<8x1xf32>
    %265 = vector.broadcast %264 : vector<8x1xf32> to vector<8x32xf32>
    %266 = arith.subf %256, %265 : vector<8x32xf32>
    %267 = arith.mulf %266, %266 : vector<8x32xf32>
    %cst_134 = arith.constant dense<0.000000e+00> : vector<8xf32>
    %268 = vector.multi_reduction <add>, %267, %cst_134 [1] : vector<8x32xf32> to vector<8xf32>
    %269 = vector.shape_cast %268 : vector<8xf32> to vector<8x1xf32>
    %cst_135 = arith.constant 3.200000e+01 : f32
    %270 = vector.broadcast %cst_135 : f32 to vector<8x1xf32>
    %271 = arith.divf %269, %270 : vector<8x1xf32>
    %cst_136 = arith.constant 9.99999974E-6 : f32
    %272 = vector.broadcast %cst_136 : f32 to vector<8x1xf32>
    %273 = arith.addf %271, %272 : vector<8x1xf32>
    %274 = math.rsqrt %273 : vector<8x1xf32>
    %275 = vector.broadcast %274 : vector<8x1xf32> to vector<8x32xf32>
    %276 = arith.mulf %266, %275 : vector<8x32xf32>
    %277 = vector.broadcast %258 : vector<1x32xf32> to vector<8x32xf32>
    %278 = arith.mulf %276, %277 : vector<8x32xf32>
    %279 = vector.broadcast %260 : vector<1x32xf32> to vector<8x32xf32>
    %280 = arith.addf %278, %279 : vector<8x32xf32>
    %c1_137 = arith.constant 1 : index
    %c0_138 = arith.constant 0 : index
    %c0_139 = arith.constant 0 : index
    %281 = vector.load %arg17[%c1_137, %c0_138, %c0_139] : memref<2x32x32xf32, #tpu.memory_space<vmem>>, vector<1x32x32xf32>
    %282 = vector.shape_cast %281 : vector<1x32x32xf32> to vector<32x32xf32>
    %c1_140 = arith.constant 1 : index
    %c0_141 = arith.constant 0 : index
    %c0_142 = arith.constant 0 : index
    %283 = vector.load %arg18[%c1_140, %c0_141, %c0_142] : memref<2x1x32xf32, #tpu.memory_space<vmem>>, vector<1x1x32xf32>
    %284 = vector.shape_cast %283 : vector<1x1x32xf32> to vector<1x32xf32>
    %cst_143 = arith.constant dense<0.000000e+00> : vector<8x32xf32>
    %285 = tpu.matmul %280, %282, %cst_143 {dimension_numbers = #tpu.dot_dimension_numbers<[1], [0], [0], [1], [0, 0, 1, 1], [], []>} : vector<8x32xf32>, vector<32x32xf32>, vector<8x32xf32> -> vector<8x32xf32>
    %286 = vector.broadcast %284 : vector<1x32xf32> to vector<8x32xf32>
    %287 = arith.addf %285, %286 : vector<8x32xf32>
    %cst_144 = arith.constant 0.000000e+00 : f32
    %288 = vector.broadcast %cst_144 : f32 to vector<8x32xf32>
    %289 = arith.maximumf %287, %288 : vector<8x32xf32>
    %c1_145 = arith.constant 1 : index
    %c0_146 = arith.constant 0 : index
    %c0_147 = arith.constant 0 : index
    %290 = vector.load %arg19[%c1_145, %c0_146, %c0_147] : memref<2x32x32xf32, #tpu.memory_space<vmem>>, vector<1x32x32xf32>
    %291 = vector.shape_cast %290 : vector<1x32x32xf32> to vector<32x32xf32>
    %c1_148 = arith.constant 1 : index
    %c0_149 = arith.constant 0 : index
    %c0_150 = arith.constant 0 : index
    %292 = vector.load %arg20[%c1_148, %c0_149, %c0_150] : memref<2x1x32xf32, #tpu.memory_space<vmem>>, vector<1x1x32xf32>
    %293 = vector.shape_cast %292 : vector<1x1x32xf32> to vector<1x32xf32>
    %cst_151 = arith.constant dense<0.000000e+00> : vector<8x32xf32>
    %294 = tpu.matmul %289, %291, %cst_151 {dimension_numbers = #tpu.dot_dimension_numbers<[1], [0], [0], [1], [0, 0, 1, 1], [], []>} : vector<8x32xf32>, vector<32x32xf32>, vector<8x32xf32> -> vector<8x32xf32>
    %295 = vector.broadcast %293 : vector<1x32xf32> to vector<8x32xf32>
    %296 = arith.addf %294, %295 : vector<8x32xf32>
    %297 = arith.addf %280, %296 : vector<8x32xf32>
    %c1_152 = arith.constant 1 : index
    %c0_153 = arith.constant 0 : index
    %c0_154 = arith.constant 0 : index
    %298 = vector.load %arg23[%c1_152, %c0_153, %c0_154] : memref<2x1x32xf32, #tpu.memory_space<vmem>>, vector<1x1x32xf32>
    %299 = vector.shape_cast %298 : vector<1x1x32xf32> to vector<1x32xf32>
    %c1_155 = arith.constant 1 : index
    %c0_156 = arith.constant 0 : index
    %c0_157 = arith.constant 0 : index
    %300 = vector.load %arg24[%c1_155, %c0_156, %c0_157] : memref<2x1x32xf32, #tpu.memory_space<vmem>>, vector<1x1x32xf32>
    %301 = vector.shape_cast %300 : vector<1x1x32xf32> to vector<1x32xf32>
    %cst_158 = arith.constant dense<0.000000e+00> : vector<8xf32>
    %302 = vector.multi_reduction <add>, %297, %cst_158 [1] : vector<8x32xf32> to vector<8xf32>
    %303 = vector.shape_cast %302 : vector<8xf32> to vector<8x1xf32>
    %cst_159 = arith.constant 3.200000e+01 : f32
    %304 = vector.broadcast %cst_159 : f32 to vector<8x1xf32>
    %305 = arith.divf %303, %304 : vector<8x1xf32>
    %306 = vector.broadcast %305 : vector<8x1xf32> to vector<8x32xf32>
    %307 = arith.subf %297, %306 : vector<8x32xf32>
    %308 = arith.mulf %307, %307 : vector<8x32xf32>
    %cst_160 = arith.constant dense<0.000000e+00> : vector<8xf32>
    %309 = vector.multi_reduction <add>, %308, %cst_160 [1] : vector<8x32xf32> to vector<8xf32>
    %310 = vector.shape_cast %309 : vector<8xf32> to vector<8x1xf32>
    %cst_161 = arith.constant 3.200000e+01 : f32
    %311 = vector.broadcast %cst_161 : f32 to vector<8x1xf32>
    %312 = arith.divf %310, %311 : vector<8x1xf32>
    %cst_162 = arith.constant 9.99999974E-6 : f32
    %313 = vector.broadcast %cst_162 : f32 to vector<8x1xf32>
    %314 = arith.addf %312, %313 : vector<8x1xf32>
    %315 = math.rsqrt %314 : vector<8x1xf32>
    %316 = vector.broadcast %315 : vector<8x1xf32> to vector<8x32xf32>
    %317 = arith.mulf %307, %316 : vector<8x32xf32>
    %318 = vector.broadcast %299 : vector<1x32xf32> to vector<8x32xf32>
    %319 = arith.mulf %317, %318 : vector<8x32xf32>
    %320 = vector.broadcast %301 : vector<1x32xf32> to vector<8x32xf32>
    %321 = arith.addf %319, %320 : vector<8x32xf32>
    %c0_163 = arith.constant 0 : index
    %c0_164 = arith.constant 0 : index
    %322 = vector.load %arg51[%c0_163, %c0_164] : memref<1x32xf32, #tpu.memory_space<vmem>>, vector<1x32xf32>
    %c0_165 = arith.constant 0 : index
    %c0_166 = arith.constant 0 : index
    %323 = vector.load %arg52[%c0_165, %c0_166] : memref<1x32xf32, #tpu.memory_space<vmem>>, vector<1x32xf32>
    %cst_167 = arith.constant dense<0.000000e+00> : vector<8xf32>
    %324 = vector.multi_reduction <add>, %321, %cst_167 [1] : vector<8x32xf32> to vector<8xf32>
    %325 = vector.shape_cast %324 : vector<8xf32> to vector<8x1xf32>
    %cst_168 = arith.constant 3.200000e+01 : f32
    %326 = vector.broadcast %cst_168 : f32 to vector<8x1xf32>
    %327 = arith.divf %325, %326 : vector<8x1xf32>
    %328 = vector.broadcast %327 : vector<8x1xf32> to vector<8x32xf32>
    %329 = arith.subf %321, %328 : vector<8x32xf32>
    %330 = arith.mulf %329, %329 : vector<8x32xf32>
    %cst_169 = arith.constant dense<0.000000e+00> : vector<8xf32>
    %331 = vector.multi_reduction <add>, %330, %cst_169 [1] : vector<8x32xf32> to vector<8xf32>
    %332 = vector.shape_cast %331 : vector<8xf32> to vector<8x1xf32>
    %cst_170 = arith.constant 3.200000e+01 : f32
    %333 = vector.broadcast %cst_170 : f32 to vector<8x1xf32>
    %334 = arith.divf %332, %333 : vector<8x1xf32>
    %cst_171 = arith.constant 9.99999974E-6 : f32
    %335 = vector.broadcast %cst_171 : f32 to vector<8x1xf32>
    %336 = arith.addf %334, %335 : vector<8x1xf32>
    %337 = math.rsqrt %336 : vector<8x1xf32>
    %338 = vector.broadcast %337 : vector<8x1xf32> to vector<8x32xf32>
    %339 = arith.mulf %329, %338 : vector<8x32xf32>
    %340 = vector.broadcast %322 : vector<1x32xf32> to vector<8x32xf32>
    %341 = arith.mulf %339, %340 : vector<8x32xf32>
    %342 = vector.broadcast %323 : vector<1x32xf32> to vector<8x32xf32>
    %343 = arith.addf %341, %342 : vector<8x32xf32>
    %c0_172 = arith.constant 0 : index
    %c0_173 = arith.constant 0 : index
    %c0_174 = arith.constant 0 : index
    %344 = vector.load %arg2[%c0_172, %c0_173, %c0_174] : memref<1x8x55xf32, #tpu.memory_space<vmem>>, vector<1x8x55xf32>
    %345 = vector.shape_cast %344 : vector<1x8x55xf32> to vector<8x55xf32>
    %c0_175 = arith.constant 0 : index
    %c0_176 = arith.constant 0 : index
    %346 = vector.load %arg5[%c0_175, %c0_176] : memref<55x32xf32, #tpu.memory_space<vmem>>, vector<55x32xf32>
    %c0_177 = arith.constant 0 : index
    %c0_178 = arith.constant 0 : index
    %347 = vector.load %arg6[%c0_177, %c0_178] : memref<1x32xf32, #tpu.memory_space<vmem>>, vector<1x32xf32>
    %cst_179 = arith.constant dense<0.000000e+00> : vector<8x32xf32>
    %348 = tpu.matmul %345, %346, %cst_179 {dimension_numbers = #tpu.dot_dimension_numbers<[1], [0], [0], [1], [0, 0, 1, 1], [], []>} : vector<8x55xf32>, vector<55x32xf32>, vector<8x32xf32> -> vector<8x32xf32>
    %349 = vector.broadcast %347 : vector<1x32xf32> to vector<8x32xf32>
    %350 = arith.addf %348, %349 : vector<8x32xf32>
    %cst_180 = arith.constant 5.65685415 : f32
    %351 = vector.broadcast %cst_180 : f32 to vector<8x32xf32>
    %352 = arith.mulf %350, %351 : vector<8x32xf32>
    %c0_181 = arith.constant 0 : index
    %c0_182 = arith.constant 0 : index
    %353 = vector.load %arg4[%c0_181, %c0_182] : memref<8x32xf32, #tpu.memory_space<vmem>>, vector<8x32xf32>
    %354 = arith.addf %352, %353 : vector<8x32xf32>
    %c0_183 = arith.constant 0 : index
    %c0_184 = arith.constant 0 : index
    %c0_185 = arith.constant 0 : index
    %355 = vector.load %arg25[%c0_183, %c0_184, %c0_185] : memref<2x32x32xf32, #tpu.memory_space<vmem>>, vector<1x32x32xf32>
    %356 = vector.shape_cast %355 : vector<1x32x32xf32> to vector<32x32xf32>
    %c0_186 = arith.constant 0 : index
    %c0_187 = arith.constant 0 : index
    %c0_188 = arith.constant 0 : index
    %357 = vector.load %arg26[%c0_186, %c0_187, %c0_188] : memref<2x1x32xf32, #tpu.memory_space<vmem>>, vector<1x1x32xf32>
    %358 = vector.shape_cast %357 : vector<1x1x32xf32> to vector<1x32xf32>
    %cst_189 = arith.constant dense<0.000000e+00> : vector<8x32xf32>
    %359 = tpu.matmul %354, %356, %cst_189 {dimension_numbers = #tpu.dot_dimension_numbers<[1], [0], [0], [1], [0, 0, 1, 1], [], []>} : vector<8x32xf32>, vector<32x32xf32>, vector<8x32xf32> -> vector<8x32xf32>
    %360 = vector.broadcast %358 : vector<1x32xf32> to vector<8x32xf32>
    %361 = arith.addf %359, %360 : vector<8x32xf32>
    %c0_190 = arith.constant 0 : index
    %c0_191 = arith.constant 0 : index
    %c0_192 = arith.constant 0 : index
    %362 = vector.load %arg27[%c0_190, %c0_191, %c0_192] : memref<2x32x32xf32, #tpu.memory_space<vmem>>, vector<1x32x32xf32>
    %363 = vector.shape_cast %362 : vector<1x32x32xf32> to vector<32x32xf32>
    %c0_193 = arith.constant 0 : index
    %c0_194 = arith.constant 0 : index
    %c0_195 = arith.constant 0 : index
    %364 = vector.load %arg28[%c0_193, %c0_194, %c0_195] : memref<2x1x32xf32, #tpu.memory_space<vmem>>, vector<1x1x32xf32>
    %365 = vector.shape_cast %364 : vector<1x1x32xf32> to vector<1x32xf32>
    %cst_196 = arith.constant dense<0.000000e+00> : vector<8x32xf32>
    %366 = tpu.matmul %354, %363, %cst_196 {dimension_numbers = #tpu.dot_dimension_numbers<[1], [0], [0], [1], [0, 0, 1, 1], [], []>} : vector<8x32xf32>, vector<32x32xf32>, vector<8x32xf32> -> vector<8x32xf32>
    %367 = vector.broadcast %365 : vector<1x32xf32> to vector<8x32xf32>
    %368 = arith.addf %366, %367 : vector<8x32xf32>
    %c0_197 = arith.constant 0 : index
    %c0_198 = arith.constant 0 : index
    %c0_199 = arith.constant 0 : index
    %369 = vector.load %arg29[%c0_197, %c0_198, %c0_199] : memref<2x32x32xf32, #tpu.memory_space<vmem>>, vector<1x32x32xf32>
    %370 = vector.shape_cast %369 : vector<1x32x32xf32> to vector<32x32xf32>
    %c0_200 = arith.constant 0 : index
    %c0_201 = arith.constant 0 : index
    %c0_202 = arith.constant 0 : index
    %371 = vector.load %arg30[%c0_200, %c0_201, %c0_202] : memref<2x1x32xf32, #tpu.memory_space<vmem>>, vector<1x1x32xf32>
    %372 = vector.shape_cast %371 : vector<1x1x32xf32> to vector<1x32xf32>
    %cst_203 = arith.constant dense<0.000000e+00> : vector<8x32xf32>
    %373 = tpu.matmul %354, %370, %cst_203 {dimension_numbers = #tpu.dot_dimension_numbers<[1], [0], [0], [1], [0, 0, 1, 1], [], []>} : vector<8x32xf32>, vector<32x32xf32>, vector<8x32xf32> -> vector<8x32xf32>
    %374 = vector.broadcast %372 : vector<1x32xf32> to vector<8x32xf32>
    %375 = arith.addf %373, %374 : vector<8x32xf32>
    %c0_204 = arith.constant 0 : index
    %c0_205 = arith.constant 0 : index
    %c0_206 = arith.constant 0 : index
    %376 = vector.load %arg31[%c0_204, %c0_205, %c0_206] : memref<2x32x32xf32, #tpu.memory_space<vmem>>, vector<1x32x32xf32>
    %377 = vector.shape_cast %376 : vector<1x32x32xf32> to vector<32x32xf32>
    %c0_207 = arith.constant 0 : index
    %c0_208 = arith.constant 0 : index
    %c0_209 = arith.constant 0 : index
    %378 = vector.load %arg32[%c0_207, %c0_208, %c0_209] : memref<2x1x32xf32, #tpu.memory_space<vmem>>, vector<1x1x32xf32>
    %379 = vector.shape_cast %378 : vector<1x1x32xf32> to vector<1x32xf32>
    %380 = tpu.concatenate %361, %361, %361, %361 in 0 : vector<8x32xf32>, vector<8x32xf32>, vector<8x32xf32>, vector<8x32xf32> -> vector<32x32xf32>
    %381 = arith.mulf %380, %59 : vector<32x32xf32>
    %cst_210 = arith.constant dense<0.000000e+00> : vector<32x8xf32>
    %382 = tpu.matmul %381, %368, %cst_210 {dimension_numbers = #tpu.dot_dimension_numbers<[1], [1], [0], [0], [0, 0, 1, 0], [], []>} : vector<32x32xf32>, vector<8x32xf32>, vector<32x8xf32> -> vector<32x8xf32>
    %cst_211 = arith.constant 0.353553385 : f32
    %383 = vector.broadcast %cst_211 : f32 to vector<32x8xf32>
    %384 = arith.mulf %382, %383 : vector<32x8xf32>
    %385 = arith.addf %384, %72 : vector<32x8xf32>
    %cst_212 = arith.constant dense<0xFF800000> : vector<32xf32>
    %386 = vector.multi_reduction <maximumf>, %385, %cst_212 [1] : vector<32x8xf32> to vector<32xf32>
    %387 = vector.shape_cast %386 : vector<32xf32> to vector<32x1xf32>
    %388 = vector.broadcast %387 : vector<32x1xf32> to vector<32x8xf32>
    %389 = arith.subf %385, %388 : vector<32x8xf32>
    %390 = math.exp %389 : vector<32x8xf32>
    %cst_213 = arith.constant dense<0.000000e+00> : vector<32xf32>
    %391 = vector.multi_reduction <add>, %390, %cst_213 [1] : vector<32x8xf32> to vector<32xf32>
    %392 = vector.shape_cast %391 : vector<32xf32> to vector<32x1xf32>
    %393 = vector.broadcast %392 : vector<32x1xf32> to vector<32x8xf32>
    %394 = arith.divf %390, %393 : vector<32x8xf32>
    %cst_214 = arith.constant dense<0.000000e+00> : vector<32x32xf32>
    %395 = tpu.matmul %394, %375, %cst_214 {dimension_numbers = #tpu.dot_dimension_numbers<[1], [0], [0], [1], [0, 0, 1, 1], [], []>} : vector<32x8xf32>, vector<8x32xf32>, vector<32x32xf32> -> vector<32x32xf32>
    %396 = arith.mulf %395, %59 : vector<32x32xf32>
    %397 = vector.extract_strided_slice %396 {offsets = [0, 0], sizes = [8, 32], strides = [1, 1]} : vector<32x32xf32> to vector<8x32xf32>
    %398 = vector.extract_strided_slice %396 {offsets = [8, 0], sizes = [8, 32], strides = [1, 1]} : vector<32x32xf32> to vector<8x32xf32>
    %399 = arith.addf %397, %398 : vector<8x32xf32>
    %400 = vector.extract_strided_slice %396 {offsets = [16, 0], sizes = [8, 32], strides = [1, 1]} : vector<32x32xf32> to vector<8x32xf32>
    %401 = arith.addf %399, %400 : vector<8x32xf32>
    %402 = vector.extract_strided_slice %396 {offsets = [24, 0], sizes = [8, 32], strides = [1, 1]} : vector<32x32xf32> to vector<8x32xf32>
    %403 = arith.addf %401, %402 : vector<8x32xf32>
    %cst_215 = arith.constant dense<0.000000e+00> : vector<8x32xf32>
    %404 = tpu.matmul %403, %377, %cst_215 {dimension_numbers = #tpu.dot_dimension_numbers<[1], [0], [0], [1], [0, 0, 1, 1], [], []>} : vector<8x32xf32>, vector<32x32xf32>, vector<8x32xf32> -> vector<8x32xf32>
    %405 = vector.broadcast %379 : vector<1x32xf32> to vector<8x32xf32>
    %406 = arith.addf %404, %405 : vector<8x32xf32>
    %407 = arith.addf %354, %406 : vector<8x32xf32>
    %c0_216 = arith.constant 0 : index
    %c0_217 = arith.constant 0 : index
    %c0_218 = arith.constant 0 : index
    %408 = vector.load %arg45[%c0_216, %c0_217, %c0_218] : memref<2x1x32xf32, #tpu.memory_space<vmem>>, vector<1x1x32xf32>
    %409 = vector.shape_cast %408 : vector<1x1x32xf32> to vector<1x32xf32>
    %c0_219 = arith.constant 0 : index
    %c0_220 = arith.constant 0 : index
    %c0_221 = arith.constant 0 : index
    %410 = vector.load %arg46[%c0_219, %c0_220, %c0_221] : memref<2x1x32xf32, #tpu.memory_space<vmem>>, vector<1x1x32xf32>
    %411 = vector.shape_cast %410 : vector<1x1x32xf32> to vector<1x32xf32>
    %cst_222 = arith.constant dense<0.000000e+00> : vector<8xf32>
    %412 = vector.multi_reduction <add>, %407, %cst_222 [1] : vector<8x32xf32> to vector<8xf32>
    %413 = vector.shape_cast %412 : vector<8xf32> to vector<8x1xf32>
    %cst_223 = arith.constant 3.200000e+01 : f32
    %414 = vector.broadcast %cst_223 : f32 to vector<8x1xf32>
    %415 = arith.divf %413, %414 : vector<8x1xf32>
    %416 = vector.broadcast %415 : vector<8x1xf32> to vector<8x32xf32>
    %417 = arith.subf %407, %416 : vector<8x32xf32>
    %418 = arith.mulf %417, %417 : vector<8x32xf32>
    %cst_224 = arith.constant dense<0.000000e+00> : vector<8xf32>
    %419 = vector.multi_reduction <add>, %418, %cst_224 [1] : vector<8x32xf32> to vector<8xf32>
    %420 = vector.shape_cast %419 : vector<8xf32> to vector<8x1xf32>
    %cst_225 = arith.constant 3.200000e+01 : f32
    %421 = vector.broadcast %cst_225 : f32 to vector<8x1xf32>
    %422 = arith.divf %420, %421 : vector<8x1xf32>
    %cst_226 = arith.constant 9.99999974E-6 : f32
    %423 = vector.broadcast %cst_226 : f32 to vector<8x1xf32>
    %424 = arith.addf %422, %423 : vector<8x1xf32>
    %425 = math.rsqrt %424 : vector<8x1xf32>
    %426 = vector.broadcast %425 : vector<8x1xf32> to vector<8x32xf32>
    %427 = arith.mulf %417, %426 : vector<8x32xf32>
    %428 = vector.broadcast %409 : vector<1x32xf32> to vector<8x32xf32>
    %429 = arith.mulf %427, %428 : vector<8x32xf32>
    %430 = vector.broadcast %411 : vector<1x32xf32> to vector<8x32xf32>
    %431 = arith.addf %429, %430 : vector<8x32xf32>
    %c0_227 = arith.constant 0 : index
    %c0_228 = arith.constant 0 : index
    %c0_229 = arith.constant 0 : index
    %432 = vector.load %arg33[%c0_227, %c0_228, %c0_229] : memref<2x32x32xf32, #tpu.memory_space<vmem>>, vector<1x32x32xf32>
    %433 = vector.shape_cast %432 : vector<1x32x32xf32> to vector<32x32xf32>
    %c0_230 = arith.constant 0 : index
    %c0_231 = arith.constant 0 : index
    %c0_232 = arith.constant 0 : index
    %434 = vector.load %arg34[%c0_230, %c0_231, %c0_232] : memref<2x1x32xf32, #tpu.memory_space<vmem>>, vector<1x1x32xf32>
    %435 = vector.shape_cast %434 : vector<1x1x32xf32> to vector<1x32xf32>
    %cst_233 = arith.constant dense<0.000000e+00> : vector<8x32xf32>
    %436 = tpu.matmul %431, %433, %cst_233 {dimension_numbers = #tpu.dot_dimension_numbers<[1], [0], [0], [1], [0, 0, 1, 1], [], []>} : vector<8x32xf32>, vector<32x32xf32>, vector<8x32xf32> -> vector<8x32xf32>
    %437 = vector.broadcast %435 : vector<1x32xf32> to vector<8x32xf32>
    %438 = arith.addf %436, %437 : vector<8x32xf32>
    %c0_234 = arith.constant 0 : index
    %c0_235 = arith.constant 0 : index
    %c0_236 = arith.constant 0 : index
    %439 = vector.load %arg35[%c0_234, %c0_235, %c0_236] : memref<2x32x32xf32, #tpu.memory_space<vmem>>, vector<1x32x32xf32>
    %440 = vector.shape_cast %439 : vector<1x32x32xf32> to vector<32x32xf32>
    %c0_237 = arith.constant 0 : index
    %c0_238 = arith.constant 0 : index
    %c0_239 = arith.constant 0 : index
    %441 = vector.load %arg36[%c0_237, %c0_238, %c0_239] : memref<2x1x32xf32, #tpu.memory_space<vmem>>, vector<1x1x32xf32>
    %442 = vector.shape_cast %441 : vector<1x1x32xf32> to vector<1x32xf32>
    %cst_240 = arith.constant dense<0.000000e+00> : vector<8x32xf32>
    %443 = tpu.matmul %343, %440, %cst_240 {dimension_numbers = #tpu.dot_dimension_numbers<[1], [0], [0], [1], [0, 0, 1, 1], [], []>} : vector<8x32xf32>, vector<32x32xf32>, vector<8x32xf32> -> vector<8x32xf32>
    %444 = vector.broadcast %442 : vector<1x32xf32> to vector<8x32xf32>
    %445 = arith.addf %443, %444 : vector<8x32xf32>
    %c0_241 = arith.constant 0 : index
    %c0_242 = arith.constant 0 : index
    %c0_243 = arith.constant 0 : index
    %446 = vector.load %arg37[%c0_241, %c0_242, %c0_243] : memref<2x32x32xf32, #tpu.memory_space<vmem>>, vector<1x32x32xf32>
    %447 = vector.shape_cast %446 : vector<1x32x32xf32> to vector<32x32xf32>
    %c0_244 = arith.constant 0 : index
    %c0_245 = arith.constant 0 : index
    %c0_246 = arith.constant 0 : index
    %448 = vector.load %arg38[%c0_244, %c0_245, %c0_246] : memref<2x1x32xf32, #tpu.memory_space<vmem>>, vector<1x1x32xf32>
    %449 = vector.shape_cast %448 : vector<1x1x32xf32> to vector<1x32xf32>
    %cst_247 = arith.constant dense<0.000000e+00> : vector<8x32xf32>
    %450 = tpu.matmul %343, %447, %cst_247 {dimension_numbers = #tpu.dot_dimension_numbers<[1], [0], [0], [1], [0, 0, 1, 1], [], []>} : vector<8x32xf32>, vector<32x32xf32>, vector<8x32xf32> -> vector<8x32xf32>
    %451 = vector.broadcast %449 : vector<1x32xf32> to vector<8x32xf32>
    %452 = arith.addf %450, %451 : vector<8x32xf32>
    %c0_248 = arith.constant 0 : index
    %c0_249 = arith.constant 0 : index
    %c0_250 = arith.constant 0 : index
    %453 = vector.load %arg39[%c0_248, %c0_249, %c0_250] : memref<2x32x32xf32, #tpu.memory_space<vmem>>, vector<1x32x32xf32>
    %454 = vector.shape_cast %453 : vector<1x32x32xf32> to vector<32x32xf32>
    %c0_251 = arith.constant 0 : index
    %c0_252 = arith.constant 0 : index
    %c0_253 = arith.constant 0 : index
    %455 = vector.load %arg40[%c0_251, %c0_252, %c0_253] : memref<2x1x32xf32, #tpu.memory_space<vmem>>, vector<1x1x32xf32>
    %456 = vector.shape_cast %455 : vector<1x1x32xf32> to vector<1x32xf32>
    %457 = tpu.concatenate %438, %438, %438, %438 in 0 : vector<8x32xf32>, vector<8x32xf32>, vector<8x32xf32>, vector<8x32xf32> -> vector<32x32xf32>
    %458 = arith.mulf %457, %59 : vector<32x32xf32>
    %cst_254 = arith.constant dense<0.000000e+00> : vector<32x8xf32>
    %459 = tpu.matmul %458, %445, %cst_254 {dimension_numbers = #tpu.dot_dimension_numbers<[1], [1], [0], [0], [0, 0, 1, 0], [], []>} : vector<32x32xf32>, vector<8x32xf32>, vector<32x8xf32> -> vector<32x8xf32>
    %cst_255 = arith.constant 0.353553385 : f32
    %460 = vector.broadcast %cst_255 : f32 to vector<32x8xf32>
    %461 = arith.mulf %459, %460 : vector<32x8xf32>
    %462 = vector.broadcast %65 : vector<1x8xf32> to vector<32x8xf32>
    %463 = arith.addf %461, %462 : vector<32x8xf32>
    %cst_256 = arith.constant dense<0xFF800000> : vector<32xf32>
    %464 = vector.multi_reduction <maximumf>, %463, %cst_256 [1] : vector<32x8xf32> to vector<32xf32>
    %465 = vector.shape_cast %464 : vector<32xf32> to vector<32x1xf32>
    %466 = vector.broadcast %465 : vector<32x1xf32> to vector<32x8xf32>
    %467 = arith.subf %463, %466 : vector<32x8xf32>
    %468 = math.exp %467 : vector<32x8xf32>
    %cst_257 = arith.constant dense<0.000000e+00> : vector<32xf32>
    %469 = vector.multi_reduction <add>, %468, %cst_257 [1] : vector<32x8xf32> to vector<32xf32>
    %470 = vector.shape_cast %469 : vector<32xf32> to vector<32x1xf32>
    %471 = vector.broadcast %470 : vector<32x1xf32> to vector<32x8xf32>
    %472 = arith.divf %468, %471 : vector<32x8xf32>
    %cst_258 = arith.constant dense<0.000000e+00> : vector<32x32xf32>
    %473 = tpu.matmul %472, %452, %cst_258 {dimension_numbers = #tpu.dot_dimension_numbers<[1], [0], [0], [1], [0, 0, 1, 1], [], []>} : vector<32x8xf32>, vector<8x32xf32>, vector<32x32xf32> -> vector<32x32xf32>
    %474 = arith.mulf %473, %59 : vector<32x32xf32>
    %475 = vector.extract_strided_slice %474 {offsets = [0, 0], sizes = [8, 32], strides = [1, 1]} : vector<32x32xf32> to vector<8x32xf32>
    %476 = vector.extract_strided_slice %474 {offsets = [8, 0], sizes = [8, 32], strides = [1, 1]} : vector<32x32xf32> to vector<8x32xf32>
    %477 = arith.addf %475, %476 : vector<8x32xf32>
    %478 = vector.extract_strided_slice %474 {offsets = [16, 0], sizes = [8, 32], strides = [1, 1]} : vector<32x32xf32> to vector<8x32xf32>
    %479 = arith.addf %477, %478 : vector<8x32xf32>
    %480 = vector.extract_strided_slice %474 {offsets = [24, 0], sizes = [8, 32], strides = [1, 1]} : vector<32x32xf32> to vector<8x32xf32>
    %481 = arith.addf %479, %480 : vector<8x32xf32>
    %cst_259 = arith.constant dense<0.000000e+00> : vector<8x32xf32>
    %482 = tpu.matmul %481, %454, %cst_259 {dimension_numbers = #tpu.dot_dimension_numbers<[1], [0], [0], [1], [0, 0, 1, 1], [], []>} : vector<8x32xf32>, vector<32x32xf32>, vector<8x32xf32> -> vector<8x32xf32>
    %483 = vector.broadcast %456 : vector<1x32xf32> to vector<8x32xf32>
    %484 = arith.addf %482, %483 : vector<8x32xf32>
    %485 = arith.addf %431, %484 : vector<8x32xf32>
    %c0_260 = arith.constant 0 : index
    %c0_261 = arith.constant 0 : index
    %c0_262 = arith.constant 0 : index
    %486 = vector.load %arg47[%c0_260, %c0_261, %c0_262] : memref<2x1x32xf32, #tpu.memory_space<vmem>>, vector<1x1x32xf32>
    %487 = vector.shape_cast %486 : vector<1x1x32xf32> to vector<1x32xf32>
    %c0_263 = arith.constant 0 : index
    %c0_264 = arith.constant 0 : index
    %c0_265 = arith.constant 0 : index
    %488 = vector.load %arg48[%c0_263, %c0_264, %c0_265] : memref<2x1x32xf32, #tpu.memory_space<vmem>>, vector<1x1x32xf32>
    %489 = vector.shape_cast %488 : vector<1x1x32xf32> to vector<1x32xf32>
    %cst_266 = arith.constant dense<0.000000e+00> : vector<8xf32>
    %490 = vector.multi_reduction <add>, %485, %cst_266 [1] : vector<8x32xf32> to vector<8xf32>
    %491 = vector.shape_cast %490 : vector<8xf32> to vector<8x1xf32>
    %cst_267 = arith.constant 3.200000e+01 : f32
    %492 = vector.broadcast %cst_267 : f32 to vector<8x1xf32>
    %493 = arith.divf %491, %492 : vector<8x1xf32>
    %494 = vector.broadcast %493 : vector<8x1xf32> to vector<8x32xf32>
    %495 = arith.subf %485, %494 : vector<8x32xf32>
    %496 = arith.mulf %495, %495 : vector<8x32xf32>
    %cst_268 = arith.constant dense<0.000000e+00> : vector<8xf32>
    %497 = vector.multi_reduction <add>, %496, %cst_268 [1] : vector<8x32xf32> to vector<8xf32>
    %498 = vector.shape_cast %497 : vector<8xf32> to vector<8x1xf32>
    %cst_269 = arith.constant 3.200000e+01 : f32
    %499 = vector.broadcast %cst_269 : f32 to vector<8x1xf32>
    %500 = arith.divf %498, %499 : vector<8x1xf32>
    %cst_270 = arith.constant 9.99999974E-6 : f32
    %501 = vector.broadcast %cst_270 : f32 to vector<8x1xf32>
    %502 = arith.addf %500, %501 : vector<8x1xf32>
    %503 = math.rsqrt %502 : vector<8x1xf32>
    %504 = vector.broadcast %503 : vector<8x1xf32> to vector<8x32xf32>
    %505 = arith.mulf %495, %504 : vector<8x32xf32>
    %506 = vector.broadcast %487 : vector<1x32xf32> to vector<8x32xf32>
    %507 = arith.mulf %505, %506 : vector<8x32xf32>
    %508 = vector.broadcast %489 : vector<1x32xf32> to vector<8x32xf32>
    %509 = arith.addf %507, %508 : vector<8x32xf32>
    %c0_271 = arith.constant 0 : index
    %c0_272 = arith.constant 0 : index
    %c0_273 = arith.constant 0 : index
    %510 = vector.load %arg41[%c0_271, %c0_272, %c0_273] : memref<2x32x32xf32, #tpu.memory_space<vmem>>, vector<1x32x32xf32>
    %511 = vector.shape_cast %510 : vector<1x32x32xf32> to vector<32x32xf32>
    %c0_274 = arith.constant 0 : index
    %c0_275 = arith.constant 0 : index
    %c0_276 = arith.constant 0 : index
    %512 = vector.load %arg42[%c0_274, %c0_275, %c0_276] : memref<2x1x32xf32, #tpu.memory_space<vmem>>, vector<1x1x32xf32>
    %513 = vector.shape_cast %512 : vector<1x1x32xf32> to vector<1x32xf32>
    %cst_277 = arith.constant dense<0.000000e+00> : vector<8x32xf32>
    %514 = tpu.matmul %509, %511, %cst_277 {dimension_numbers = #tpu.dot_dimension_numbers<[1], [0], [0], [1], [0, 0, 1, 1], [], []>} : vector<8x32xf32>, vector<32x32xf32>, vector<8x32xf32> -> vector<8x32xf32>
    %515 = vector.broadcast %513 : vector<1x32xf32> to vector<8x32xf32>
    %516 = arith.addf %514, %515 : vector<8x32xf32>
    %cst_278 = arith.constant 0.000000e+00 : f32
    %517 = vector.broadcast %cst_278 : f32 to vector<8x32xf32>
    %518 = arith.maximumf %516, %517 : vector<8x32xf32>
    %c0_279 = arith.constant 0 : index
    %c0_280 = arith.constant 0 : index
    %c0_281 = arith.constant 0 : index
    %519 = vector.load %arg43[%c0_279, %c0_280, %c0_281] : memref<2x32x32xf32, #tpu.memory_space<vmem>>, vector<1x32x32xf32>
    %520 = vector.shape_cast %519 : vector<1x32x32xf32> to vector<32x32xf32>
    %c0_282 = arith.constant 0 : index
    %c0_283 = arith.constant 0 : index
    %c0_284 = arith.constant 0 : index
    %521 = vector.load %arg44[%c0_282, %c0_283, %c0_284] : memref<2x1x32xf32, #tpu.memory_space<vmem>>, vector<1x1x32xf32>
    %522 = vector.shape_cast %521 : vector<1x1x32xf32> to vector<1x32xf32>
    %cst_285 = arith.constant dense<0.000000e+00> : vector<8x32xf32>
    %523 = tpu.matmul %518, %520, %cst_285 {dimension_numbers = #tpu.dot_dimension_numbers<[1], [0], [0], [1], [0, 0, 1, 1], [], []>} : vector<8x32xf32>, vector<32x32xf32>, vector<8x32xf32> -> vector<8x32xf32>
    %524 = vector.broadcast %522 : vector<1x32xf32> to vector<8x32xf32>
    %525 = arith.addf %523, %524 : vector<8x32xf32>
    %526 = arith.addf %509, %525 : vector<8x32xf32>
    %c0_286 = arith.constant 0 : index
    %c0_287 = arith.constant 0 : index
    %c0_288 = arith.constant 0 : index
    %527 = vector.load %arg49[%c0_286, %c0_287, %c0_288] : memref<2x1x32xf32, #tpu.memory_space<vmem>>, vector<1x1x32xf32>
    %528 = vector.shape_cast %527 : vector<1x1x32xf32> to vector<1x32xf32>
    %c0_289 = arith.constant 0 : index
    %c0_290 = arith.constant 0 : index
    %c0_291 = arith.constant 0 : index
    %529 = vector.load %arg50[%c0_289, %c0_290, %c0_291] : memref<2x1x32xf32, #tpu.memory_space<vmem>>, vector<1x1x32xf32>
    %530 = vector.shape_cast %529 : vector<1x1x32xf32> to vector<1x32xf32>
    %cst_292 = arith.constant dense<0.000000e+00> : vector<8xf32>
    %531 = vector.multi_reduction <add>, %526, %cst_292 [1] : vector<8x32xf32> to vector<8xf32>
    %532 = vector.shape_cast %531 : vector<8xf32> to vector<8x1xf32>
    %cst_293 = arith.constant 3.200000e+01 : f32
    %533 = vector.broadcast %cst_293 : f32 to vector<8x1xf32>
    %534 = arith.divf %532, %533 : vector<8x1xf32>
    %535 = vector.broadcast %534 : vector<8x1xf32> to vector<8x32xf32>
    %536 = arith.subf %526, %535 : vector<8x32xf32>
    %537 = arith.mulf %536, %536 : vector<8x32xf32>
    %cst_294 = arith.constant dense<0.000000e+00> : vector<8xf32>
    %538 = vector.multi_reduction <add>, %537, %cst_294 [1] : vector<8x32xf32> to vector<8xf32>
    %539 = vector.shape_cast %538 : vector<8xf32> to vector<8x1xf32>
    %cst_295 = arith.constant 3.200000e+01 : f32
    %540 = vector.broadcast %cst_295 : f32 to vector<8x1xf32>
    %541 = arith.divf %539, %540 : vector<8x1xf32>
    %cst_296 = arith.constant 9.99999974E-6 : f32
    %542 = vector.broadcast %cst_296 : f32 to vector<8x1xf32>
    %543 = arith.addf %541, %542 : vector<8x1xf32>
    %544 = math.rsqrt %543 : vector<8x1xf32>
    %545 = vector.broadcast %544 : vector<8x1xf32> to vector<8x32xf32>
    %546 = arith.mulf %536, %545 : vector<8x32xf32>
    %547 = vector.broadcast %528 : vector<1x32xf32> to vector<8x32xf32>
    %548 = arith.mulf %546, %547 : vector<8x32xf32>
    %549 = vector.broadcast %530 : vector<1x32xf32> to vector<8x32xf32>
    %550 = arith.addf %548, %549 : vector<8x32xf32>
    %c1_297 = arith.constant 1 : index
    %c0_298 = arith.constant 0 : index
    %c0_299 = arith.constant 0 : index
    %551 = vector.load %arg25[%c1_297, %c0_298, %c0_299] : memref<2x32x32xf32, #tpu.memory_space<vmem>>, vector<1x32x32xf32>
    %552 = vector.shape_cast %551 : vector<1x32x32xf32> to vector<32x32xf32>
    %c1_300 = arith.constant 1 : index
    %c0_301 = arith.constant 0 : index
    %c0_302 = arith.constant 0 : index
    %553 = vector.load %arg26[%c1_300, %c0_301, %c0_302] : memref<2x1x32xf32, #tpu.memory_space<vmem>>, vector<1x1x32xf32>
    %554 = vector.shape_cast %553 : vector<1x1x32xf32> to vector<1x32xf32>
    %cst_303 = arith.constant dense<0.000000e+00> : vector<8x32xf32>
    %555 = tpu.matmul %550, %552, %cst_303 {dimension_numbers = #tpu.dot_dimension_numbers<[1], [0], [0], [1], [0, 0, 1, 1], [], []>} : vector<8x32xf32>, vector<32x32xf32>, vector<8x32xf32> -> vector<8x32xf32>
    %556 = vector.broadcast %554 : vector<1x32xf32> to vector<8x32xf32>
    %557 = arith.addf %555, %556 : vector<8x32xf32>
    %c1_304 = arith.constant 1 : index
    %c0_305 = arith.constant 0 : index
    %c0_306 = arith.constant 0 : index
    %558 = vector.load %arg27[%c1_304, %c0_305, %c0_306] : memref<2x32x32xf32, #tpu.memory_space<vmem>>, vector<1x32x32xf32>
    %559 = vector.shape_cast %558 : vector<1x32x32xf32> to vector<32x32xf32>
    %c1_307 = arith.constant 1 : index
    %c0_308 = arith.constant 0 : index
    %c0_309 = arith.constant 0 : index
    %560 = vector.load %arg28[%c1_307, %c0_308, %c0_309] : memref<2x1x32xf32, #tpu.memory_space<vmem>>, vector<1x1x32xf32>
    %561 = vector.shape_cast %560 : vector<1x1x32xf32> to vector<1x32xf32>
    %cst_310 = arith.constant dense<0.000000e+00> : vector<8x32xf32>
    %562 = tpu.matmul %550, %559, %cst_310 {dimension_numbers = #tpu.dot_dimension_numbers<[1], [0], [0], [1], [0, 0, 1, 1], [], []>} : vector<8x32xf32>, vector<32x32xf32>, vector<8x32xf32> -> vector<8x32xf32>
    %563 = vector.broadcast %561 : vector<1x32xf32> to vector<8x32xf32>
    %564 = arith.addf %562, %563 : vector<8x32xf32>
    %c1_311 = arith.constant 1 : index
    %c0_312 = arith.constant 0 : index
    %c0_313 = arith.constant 0 : index
    %565 = vector.load %arg29[%c1_311, %c0_312, %c0_313] : memref<2x32x32xf32, #tpu.memory_space<vmem>>, vector<1x32x32xf32>
    %566 = vector.shape_cast %565 : vector<1x32x32xf32> to vector<32x32xf32>
    %c1_314 = arith.constant 1 : index
    %c0_315 = arith.constant 0 : index
    %c0_316 = arith.constant 0 : index
    %567 = vector.load %arg30[%c1_314, %c0_315, %c0_316] : memref<2x1x32xf32, #tpu.memory_space<vmem>>, vector<1x1x32xf32>
    %568 = vector.shape_cast %567 : vector<1x1x32xf32> to vector<1x32xf32>
    %cst_317 = arith.constant dense<0.000000e+00> : vector<8x32xf32>
    %569 = tpu.matmul %550, %566, %cst_317 {dimension_numbers = #tpu.dot_dimension_numbers<[1], [0], [0], [1], [0, 0, 1, 1], [], []>} : vector<8x32xf32>, vector<32x32xf32>, vector<8x32xf32> -> vector<8x32xf32>
    %570 = vector.broadcast %568 : vector<1x32xf32> to vector<8x32xf32>
    %571 = arith.addf %569, %570 : vector<8x32xf32>
    %c1_318 = arith.constant 1 : index
    %c0_319 = arith.constant 0 : index
    %c0_320 = arith.constant 0 : index
    %572 = vector.load %arg31[%c1_318, %c0_319, %c0_320] : memref<2x32x32xf32, #tpu.memory_space<vmem>>, vector<1x32x32xf32>
    %573 = vector.shape_cast %572 : vector<1x32x32xf32> to vector<32x32xf32>
    %c1_321 = arith.constant 1 : index
    %c0_322 = arith.constant 0 : index
    %c0_323 = arith.constant 0 : index
    %574 = vector.load %arg32[%c1_321, %c0_322, %c0_323] : memref<2x1x32xf32, #tpu.memory_space<vmem>>, vector<1x1x32xf32>
    %575 = vector.shape_cast %574 : vector<1x1x32xf32> to vector<1x32xf32>
    %576 = tpu.concatenate %557, %557, %557, %557 in 0 : vector<8x32xf32>, vector<8x32xf32>, vector<8x32xf32>, vector<8x32xf32> -> vector<32x32xf32>
    %577 = arith.mulf %576, %59 : vector<32x32xf32>
    %cst_324 = arith.constant dense<0.000000e+00> : vector<32x8xf32>
    %578 = tpu.matmul %577, %564, %cst_324 {dimension_numbers = #tpu.dot_dimension_numbers<[1], [1], [0], [0], [0, 0, 1, 0], [], []>} : vector<32x32xf32>, vector<8x32xf32>, vector<32x8xf32> -> vector<32x8xf32>
    %cst_325 = arith.constant 0.353553385 : f32
    %579 = vector.broadcast %cst_325 : f32 to vector<32x8xf32>
    %580 = arith.mulf %578, %579 : vector<32x8xf32>
    %581 = arith.addf %580, %72 : vector<32x8xf32>
    %cst_326 = arith.constant dense<0xFF800000> : vector<32xf32>
    %582 = vector.multi_reduction <maximumf>, %581, %cst_326 [1] : vector<32x8xf32> to vector<32xf32>
    %583 = vector.shape_cast %582 : vector<32xf32> to vector<32x1xf32>
    %584 = vector.broadcast %583 : vector<32x1xf32> to vector<32x8xf32>
    %585 = arith.subf %581, %584 : vector<32x8xf32>
    %586 = math.exp %585 : vector<32x8xf32>
    %cst_327 = arith.constant dense<0.000000e+00> : vector<32xf32>
    %587 = vector.multi_reduction <add>, %586, %cst_327 [1] : vector<32x8xf32> to vector<32xf32>
    %588 = vector.shape_cast %587 : vector<32xf32> to vector<32x1xf32>
    %589 = vector.broadcast %588 : vector<32x1xf32> to vector<32x8xf32>
    %590 = arith.divf %586, %589 : vector<32x8xf32>
    %cst_328 = arith.constant dense<0.000000e+00> : vector<32x32xf32>
    %591 = tpu.matmul %590, %571, %cst_328 {dimension_numbers = #tpu.dot_dimension_numbers<[1], [0], [0], [1], [0, 0, 1, 1], [], []>} : vector<32x8xf32>, vector<8x32xf32>, vector<32x32xf32> -> vector<32x32xf32>
    %592 = arith.mulf %591, %59 : vector<32x32xf32>
    %593 = vector.extract_strided_slice %592 {offsets = [0, 0], sizes = [8, 32], strides = [1, 1]} : vector<32x32xf32> to vector<8x32xf32>
    %594 = vector.extract_strided_slice %592 {offsets = [8, 0], sizes = [8, 32], strides = [1, 1]} : vector<32x32xf32> to vector<8x32xf32>
    %595 = arith.addf %593, %594 : vector<8x32xf32>
    %596 = vector.extract_strided_slice %592 {offsets = [16, 0], sizes = [8, 32], strides = [1, 1]} : vector<32x32xf32> to vector<8x32xf32>
    %597 = arith.addf %595, %596 : vector<8x32xf32>
    %598 = vector.extract_strided_slice %592 {offsets = [24, 0], sizes = [8, 32], strides = [1, 1]} : vector<32x32xf32> to vector<8x32xf32>
    %599 = arith.addf %597, %598 : vector<8x32xf32>
    %cst_329 = arith.constant dense<0.000000e+00> : vector<8x32xf32>
    %600 = tpu.matmul %599, %573, %cst_329 {dimension_numbers = #tpu.dot_dimension_numbers<[1], [0], [0], [1], [0, 0, 1, 1], [], []>} : vector<8x32xf32>, vector<32x32xf32>, vector<8x32xf32> -> vector<8x32xf32>
    %601 = vector.broadcast %575 : vector<1x32xf32> to vector<8x32xf32>
    %602 = arith.addf %600, %601 : vector<8x32xf32>
    %603 = arith.addf %550, %602 : vector<8x32xf32>
    %c1_330 = arith.constant 1 : index
    %c0_331 = arith.constant 0 : index
    %c0_332 = arith.constant 0 : index
    %604 = vector.load %arg45[%c1_330, %c0_331, %c0_332] : memref<2x1x32xf32, #tpu.memory_space<vmem>>, vector<1x1x32xf32>
    %605 = vector.shape_cast %604 : vector<1x1x32xf32> to vector<1x32xf32>
    %c1_333 = arith.constant 1 : index
    %c0_334 = arith.constant 0 : index
    %c0_335 = arith.constant 0 : index
    %606 = vector.load %arg46[%c1_333, %c0_334, %c0_335] : memref<2x1x32xf32, #tpu.memory_space<vmem>>, vector<1x1x32xf32>
    %607 = vector.shape_cast %606 : vector<1x1x32xf32> to vector<1x32xf32>
    %cst_336 = arith.constant dense<0.000000e+00> : vector<8xf32>
    %608 = vector.multi_reduction <add>, %603, %cst_336 [1] : vector<8x32xf32> to vector<8xf32>
    %609 = vector.shape_cast %608 : vector<8xf32> to vector<8x1xf32>
    %cst_337 = arith.constant 3.200000e+01 : f32
    %610 = vector.broadcast %cst_337 : f32 to vector<8x1xf32>
    %611 = arith.divf %609, %610 : vector<8x1xf32>
    %612 = vector.broadcast %611 : vector<8x1xf32> to vector<8x32xf32>
    %613 = arith.subf %603, %612 : vector<8x32xf32>
    %614 = arith.mulf %613, %613 : vector<8x32xf32>
    %cst_338 = arith.constant dense<0.000000e+00> : vector<8xf32>
    %615 = vector.multi_reduction <add>, %614, %cst_338 [1] : vector<8x32xf32> to vector<8xf32>
    %616 = vector.shape_cast %615 : vector<8xf32> to vector<8x1xf32>
    %cst_339 = arith.constant 3.200000e+01 : f32
    %617 = vector.broadcast %cst_339 : f32 to vector<8x1xf32>
    %618 = arith.divf %616, %617 : vector<8x1xf32>
    %cst_340 = arith.constant 9.99999974E-6 : f32
    %619 = vector.broadcast %cst_340 : f32 to vector<8x1xf32>
    %620 = arith.addf %618, %619 : vector<8x1xf32>
    %621 = math.rsqrt %620 : vector<8x1xf32>
    %622 = vector.broadcast %621 : vector<8x1xf32> to vector<8x32xf32>
    %623 = arith.mulf %613, %622 : vector<8x32xf32>
    %624 = vector.broadcast %605 : vector<1x32xf32> to vector<8x32xf32>
    %625 = arith.mulf %623, %624 : vector<8x32xf32>
    %626 = vector.broadcast %607 : vector<1x32xf32> to vector<8x32xf32>
    %627 = arith.addf %625, %626 : vector<8x32xf32>
    %c1_341 = arith.constant 1 : index
    %c0_342 = arith.constant 0 : index
    %c0_343 = arith.constant 0 : index
    %628 = vector.load %arg33[%c1_341, %c0_342, %c0_343] : memref<2x32x32xf32, #tpu.memory_space<vmem>>, vector<1x32x32xf32>
    %629 = vector.shape_cast %628 : vector<1x32x32xf32> to vector<32x32xf32>
    %c1_344 = arith.constant 1 : index
    %c0_345 = arith.constant 0 : index
    %c0_346 = arith.constant 0 : index
    %630 = vector.load %arg34[%c1_344, %c0_345, %c0_346] : memref<2x1x32xf32, #tpu.memory_space<vmem>>, vector<1x1x32xf32>
    %631 = vector.shape_cast %630 : vector<1x1x32xf32> to vector<1x32xf32>
    %cst_347 = arith.constant dense<0.000000e+00> : vector<8x32xf32>
    %632 = tpu.matmul %627, %629, %cst_347 {dimension_numbers = #tpu.dot_dimension_numbers<[1], [0], [0], [1], [0, 0, 1, 1], [], []>} : vector<8x32xf32>, vector<32x32xf32>, vector<8x32xf32> -> vector<8x32xf32>
    %633 = vector.broadcast %631 : vector<1x32xf32> to vector<8x32xf32>
    %634 = arith.addf %632, %633 : vector<8x32xf32>
    %c1_348 = arith.constant 1 : index
    %c0_349 = arith.constant 0 : index
    %c0_350 = arith.constant 0 : index
    %635 = vector.load %arg35[%c1_348, %c0_349, %c0_350] : memref<2x32x32xf32, #tpu.memory_space<vmem>>, vector<1x32x32xf32>
    %636 = vector.shape_cast %635 : vector<1x32x32xf32> to vector<32x32xf32>
    %c1_351 = arith.constant 1 : index
    %c0_352 = arith.constant 0 : index
    %c0_353 = arith.constant 0 : index
    %637 = vector.load %arg36[%c1_351, %c0_352, %c0_353] : memref<2x1x32xf32, #tpu.memory_space<vmem>>, vector<1x1x32xf32>
    %638 = vector.shape_cast %637 : vector<1x1x32xf32> to vector<1x32xf32>
    %cst_354 = arith.constant dense<0.000000e+00> : vector<8x32xf32>
    %639 = tpu.matmul %343, %636, %cst_354 {dimension_numbers = #tpu.dot_dimension_numbers<[1], [0], [0], [1], [0, 0, 1, 1], [], []>} : vector<8x32xf32>, vector<32x32xf32>, vector<8x32xf32> -> vector<8x32xf32>
    %640 = vector.broadcast %638 : vector<1x32xf32> to vector<8x32xf32>
    %641 = arith.addf %639, %640 : vector<8x32xf32>
    %c1_355 = arith.constant 1 : index
    %c0_356 = arith.constant 0 : index
    %c0_357 = arith.constant 0 : index
    %642 = vector.load %arg37[%c1_355, %c0_356, %c0_357] : memref<2x32x32xf32, #tpu.memory_space<vmem>>, vector<1x32x32xf32>
    %643 = vector.shape_cast %642 : vector<1x32x32xf32> to vector<32x32xf32>
    %c1_358 = arith.constant 1 : index
    %c0_359 = arith.constant 0 : index
    %c0_360 = arith.constant 0 : index
    %644 = vector.load %arg38[%c1_358, %c0_359, %c0_360] : memref<2x1x32xf32, #tpu.memory_space<vmem>>, vector<1x1x32xf32>
    %645 = vector.shape_cast %644 : vector<1x1x32xf32> to vector<1x32xf32>
    %cst_361 = arith.constant dense<0.000000e+00> : vector<8x32xf32>
    %646 = tpu.matmul %343, %643, %cst_361 {dimension_numbers = #tpu.dot_dimension_numbers<[1], [0], [0], [1], [0, 0, 1, 1], [], []>} : vector<8x32xf32>, vector<32x32xf32>, vector<8x32xf32> -> vector<8x32xf32>
    %647 = vector.broadcast %645 : vector<1x32xf32> to vector<8x32xf32>
    %648 = arith.addf %646, %647 : vector<8x32xf32>
    %c1_362 = arith.constant 1 : index
    %c0_363 = arith.constant 0 : index
    %c0_364 = arith.constant 0 : index
    %649 = vector.load %arg39[%c1_362, %c0_363, %c0_364] : memref<2x32x32xf32, #tpu.memory_space<vmem>>, vector<1x32x32xf32>
    %650 = vector.shape_cast %649 : vector<1x32x32xf32> to vector<32x32xf32>
    %c1_365 = arith.constant 1 : index
    %c0_366 = arith.constant 0 : index
    %c0_367 = arith.constant 0 : index
    %651 = vector.load %arg40[%c1_365, %c0_366, %c0_367] : memref<2x1x32xf32, #tpu.memory_space<vmem>>, vector<1x1x32xf32>
    %652 = vector.shape_cast %651 : vector<1x1x32xf32> to vector<1x32xf32>
    %653 = tpu.concatenate %634, %634, %634, %634 in 0 : vector<8x32xf32>, vector<8x32xf32>, vector<8x32xf32>, vector<8x32xf32> -> vector<32x32xf32>
    %654 = arith.mulf %653, %59 : vector<32x32xf32>
    %cst_368 = arith.constant dense<0.000000e+00> : vector<32x8xf32>
    %655 = tpu.matmul %654, %641, %cst_368 {dimension_numbers = #tpu.dot_dimension_numbers<[1], [1], [0], [0], [0, 0, 1, 0], [], []>} : vector<32x32xf32>, vector<8x32xf32>, vector<32x8xf32> -> vector<32x8xf32>
    %cst_369 = arith.constant 0.353553385 : f32
    %656 = vector.broadcast %cst_369 : f32 to vector<32x8xf32>
    %657 = arith.mulf %655, %656 : vector<32x8xf32>
    %658 = vector.broadcast %65 : vector<1x8xf32> to vector<32x8xf32>
    %659 = arith.addf %657, %658 : vector<32x8xf32>
    %cst_370 = arith.constant dense<0xFF800000> : vector<32xf32>
    %660 = vector.multi_reduction <maximumf>, %659, %cst_370 [1] : vector<32x8xf32> to vector<32xf32>
    %661 = vector.shape_cast %660 : vector<32xf32> to vector<32x1xf32>
    %662 = vector.broadcast %661 : vector<32x1xf32> to vector<32x8xf32>
    %663 = arith.subf %659, %662 : vector<32x8xf32>
    %664 = math.exp %663 : vector<32x8xf32>
    %cst_371 = arith.constant dense<0.000000e+00> : vector<32xf32>
    %665 = vector.multi_reduction <add>, %664, %cst_371 [1] : vector<32x8xf32> to vector<32xf32>
    %666 = vector.shape_cast %665 : vector<32xf32> to vector<32x1xf32>
    %667 = vector.broadcast %666 : vector<32x1xf32> to vector<32x8xf32>
    %668 = arith.divf %664, %667 : vector<32x8xf32>
    %cst_372 = arith.constant dense<0.000000e+00> : vector<32x32xf32>
    %669 = tpu.matmul %668, %648, %cst_372 {dimension_numbers = #tpu.dot_dimension_numbers<[1], [0], [0], [1], [0, 0, 1, 1], [], []>} : vector<32x8xf32>, vector<8x32xf32>, vector<32x32xf32> -> vector<32x32xf32>
    %670 = arith.mulf %669, %59 : vector<32x32xf32>
    %671 = vector.extract_strided_slice %670 {offsets = [0, 0], sizes = [8, 32], strides = [1, 1]} : vector<32x32xf32> to vector<8x32xf32>
    %672 = vector.extract_strided_slice %670 {offsets = [8, 0], sizes = [8, 32], strides = [1, 1]} : vector<32x32xf32> to vector<8x32xf32>
    %673 = arith.addf %671, %672 : vector<8x32xf32>
    %674 = vector.extract_strided_slice %670 {offsets = [16, 0], sizes = [8, 32], strides = [1, 1]} : vector<32x32xf32> to vector<8x32xf32>
    %675 = arith.addf %673, %674 : vector<8x32xf32>
    %676 = vector.extract_strided_slice %670 {offsets = [24, 0], sizes = [8, 32], strides = [1, 1]} : vector<32x32xf32> to vector<8x32xf32>
    %677 = arith.addf %675, %676 : vector<8x32xf32>
    %cst_373 = arith.constant dense<0.000000e+00> : vector<8x32xf32>
    %678 = tpu.matmul %677, %650, %cst_373 {dimension_numbers = #tpu.dot_dimension_numbers<[1], [0], [0], [1], [0, 0, 1, 1], [], []>} : vector<8x32xf32>, vector<32x32xf32>, vector<8x32xf32> -> vector<8x32xf32>
    %679 = vector.broadcast %652 : vector<1x32xf32> to vector<8x32xf32>
    %680 = arith.addf %678, %679 : vector<8x32xf32>
    %681 = arith.addf %627, %680 : vector<8x32xf32>
    %c1_374 = arith.constant 1 : index
    %c0_375 = arith.constant 0 : index
    %c0_376 = arith.constant 0 : index
    %682 = vector.load %arg47[%c1_374, %c0_375, %c0_376] : memref<2x1x32xf32, #tpu.memory_space<vmem>>, vector<1x1x32xf32>
    %683 = vector.shape_cast %682 : vector<1x1x32xf32> to vector<1x32xf32>
    %c1_377 = arith.constant 1 : index
    %c0_378 = arith.constant 0 : index
    %c0_379 = arith.constant 0 : index
    %684 = vector.load %arg48[%c1_377, %c0_378, %c0_379] : memref<2x1x32xf32, #tpu.memory_space<vmem>>, vector<1x1x32xf32>
    %685 = vector.shape_cast %684 : vector<1x1x32xf32> to vector<1x32xf32>
    %cst_380 = arith.constant dense<0.000000e+00> : vector<8xf32>
    %686 = vector.multi_reduction <add>, %681, %cst_380 [1] : vector<8x32xf32> to vector<8xf32>
    %687 = vector.shape_cast %686 : vector<8xf32> to vector<8x1xf32>
    %cst_381 = arith.constant 3.200000e+01 : f32
    %688 = vector.broadcast %cst_381 : f32 to vector<8x1xf32>
    %689 = arith.divf %687, %688 : vector<8x1xf32>
    %690 = vector.broadcast %689 : vector<8x1xf32> to vector<8x32xf32>
    %691 = arith.subf %681, %690 : vector<8x32xf32>
    %692 = arith.mulf %691, %691 : vector<8x32xf32>
    %cst_382 = arith.constant dense<0.000000e+00> : vector<8xf32>
    %693 = vector.multi_reduction <add>, %692, %cst_382 [1] : vector<8x32xf32> to vector<8xf32>
    %694 = vector.shape_cast %693 : vector<8xf32> to vector<8x1xf32>
    %cst_383 = arith.constant 3.200000e+01 : f32
    %695 = vector.broadcast %cst_383 : f32 to vector<8x1xf32>
    %696 = arith.divf %694, %695 : vector<8x1xf32>
    %cst_384 = arith.constant 9.99999974E-6 : f32
    %697 = vector.broadcast %cst_384 : f32 to vector<8x1xf32>
    %698 = arith.addf %696, %697 : vector<8x1xf32>
    %699 = math.rsqrt %698 : vector<8x1xf32>
    %700 = vector.broadcast %699 : vector<8x1xf32> to vector<8x32xf32>
    %701 = arith.mulf %691, %700 : vector<8x32xf32>
    %702 = vector.broadcast %683 : vector<1x32xf32> to vector<8x32xf32>
    %703 = arith.mulf %701, %702 : vector<8x32xf32>
    %704 = vector.broadcast %685 : vector<1x32xf32> to vector<8x32xf32>
    %705 = arith.addf %703, %704 : vector<8x32xf32>
    %c1_385 = arith.constant 1 : index
    %c0_386 = arith.constant 0 : index
    %c0_387 = arith.constant 0 : index
    %706 = vector.load %arg41[%c1_385, %c0_386, %c0_387] : memref<2x32x32xf32, #tpu.memory_space<vmem>>, vector<1x32x32xf32>
    %707 = vector.shape_cast %706 : vector<1x32x32xf32> to vector<32x32xf32>
    %c1_388 = arith.constant 1 : index
    %c0_389 = arith.constant 0 : index
    %c0_390 = arith.constant 0 : index
    %708 = vector.load %arg42[%c1_388, %c0_389, %c0_390] : memref<2x1x32xf32, #tpu.memory_space<vmem>>, vector<1x1x32xf32>
    %709 = vector.shape_cast %708 : vector<1x1x32xf32> to vector<1x32xf32>
    %cst_391 = arith.constant dense<0.000000e+00> : vector<8x32xf32>
    %710 = tpu.matmul %705, %707, %cst_391 {dimension_numbers = #tpu.dot_dimension_numbers<[1], [0], [0], [1], [0, 0, 1, 1], [], []>} : vector<8x32xf32>, vector<32x32xf32>, vector<8x32xf32> -> vector<8x32xf32>
    %711 = vector.broadcast %709 : vector<1x32xf32> to vector<8x32xf32>
    %712 = arith.addf %710, %711 : vector<8x32xf32>
    %cst_392 = arith.constant 0.000000e+00 : f32
    %713 = vector.broadcast %cst_392 : f32 to vector<8x32xf32>
    %714 = arith.maximumf %712, %713 : vector<8x32xf32>
    %c1_393 = arith.constant 1 : index
    %c0_394 = arith.constant 0 : index
    %c0_395 = arith.constant 0 : index
    %715 = vector.load %arg43[%c1_393, %c0_394, %c0_395] : memref<2x32x32xf32, #tpu.memory_space<vmem>>, vector<1x32x32xf32>
    %716 = vector.shape_cast %715 : vector<1x32x32xf32> to vector<32x32xf32>
    %c1_396 = arith.constant 1 : index
    %c0_397 = arith.constant 0 : index
    %c0_398 = arith.constant 0 : index
    %717 = vector.load %arg44[%c1_396, %c0_397, %c0_398] : memref<2x1x32xf32, #tpu.memory_space<vmem>>, vector<1x1x32xf32>
    %718 = vector.shape_cast %717 : vector<1x1x32xf32> to vector<1x32xf32>
    %cst_399 = arith.constant dense<0.000000e+00> : vector<8x32xf32>
    %719 = tpu.matmul %714, %716, %cst_399 {dimension_numbers = #tpu.dot_dimension_numbers<[1], [0], [0], [1], [0, 0, 1, 1], [], []>} : vector<8x32xf32>, vector<32x32xf32>, vector<8x32xf32> -> vector<8x32xf32>
    %720 = vector.broadcast %718 : vector<1x32xf32> to vector<8x32xf32>
    %721 = arith.addf %719, %720 : vector<8x32xf32>
    %722 = arith.addf %705, %721 : vector<8x32xf32>
    %c1_400 = arith.constant 1 : index
    %c0_401 = arith.constant 0 : index
    %c0_402 = arith.constant 0 : index
    %723 = vector.load %arg49[%c1_400, %c0_401, %c0_402] : memref<2x1x32xf32, #tpu.memory_space<vmem>>, vector<1x1x32xf32>
    %724 = vector.shape_cast %723 : vector<1x1x32xf32> to vector<1x32xf32>
    %c1_403 = arith.constant 1 : index
    %c0_404 = arith.constant 0 : index
    %c0_405 = arith.constant 0 : index
    %725 = vector.load %arg50[%c1_403, %c0_404, %c0_405] : memref<2x1x32xf32, #tpu.memory_space<vmem>>, vector<1x1x32xf32>
    %726 = vector.shape_cast %725 : vector<1x1x32xf32> to vector<1x32xf32>
    %cst_406 = arith.constant dense<0.000000e+00> : vector<8xf32>
    %727 = vector.multi_reduction <add>, %722, %cst_406 [1] : vector<8x32xf32> to vector<8xf32>
    %728 = vector.shape_cast %727 : vector<8xf32> to vector<8x1xf32>
    %cst_407 = arith.constant 3.200000e+01 : f32
    %729 = vector.broadcast %cst_407 : f32 to vector<8x1xf32>
    %730 = arith.divf %728, %729 : vector<8x1xf32>
    %731 = vector.broadcast %730 : vector<8x1xf32> to vector<8x32xf32>
    %732 = arith.subf %722, %731 : vector<8x32xf32>
    %733 = arith.mulf %732, %732 : vector<8x32xf32>
    %cst_408 = arith.constant dense<0.000000e+00> : vector<8xf32>
    %734 = vector.multi_reduction <add>, %733, %cst_408 [1] : vector<8x32xf32> to vector<8xf32>
    %735 = vector.shape_cast %734 : vector<8xf32> to vector<8x1xf32>
    %cst_409 = arith.constant 3.200000e+01 : f32
    %736 = vector.broadcast %cst_409 : f32 to vector<8x1xf32>
    %737 = arith.divf %735, %736 : vector<8x1xf32>
    %cst_410 = arith.constant 9.99999974E-6 : f32
    %738 = vector.broadcast %cst_410 : f32 to vector<8x1xf32>
    %739 = arith.addf %737, %738 : vector<8x1xf32>
    %740 = math.rsqrt %739 : vector<8x1xf32>
    %741 = vector.broadcast %740 : vector<8x1xf32> to vector<8x32xf32>
    %742 = arith.mulf %732, %741 : vector<8x32xf32>
    %743 = vector.broadcast %724 : vector<1x32xf32> to vector<8x32xf32>
    %744 = arith.mulf %742, %743 : vector<8x32xf32>
    %745 = vector.broadcast %726 : vector<1x32xf32> to vector<8x32xf32>
    %746 = arith.addf %744, %745 : vector<8x32xf32>
    %c0_411 = arith.constant 0 : index
    %c0_412 = arith.constant 0 : index
    %747 = vector.load %arg53[%c0_411, %c0_412] : memref<1x32xf32, #tpu.memory_space<vmem>>, vector<1x32xf32>
    %c0_413 = arith.constant 0 : index
    %c0_414 = arith.constant 0 : index
    %748 = vector.load %arg54[%c0_413, %c0_414] : memref<1x32xf32, #tpu.memory_space<vmem>>, vector<1x32xf32>
    %cst_415 = arith.constant dense<0.000000e+00> : vector<8xf32>
    %749 = vector.multi_reduction <add>, %746, %cst_415 [1] : vector<8x32xf32> to vector<8xf32>
    %750 = vector.shape_cast %749 : vector<8xf32> to vector<8x1xf32>
    %cst_416 = arith.constant 3.200000e+01 : f32
    %751 = vector.broadcast %cst_416 : f32 to vector<8x1xf32>
    %752 = arith.divf %750, %751 : vector<8x1xf32>
    %753 = vector.broadcast %752 : vector<8x1xf32> to vector<8x32xf32>
    %754 = arith.subf %746, %753 : vector<8x32xf32>
    %755 = arith.mulf %754, %754 : vector<8x32xf32>
    %cst_417 = arith.constant dense<0.000000e+00> : vector<8xf32>
    %756 = vector.multi_reduction <add>, %755, %cst_417 [1] : vector<8x32xf32> to vector<8xf32>
    %757 = vector.shape_cast %756 : vector<8xf32> to vector<8x1xf32>
    %cst_418 = arith.constant 3.200000e+01 : f32
    %758 = vector.broadcast %cst_418 : f32 to vector<8x1xf32>
    %759 = arith.divf %757, %758 : vector<8x1xf32>
    %cst_419 = arith.constant 9.99999974E-6 : f32
    %760 = vector.broadcast %cst_419 : f32 to vector<8x1xf32>
    %761 = arith.addf %759, %760 : vector<8x1xf32>
    %762 = math.rsqrt %761 : vector<8x1xf32>
    %763 = vector.broadcast %762 : vector<8x1xf32> to vector<8x32xf32>
    %764 = arith.mulf %754, %763 : vector<8x32xf32>
    %765 = vector.broadcast %747 : vector<1x32xf32> to vector<8x32xf32>
    %766 = arith.mulf %764, %765 : vector<8x32xf32>
    %767 = vector.broadcast %748 : vector<1x32xf32> to vector<8x32xf32>
    %768 = arith.addf %766, %767 : vector<8x32xf32>
    %c0_420 = arith.constant 0 : index
    %c0_421 = arith.constant 0 : index
    %769 = vector.load %arg7[%c0_420, %c0_421] : memref<32x128xf32, #tpu.memory_space<vmem>>, vector<32x128xf32>
    %c0_422 = arith.constant 0 : index
    %c0_423 = arith.constant 0 : index
    %770 = vector.load %arg8[%c0_422, %c0_423] : memref<1x128xf32, #tpu.memory_space<vmem>>, vector<1x128xf32>
    %cst_424 = arith.constant dense<0.000000e+00> : vector<8x128xf32>
    %771 = tpu.matmul %768, %769, %cst_424 {dimension_numbers = #tpu.dot_dimension_numbers<[1], [0], [0], [1], [0, 0, 1, 1], [], []>} : vector<8x32xf32>, vector<32x128xf32>, vector<8x128xf32> -> vector<8x128xf32>
    %772 = vector.broadcast %770 : vector<1x128xf32> to vector<8x128xf32>
    %773 = arith.addf %771, %772 : vector<8x128xf32>
    %c0_425 = arith.constant 0 : index
    %c0_426 = arith.constant 0 : index
    %c0_427 = arith.constant 0 : index
    %774 = vector.load %arg55[%c0_425, %c0_426, %c0_427] : memref<1x8x128xf32, #tpu.memory_space<vmem>>, vector<1x8x128xf32>
    %775 = vector.shape_cast %774 : vector<1x8x128xf32> to vector<8x128xf32>
    %776 = vector.shape_cast %773 : vector<8x128xf32> to vector<1x8x128xf32>
    tpu.vector_store %arg55[%c0_425, %c0_426, %c0_427], %776 {strides = array<i32>} : memref<1x8x128xf32, #tpu.memory_space<vmem>>, vector<1x8x128xf32>,
    return
  }
  func.func @transform_0(%arg0: i32) -> (i32, i32, i32) {
    %c0_i32 = arith.constant 0 : i32
    %c0_i32_0 = arith.constant 0 : i32
    %c0_i32_1 = arith.constant 0 : i32
    return %arg0, %c0_i32, %c0_i32_0 : i32, i32, i32
  }
  func.func @transform_1(%arg0: i32) -> (i32, i32, i32) {
    %c0_i32 = arith.constant 0 : i32
    %c0_i32_0 = arith.constant 0 : i32
    %c0_i32_1 = arith.constant 0 : i32
    return %arg0, %c0_i32, %c0_i32_0 : i32, i32, i32
  }
  func.func @transform_2(%arg0: i32) -> (i32, i32) {
    %c0_i32 = arith.constant 0 : i32
    %c0_i32_0 = arith.constant 0 : i32
    %c0_i32_1 = arith.constant 0 : i32
    return %c0_i32, %c0_i32_0 : i32, i32
  }
  func.func @transform_3(%arg0: i32) -> (i32, i32) {
    %c0_i32 = arith.constant 0 : i32
    %c0_i32_0 = arith.constant 0 : i32
    %c0_i32_1 = arith.constant 0 : i32
    return %c0_i32, %c0_i32_0 : i32, i32
  }
  func.func @transform_4(%arg0: i32) -> (i32, i32) {
    %c0_i32 = arith.constant 0 : i32
    %c0_i32_0 = arith.constant 0 : i32
    %c0_i32_1 = arith.constant 0 : i32
    return %c0_i32, %c0_i32_0 : i32, i32
  }
  func.func @transform_5(%arg0: i32) -> (i32, i32) {
    %c0_i32 = arith.constant 0 : i32
    %c0_i32_0 = arith.constant 0 : i32
    %c0_i32_1 = arith.constant 0 : i32
    return %c0_i32, %c0_i32_0 : i32, i32
  }
  func.func @transform_6(%arg0: i32) -> (i32, i32) {
    %c0_i32 = arith.constant 0 : i32
    %c0_i32_0 = arith.constant 0 : i32
    %c0_i32_1 = arith.constant 0 : i32
    return %c0_i32, %c0_i32_0 : i32, i32
  }
  func.func @transform_7(%arg0: i32) -> (i32, i32) {
    %c0_i32 = arith.constant 0 : i32
    %c0_i32_0 = arith.constant 0 : i32
    %c0_i32_1 = arith.constant 0 : i32
    return %c0_i32, %c0_i32_0 : i32, i32
  }
  func.func @transform_8(%arg0: i32) -> (i32, i32, i32) {
    %c0_i32 = arith.constant 0 : i32
    %c0_i32_0 = arith.constant 0 : i32
    %c0_i32_1 = arith.constant 0 : i32
    %c0_i32_2 = arith.constant 0 : i32
    return %c0_i32, %c0_i32_0, %c0_i32_1 : i32, i32, i32
  }
  func.func @transform_9(%arg0: i32) -> (i32, i32, i32) {
    %c0_i32 = arith.constant 0 : i32
    %c0_i32_0 = arith.constant 0 : i32
    %c0_i32_1 = arith.constant 0 : i32
    %c0_i32_2 = arith.constant 0 : i32
    return %c0_i32, %c0_i32_0, %c0_i32_1 : i32, i32, i32
  }
  func.func @transform_10(%arg0: i32) -> (i32, i32, i32) {
    %c0_i32 = arith.constant 0 : i32
    %c0_i32_0 = arith.constant 0 : i32
    %c0_i32_1 = arith.constant 0 : i32
    %c0_i32_2 = arith.constant 0 : i32
    return %c0_i32, %c0_i32_0, %c0_i32_1 : i32, i32, i32
  }
  func.func @transform_11(%arg0: i32) -> (i32, i32, i32) {
    %c0_i32 = arith.constant 0 : i32
    %c0_i32_0 = arith.constant 0 : i32
    %c0_i32_1 = arith.constant 0 : i32
    %c0_i32_2 = arith.constant 0 : i32
    return %c0_i32, %c0_i32_0, %c0_i32_1 : i32, i32, i32
  }
  func.func @transform_12(%arg0: i32) -> (i32, i32, i32) {
    %c0_i32 = arith.constant 0 : i32
    %c0_i32_0 = arith.constant 0 : i32
    %c0_i32_1 = arith.constant 0 : i32
    %c0_i32_2 = arith.constant 0 : i32
    return %c0_i32, %c0_i32_0, %c0_i32_1 : i32, i32, i32
  }
  func.func @transform_13(%arg0: i32) -> (i32, i32, i32) {
    %c0_i32 = arith.constant 0 : i32
    %c0_i32_0 = arith.constant 0 : i32
    %c0_i32_1 = arith.constant 0 : i32
    %c0_i32_2 = arith.constant 0 : i32
    return %c0_i32, %c0_i32_0, %c0_i32_1 : i32, i32, i32
  }
  func.func @transform_14(%arg0: i32) -> (i32, i32, i32) {
    %c0_i32 = arith.constant 0 : i32
    %c0_i32_0 = arith.constant 0 : i32
    %c0_i32_1 = arith.constant 0 : i32
    %c0_i32_2 = arith.constant 0 : i32
    return %c0_i32, %c0_i32_0, %c0_i32_1 : i32, i32, i32
  }
  func.func @transform_15(%arg0: i32) -> (i32, i32, i32) {
    %c0_i32 = arith.constant 0 : i32
    %c0_i32_0 = arith.constant 0 : i32
    %c0_i32_1 = arith.constant 0 : i32
    %c0_i32_2 = arith.constant 0 : i32
    return %c0_i32, %c0_i32_0, %c0_i32_1 : i32, i32, i32
  }
  func.func @transform_16(%arg0: i32) -> (i32, i32, i32) {
    %c0_i32 = arith.constant 0 : i32
    %c0_i32_0 = arith.constant 0 : i32
    %c0_i32_1 = arith.constant 0 : i32
    %c0_i32_2 = arith.constant 0 : i32
    return %c0_i32, %c0_i32_0, %c0_i32_1 : i32, i32, i32
  }
  func.func @transform_17(%arg0: i32) -> (i32, i32, i32) {
    %c0_i32 = arith.constant 0 : i32
    %c0_i32_0 = arith.constant 0 : i32
    %c0_i32_1 = arith.constant 0 : i32
    %c0_i32_2 = arith.constant 0 : i32
    return %c0_i32, %c0_i32_0, %c0_i32_1 : i32, i32, i32
  }
  func.func @transform_18(%arg0: i32) -> (i32, i32, i32) {
    %c0_i32 = arith.constant 0 : i32
    %c0_i32_0 = arith.constant 0 : i32
    %c0_i32_1 = arith.constant 0 : i32
    %c0_i32_2 = arith.constant 0 : i32
    return %c0_i32, %c0_i32_0, %c0_i32_1 : i32, i32, i32
  }
  func.func @transform_19(%arg0: i32) -> (i32, i32, i32) {
    %c0_i32 = arith.constant 0 : i32
    %c0_i32_0 = arith.constant 0 : i32
    %c0_i32_1 = arith.constant 0 : i32
    %c0_i32_2 = arith.constant 0 : i32
    return %c0_i32, %c0_i32_0, %c0_i32_1 : i32, i32, i32
  }
  func.func @transform_20(%arg0: i32) -> (i32, i32, i32) {
    %c0_i32 = arith.constant 0 : i32
    %c0_i32_0 = arith.constant 0 : i32
    %c0_i32_1 = arith.constant 0 : i32
    %c0_i32_2 = arith.constant 0 : i32
    return %c0_i32, %c0_i32_0, %c0_i32_1 : i32, i32, i32
  }
  func.func @transform_21(%arg0: i32) -> (i32, i32, i32) {
    %c0_i32 = arith.constant 0 : i32
    %c0_i32_0 = arith.constant 0 : i32
    %c0_i32_1 = arith.constant 0 : i32
    %c0_i32_2 = arith.constant 0 : i32
    return %c0_i32, %c0_i32_0, %c0_i32_1 : i32, i32, i32
  }
  func.func @transform_22(%arg0: i32) -> (i32, i32, i32) {
    %c0_i32 = arith.constant 0 : i32
    %c0_i32_0 = arith.constant 0 : i32
    %c0_i32_1 = arith.constant 0 : i32
    %c0_i32_2 = arith.constant 0 : i32
    return %c0_i32, %c0_i32_0, %c0_i32_1 : i32, i32, i32
  }
  func.func @transform_23(%arg0: i32) -> (i32, i32, i32) {
    %c0_i32 = arith.constant 0 : i32
    %c0_i32_0 = arith.constant 0 : i32
    %c0_i32_1 = arith.constant 0 : i32
    %c0_i32_2 = arith.constant 0 : i32
    return %c0_i32, %c0_i32_0, %c0_i32_1 : i32, i32, i32
  }
  func.func @transform_24(%arg0: i32) -> (i32, i32, i32) {
    %c0_i32 = arith.constant 0 : i32
    %c0_i32_0 = arith.constant 0 : i32
    %c0_i32_1 = arith.constant 0 : i32
    %c0_i32_2 = arith.constant 0 : i32
    return %c0_i32, %c0_i32_0, %c0_i32_1 : i32, i32, i32
  }
  func.func @transform_25(%arg0: i32) -> (i32, i32, i32) {
    %c0_i32 = arith.constant 0 : i32
    %c0_i32_0 = arith.constant 0 : i32
    %c0_i32_1 = arith.constant 0 : i32
    %c0_i32_2 = arith.constant 0 : i32
    return %c0_i32, %c0_i32_0, %c0_i32_1 : i32, i32, i32
  }
  func.func @transform_26(%arg0: i32) -> (i32, i32, i32) {
    %c0_i32 = arith.constant 0 : i32
    %c0_i32_0 = arith.constant 0 : i32
    %c0_i32_1 = arith.constant 0 : i32
    %c0_i32_2 = arith.constant 0 : i32
    return %c0_i32, %c0_i32_0, %c0_i32_1 : i32, i32, i32
  }
  func.func @transform_27(%arg0: i32) -> (i32, i32, i32) {
    %c0_i32 = arith.constant 0 : i32
    %c0_i32_0 = arith.constant 0 : i32
    %c0_i32_1 = arith.constant 0 : i32
    %c0_i32_2 = arith.constant 0 : i32
    return %c0_i32, %c0_i32_0, %c0_i32_1 : i32, i32, i32
  }
  func.func @transform_28(%arg0: i32) -> (i32, i32, i32) {
    %c0_i32 = arith.constant 0 : i32
    %c0_i32_0 = arith.constant 0 : i32
    %c0_i32_1 = arith.constant 0 : i32
    %c0_i32_2 = arith.constant 0 : i32
    return %c0_i32, %c0_i32_0, %c0_i32_1 : i32, i32, i32
  }
  func.func @transform_29(%arg0: i32) -> (i32, i32, i32) {
    %c0_i32 = arith.constant 0 : i32
    %c0_i32_0 = arith.constant 0 : i32
    %c0_i32_1 = arith.constant 0 : i32
    %c0_i32_2 = arith.constant 0 : i32
    return %c0_i32, %c0_i32_0, %c0_i32_1 : i32, i32, i32
  }
  func.func @transform_30(%arg0: i32) -> (i32, i32, i32) {
    %c0_i32 = arith.constant 0 : i32
    %c0_i32_0 = arith.constant 0 : i32
    %c0_i32_1 = arith.constant 0 : i32
    %c0_i32_2 = arith.constant 0 : i32
    return %c0_i32, %c0_i32_0, %c0_i32_1 : i32, i32, i32
  }
  func.func @transform_31(%arg0: i32) -> (i32, i32, i32) {
    %c0_i32 = arith.constant 0 : i32
    %c0_i32_0 = arith.constant 0 : i32
    %c0_i32_1 = arith.constant 0 : i32
    %c0_i32_2 = arith.constant 0 : i32
    return %c0_i32, %c0_i32_0, %c0_i32_1 : i32, i32, i32
  }
  func.func @transform_32(%arg0: i32) -> (i32, i32, i32) {
    %c0_i32 = arith.constant 0 : i32
    %c0_i32_0 = arith.constant 0 : i32
    %c0_i32_1 = arith.constant 0 : i32
    %c0_i32_2 = arith.constant 0 : i32
    return %c0_i32, %c0_i32_0, %c0_i32_1 : i32, i32, i32
  }
  func.func @transform_33(%arg0: i32) -> (i32, i32, i32) {
    %c0_i32 = arith.constant 0 : i32
    %c0_i32_0 = arith.constant 0 : i32
    %c0_i32_1 = arith.constant 0 : i32
    %c0_i32_2 = arith.constant 0 : i32
    return %c0_i32, %c0_i32_0, %c0_i32_1 : i32, i32, i32
  }
  func.func @transform_34(%arg0: i32) -> (i32, i32, i32) {
    %c0_i32 = arith.constant 0 : i32
    %c0_i32_0 = arith.constant 0 : i32
    %c0_i32_1 = arith.constant 0 : i32
    %c0_i32_2 = arith.constant 0 : i32
    return %c0_i32, %c0_i32_0, %c0_i32_1 : i32, i32, i32
  }
  func.func @transform_35(%arg0: i32) -> (i32, i32, i32) {
    %c0_i32 = arith.constant 0 : i32
    %c0_i32_0 = arith.constant 0 : i32
    %c0_i32_1 = arith.constant 0 : i32
    %c0_i32_2 = arith.constant 0 : i32
    return %c0_i32, %c0_i32_0, %c0_i32_1 : i32, i32, i32
  }
  func.func @transform_36(%arg0: i32) -> (i32, i32, i32) {
    %c0_i32 = arith.constant 0 : i32
    %c0_i32_0 = arith.constant 0 : i32
    %c0_i32_1 = arith.constant 0 : i32
    %c0_i32_2 = arith.constant 0 : i32
    return %c0_i32, %c0_i32_0, %c0_i32_1 : i32, i32, i32
  }
  func.func @transform_37(%arg0: i32) -> (i32, i32, i32) {
    %c0_i32 = arith.constant 0 : i32
    %c0_i32_0 = arith.constant 0 : i32
    %c0_i32_1 = arith.constant 0 : i32
    %c0_i32_2 = arith.constant 0 : i32
    return %c0_i32, %c0_i32_0, %c0_i32_1 : i32, i32, i32
  }
  func.func @transform_38(%arg0: i32) -> (i32, i32, i32) {
    %c0_i32 = arith.constant 0 : i32
    %c0_i32_0 = arith.constant 0 : i32
    %c0_i32_1 = arith.constant 0 : i32
    %c0_i32_2 = arith.constant 0 : i32
    return %c0_i32, %c0_i32_0, %c0_i32_1 : i32, i32, i32
  }
  func.func @transform_39(%arg0: i32) -> (i32, i32, i32) {
    %c0_i32 = arith.constant 0 : i32
    %c0_i32_0 = arith.constant 0 : i32
    %c0_i32_1 = arith.constant 0 : i32
    %c0_i32_2 = arith.constant 0 : i32
    return %c0_i32, %c0_i32_0, %c0_i32_1 : i32, i32, i32
  }
  func.func @transform_40(%arg0: i32) -> (i32, i32, i32) {
    %c0_i32 = arith.constant 0 : i32
    %c0_i32_0 = arith.constant 0 : i32
    %c0_i32_1 = arith.constant 0 : i32
    %c0_i32_2 = arith.constant 0 : i32
    return %c0_i32, %c0_i32_0, %c0_i32_1 : i32, i32, i32
  }
  func.func @transform_41(%arg0: i32) -> (i32, i32, i32) {
    %c0_i32 = arith.constant 0 : i32
    %c0_i32_0 = arith.constant 0 : i32
    %c0_i32_1 = arith.constant 0 : i32
    %c0_i32_2 = arith.constant 0 : i32
    return %c0_i32, %c0_i32_0, %c0_i32_1 : i32, i32, i32
  }
  func.func @transform_42(%arg0: i32) -> (i32, i32, i32) {
    %c0_i32 = arith.constant 0 : i32
    %c0_i32_0 = arith.constant 0 : i32
    %c0_i32_1 = arith.constant 0 : i32
    %c0_i32_2 = arith.constant 0 : i32
    return %c0_i32, %c0_i32_0, %c0_i32_1 : i32, i32, i32
  }
  func.func @transform_43(%arg0: i32) -> (i32, i32, i32) {
    %c0_i32 = arith.constant 0 : i32
    %c0_i32_0 = arith.constant 0 : i32
    %c0_i32_1 = arith.constant 0 : i32
    %c0_i32_2 = arith.constant 0 : i32
    return %c0_i32, %c0_i32_0, %c0_i32_1 : i32, i32, i32
  }
  func.func @transform_44(%arg0: i32) -> (i32, i32, i32) {
    %c0_i32 = arith.constant 0 : i32
    %c0_i32_0 = arith.constant 0 : i32
    %c0_i32_1 = arith.constant 0 : i32
    %c0_i32_2 = arith.constant 0 : i32
    return %c0_i32, %c0_i32_0, %c0_i32_1 : i32, i32, i32
  }
  func.func @transform_45(%arg0: i32) -> (i32, i32, i32) {
    %c0_i32 = arith.constant 0 : i32
    %c0_i32_0 = arith.constant 0 : i32
    %c0_i32_1 = arith.constant 0 : i32
    %c0_i32_2 = arith.constant 0 : i32
    return %c0_i32, %c0_i32_0, %c0_i32_1 : i32, i32, i32
  }
  func.func @transform_46(%arg0: i32) -> (i32, i32, i32) {
    %c0_i32 = arith.constant 0 : i32
    %c0_i32_0 = arith.constant 0 : i32
    %c0_i32_1 = arith.constant 0 : i32
    %c0_i32_2 = arith.constant 0 : i32
    return %c0_i32, %c0_i32_0, %c0_i32_1 : i32, i32, i32
  }
  func.func @transform_47(%arg0: i32) -> (i32, i32, i32) {
    %c0_i32 = arith.constant 0 : i32
    %c0_i32_0 = arith.constant 0 : i32
    %c0_i32_1 = arith.constant 0 : i32
    %c0_i32_2 = arith.constant 0 : i32
    return %c0_i32, %c0_i32_0, %c0_i32_1 : i32, i32, i32
  }
  func.func @transform_48(%arg0: i32) -> (i32, i32, i32) {
    %c0_i32 = arith.constant 0 : i32
    %c0_i32_0 = arith.constant 0 : i32
    %c0_i32_1 = arith.constant 0 : i32
    %c0_i32_2 = arith.constant 0 : i32
    return %c0_i32, %c0_i32_0, %c0_i32_1 : i32, i32, i32
  }
  func.func @transform_49(%arg0: i32) -> (i32, i32, i32) {
    %c0_i32 = arith.constant 0 : i32
    %c0_i32_0 = arith.constant 0 : i32
    %c0_i32_1 = arith.constant 0 : i32
    %c0_i32_2 = arith.constant 0 : i32
    return %c0_i32, %c0_i32_0, %c0_i32_1 : i32, i32, i32
  }
  func.func @transform_50(%arg0: i32) -> (i32, i32) {
    %c0_i32 = arith.constant 0 : i32
    %c0_i32_0 = arith.constant 0 : i32
    %c0_i32_1 = arith.constant 0 : i32
    return %c0_i32, %c0_i32_0 : i32, i32
  }
  func.func @transform_51(%arg0: i32) -> (i32, i32) {
    %c0_i32 = arith.constant 0 : i32
    %c0_i32_0 = arith.constant 0 : i32
    %c0_i32_1 = arith.constant 0 : i32
    return %c0_i32, %c0_i32_0 : i32, i32
  }
  func.func @transform_52(%arg0: i32) -> (i32, i32) {
    %c0_i32 = arith.constant 0 : i32
    %c0_i32_0 = arith.constant 0 : i32
    %c0_i32_1 = arith.constant 0 : i32
    return %c0_i32, %c0_i32_0 : i32, i32
  }
  func.func @transform_53(%arg0: i32) -> (i32, i32) {
    %c0_i32 = arith.constant 0 : i32
    %c0_i32_0 = arith.constant 0 : i32
    %c0_i32_1 = arith.constant 0 : i32
    return %c0_i32, %c0_i32_0 : i32, i32
  }
  func.func @transform_54(%arg0: i32) -> (i32, i32, i32) {
    %c0_i32 = arith.constant 0 : i32
    %c0_i32_0 = arith.constant 0 : i32
    %c0_i32_1 = arith.constant 0 : i32
    return %arg0, %c0_i32, %c0_i32_0 : i32, i32, i32
  }
}

</mosaic_0001>

<llo_original>
// kernel: transformer_model_forward.1
$region0: #{transformer_model_forward.1}
  #allocation0 [shape = 'u32[]', space=smem, size = 0x4, offset = 0x4, fixed_abs, tag = 'smem constant byte address 0x4 - core index']
  #allocation1 [shape = 'u32[144,128]{1,0:T(1,128)}', space=vmem, size = 0x12000, scoped, tag = 'internal scratch']
  %s0 = inlined_call_operand.smem [shape: u32[55], index: -1, kind: input, shape index: {}]
  %s1 = sld [smem:[%s0]]
  %s2 = scalar_lea.smem %s0, 1
  %s3 = sld [smem:[%s2]]
  %s4 = scalar_lea.smem %s0, 2
  %s5 = sld [smem:[%s4]]
  %s6 = scalar_lea.smem %s0, 3
  %s7 = sld [smem:[%s6]]
  %s8 = scalar_lea.smem %s0, 4
  %s9 = sld [smem:[%s8]]
  %s10 = scalar_lea.smem %s0, 5
  %s11 = sld [smem:[%s10]]
  %s12 = scalar_lea.smem %s0, 6
  %s13 = sld [smem:[%s12]]
  %s14 = scalar_lea.smem %s0, 7
  %s15 = sld [smem:[%s14]]
  %s16 = scalar_lea.smem %s0, 8
  %s17 = sld [smem:[%s16]]
  %s18 = scalar_lea.smem %s0, 9
  %s19 = sld [smem:[%s18]]
  %s20 = scalar_lea.smem %s0, 10
  %s21 = sld [smem:[%s20]]
  %s22 = scalar_lea.smem %s0, 11
  %s23 = sld [smem:[%s22]]
  %s24 = scalar_lea.smem %s0, 12
  %s25 = sld [smem:[%s24]]
  %s26 = scalar_lea.smem %s0, 13
  %s27 = sld [smem:[%s26]]
  %s28 = scalar_lea.smem %s0, 14
  %s29 = sld [smem:[%s28]]
  %s30 = scalar_lea.smem %s0, 15
  %s31 = sld [smem:[%s30]]
  %s32 = scalar_lea.smem %s0, 16
  %s33 = sld [smem:[%s32]]
  %s34 = scalar_lea.smem %s0, 17
  %s35 = sld [smem:[%s34]]
  %s36 = scalar_lea.smem %s0, 18
  %s37 = sld [smem:[%s36]]
  %s38 = scalar_lea.smem %s0, 19
  %s39 = sld [smem:[%s38]]
  %s40 = scalar_lea.smem %s0, 20
  %s41 = sld [smem:[%s40]]
  %s42 = scalar_lea.smem %s0, 21
  %s43 = sld [smem:[%s42]]
  %s44 = scalar_lea.smem %s0, 22
  %s45 = sld [smem:[%s44]]
  %s46 = scalar_lea.smem %s0, 23
  %s47 = sld [smem:[%s46]]
  %s48 = scalar_lea.smem %s0, 24
  %s49 = sld [smem:[%s48]]
  %s50 = scalar_lea.smem %s0, 25
  %s51 = sld [smem:[%s50]]
  %s52 = scalar_lea.smem %s0, 26
  %s53 = sld [smem:[%s52]]
  %s54 = scalar_lea.smem %s0, 27
  %s55 = sld [smem:[%s54]]
  %s56 = scalar_lea.smem %s0, 28
  %s57 = sld [smem:[%s56]]
  %s58 = scalar_lea.smem %s0, 29
  %s59 = sld [smem:[%s58]]
  %s60 = scalar_lea.smem %s0, 30
  %s61 = sld [smem:[%s60]]
  %s62 = scalar_lea.smem %s0, 31
  %s63 = sld [smem:[%s62]]
  %s64 = scalar_lea.smem %s0, 32
  %s65 = sld [smem:[%s64]]
  %s66 = scalar_lea.smem %s0, 33
  %s67 = sld [smem:[%s66]]
  %s68 = scalar_lea.smem %s0, 34
  %s69 = sld [smem:[%s68]]
  %s70 = scalar_lea.smem %s0, 35
  %s71 = sld [smem:[%s70]]
  %s72 = scalar_lea.smem %s0, 36
  %s73 = sld [smem:[%s72]]
  %s74 = scalar_lea.smem %s0, 37
  %s75 = sld [smem:[%s74]]
  %s76 = scalar_lea.smem %s0, 38
  %s77 = sld [smem:[%s76]]
  %s78 = scalar_lea.smem %s0, 39
  %s79 = sld [smem:[%s78]]
  %s80 = scalar_lea.smem %s0, 40
  %s81 = sld [smem:[%s80]]
  %s82 = scalar_lea.smem %s0, 41
  %s83 = sld [smem:[%s82]]
  %s84 = scalar_lea.smem %s0, 42
  %s85 = sld [smem:[%s84]]
  %s86 = scalar_lea.smem %s0, 43
  %s87 = sld [smem:[%s86]]
  %s88 = scalar_lea.smem %s0, 44
  %s89 = sld [smem:[%s88]]
  %s90 = scalar_lea.smem %s0, 45
  %s91 = sld [smem:[%s90]]
  %s92 = scalar_lea.smem %s0, 46
  %s93 = sld [smem:[%s92]]
  %s94 = scalar_lea.smem %s0, 47
  %s95 = sld [smem:[%s94]]
  %s96 = scalar_lea.smem %s0, 48
  %s97 = sld [smem:[%s96]]
  %s98 = scalar_lea.smem %s0, 49
  %s99 = sld [smem:[%s98]]
  %s100 = scalar_lea.smem %s0, 50
  %s101 = sld [smem:[%s100]]
  %s102 = scalar_lea.smem %s0, 51
  %s103 = sld [smem:[%s102]]
  %s104 = scalar_lea.smem %s0, 52
  %s105 = sld [smem:[%s104]]
  %s106 = scalar_lea.smem %s0, 53
  %s107 = sld [smem:[%s106]]
  %s108 = scalar_lea.smem %s0, 54
  %s109 = sld [smem:[%s108]]
  %s110 = sld [smem:[#allocation0]]
  $region417: #{transformer_model_forward.1} parent=0
    _
  %s112 = ssub.s32 1, %s110
  %s113 = scalar_select 0, %s112, %s110
  $region1: #{transformer_model_forward.1} parent=0
    #allocation2 [shape = 'u8[512]{0}', space=vmem, size = 0x400, scoped, tag = 'input window, operand 5, single buffered']
    #allocation3 [shape = 's32[2]{0}', space=sflag, size = 0x8, scoped, tag = 'scoped memory for transformer_model_forward.1']
    #allocation4 [shape = 's32[2]{0}', space=sflag, size = 0x8, scoped, tag = 'scoped memory for transformer_model_forward.1']
    #allocation5 [shape = 'u8[512]{0}', space=vmem, size = 0x400, scoped, tag = 'input window, operand 7, single buffered']
    #allocation6 [shape = 's32[1]{0}', space=sflag, size = 0x4, scoped, tag = 'scoped memory for transformer_model_forward.1']
    #allocation7 [shape = 'u8[1024]{0}', space=vmem, size = 0x400, scoped, tag = 'input window, operand 11, single buffered']
    #allocation8 [shape = 'u8[1024]{0}', space=vmem, size = 0x400, scoped, tag = 'input window, operand 13, single buffered']
    #allocation9 [shape = 's32[1]{0}', space=sflag, size = 0x4, scoped, tag = 'scoped memory for transformer_model_forward.1']
    #allocation10 [shape = 'u8[1024]{0}', space=vmem, size = 0x400, scoped, tag = 'input window, operand 15, single buffered']
    #allocation11 [shape = 'u8[32768]{0}', space=vmem, size = 0x8000, scoped, tag = 'input window, operand 16, single buffered']
    #allocation12 [shape = 's32[1]{0}', space=sflag, size = 0x4, scoped, tag = 'scoped memory for transformer_model_forward.1']
    #allocation13 [shape = 'u8[1024]{0}', space=vmem, size = 0x400, scoped, tag = 'input window, operand 17, single buffered']
    #allocation14 [shape = 'u8[1024]{0}', space=vmem, size = 0x400, scoped, tag = 'input window, operand 19, single buffered']
    #allocation15 [shape = 's32[1]{0}', space=sflag, size = 0x4, scoped, tag = 'scoped memory for transformer_model_forward.1']
    #allocation16 [shape = 'u8[1024]{0}', space=vmem, size = 0x400, scoped, tag = 'input window, operand 20, single buffered']
    #allocation17 [shape = 'u8[1024]{0}', space=vmem, size = 0x400, scoped, tag = 'input window, operand 21, single buffered']
    #allocation18 [shape = 's32[1]{0}', space=sflag, size = 0x4, scoped, tag = 'scoped memory for transformer_model_forward.1']
    #allocation19 [shape = 'u8[1024]{0}', space=vmem, size = 0x400, scoped, tag = 'input window, operand 22, single buffered']
    #allocation20 [shape = 'u8[1024]{0}', space=vmem, size = 0x400, scoped, tag = 'input window, operand 23, single buffered']
    #allocation21 [shape = 's32[1]{0}', space=sflag, size = 0x4, scoped, tag = 'scoped memory for transformer_model_forward.1']
    #allocation22 [shape = 'u8[32768]{0}', space=vmem, size = 0x8000, scoped, tag = 'input window, operand 24, single buffered']
    #allocation23 [shape = 'u8[1024]{0}', space=vmem, size = 0x400, scoped, tag = 'input window, operand 25, single buffered']
    #allocation24 [shape = 's32[1]{0}', space=sflag, size = 0x4, scoped, tag = 'scoped memory for transformer_model_forward.1']
    #allocation25 [shape = 'u8[32768]{0}', space=vmem, size = 0x8000, scoped, tag = 'input window, operand 26, single buffered']
    #allocation26 [shape = 'u8[1024]{0}', space=vmem, size = 0x400, scoped, tag = 'input window, operand 27, single buffered']
    #allocation27 [shape = 's32[1]{0}', space=sflag, size = 0x4, scoped, tag = 'scoped memory for transformer_model_forward.1']
    #allocation28 [shape = 'u8[32768]{0}', space=vmem, size = 0x8000, scoped, tag = 'input window, operand 28, single buffered']
    #allocation29 [shape = 'u8[1024]{0}', space=vmem, size = 0x400, scoped, tag = 'input window, operand 29, single buffered']
    #allocation30 [shape = 's32[1]{0}', space=sflag, size = 0x4, scoped, tag = 'scoped memory for transformer_model_forward.1']
    #allocation31 [shape = 'u8[32768]{0}', space=vmem, size = 0x8000, scoped, tag = 'input window, operand 30, single buffered']
    #allocation32 [shape = 'u8[1024]{0}', space=vmem, size = 0x400, scoped, tag = 'input window, operand 31, single buffered']
    #allocation33 [shape = 's32[1]{0}', space=sflag, size = 0x4, scoped, tag = 'scoped memory for transformer_model_forward.1']
    #allocation34 [shape = 'u8[32768]{0}', space=vmem, size = 0x8000, scoped, tag = 'input window, operand 32, single buffered']
    #allocation35 [shape = 'u8[1024]{0}', space=vmem, size = 0x400, scoped, tag = 'input window, operand 33, single buffered']
    #allocation36 [shape = 's32[1]{0}', space=sflag, size = 0x4, scoped, tag = 'scoped memory for transformer_model_forward.1']
    #allocation37 [shape = 'u8[32768]{0}', space=vmem, size = 0x8000, scoped, tag = 'input window, operand 34, single buffered']
    #allocation38 [shape = 'u8[1024]{0}', space=vmem, size = 0x400, scoped, tag = 'input window, operand 35, single buffered']
    #allocation39 [shape = 's32[1]{0}', space=sflag, size = 0x4, scoped, tag = 'scoped memory for transformer_model_forward.1']
    #allocation40 [shape = 'u8[32768]{0}', space=vmem, size = 0x8000, scoped, tag = 'input window, operand 36, single buffered']
    #allocation41 [shape = 'u8[1024]{0}', space=vmem, size = 0x400, scoped, tag = 'input window, operand 37, single buffered']
    #allocation42 [shape = 's32[1]{0}', space=sflag, size = 0x4, scoped, tag = 'scoped memory for transformer_model_forward.1']
    #allocation43 [shape = 'u8[32768]{0}', space=vmem, size = 0x8000, scoped, tag = 'input window, operand 38, single buffered']
    #allocation44 [shape = 'u8[1024]{0}', space=vmem, size = 0x400, scoped, tag = 'input window, operand 39, single buffered']
    #allocation45 [shape = 's32[1]{0}', space=sflag, size = 0x4, scoped, tag = 'scoped memory for transformer_model_forward.1']
    #allocation46 [shape = 'u8[32768]{0}', space=vmem, size = 0x8000, scoped, tag = 'input window, operand 40, single buffered']
    #allocation47 [shape = 'u8[1024]{0}', space=vmem, size = 0x400, scoped, tag = 'input window, operand 41, single buffered']
    #allocation48 [shape = 's32[1]{0}', space=sflag, size = 0x4, scoped, tag = 'scoped memory for transformer_model_forward.1']
    #allocation49 [shape = 'u8[32768]{0}', space=vmem, size = 0x8000, scoped, tag = 'input window, operand 42, single buffered']
    #allocation50 [shape = 'u8[1024]{0}', space=vmem, size = 0x400, scoped, tag = 'input window, operand 43, single buffered']
    #allocation51 [shape = 's32[1]{0}', space=sflag, size = 0x4, scoped, tag = 'scoped memory for transformer_model_forward.1']
    #allocation52 [shape = 'u8[1024]{0}', space=vmem, size = 0x400, scoped, tag = 'input window, operand 44, single buffered']
    #allocation53 [shape = 'u8[1024]{0}', space=vmem, size = 0x400, scoped, tag = 'input window, operand 45, single buffered']
    #allocation54 [shape = 's32[1]{0}', space=sflag, size = 0x4, scoped, tag = 'scoped memory for transformer_model_forward.1']
    #allocation55 [shape = 'u8[1024]{0}', space=vmem, size = 0x400, scoped, tag = 'input window, operand 46, single buffered']
    #allocation56 [shape = 'u8[1024]{0}', space=vmem, size = 0x400, scoped, tag = 'input window, operand 47, single buffered']
    #allocation57 [shape = 's32[1]{0}', space=sflag, size = 0x4, scoped, tag = 'scoped memory for transformer_model_forward.1']
    #allocation58 [shape = 'u8[1024]{0}', space=vmem, size = 0x400, scoped, tag = 'input window, operand 48, single buffered']
    #allocation59 [shape = 'u8[1024]{0}', space=vmem, size = 0x400, scoped, tag = 'input window, operand 49, single buffered']
    #allocation60 [shape = 's32[1]{0}', space=sflag, size = 0x4, scoped, tag = 'scoped memory for transformer_model_forward.1']
    #allocation61 [shape = 'u8[512]{0}', space=vmem, size = 0x400, scoped, tag = 'input window, operand 50, single buffered']
    #allocation62 [shape = 'u8[512]{0}', space=vmem, size = 0x400, scoped, tag = 'input window, operand 51, single buffered']
    #allocation63 [shape = 's32[1]{0}', space=sflag, size = 0x4, scoped, tag = 'scoped memory for transformer_model_forward.1']
    #allocation64 [shape = 'u8[512]{0}', space=vmem, size = 0x400, scoped, tag = 'input window, operand 52, single buffered']
    #allocation65 [shape = 'u8[512]{0}', space=vmem, size = 0x400, scoped, tag = 'input window, operand 53, single buffered']
    #allocation66 [shape = 's32[1]{0}', space=sflag, size = 0x4, scoped, tag = 'scoped memory for transformer_model_forward.1']
    #allocation67 [shape = 'u8[8192]{0}', space=vmem, size = 0x2000, scoped, tag = 'output window, operand 0']
    %114 = vsyncpa [#allocation3], 0
    %115 = vsyncpa [#allocation6], 0
    %116 = vsyncpa [#allocation9], 0
    %117 = vsyncpa [#allocation12], 0
    %118 = vsyncpa [#allocation15], 0
    %119 = vsyncpa [#allocation18], 0
    %120 = vsyncpa [#allocation21], 0
    %121 = vsyncpa [#allocation24], 0
    %122 = vsyncpa [#allocation27], 0
    %123 = vsyncpa [#allocation30], 0
    %124 = vsyncpa [#allocation33], 0
    %125 = vsyncpa [#allocation36], 0
    %126 = vsyncpa [#allocation39], 0
    %127 = vsyncpa [#allocation42], 0
    %128 = vsyncpa [#allocation45], 0
    %129 = vsyncpa [#allocation48], 0
    %130 = vsyncpa [#allocation51], 0
    %131 = vsyncpa [#allocation54], 0
    %132 = vsyncpa [#allocation57], 0
    %133 = vsyncpa [#allocation60], 0
    %134 = vsyncpa [#allocation63], 0
    %135 = vsyncpa [#allocation66], 0
    %136 = vsyncpa [#allocation4], 0
    %s137 = scalar_lea.sflag [#allocation4], 1
    %138 = vsyncpa %s137, 0
    loop: start=0, step=1, limit=4
    $region2: #{transformer_model_forward.1} parent=1 // loop_pre_header
      _
    $region3: #{transformer_model_forward.1} parent=1 // loop_header
      %s140 = sphi 0, %s144
      %p141 = scmp.ge.s32.totalorder %s140, 4
      %s150 = sphi 0, %s152
      %s153 = sphi 0, %s150
      %s154 = sphi 0, %s153
      %s170 = sphi 0, %s154
      %s176 = sphi 0, %s178
      %s179 = sphi 0, %s176
      %s180 = sphi 0, %s179
      %s196 = sphi 0, %s180
      %s200 = sphi 0, %s200
      %s202 = sphi 0, %s200
      %s203 = sphi 0, %s202
      %s217 = sphi 0, %s203
      %s221 = sphi 0, %s221
      %s223 = sphi 0, %s221
      %s224 = sphi 0, %s223
      %s238 = sphi 0, %s224
      %s242 = sphi 0, %s242
      %s244 = sphi 0, %s242
      %s245 = sphi 0, %s244
      %s259 = sphi 0, %s245
      %s263 = sphi 0, %s263
      %s265 = sphi 0, %s263
      %s266 = sphi 0, %s265
      %s280 = sphi 0, %s266
      %s284 = sphi 0, %s284
      %s286 = sphi 0, %s284
      %s287 = sphi 0, %s286
      %s301 = sphi 0, %s287
      %s305 = sphi 0, %s305
      %s307 = sphi 0, %s305
      %s308 = sphi 0, %s307
      %s322 = sphi 0, %s308
      %s326 = sphi 0, %s326
      %s328 = sphi 0, %s326
      %s329 = sphi 0, %s328
      %s343 = sphi 0, %s329
      %s347 = sphi 0, %s347
      %s349 = sphi 0, %s347
      %s350 = sphi 0, %s349
      %s364 = sphi 0, %s350
      %s368 = sphi 0, %s368
      %s370 = sphi 0, %s368
      %s371 = sphi 0, %s370
      %s385 = sphi 0, %s371
      %s389 = sphi 0, %s389
      %s391 = sphi 0, %s389
      %s392 = sphi 0, %s391
      %s406 = sphi 0, %s392
      %s410 = sphi 0, %s410
      %s412 = sphi 0, %s410
      %s413 = sphi 0, %s412
      %s427 = sphi 0, %s413
      %s431 = sphi 0, %s431
      %s433 = sphi 0, %s431
      %s434 = sphi 0, %s433
      %s448 = sphi 0, %s434
      %s452 = sphi 0, %s452
      %s454 = sphi 0, %s452
      %s455 = sphi 0, %s454
      %s469 = sphi 0, %s455
      %s473 = sphi 0, %s473
      %s475 = sphi 0, %s473
      %s476 = sphi 0, %s475
      %s490 = sphi 0, %s476
      %s494 = sphi 0, %s494
      %s496 = sphi 0, %s494
      %s497 = sphi 0, %s496
      %s511 = sphi 0, %s497
      %s515 = sphi 0, %s515
      %s517 = sphi 0, %s515
      %s518 = sphi 0, %s517
      %s532 = sphi 0, %s518
      %s536 = sphi 0, %s536
      %s538 = sphi 0, %s536
      %s539 = sphi 0, %s538
      %s553 = sphi 0, %s539
      %s557 = sphi 0, %s557
      %s559 = sphi 0, %s557
      %s560 = sphi 0, %s559
      %s574 = sphi 0, %s560
      %s578 = sphi 0, %s578
      %s580 = sphi 0, %s578
      %s581 = sphi 0, %s580
      %s595 = sphi 0, %s581
      %s599 = sphi 0, %s599
      %s601 = sphi 0, %s599
      %s602 = sphi 0, %s601
      %s616 = sphi 0, %s602
      %s620 = sphi 0, %s620
      %s622 = sphi 0, %s620
      %s623 = sphi 0, %s622
      %s637 = sphi 0, %s623
      %s641 = sphi 0, %s641
      %s643 = sphi 0, %s641
      %s644 = sphi 0, %s643
      %s658 = sphi 0, %s644
      %s662 = sphi 0, %s662
      %s664 = sphi 0, %s662
      %s665 = sphi 0, %s664
      %s679 = sphi 0, %s665
      %s683 = sphi 0, %s683
      %s685 = sphi 0, %s683
      %s686 = sphi 0, %s685
      %s700 = sphi 0, %s686
      %s704 = sphi 0, %s704
      %s706 = sphi 0, %s704
      %s707 = sphi 0, %s706
      %s721 = sphi 0, %s707
      %s725 = sphi 0, %s725
      %s727 = sphi 0, %s725
      %s728 = sphi 0, %s727
      %s742 = sphi 0, %s728
      %s746 = sphi 0, %s746
      %s748 = sphi 0, %s746
      %s749 = sphi 0, %s748
      %s763 = sphi 0, %s749
      %s767 = sphi 0, %s767
      %s769 = sphi 0, %s767
      %s770 = sphi 0, %s769
      %s784 = sphi 0, %s770
      %s788 = sphi 0, %s788
      %s790 = sphi 0, %s788
      %s791 = sphi 0, %s790
      %s805 = sphi 0, %s791
      %s809 = sphi 0, %s809
      %s811 = sphi 0, %s809
      %s812 = sphi 0, %s811
      %s826 = sphi 0, %s812
      %s830 = sphi 0, %s830
      %s832 = sphi 0, %s830
      %s833 = sphi 0, %s832
      %s847 = sphi 0, %s833
      %s851 = sphi 0, %s851
      %s853 = sphi 0, %s851
      %s854 = sphi 0, %s853
      %s868 = sphi 0, %s854
      %s872 = sphi 0, %s872
      %s874 = sphi 0, %s872
      %s875 = sphi 0, %s874
      %s889 = sphi 0, %s875
      %s893 = sphi 0, %s893
      %s895 = sphi 0, %s893
      %s896 = sphi 0, %s895
      %s910 = sphi 0, %s896
      %s914 = sphi 0, %s914
      %s916 = sphi 0, %s914
      %s917 = sphi 0, %s916
      %s931 = sphi 0, %s917
      %s935 = sphi 0, %s935
      %s937 = sphi 0, %s935
      %s938 = sphi 0, %s937
      %s952 = sphi 0, %s938
      %s956 = sphi 0, %s956
      %s958 = sphi 0, %s956
      %s959 = sphi 0, %s958
      %s973 = sphi 0, %s959
      %s977 = sphi 0, %s977
      %s979 = sphi 0, %s977
      %s980 = sphi 0, %s979
      %s994 = sphi 0, %s980
      %s998 = sphi 0, %s998
      %s1000 = sphi 0, %s998
      %s1001 = sphi 0, %s1000
      %s1015 = sphi 0, %s1001
      %s1019 = sphi 0, %s1019
      %s1021 = sphi 0, %s1019
      %s1022 = sphi 0, %s1021
      %s1036 = sphi 0, %s1022
      %s1040 = sphi 0, %s1040
      %s1042 = sphi 0, %s1040
      %s1043 = sphi 0, %s1042
      %s1057 = sphi 0, %s1043
      %s1061 = sphi 0, %s1061
      %s1063 = sphi 0, %s1061
      %s1064 = sphi 0, %s1063
      %s1078 = sphi 0, %s1064
      %s1082 = sphi 0, %s1082
      %s1084 = sphi 0, %s1082
      %s1085 = sphi 0, %s1084
      %s1099 = sphi 0, %s1085
      %s1103 = sphi 0, %s1103
      %s1105 = sphi 0, %s1103
      %s1106 = sphi 0, %s1105
      %s1120 = sphi 0, %s1106
      %s1124 = sphi 0, %s1124
      %s1126 = sphi 0, %s1124
      %s1127 = sphi 0, %s1126
      %s1141 = sphi 0, %s1127
      %s1145 = sphi 0, %s1145
      %s1147 = sphi 0, %s1145
      %s1148 = sphi 0, %s1147
      %s1162 = sphi 0, %s1148
      %s1166 = sphi 0, %s1166
      %s1168 = sphi 0, %s1166
      %s1169 = sphi 0, %s1168
      %s1183 = sphi 0, %s1169
      %s1187 = sphi 0, %s1187
      %s1189 = sphi 0, %s1187
      %s1190 = sphi 0, %s1189
      %s1204 = sphi 0, %s1190
      %s1208 = sphi 0, %s1208
      %s1210 = sphi 0, %s1208
      %s1211 = sphi 0, %s1210
      %s1225 = sphi 0, %s1211
      %s1229 = sphi 0, %s1229
      %s1231 = sphi 0, %s1229
      %s1232 = sphi 0, %s1231
      %s1246 = sphi 0, %s1232
      %s1250 = sphi 0, %s1250
      %s1252 = sphi 0, %s1250
      %s1253 = sphi 0, %s1252
      %s1267 = sphi 0, %s1253
      %s1271 = sphi 0, %s1271
      %s1273 = sphi 0, %s1271
      %s1274 = sphi 0, %s1273
      %s1288 = sphi 0, %s1274
      %s1294 = sphi 0, %s1296
      %s1297 = sphi 0, %s1294
      %s1298 = sphi 0, %s1297
      %s1314 = sphi 0, %s1298
    $region4: #{transformer_model_forward.1} parent=1 // loop_header_branch
      %143 = sbr.rel (%p141) target = $region8
    $region5: #{transformer_model_forward.1} parent=1 // loop_body
      %s145 = ssub.s32 %s140, 1
      %s146 = ssub.s32 %s140, 2
      %s147 = sadd.s32 %s140, 1
      %s148 = ssub.s32 %s140, %s147
      %p149 = scmp.eq.s32.totalorder %s148, 0
      %s151 = sadd.s32 %s150, 1
      %s152 = scalar_select %p149, %s150, %s151
      %p155 = pneg %p149
      %p156 = scmp.eq.s32.totalorder %s140, 1
      %p157 = por %p155, %p156
      %p158 = scmp.ne.s32.totalorder %s150, %s153
      %p159 = scmp.eq.s32.totalorder %s140, 0
      %p160 = por %p158, %p159
      %p161 = scmp.ne.s32.totalorder %s150, %s153
      %p162 = scmp.eq.s32.totalorder %s145, 1
      %p163 = por %p161, %p162
      %p164 = scmp.ne.s32.totalorder %s153, %s154
      %p165 = scmp.eq.s32.totalorder %s145, 0
      %p166 = por %p164, %p165
      %p167 = scmp.ne.s32.totalorder %s153, %s154
      %p168 = scmp.eq.s32.totalorder %s146, 1
      %p169 = por %p167, %p168
      %p171 = scmp.ne.s32.totalorder %s154, %s170
      %p172 = scmp.eq.s32.totalorder %s146, 0
      %p173 = por %p171, %p172
      %s174 = ssub.s32 %s140, %s147
      %p175 = scmp.eq.s32.totalorder %s174, 0
      %s177 = sadd.s32 %s176, 1
      %s178 = scalar_select %p175, %s176, %s177
      %p181 = pneg %p175
      %p182 = scmp.eq.s32.totalorder %s140, 1
      %p183 = por %p181, %p182
      %p184 = scmp.ne.s32.totalorder %s176, %s179
      %p185 = scmp.eq.s32.totalorder %s140, 0
      %p186 = por %p184, %p185
      %p187 = scmp.ne.s32.totalorder %s176, %s179
      %p188 = scmp.eq.s32.totalorder %s145, 1
      %p189 = por %p187, %p188
      %p190 = scmp.ne.s32.totalorder %s179, %s180
      %p191 = scmp.eq.s32.totalorder %s145, 0
      %p192 = por %p190, %p191
      %p193 = scmp.ne.s32.totalorder %s179, %s180
      %p194 = scmp.eq.s32.totalorder %s146, 1
      %p195 = por %p193, %p194
      %p197 = scmp.ne.s32.totalorder %s180, %s196
      %p198 = scmp.eq.s32.totalorder %s146, 0
      %p199 = por %p197, %p198
      %s201 = sadd.s32 %s200, 1
      %p204 = scmp.eq.s32.totalorder %s140, 1
      %p205 = scmp.ne.s32.totalorder %s200, %s202
      %p206 = scmp.eq.s32.totalorder %s140, 0
      %p207 = por %p205, %p206
      %p208 = scmp.ne.s32.totalorder %s200, %s202
      %p209 = scmp.eq.s32.totalorder %s145, 1
      %p210 = por %p208, %p209
      %p211 = scmp.ne.s32.totalorder %s202, %s203
      %p212 = scmp.eq.s32.totalorder %s145, 0
      %p213 = por %p211, %p212
      %p214 = scmp.ne.s32.totalorder %s202, %s203
      %p215 = scmp.eq.s32.totalorder %s146, 1
      %p216 = por %p214, %p215
      %p218 = scmp.ne.s32.totalorder %s203, %s217
      %p219 = scmp.eq.s32.totalorder %s146, 0
      %p220 = por %p218, %p219
      %s222 = sadd.s32 %s221, 1
      %p225 = scmp.eq.s32.totalorder %s140, 1
      %p226 = scmp.ne.s32.totalorder %s221, %s223
      %p227 = scmp.eq.s32.totalorder %s140, 0
      %p228 = por %p226, %p227
      %p229 = scmp.ne.s32.totalorder %s221, %s223
      %p230 = scmp.eq.s32.totalorder %s145, 1
      %p231 = por %p229, %p230
      %p232 = scmp.ne.s32.totalorder %s223, %s224
      %p233 = scmp.eq.s32.totalorder %s145, 0
      %p234 = por %p232, %p233
      %p235 = scmp.ne.s32.totalorder %s223, %s224
      %p236 = scmp.eq.s32.totalorder %s146, 1
      %p237 = por %p235, %p236
      %p239 = scmp.ne.s32.totalorder %s224, %s238
      %p240 = scmp.eq.s32.totalorder %s146, 0
      %p241 = por %p239, %p240
      %s243 = sadd.s32 %s242, 1
      %p246 = scmp.eq.s32.totalorder %s140, 1
      %p247 = scmp.ne.s32.totalorder %s242, %s244
      %p248 = scmp.eq.s32.totalorder %s140, 0
      %p249 = por %p247, %p248
      %p250 = scmp.ne.s32.totalorder %s242, %s244
      %p251 = scmp.eq.s32.totalorder %s145, 1
      %p252 = por %p250, %p251
      %p253 = scmp.ne.s32.totalorder %s244, %s245
      %p254 = scmp.eq.s32.totalorder %s145, 0
      %p255 = por %p253, %p254
      %p256 = scmp.ne.s32.totalorder %s244, %s245
      %p257 = scmp.eq.s32.totalorder %s146, 1
      %p258 = por %p256, %p257
      %p260 = scmp.ne.s32.totalorder %s245, %s259
      %p261 = scmp.eq.s32.totalorder %s146, 0
      %p262 = por %p260, %p261
      %s264 = sadd.s32 %s263, 1
      %p267 = scmp.eq.s32.totalorder %s140, 1
      %p268 = scmp.ne.s32.totalorder %s263, %s265
      %p269 = scmp.eq.s32.totalorder %s140, 0
      %p270 = por %p268, %p269
      %p271 = scmp.ne.s32.totalorder %s263, %s265
      %p272 = scmp.eq.s32.totalorder %s145, 1
      %p273 = por %p271, %p272
      %p274 = scmp.ne.s32.totalorder %s265, %s266
      %p275 = scmp.eq.s32.totalorder %s145, 0
      %p276 = por %p274, %p275
      %p277 = scmp.ne.s32.totalorder %s265, %s266
      %p278 = scmp.eq.s32.totalorder %s146, 1
      %p279 = por %p277, %p278
      %p281 = scmp.ne.s32.totalorder %s266, %s280
      %p282 = scmp.eq.s32.totalorder %s146, 0
      %p283 = por %p281, %p282
      %s285 = sadd.s32 %s284, 1
      %p288 = scmp.eq.s32.totalorder %s140, 1
      %p289 = scmp.ne.s32.totalorder %s284, %s286
      %p290 = scmp.eq.s32.totalorder %s140, 0
      %p291 = por %p289, %p290
      %p292 = scmp.ne.s32.totalorder %s284, %s286
      %p293 = scmp.eq.s32.totalorder %s145, 1
      %p294 = por %p292, %p293
      %p295 = scmp.ne.s32.totalorder %s286, %s287
      %p296 = scmp.eq.s32.totalorder %s145, 0
      %p297 = por %p295, %p296
      %p298 = scmp.ne.s32.totalorder %s286, %s287
      %p299 = scmp.eq.s32.totalorder %s146, 1
      %p300 = por %p298, %p299
      %p302 = scmp.ne.s32.totalorder %s287, %s301
      %p303 = scmp.eq.s32.totalorder %s146, 0
      %p304 = por %p302, %p303
      %s306 = sadd.s32 %s305, 1
      %p309 = scmp.eq.s32.totalorder %s140, 1
      %p310 = scmp.ne.s32.totalorder %s305, %s307
      %p311 = scmp.eq.s32.totalorder %s140, 0
      %p312 = por %p310, %p311
      %p313 = scmp.ne.s32.totalorder %s305, %s307
      %p314 = scmp.eq.s32.totalorder %s145, 1
      %p315 = por %p313, %p314
      %p316 = scmp.ne.s32.totalorder %s307, %s308
      %p317 = scmp.eq.s32.totalorder %s145, 0
      %p318 = por %p316, %p317
      %p319 = scmp.ne.s32.totalorder %s307, %s308
      %p320 = scmp.eq.s32.totalorder %s146, 1
      %p321 = por %p319, %p320
      %p323 = scmp.ne.s32.totalorder %s308, %s322
      %p324 = scmp.eq.s32.totalorder %s146, 0
      %p325 = por %p323, %p324
      %s327 = sadd.s32 %s326, 1
      %p330 = scmp.eq.s32.totalorder %s140, 1
      %p331 = scmp.ne.s32.totalorder %s326, %s328
      %p332 = scmp.eq.s32.totalorder %s140, 0
      %p333 = por %p331, %p332
      %p334 = scmp.ne.s32.totalorder %s326, %s328
      %p335 = scmp.eq.s32.totalorder %s145, 1
      %p336 = por %p334, %p335
      %p337 = scmp.ne.s32.totalorder %s328, %s329
      %p338 = scmp.eq.s32.totalorder %s145, 0
      %p339 = por %p337, %p338
      %p340 = scmp.ne.s32.totalorder %s328, %s329
      %p341 = scmp.eq.s32.totalorder %s146, 1
      %p342 = por %p340, %p341
      %p344 = scmp.ne.s32.totalorder %s329, %s343
      %p345 = scmp.eq.s32.totalorder %s146, 0
      %p346 = por %p344, %p345
      %s348 = sadd.s32 %s347, 1
      %p351 = scmp.eq.s32.totalorder %s140, 1
      %p352 = scmp.ne.s32.totalorder %s347, %s349
      %p353 = scmp.eq.s32.totalorder %s140, 0
      %p354 = por %p352, %p353
      %p355 = scmp.ne.s32.totalorder %s347, %s349
      %p356 = scmp.eq.s32.totalorder %s145, 1
      %p357 = por %p355, %p356
      %p358 = scmp.ne.s32.totalorder %s349, %s350
      %p359 = scmp.eq.s32.totalorder %s145, 0
      %p360 = por %p358, %p359
      %p361 = scmp.ne.s32.totalorder %s349, %s350
      %p362 = scmp.eq.s32.totalorder %s146, 1
      %p363 = por %p361, %p362
      %p365 = scmp.ne.s32.totalorder %s350, %s364
      %p366 = scmp.eq.s32.totalorder %s146, 0
      %p367 = por %p365, %p366
      %s369 = sadd.s32 %s368, 1
      %p372 = scmp.eq.s32.totalorder %s140, 1
      %p373 = scmp.ne.s32.totalorder %s368, %s370
      %p374 = scmp.eq.s32.totalorder %s140, 0
      %p375 = por %p373, %p374
      %p376 = scmp.ne.s32.totalorder %s368, %s370
      %p377 = scmp.eq.s32.totalorder %s145, 1
      %p378 = por %p376, %p377
      %p379 = scmp.ne.s32.totalorder %s370, %s371
      %p380 = scmp.eq.s32.totalorder %s145, 0
      %p381 = por %p379, %p380
      %p382 = scmp.ne.s32.totalorder %s370, %s371
      %p383 = scmp.eq.s32.totalorder %s146, 1
      %p384 = por %p382, %p383
      %p386 = scmp.ne.s32.totalorder %s371, %s385
      %p387 = scmp.eq.s32.totalorder %s146, 0
      %p388 = por %p386, %p387
      %s390 = sadd.s32 %s389, 1
      %p393 = scmp.eq.s32.totalorder %s140, 1
      %p394 = scmp.ne.s32.totalorder %s389, %s391
      %p395 = scmp.eq.s32.totalorder %s140, 0
      %p396 = por %p394, %p395
      %p397 = scmp.ne.s32.totalorder %s389, %s391
      %p398 = scmp.eq.s32.totalorder %s145, 1
      %p399 = por %p397, %p398
      %p400 = scmp.ne.s32.totalorder %s391, %s392
      %p401 = scmp.eq.s32.totalorder %s145, 0
      %p402 = por %p400, %p401
      %p403 = scmp.ne.s32.totalorder %s391, %s392
      %p404 = scmp.eq.s32.totalorder %s146, 1
      %p405 = por %p403, %p404
      %p407 = scmp.ne.s32.totalorder %s392, %s406
      %p408 = scmp.eq.s32.totalorder %s146, 0
      %p409 = por %p407, %p408
      %s411 = sadd.s32 %s410, 1
      %p414 = scmp.eq.s32.totalorder %s140, 1
      %p415 = scmp.ne.s32.totalorder %s410, %s412
      %p416 = scmp.eq.s32.totalorder %s140, 0
      %p417 = por %p415, %p416
      %p418 = scmp.ne.s32.totalorder %s410, %s412
      %p419 = scmp.eq.s32.totalorder %s145, 1
      %p420 = por %p418, %p419
      %p421 = scmp.ne.s32.totalorder %s412, %s413
      %p422 = scmp.eq.s32.totalorder %s145, 0
      %p423 = por %p421, %p422
      %p424 = scmp.ne.s32.totalorder %s412, %s413
      %p425 = scmp.eq.s32.totalorder %s146, 1
      %p426 = por %p424, %p425
      %p428 = scmp.ne.s32.totalorder %s413, %s427
      %p429 = scmp.eq.s32.totalorder %s146, 0
      %p430 = por %p428, %p429
      %s432 = sadd.s32 %s431, 1
      %p435 = scmp.eq.s32.totalorder %s140, 1
      %p436 = scmp.ne.s32.totalorder %s431, %s433
      %p437 = scmp.eq.s32.totalorder %s140, 0
      %p438 = por %p436, %p437
      %p439 = scmp.ne.s32.totalorder %s431, %s433
      %p440 = scmp.eq.s32.totalorder %s145, 1
      %p441 = por %p439, %p440
      %p442 = scmp.ne.s32.totalorder %s433, %s434
      %p443 = scmp.eq.s32.totalorder %s145, 0
      %p444 = por %p442, %p443
      %p445 = scmp.ne.s32.totalorder %s433, %s434
      %p446 = scmp.eq.s32.totalorder %s146, 1
      %p447 = por %p445, %p446
      %p449 = scmp.ne.s32.totalorder %s434, %s448
      %p450 = scmp.eq.s32.totalorder %s146, 0
      %p451 = por %p449, %p450
      %s453 = sadd.s32 %s452, 1
      %p456 = scmp.eq.s32.totalorder %s140, 1
      %p457 = scmp.ne.s32.totalorder %s452, %s454
      %p458 = scmp.eq.s32.totalorder %s140, 0
      %p459 = por %p457, %p458
      %p460 = scmp.ne.s32.totalorder %s452, %s454
      %p461 = scmp.eq.s32.totalorder %s145, 1
      %p462 = por %p460, %p461
      %p463 = scmp.ne.s32.totalorder %s454, %s455
      %p464 = scmp.eq.s32.totalorder %s145, 0
      %p465 = por %p463, %p464
      %p466 = scmp.ne.s32.totalorder %s454, %s455
      %p467 = scmp.eq.s32.totalorder %s146, 1
      %p468 = por %p466, %p467
      %p470 = scmp.ne.s32.totalorder %s455, %s469
      %p471 = scmp.eq.s32.totalorder %s146, 0
      %p472 = por %p470, %p471
      %s474 = sadd.s32 %s473, 1
      %p477 = scmp.eq.s32.totalorder %s140, 1
      %p478 = scmp.ne.s32.totalorder %s473, %s475
      %p479 = scmp.eq.s32.totalorder %s140, 0
      %p480 = por %p478, %p479
      %p481 = scmp.ne.s32.totalorder %s473, %s475
      %p482 = scmp.eq.s32.totalorder %s145, 1
      %p483 = por %p481, %p482
      %p484 = scmp.ne.s32.totalorder %s475, %s476
      %p485 = scmp.eq.s32.totalorder %s145, 0
      %p486 = por %p484, %p485
      %p487 = scmp.ne.s32.totalorder %s475, %s476
      %p488 = scmp.eq.s32.totalorder %s146, 1
      %p489 = por %p487, %p488
      %p491 = scmp.ne.s32.totalorder %s476, %s490
      %p492 = scmp.eq.s32.totalorder %s146, 0
      %p493 = por %p491, %p492
      %s495 = sadd.s32 %s494, 1
      %p498 = scmp.eq.s32.totalorder %s140, 1
      %p499 = scmp.ne.s32.totalorder %s494, %s496
      %p500 = scmp.eq.s32.totalorder %s140, 0
      %p501 = por %p499, %p500
      %p502 = scmp.ne.s32.totalorder %s494, %s496
      %p503 = scmp.eq.s32.totalorder %s145, 1
      %p504 = por %p502, %p503
      %p505 = scmp.ne.s32.totalorder %s496, %s497
      %p506 = scmp.eq.s32.totalorder %s145, 0
      %p507 = por %p505, %p506
      %p508 = scmp.ne.s32.totalorder %s496, %s497
      %p509 = scmp.eq.s32.totalorder %s146, 1
      %p510 = por %p508, %p509
      %p512 = scmp.ne.s32.totalorder %s497, %s511
      %p513 = scmp.eq.s32.totalorder %s146, 0
      %p514 = por %p512, %p513
      %s516 = sadd.s32 %s515, 1
      %p519 = scmp.eq.s32.totalorder %s140, 1
      %p520 = scmp.ne.s32.totalorder %s515, %s517
      %p521 = scmp.eq.s32.totalorder %s140, 0
      %p522 = por %p520, %p521
      %p523 = scmp.ne.s32.totalorder %s515, %s517
      %p524 = scmp.eq.s32.totalorder %s145, 1
      %p525 = por %p523, %p524
      %p526 = scmp.ne.s32.totalorder %s517, %s518
      %p527 = scmp.eq.s32.totalorder %s145, 0
      %p528 = por %p526, %p527
      %p529 = scmp.ne.s32.totalorder %s517, %s518
      %p530 = scmp.eq.s32.totalorder %s146, 1
      %p531 = por %p529, %p530
      %p533 = scmp.ne.s32.totalorder %s518, %s532
      %p534 = scmp.eq.s32.totalorder %s146, 0
      %p535 = por %p533, %p534
      %s537 = sadd.s32 %s536, 1
      %p540 = scmp.eq.s32.totalorder %s140, 1
      %p541 = scmp.ne.s32.totalorder %s536, %s538
      %p542 = scmp.eq.s32.totalorder %s140, 0
      %p543 = por %p541, %p542
      %p544 = scmp.ne.s32.totalorder %s536, %s538
      %p545 = scmp.eq.s32.totalorder %s145, 1
      %p546 = por %p544, %p545
      %p547 = scmp.ne.s32.totalorder %s538, %s539
      %p548 = scmp.eq.s32.totalorder %s145, 0
      %p549 = por %p547, %p548
      %p550 = scmp.ne.s32.totalorder %s538, %s539
      %p551 = scmp.eq.s32.totalorder %s146, 1
      %p552 = por %p550, %p551
      %p554 = scmp.ne.s32.totalorder %s539, %s553
      %p555 = scmp.eq.s32.totalorder %s146, 0
      %p556 = por %p554, %p555
      %s558 = sadd.s32 %s557, 1
      %p561 = scmp.eq.s32.totalorder %s140, 1
      %p562 = scmp.ne.s32.totalorder %s557, %s559
      %p563 = scmp.eq.s32.totalorder %s140, 0
      %p564 = por %p562, %p563
      %p565 = scmp.ne.s32.totalorder %s557, %s559
      %p566 = scmp.eq.s32.totalorder %s145, 1
      %p567 = por %p565, %p566
      %p568 = scmp.ne.s32.totalorder %s559, %s560
      %p569 = scmp.eq.s32.totalorder %s145, 0
      %p570 = por %p568, %p569
      %p571 = scmp.ne.s32.totalorder %s559, %s560
      %p572 = scmp.eq.s32.totalorder %s146, 1
      %p573 = por %p571, %p572
      %p575 = scmp.ne.s32.totalorder %s560, %s574
      %p576 = scmp.eq.s32.totalorder %s146, 0
      %p577 = por %p575, %p576
      %s579 = sadd.s32 %s578, 1
      %p582 = scmp.eq.s32.totalorder %s140, 1
      %p583 = scmp.ne.s32.totalorder %s578, %s580
      %p584 = scmp.eq.s32.totalorder %s140, 0
      %p585 = por %p583, %p584
      %p586 = scmp.ne.s32.totalorder %s578, %s580
      %p587 = scmp.eq.s32.totalorder %s145, 1
      %p588 = por %p586, %p587
      %p589 = scmp.ne.s32.totalorder %s580, %s581
      %p590 = scmp.eq.s32.totalorder %s145, 0
      %p591 = por %p589, %p590
      %p592 = scmp.ne.s32.totalorder %s580, %s581
      %p593 = scmp.eq.s32.totalorder %s146, 1
      %p594 = por %p592, %p593
      %p596 = scmp.ne.s32.totalorder %s581, %s595
      %p597 = scmp.eq.s32.totalorder %s146, 0
      %p598 = por %p596, %p597
      %s600 = sadd.s32 %s599, 1
      %p603 = scmp.eq.s32.totalorder %s140, 1
      %p604 = scmp.ne.s32.totalorder %s599, %s601
      %p605 = scmp.eq.s32.totalorder %s140, 0
      %p606 = por %p604, %p605
      %p607 = scmp.ne.s32.totalorder %s599, %s601
      %p608 = scmp.eq.s32.totalorder %s145, 1
      %p609 = por %p607, %p608
      %p610 = scmp.ne.s32.totalorder %s601, %s602
      %p611 = scmp.eq.s32.totalorder %s145, 0
      %p612 = por %p610, %p611
      %p613 = scmp.ne.s32.totalorder %s601, %s602
      %p614 = scmp.eq.s32.totalorder %s146, 1
      %p615 = por %p613, %p614
      %p617 = scmp.ne.s32.totalorder %s602, %s616
      %p618 = scmp.eq.s32.totalorder %s146, 0
      %p619 = por %p617, %p618
      %s621 = sadd.s32 %s620, 1
      %p624 = scmp.eq.s32.totalorder %s140, 1
      %p625 = scmp.ne.s32.totalorder %s620, %s622
      %p626 = scmp.eq.s32.totalorder %s140, 0
      %p627 = por %p625, %p626
      %p628 = scmp.ne.s32.totalorder %s620, %s622
      %p629 = scmp.eq.s32.totalorder %s145, 1
      %p630 = por %p628, %p629
      %p631 = scmp.ne.s32.totalorder %s622, %s623
      %p632 = scmp.eq.s32.totalorder %s145, 0
      %p633 = por %p631, %p632
      %p634 = scmp.ne.s32.totalorder %s622, %s623
      %p635 = scmp.eq.s32.totalorder %s146, 1
      %p636 = por %p634, %p635
      %p638 = scmp.ne.s32.totalorder %s623, %s637
      %p639 = scmp.eq.s32.totalorder %s146, 0
      %p640 = por %p638, %p639
      %s642 = sadd.s32 %s641, 1
      %p645 = scmp.eq.s32.totalorder %s140, 1
      %p646 = scmp.ne.s32.totalorder %s641, %s643
      %p647 = scmp.eq.s32.totalorder %s140, 0
      %p648 = por %p646, %p647
      %p649 = scmp.ne.s32.totalorder %s641, %s643
      %p650 = scmp.eq.s32.totalorder %s145, 1
      %p651 = por %p649, %p650
      %p652 = scmp.ne.s32.totalorder %s643, %s644
      %p653 = scmp.eq.s32.totalorder %s145, 0
      %p654 = por %p652, %p653
      %p655 = scmp.ne.s32.totalorder %s643, %s644
      %p656 = scmp.eq.s32.totalorder %s146, 1
      %p657 = por %p655, %p656
      %p659 = scmp.ne.s32.totalorder %s644, %s658
      %p660 = scmp.eq.s32.totalorder %s146, 0
      %p661 = por %p659, %p660
      %s663 = sadd.s32 %s662, 1
      %p666 = scmp.eq.s32.totalorder %s140, 1
      %p667 = scmp.ne.s32.totalorder %s662, %s664
      %p668 = scmp.eq.s32.totalorder %s140, 0
      %p669 = por %p667, %p668
      %p670 = scmp.ne.s32.totalorder %s662, %s664
      %p671 = scmp.eq.s32.totalorder %s145, 1
      %p672 = por %p670, %p671
      %p673 = scmp.ne.s32.totalorder %s664, %s665
      %p674 = scmp.eq.s32.totalorder %s145, 0
      %p675 = por %p673, %p674
      %p676 = scmp.ne.s32.totalorder %s664, %s665
      %p677 = scmp.eq.s32.totalorder %s146, 1
      %p678 = por %p676, %p677
      %p680 = scmp.ne.s32.totalorder %s665, %s679
      %p681 = scmp.eq.s32.totalorder %s146, 0
      %p682 = por %p680, %p681
      %s684 = sadd.s32 %s683, 1
      %p687 = scmp.eq.s32.totalorder %s140, 1
      %p688 = scmp.ne.s32.totalorder %s683, %s685
      %p689 = scmp.eq.s32.totalorder %s140, 0
      %p690 = por %p688, %p689
      %p691 = scmp.ne.s32.totalorder %s683, %s685
      %p692 = scmp.eq.s32.totalorder %s145, 1
      %p693 = por %p691, %p692
      %p694 = scmp.ne.s32.totalorder %s685, %s686
      %p695 = scmp.eq.s32.totalorder %s145, 0
      %p696 = por %p694, %p695
      %p697 = scmp.ne.s32.totalorder %s685, %s686
      %p698 = scmp.eq.s32.totalorder %s146, 1
      %p699 = por %p697, %p698
      %p701 = scmp.ne.s32.totalorder %s686, %s700
      %p702 = scmp.eq.s32.totalorder %s146, 0
      %p703 = por %p701, %p702
      %s705 = sadd.s32 %s704, 1
      %p708 = scmp.eq.s32.totalorder %s140, 1
      %p709 = scmp.ne.s32.totalorder %s704, %s706
      %p710 = scmp.eq.s32.totalorder %s140, 0
      %p711 = por %p709, %p710
      %p712 = scmp.ne.s32.totalorder %s704, %s706
      %p713 = scmp.eq.s32.totalorder %s145, 1
      %p714 = por %p712, %p713
      %p715 = scmp.ne.s32.totalorder %s706, %s707
      %p716 = scmp.eq.s32.totalorder %s145, 0
      %p717 = por %p715, %p716
      %p718 = scmp.ne.s32.totalorder %s706, %s707
      %p719 = scmp.eq.s32.totalorder %s146, 1
      %p720 = por %p718, %p719
      %p722 = scmp.ne.s32.totalorder %s707, %s721
      %p723 = scmp.eq.s32.totalorder %s146, 0
      %p724 = por %p722, %p723
      %s726 = sadd.s32 %s725, 1
      %p729 = scmp.eq.s32.totalorder %s140, 1
      %p730 = scmp.ne.s32.totalorder %s725, %s727
      %p731 = scmp.eq.s32.totalorder %s140, 0
      %p732 = por %p730, %p731
      %p733 = scmp.ne.s32.totalorder %s725, %s727
      %p734 = scmp.eq.s32.totalorder %s145, 1
      %p735 = por %p733, %p734
      %p736 = scmp.ne.s32.totalorder %s727, %s728
      %p737 = scmp.eq.s32.totalorder %s145, 0
      %p738 = por %p736, %p737
      %p739 = scmp.ne.s32.totalorder %s727, %s728
      %p740 = scmp.eq.s32.totalorder %s146, 1
      %p741 = por %p739, %p740
      %p743 = scmp.ne.s32.totalorder %s728, %s742
      %p744 = scmp.eq.s32.totalorder %s146, 0
      %p745 = por %p743, %p744
      %s747 = sadd.s32 %s746, 1
      %p750 = scmp.eq.s32.totalorder %s140, 1
      %p751 = scmp.ne.s32.totalorder %s746, %s748
      %p752 = scmp.eq.s32.totalorder %s140, 0
      %p753 = por %p751, %p752
      %p754 = scmp.ne.s32.totalorder %s746, %s748
      %p755 = scmp.eq.s32.totalorder %s145, 1
      %p756 = por %p754, %p755
      %p757 = scmp.ne.s32.totalorder %s748, %s749
      %p758 = scmp.eq.s32.totalorder %s145, 0
      %p759 = por %p757, %p758
      %p760 = scmp.ne.s32.totalorder %s748, %s749
      %p761 = scmp.eq.s32.totalorder %s146, 1
      %p762 = por %p760, %p761
      %p764 = scmp.ne.s32.totalorder %s749, %s763
      %p765 = scmp.eq.s32.totalorder %s146, 0
      %p766 = por %p764, %p765
      %s768 = sadd.s32 %s767, 1
      %p771 = scmp.eq.s32.totalorder %s140, 1
      %p772 = scmp.ne.s32.totalorder %s767, %s769
      %p773 = scmp.eq.s32.totalorder %s140, 0
      %p774 = por %p772, %p773
      %p775 = scmp.ne.s32.totalorder %s767, %s769
      %p776 = scmp.eq.s32.totalorder %s145, 1
      %p777 = por %p775, %p776
      %p778 = scmp.ne.s32.totalorder %s769, %s770
      %p779 = scmp.eq.s32.totalorder %s145, 0
      %p780 = por %p778, %p779
      %p781 = scmp.ne.s32.totalorder %s769, %s770
      %p782 = scmp.eq.s32.totalorder %s146, 1
      %p783 = por %p781, %p782
      %p785 = scmp.ne.s32.totalorder %s770, %s784
      %p786 = scmp.eq.s32.totalorder %s146, 0
      %p787 = por %p785, %p786
      %s789 = sadd.s32 %s788, 1
      %p792 = scmp.eq.s32.totalorder %s140, 1
      %p793 = scmp.ne.s32.totalorder %s788, %s790
      %p794 = scmp.eq.s32.totalorder %s140, 0
      %p795 = por %p793, %p794
      %p796 = scmp.ne.s32.totalorder %s788, %s790
      %p797 = scmp.eq.s32.totalorder %s145, 1
      %p798 = por %p796, %p797
      %p799 = scmp.ne.s32.totalorder %s790, %s791
      %p800 = scmp.eq.s32.totalorder %s145, 0
      %p801 = por %p799, %p800
      %p802 = scmp.ne.s32.totalorder %s790, %s791
      %p803 = scmp.eq.s32.totalorder %s146, 1
      %p804 = por %p802, %p803
      %p806 = scmp.ne.s32.totalorder %s791, %s805
      %p807 = scmp.eq.s32.totalorder %s146, 0
      %p808 = por %p806, %p807
      %s810 = sadd.s32 %s809, 1
      %p813 = scmp.eq.s32.totalorder %s140, 1
      %p814 = scmp.ne.s32.totalorder %s809, %s811
      %p815 = scmp.eq.s32.totalorder %s140, 0
      %p816 = por %p814, %p815
      %p817 = scmp.ne.s32.totalorder %s809, %s811
      %p818 = scmp.eq.s32.totalorder %s145, 1
      %p819 = por %p817, %p818
      %p820 = scmp.ne.s32.totalorder %s811, %s812
      %p821 = scmp.eq.s32.totalorder %s145, 0
      %p822 = por %p820, %p821
      %p823 = scmp.ne.s32.totalorder %s811, %s812
      %p824 = scmp.eq.s32.totalorder %s146, 1
      %p825 = por %p823, %p824
      %p827 = scmp.ne.s32.totalorder %s812, %s826
      %p828 = scmp.eq.s32.totalorder %s146, 0
      %p829 = por %p827, %p828
      %s831 = sadd.s32 %s830, 1
      %p834 = scmp.eq.s32.totalorder %s140, 1
      %p835 = scmp.ne.s32.totalorder %s830, %s832
      %p836 = scmp.eq.s32.totalorder %s140, 0
      %p837 = por %p835, %p836
      %p838 = scmp.ne.s32.totalorder %s830, %s832
      %p839 = scmp.eq.s32.totalorder %s145, 1
      %p840 = por %p838, %p839
      %p841 = scmp.ne.s32.totalorder %s832, %s833
      %p842 = scmp.eq.s32.totalorder %s145, 0
      %p843 = por %p841, %p842
      %p844 = scmp.ne.s32.totalorder %s832, %s833
      %p845 = scmp.eq.s32.totalorder %s146, 1
      %p846 = por %p844, %p845
      %p848 = scmp.ne.s32.totalorder %s833, %s847
      %p849 = scmp.eq.s32.totalorder %s146, 0
      %p850 = por %p848, %p849
      %s852 = sadd.s32 %s851, 1
      %p855 = scmp.eq.s32.totalorder %s140, 1
      %p856 = scmp.ne.s32.totalorder %s851, %s853
      %p857 = scmp.eq.s32.totalorder %s140, 0
      %p858 = por %p856, %p857
      %p859 = scmp.ne.s32.totalorder %s851, %s853
      %p860 = scmp.eq.s32.totalorder %s145, 1
      %p861 = por %p859, %p860
      %p862 = scmp.ne.s32.totalorder %s853, %s854
      %p863 = scmp.eq.s32.totalorder %s145, 0
      %p864 = por %p862, %p863
      %p865 = scmp.ne.s32.totalorder %s853, %s854
      %p866 = scmp.eq.s32.totalorder %s146, 1
      %p867 = por %p865, %p866
      %p869 = scmp.ne.s32.totalorder %s854, %s868
      %p870 = scmp.eq.s32.totalorder %s146, 0
      %p871 = por %p869, %p870
      %s873 = sadd.s32 %s872, 1
      %p876 = scmp.eq.s32.totalorder %s140, 1
      %p877 = scmp.ne.s32.totalorder %s872, %s874
      %p878 = scmp.eq.s32.totalorder %s140, 0
      %p879 = por %p877, %p878
      %p880 = scmp.ne.s32.totalorder %s872, %s874
      %p881 = scmp.eq.s32.totalorder %s145, 1
      %p882 = por %p880, %p881
      %p883 = scmp.ne.s32.totalorder %s874, %s875
      %p884 = scmp.eq.s32.totalorder %s145, 0
      %p885 = por %p883, %p884
      %p886 = scmp.ne.s32.totalorder %s874, %s875
      %p887 = scmp.eq.s32.totalorder %s146, 1
      %p888 = por %p886, %p887
      %p890 = scmp.ne.s32.totalorder %s875, %s889
      %p891 = scmp.eq.s32.totalorder %s146, 0
      %p892 = por %p890, %p891
      %s894 = sadd.s32 %s893, 1
      %p897 = scmp.eq.s32.totalorder %s140, 1
      %p898 = scmp.ne.s32.totalorder %s893, %s895
      %p899 = scmp.eq.s32.totalorder %s140, 0
      %p900 = por %p898, %p899
      %p901 = scmp.ne.s32.totalorder %s893, %s895
      %p902 = scmp.eq.s32.totalorder %s145, 1
      %p903 = por %p901, %p902
      %p904 = scmp.ne.s32.totalorder %s895, %s896
      %p905 = scmp.eq.s32.totalorder %s145, 0
      %p906 = por %p904, %p905
      %p907 = scmp.ne.s32.totalorder %s895, %s896
      %p908 = scmp.eq.s32.totalorder %s146, 1
      %p909 = por %p907, %p908
      %p911 = scmp.ne.s32.totalorder %s896, %s910
      %p912 = scmp.eq.s32.totalorder %s146, 0
      %p913 = por %p911, %p912
      %s915 = sadd.s32 %s914, 1
      %p918 = scmp.eq.s32.totalorder %s140, 1
      %p919 = scmp.ne.s32.totalorder %s914, %s916
      %p920 = scmp.eq.s32.totalorder %s140, 0
      %p921 = por %p919, %p920
      %p922 = scmp.ne.s32.totalorder %s914, %s916
      %p923 = scmp.eq.s32.totalorder %s145, 1
      %p924 = por %p922, %p923
      %p925 = scmp.ne.s32.totalorder %s916, %s917
      %p926 = scmp.eq.s32.totalorder %s145, 0
      %p927 = por %p925, %p926
      %p928 = scmp.ne.s32.totalorder %s916, %s917
      %p929 = scmp.eq.s32.totalorder %s146, 1
      %p930 = por %p928, %p929
      %p932 = scmp.ne.s32.totalorder %s917, %s931
      %p933 = scmp.eq.s32.totalorder %s146, 0
      %p934 = por %p932, %p933
      %s936 = sadd.s32 %s935, 1
      %p939 = scmp.eq.s32.totalorder %s140, 1
      %p940 = scmp.ne.s32.totalorder %s935, %s937
      %p941 = scmp.eq.s32.totalorder %s140, 0
      %p942 = por %p940, %p941
      %p943 = scmp.ne.s32.totalorder %s935, %s937
      %p944 = scmp.eq.s32.totalorder %s145, 1
      %p945 = por %p943, %p944
      %p946 = scmp.ne.s32.totalorder %s937, %s938
      %p947 = scmp.eq.s32.totalorder %s145, 0
      %p948 = por %p946, %p947
      %p949 = scmp.ne.s32.totalorder %s937, %s938
      %p950 = scmp.eq.s32.totalorder %s146, 1
      %p951 = por %p949, %p950
      %p953 = scmp.ne.s32.totalorder %s938, %s952
      %p954 = scmp.eq.s32.totalorder %s146, 0
      %p955 = por %p953, %p954
      %s957 = sadd.s32 %s956, 1
      %p960 = scmp.eq.s32.totalorder %s140, 1
      %p961 = scmp.ne.s32.totalorder %s956, %s958
      %p962 = scmp.eq.s32.totalorder %s140, 0
      %p963 = por %p961, %p962
      %p964 = scmp.ne.s32.totalorder %s956, %s958
      %p965 = scmp.eq.s32.totalorder %s145, 1
      %p966 = por %p964, %p965
      %p967 = scmp.ne.s32.totalorder %s958, %s959
      %p968 = scmp.eq.s32.totalorder %s145, 0
      %p969 = por %p967, %p968
      %p970 = scmp.ne.s32.totalorder %s958, %s959
      %p971 = scmp.eq.s32.totalorder %s146, 1
      %p972 = por %p970, %p971
      %p974 = scmp.ne.s32.totalorder %s959, %s973
      %p975 = scmp.eq.s32.totalorder %s146, 0
      %p976 = por %p974, %p975
      %s978 = sadd.s32 %s977, 1
      %p981 = scmp.eq.s32.totalorder %s140, 1
      %p982 = scmp.ne.s32.totalorder %s977, %s979
      %p983 = scmp.eq.s32.totalorder %s140, 0
      %p984 = por %p982, %p983
      %p985 = scmp.ne.s32.totalorder %s977, %s979
      %p986 = scmp.eq.s32.totalorder %s145, 1
      %p987 = por %p985, %p986
      %p988 = scmp.ne.s32.totalorder %s979, %s980
      %p989 = scmp.eq.s32.totalorder %s145, 0
      %p990 = por %p988, %p989
      %p991 = scmp.ne.s32.totalorder %s979, %s980
      %p992 = scmp.eq.s32.totalorder %s146, 1
      %p993 = por %p991, %p992
      %p995 = scmp.ne.s32.totalorder %s980, %s994
      %p996 = scmp.eq.s32.totalorder %s146, 0
      %p997 = por %p995, %p996
      %s999 = sadd.s32 %s998, 1
      %p1002 = scmp.eq.s32.totalorder %s140, 1
      %p1003 = scmp.ne.s32.totalorder %s998, %s1000
      %p1004 = scmp.eq.s32.totalorder %s140, 0
      %p1005 = por %p1003, %p1004
      %p1006 = scmp.ne.s32.totalorder %s998, %s1000
      %p1007 = scmp.eq.s32.totalorder %s145, 1
      %p1008 = por %p1006, %p1007
      %p1009 = scmp.ne.s32.totalorder %s1000, %s1001
      %p1010 = scmp.eq.s32.totalorder %s145, 0
      %p1011 = por %p1009, %p1010
      %p1012 = scmp.ne.s32.totalorder %s1000, %s1001
      %p1013 = scmp.eq.s32.totalorder %s146, 1
      %p1014 = por %p1012, %p1013
      %p1016 = scmp.ne.s32.totalorder %s1001, %s1015
      %p1017 = scmp.eq.s32.totalorder %s146, 0
      %p1018 = por %p1016, %p1017
      %s1020 = sadd.s32 %s1019, 1
      %p1023 = scmp.eq.s32.totalorder %s140, 1
      %p1024 = scmp.ne.s32.totalorder %s1019, %s1021
      %p1025 = scmp.eq.s32.totalorder %s140, 0
      %p1026 = por %p1024, %p1025
      %p1027 = scmp.ne.s32.totalorder %s1019, %s1021
      %p1028 = scmp.eq.s32.totalorder %s145, 1
      %p1029 = por %p1027, %p1028
      %p1030 = scmp.ne.s32.totalorder %s1021, %s1022
      %p1031 = scmp.eq.s32.totalorder %s145, 0
      %p1032 = por %p1030, %p1031
      %p1033 = scmp.ne.s32.totalorder %s1021, %s1022
      %p1034 = scmp.eq.s32.totalorder %s146, 1
      %p1035 = por %p1033, %p1034
      %p1037 = scmp.ne.s32.totalorder %s1022, %s1036
      %p1038 = scmp.eq.s32.totalorder %s146, 0
      %p1039 = por %p1037, %p1038
      %s1041 = sadd.s32 %s1040, 1
      %p1044 = scmp.eq.s32.totalorder %s140, 1
      %p1045 = scmp.ne.s32.totalorder %s1040, %s1042
      %p1046 = scmp.eq.s32.totalorder %s140, 0
      %p1047 = por %p1045, %p1046
      %p1048 = scmp.ne.s32.totalorder %s1040, %s1042
      %p1049 = scmp.eq.s32.totalorder %s145, 1
      %p1050 = por %p1048, %p1049
      %p1051 = scmp.ne.s32.totalorder %s1042, %s1043
      %p1052 = scmp.eq.s32.totalorder %s145, 0
      %p1053 = por %p1051, %p1052
      %p1054 = scmp.ne.s32.totalorder %s1042, %s1043
      %p1055 = scmp.eq.s32.totalorder %s146, 1
      %p1056 = por %p1054, %p1055
      %p1058 = scmp.ne.s32.totalorder %s1043, %s1057
      %p1059 = scmp.eq.s32.totalorder %s146, 0
      %p1060 = por %p1058, %p1059
      %s1062 = sadd.s32 %s1061, 1
      %p1065 = scmp.eq.s32.totalorder %s140, 1
      %p1066 = scmp.ne.s32.totalorder %s1061, %s1063
      %p1067 = scmp.eq.s32.totalorder %s140, 0
      %p1068 = por %p1066, %p1067
      %p1069 = scmp.ne.s32.totalorder %s1061, %s1063
      %p1070 = scmp.eq.s32.totalorder %s145, 1
      %p1071 = por %p1069, %p1070
      %p1072 = scmp.ne.s32.totalorder %s1063, %s1064
      %p1073 = scmp.eq.s32.totalorder %s145, 0
      %p1074 = por %p1072, %p1073
      %p1075 = scmp.ne.s32.totalorder %s1063, %s1064
      %p1076 = scmp.eq.s32.totalorder %s146, 1
      %p1077 = por %p1075, %p1076
      %p1079 = scmp.ne.s32.totalorder %s1064, %s1078
      %p1080 = scmp.eq.s32.totalorder %s146, 0
      %p1081 = por %p1079, %p1080
      %s1083 = sadd.s32 %s1082, 1
      %p1086 = scmp.eq.s32.totalorder %s140, 1
      %p1087 = scmp.ne.s32.totalorder %s1082, %s1084
      %p1088 = scmp.eq.s32.totalorder %s140, 0
      %p1089 = por %p1087, %p1088
      %p1090 = scmp.ne.s32.totalorder %s1082, %s1084
      %p1091 = scmp.eq.s32.totalorder %s145, 1
      %p1092 = por %p1090, %p1091
      %p1093 = scmp.ne.s32.totalorder %s1084, %s1085
      %p1094 = scmp.eq.s32.totalorder %s145, 0
      %p1095 = por %p1093, %p1094
      %p1096 = scmp.ne.s32.totalorder %s1084, %s1085
      %p1097 = scmp.eq.s32.totalorder %s146, 1
      %p1098 = por %p1096, %p1097
      %p1100 = scmp.ne.s32.totalorder %s1085, %s1099
      %p1101 = scmp.eq.s32.totalorder %s146, 0
      %p1102 = por %p1100, %p1101
      %s1104 = sadd.s32 %s1103, 1
      %p1107 = scmp.eq.s32.totalorder %s140, 1
      %p1108 = scmp.ne.s32.totalorder %s1103, %s1105
      %p1109 = scmp.eq.s32.totalorder %s140, 0
      %p1110 = por %p1108, %p1109
      %p1111 = scmp.ne.s32.totalorder %s1103, %s1105
      %p1112 = scmp.eq.s32.totalorder %s145, 1
      %p1113 = por %p1111, %p1112
      %p1114 = scmp.ne.s32.totalorder %s1105, %s1106
      %p1115 = scmp.eq.s32.totalorder %s145, 0
      %p1116 = por %p1114, %p1115
      %p1117 = scmp.ne.s32.totalorder %s1105, %s1106
      %p1118 = scmp.eq.s32.totalorder %s146, 1
      %p1119 = por %p1117, %p1118
      %p1121 = scmp.ne.s32.totalorder %s1106, %s1120
      %p1122 = scmp.eq.s32.totalorder %s146, 0
      %p1123 = por %p1121, %p1122
      %s1125 = sadd.s32 %s1124, 1
      %p1128 = scmp.eq.s32.totalorder %s140, 1
      %p1129 = scmp.ne.s32.totalorder %s1124, %s1126
      %p1130 = scmp.eq.s32.totalorder %s140, 0
      %p1131 = por %p1129, %p1130
      %p1132 = scmp.ne.s32.totalorder %s1124, %s1126
      %p1133 = scmp.eq.s32.totalorder %s145, 1
      %p1134 = por %p1132, %p1133
      %p1135 = scmp.ne.s32.totalorder %s1126, %s1127
      %p1136 = scmp.eq.s32.totalorder %s145, 0
      %p1137 = por %p1135, %p1136
      %p1138 = scmp.ne.s32.totalorder %s1126, %s1127
      %p1139 = scmp.eq.s32.totalorder %s146, 1
      %p1140 = por %p1138, %p1139
      %p1142 = scmp.ne.s32.totalorder %s1127, %s1141
      %p1143 = scmp.eq.s32.totalorder %s146, 0
      %p1144 = por %p1142, %p1143
      %s1146 = sadd.s32 %s1145, 1
      %p1149 = scmp.eq.s32.totalorder %s140, 1
      %p1150 = scmp.ne.s32.totalorder %s1145, %s1147
      %p1151 = scmp.eq.s32.totalorder %s140, 0
      %p1152 = por %p1150, %p1151
      %p1153 = scmp.ne.s32.totalorder %s1145, %s1147
      %p1154 = scmp.eq.s32.totalorder %s145, 1
      %p1155 = por %p1153, %p1154
      %p1156 = scmp.ne.s32.totalorder %s1147, %s1148
      %p1157 = scmp.eq.s32.totalorder %s145, 0
      %p1158 = por %p1156, %p1157
      %p1159 = scmp.ne.s32.totalorder %s1147, %s1148
      %p1160 = scmp.eq.s32.totalorder %s146, 1
      %p1161 = por %p1159, %p1160
      %p1163 = scmp.ne.s32.totalorder %s1148, %s1162
      %p1164 = scmp.eq.s32.totalorder %s146, 0
      %p1165 = por %p1163, %p1164
      %s1167 = sadd.s32 %s1166, 1
      %p1170 = scmp.eq.s32.totalorder %s140, 1
      %p1171 = scmp.ne.s32.totalorder %s1166, %s1168
      %p1172 = scmp.eq.s32.totalorder %s140, 0
      %p1173 = por %p1171, %p1172
      %p1174 = scmp.ne.s32.totalorder %s1166, %s1168
      %p1175 = scmp.eq.s32.totalorder %s145, 1
      %p1176 = por %p1174, %p1175
      %p1177 = scmp.ne.s32.totalorder %s1168, %s1169
      %p1178 = scmp.eq.s32.totalorder %s145, 0
      %p1179 = por %p1177, %p1178
      %p1180 = scmp.ne.s32.totalorder %s1168, %s1169
      %p1181 = scmp.eq.s32.totalorder %s146, 1
      %p1182 = por %p1180, %p1181
      %p1184 = scmp.ne.s32.totalorder %s1169, %s1183
      %p1185 = scmp.eq.s32.totalorder %s146, 0
      %p1186 = por %p1184, %p1185
      %s1188 = sadd.s32 %s1187, 1
      %p1191 = scmp.eq.s32.totalorder %s140, 1
      %p1192 = scmp.ne.s32.totalorder %s1187, %s1189
      %p1193 = scmp.eq.s32.totalorder %s140, 0
      %p1194 = por %p1192, %p1193
      %p1195 = scmp.ne.s32.totalorder %s1187, %s1189
      %p1196 = scmp.eq.s32.totalorder %s145, 1
      %p1197 = por %p1195, %p1196
      %p1198 = scmp.ne.s32.totalorder %s1189, %s1190
      %p1199 = scmp.eq.s32.totalorder %s145, 0
      %p1200 = por %p1198, %p1199
      %p1201 = scmp.ne.s32.totalorder %s1189, %s1190
      %p1202 = scmp.eq.s32.totalorder %s146, 1
      %p1203 = por %p1201, %p1202
      %p1205 = scmp.ne.s32.totalorder %s1190, %s1204
      %p1206 = scmp.eq.s32.totalorder %s146, 0
      %p1207 = por %p1205, %p1206
      %s1209 = sadd.s32 %s1208, 1
      %p1212 = scmp.eq.s32.totalorder %s140, 1
      %p1213 = scmp.ne.s32.totalorder %s1208, %s1210
      %p1214 = scmp.eq.s32.totalorder %s140, 0
      %p1215 = por %p1213, %p1214
      %p1216 = scmp.ne.s32.totalorder %s1208, %s1210
      %p1217 = scmp.eq.s32.totalorder %s145, 1
      %p1218 = por %p1216, %p1217
      %p1219 = scmp.ne.s32.totalorder %s1210, %s1211
      %p1220 = scmp.eq.s32.totalorder %s145, 0
      %p1221 = por %p1219, %p1220
      %p1222 = scmp.ne.s32.totalorder %s1210, %s1211
      %p1223 = scmp.eq.s32.totalorder %s146, 1
      %p1224 = por %p1222, %p1223
      %p1226 = scmp.ne.s32.totalorder %s1211, %s1225
      %p1227 = scmp.eq.s32.totalorder %s146, 0
      %p1228 = por %p1226, %p1227
      %s1230 = sadd.s32 %s1229, 1
      %p1233 = scmp.eq.s32.totalorder %s140, 1
      %p1234 = scmp.ne.s32.totalorder %s1229, %s1231
      %p1235 = scmp.eq.s32.totalorder %s140, 0
      %p1236 = por %p1234, %p1235
      %p1237 = scmp.ne.s32.totalorder %s1229, %s1231
      %p1238 = scmp.eq.s32.totalorder %s145, 1
      %p1239 = por %p1237, %p1238
      %p1240 = scmp.ne.s32.totalorder %s1231, %s1232
      %p1241 = scmp.eq.s32.totalorder %s145, 0
      %p1242 = por %p1240, %p1241
      %p1243 = scmp.ne.s32.totalorder %s1231, %s1232
      %p1244 = scmp.eq.s32.totalorder %s146, 1
      %p1245 = por %p1243, %p1244
      %p1247 = scmp.ne.s32.totalorder %s1232, %s1246
      %p1248 = scmp.eq.s32.totalorder %s146, 0
      %p1249 = por %p1247, %p1248
      %s1251 = sadd.s32 %s1250, 1
      %p1254 = scmp.eq.s32.totalorder %s140, 1
      %p1255 = scmp.ne.s32.totalorder %s1250, %s1252
      %p1256 = scmp.eq.s32.totalorder %s140, 0
      %p1257 = por %p1255, %p1256
      %p1258 = scmp.ne.s32.totalorder %s1250, %s1252
      %p1259 = scmp.eq.s32.totalorder %s145, 1
      %p1260 = por %p1258, %p1259
      %p1261 = scmp.ne.s32.totalorder %s1252, %s1253
      %p1262 = scmp.eq.s32.totalorder %s145, 0
      %p1263 = por %p1261, %p1262
      %p1264 = scmp.ne.s32.totalorder %s1252, %s1253
      %p1265 = scmp.eq.s32.totalorder %s146, 1
      %p1266 = por %p1264, %p1265
      %p1268 = scmp.ne.s32.totalorder %s1253, %s1267
      %p1269 = scmp.eq.s32.totalorder %s146, 0
      %p1270 = por %p1268, %p1269
      %s1272 = sadd.s32 %s1271, 1
      %p1275 = scmp.eq.s32.totalorder %s140, 1
      %p1276 = scmp.ne.s32.totalorder %s1271, %s1273
      %p1277 = scmp.eq.s32.totalorder %s140, 0
      %p1278 = por %p1276, %p1277
      %p1279 = scmp.ne.s32.totalorder %s1271, %s1273
      %p1280 = scmp.eq.s32.totalorder %s145, 1
      %p1281 = por %p1279, %p1280
      %p1282 = scmp.ne.s32.totalorder %s1273, %s1274
      %p1283 = scmp.eq.s32.totalorder %s145, 0
      %p1284 = por %p1282, %p1283
      %p1285 = scmp.ne.s32.totalorder %s1273, %s1274
      %p1286 = scmp.eq.s32.totalorder %s146, 1
      %p1287 = por %p1285, %p1286
      %p1289 = scmp.ne.s32.totalorder %s1274, %s1288
      %p1290 = scmp.eq.s32.totalorder %s146, 0
      %p1291 = por %p1289, %p1290
      %s1292 = ssub.s32 %s140, %s147
      %p1293 = scmp.eq.s32.totalorder %s1292, 0
      %s1295 = sadd.s32 %s1294, 1
      %s1296 = scalar_select %p1293, %s1294, %s1295
      %p1299 = pneg %p1293
      %p1300 = scmp.eq.s32.totalorder %s140, 1
      %p1301 = por %p1299, %p1300
      %p1302 = scmp.ne.s32.totalorder %s1294, %s1297
      %p1303 = scmp.eq.s32.totalorder %s140, 0
      %p1304 = por %p1302, %p1303
      %p1305 = scmp.ne.s32.totalorder %s1294, %s1297
      %p1306 = scmp.eq.s32.totalorder %s145, 1
      %p1307 = por %p1305, %p1306
      %p1308 = scmp.ne.s32.totalorder %s1297, %s1298
      %p1309 = scmp.eq.s32.totalorder %s145, 0
      %p1310 = por %p1308, %p1309
      %p1311 = scmp.ne.s32.totalorder %s1297, %s1298
      %p1312 = scmp.eq.s32.totalorder %s146, 1
      %p1313 = por %p1311, %p1312
      %p1315 = scmp.ne.s32.totalorder %s1298, %s1314
      %p1316 = scmp.eq.s32.totalorder %s146, 0
      %p1317 = por %p1315, %p1316
      %p1318 = scmp.le.s32.totalorder 1, %s140
      %p1319 = scmp.lt.s32.totalorder %s140, 3
      %p1320 = pnand %p1318, %p1319
      %p1321 = pneg %p1320
      // Predicated region
      $region9: #{transformer_model_forward.1} parent=5 // pred_check
        _
      $region10: #{transformer_model_forward.1} parent=5 // pred_check_branch
        %1323 = sbr.rel (%p1320) target = $region12
      $region11: #{transformer_model_forward.1} parent=5 // pred_region
        %s1324 = ssub.s32 %s140, 1
        // Predicated region
        $region13: #{transformer_model_forward.1} parent=11 // pred_check
          %p1325 = pneg %p213
        $region14: #{transformer_model_forward.1} parent=11 // pred_check_branch
          %1327 = sbr.rel (%p1325) target = $region16
        $region15: #{transformer_model_forward.1} parent=11 // pred_region
          _
        $region16: #{transformer_model_forward.1} parent=11 // pred_fallthru
          _
        // Predicated region
        $region17: #{transformer_model_forward.1} parent=11 // pred_check
          %p1328 = pneg %p234
        $region18: #{transformer_model_forward.1} parent=11 // pred_check_branch
          %1330 = sbr.rel (%p1328) target = $region20
        $region19: #{transformer_model_forward.1} parent=11 // pred_region
          _
        $region20: #{transformer_model_forward.1} parent=11 // pred_fallthru
          _
        // Predicated region
        $region21: #{transformer_model_forward.1} parent=11 // pred_check
          %p1331 = pneg %p255
        $region22: #{transformer_model_forward.1} parent=11 // pred_check_branch
          %1333 = sbr.rel (%p1331) target = $region24
        $region23: #{transformer_model_forward.1} parent=11 // pred_region
          _
        $region24: #{transformer_model_forward.1} parent=11 // pred_fallthru
          _
        // Predicated region
        $region25: #{transformer_model_forward.1} parent=11 // pred_check
          %p1334 = pneg %p276
        $region26: #{transformer_model_forward.1} parent=11 // pred_check_branch
          %1336 = sbr.rel (%p1334) target = $region28
        $region27: #{transformer_model_forward.1} parent=11 // pred_region
          %s1338 = ssub.s32 16, 16
          %1339 = vsyncadd [#allocation3], %s1338
          %s1341 = sshll.u32 [#allocation2], 4
          %s1342 = int_to_ptr.vmem [resolvable:$true] %s1341
          %1344 = dma.hbm_to_vmem [thread:$0]  %s11, 16, %s1342, [#allocation3]
        $region28: #{transformer_model_forward.1} parent=11 // pred_fallthru
          _
        // Predicated region
        $region29: #{transformer_model_forward.1} parent=11 // pred_check
          %p1345 = pneg %p297
        $region30: #{transformer_model_forward.1} parent=11 // pred_check_branch
          %1347 = sbr.rel (%p1345) target = $region32
        $region31: #{transformer_model_forward.1} parent=11 // pred_region
          _
        $region32: #{transformer_model_forward.1} parent=11 // pred_fallthru
          _
        // Predicated region
        $region33: #{transformer_model_forward.1} parent=11 // pred_check
          %p1348 = pneg %p318
        $region34: #{transformer_model_forward.1} parent=11 // pred_check_branch
          %1350 = sbr.rel (%p1348) target = $region36
        $region35: #{transformer_model_forward.1} parent=11 // pred_region
          %s1352 = ssub.s32 16, 16
          %1353 = vsyncadd [#allocation6], %s1352
          %s1355 = sshll.u32 [#allocation5], 4
          %s1356 = int_to_ptr.vmem [resolvable:$true] %s1355
          %1358 = dma.hbm_to_vmem [thread:$0]  %s15, 16, %s1356, [#allocation6]
        $region36: #{transformer_model_forward.1} parent=11 // pred_fallthru
          _
        // Predicated region
        $region37: #{transformer_model_forward.1} parent=11 // pred_check
          %p1359 = pneg %p339
        $region38: #{transformer_model_forward.1} parent=11 // pred_check_branch
          %1361 = sbr.rel (%p1359) target = $region40
        $region39: #{transformer_model_forward.1} parent=11 // pred_region
          _
        $region40: #{transformer_model_forward.1} parent=11 // pred_fallthru
          _
        // Predicated region
        $region41: #{transformer_model_forward.1} parent=11 // pred_check
          %p1362 = pneg %p360
        $region42: #{transformer_model_forward.1} parent=11 // pred_check_branch
          %1364 = sbr.rel (%p1362) target = $region44
        $region43: #{transformer_model_forward.1} parent=11 // pred_region
          _
        $region44: #{transformer_model_forward.1} parent=11 // pred_fallthru
          _
        // Predicated region
        $region45: #{transformer_model_forward.1} parent=11 // pred_check
          %p1365 = pneg %p381
        $region46: #{transformer_model_forward.1} parent=11 // pred_check_branch
          %1367 = sbr.rel (%p1365) target = $region48
        $region47: #{transformer_model_forward.1} parent=11 // pred_region
          _
        $region48: #{transformer_model_forward.1} parent=11 // pred_fallthru
          _
        // Predicated region
        $region49: #{transformer_model_forward.1} parent=11 // pred_check
          %p1368 = pneg %p402
        $region50: #{transformer_model_forward.1} parent=11 // pred_check_branch
          %1370 = sbr.rel (%p1368) target = $region52
        $region51: #{transformer_model_forward.1} parent=11 // pred_region
          %s1372 = ssub.s32 32, 32
          %1373 = vsyncadd [#allocation6], %s1372
          %s1374 = sshll.u32 [#allocation7], 4
          %s1375 = int_to_ptr.vmem [resolvable:$true] %s1374
          %1380 = dma.hbm_to_vmem [thread:$0]  %s23, 32, %s1375, [#allocation6], 16, 16, 1
        $region52: #{transformer_model_forward.1} parent=11 // pred_fallthru
          _
        // Predicated region
        $region53: #{transformer_model_forward.1} parent=11 // pred_check
          %p1381 = pneg %p423
        $region54: #{transformer_model_forward.1} parent=11 // pred_check_branch
          %1383 = sbr.rel (%p1381) target = $region56
        $region55: #{transformer_model_forward.1} parent=11 // pred_region
          _
        $region56: #{transformer_model_forward.1} parent=11 // pred_fallthru
          _
        // Predicated region
        $region57: #{transformer_model_forward.1} parent=11 // pred_check
          %p1384 = pneg %p444
        $region58: #{transformer_model_forward.1} parent=11 // pred_check_branch
          %1386 = sbr.rel (%p1384) target = $region60
        $region59: #{transformer_model_forward.1} parent=11 // pred_region
          %s1388 = ssub.s32 32, 32
          %1389 = vsyncadd [#allocation9], %s1388
          %s1390 = sshll.u32 [#allocation8], 4
          %s1391 = int_to_ptr.vmem [resolvable:$true] %s1390
          %1396 = dma.hbm_to_vmem [thread:$0]  %s27, 32, %s1391, [#allocation9], 16, 16, 1
        $region60: #{transformer_model_forward.1} parent=11 // pred_fallthru
          _
        // Predicated region
        $region61: #{transformer_model_forward.1} parent=11 // pred_check
          %p1397 = pneg %p465
        $region62: #{transformer_model_forward.1} parent=11 // pred_check_branch
          %1399 = sbr.rel (%p1397) target = $region64
        $region63: #{transformer_model_forward.1} parent=11 // pred_region
          _
        $region64: #{transformer_model_forward.1} parent=11 // pred_fallthru
          _
        // Predicated region
        $region65: #{transformer_model_forward.1} parent=11 // pred_check
          %p1400 = pneg %p486
        $region66: #{transformer_model_forward.1} parent=11 // pred_check_branch
          %1402 = sbr.rel (%p1400) target = $region68
        $region67: #{transformer_model_forward.1} parent=11 // pred_region
          %s1404 = ssub.s32 32, 32
          %1405 = vsyncadd [#allocation9], %s1404
          %s1406 = sshll.u32 [#allocation10], 4
          %s1407 = int_to_ptr.vmem [resolvable:$true] %s1406
          %1412 = dma.hbm_to_vmem [thread:$0]  %s31, 32, %s1407, [#allocation9], 16, 16, 1
        $region68: #{transformer_model_forward.1} parent=11 // pred_fallthru
          _
        // Predicated region
        $region69: #{transformer_model_forward.1} parent=11 // pred_check
          %p1413 = pneg %p507
        $region70: #{transformer_model_forward.1} parent=11 // pred_check_branch
          %1415 = sbr.rel (%p1413) target = $region72
        $region71: #{transformer_model_forward.1} parent=11 // pred_region
          %s1417 = ssub.s32 1024, 1024
          %1418 = vsyncadd [#allocation12], %s1417
          %s1419 = sshll.u32 [#allocation11], 4
          %s1420 = int_to_ptr.vmem [resolvable:$true] %s1419
          %1425 = dma.hbm_to_vmem [thread:$0]  %s33, 1024, %s1420, [#allocation12], 128, 128, 8
        $region72: #{transformer_model_forward.1} parent=11 // pred_fallthru
          _
        // Predicated region
        $region73: #{transformer_model_forward.1} parent=11 // pred_check
          %p1426 = pneg %p528
        $region74: #{transformer_model_forward.1} parent=11 // pred_check_branch
          %1428 = sbr.rel (%p1426) target = $region76
        $region75: #{transformer_model_forward.1} parent=11 // pred_region
          %s1430 = ssub.s32 32, 32
          %1431 = vsyncadd [#allocation12], %s1430
          %s1432 = sshll.u32 [#allocation13], 4
          %s1433 = int_to_ptr.vmem [resolvable:$true] %s1432
          %1438 = dma.hbm_to_vmem [thread:$0]  %s35, 32, %s1433, [#allocation12], 16, 16, 1
        $region76: #{transformer_model_forward.1} parent=11 // pred_fallthru
          _
        // Predicated region
        $region77: #{transformer_model_forward.1} parent=11 // pred_check
          %p1439 = pneg %p549
        $region78: #{transformer_model_forward.1} parent=11 // pred_check_branch
          %1441 = sbr.rel (%p1439) target = $region80
        $region79: #{transformer_model_forward.1} parent=11 // pred_region
          _
        $region80: #{transformer_model_forward.1} parent=11 // pred_fallthru
          _
        // Predicated region
        $region81: #{transformer_model_forward.1} parent=11 // pred_check
          %p1442 = pneg %p570
        $region82: #{transformer_model_forward.1} parent=11 // pred_check_branch
          %1444 = sbr.rel (%p1442) target = $region84
        $region83: #{transformer_model_forward.1} parent=11 // pred_region
          %s1446 = ssub.s32 32, 32
          %1447 = vsyncadd [#allocation15], %s1446
          %s1448 = sshll.u32 [#allocation14], 4
          %s1449 = int_to_ptr.vmem [resolvable:$true] %s1448
          %1454 = dma.hbm_to_vmem [thread:$0]  %s39, 32, %s1449, [#allocation15], 16, 16, 1
        $region84: #{transformer_model_forward.1} parent=11 // pred_fallthru
          _
        // Predicated region
        $region85: #{transformer_model_forward.1} parent=11 // pred_check
          %p1455 = pneg %p591
        $region86: #{transformer_model_forward.1} parent=11 // pred_check_branch
          %1457 = sbr.rel (%p1455) target = $region88
        $region87: #{transformer_model_forward.1} parent=11 // pred_region
          %s1459 = ssub.s32 32, 32
          %1460 = vsyncadd [#allocation15], %s1459
          %s1461 = sshll.u32 [#allocation16], 4
          %s1462 = int_to_ptr.vmem [resolvable:$true] %s1461
          %1467 = dma.hbm_to_vmem [thread:$0]  %s41, 32, %s1462, [#allocation15], 16, 16, 1
        $region88: #{transformer_model_forward.1} parent=11 // pred_fallthru
          _
        // Predicated region
        $region89: #{transformer_model_forward.1} parent=11 // pred_check
          %p1468 = pneg %p612
        $region90: #{transformer_model_forward.1} parent=11 // pred_check_branch
          %1470 = sbr.rel (%p1468) target = $region92
        $region91: #{transformer_model_forward.1} parent=11 // pred_region
          %s1472 = ssub.s32 32, 32
          %1473 = vsyncadd [#allocation18], %s1472
          %s1474 = sshll.u32 [#allocation17], 4
          %s1475 = int_to_ptr.vmem [resolvable:$true] %s1474
          %1480 = dma.hbm_to_vmem [thread:$0]  %s43, 32, %s1475, [#allocation18], 16, 16, 1
        $region92: #{transformer_model_forward.1} parent=11 // pred_fallthru
          _
        // Predicated region
        $region93: #{transformer_model_forward.1} parent=11 // pred_check
          %p1481 = pneg %p633
        $region94: #{transformer_model_forward.1} parent=11 // pred_check_branch
          %1483 = sbr.rel (%p1481) target = $region96
        $region95: #{transformer_model_forward.1} parent=11 // pred_region
          %s1485 = ssub.s32 32, 32
          %1486 = vsyncadd [#allocation18], %s1485
          %s1487 = sshll.u32 [#allocation19], 4
          %s1488 = int_to_ptr.vmem [resolvable:$true] %s1487
          %1493 = dma.hbm_to_vmem [thread:$0]  %s45, 32, %s1488, [#allocation18], 16, 16, 1
        $region96: #{transformer_model_forward.1} parent=11 // pred_fallthru
          _
        // Predicated region
        $region97: #{transformer_model_forward.1} parent=11 // pred_check
          %p1494 = pneg %p654
        $region98: #{transformer_model_forward.1} parent=11 // pred_check_branch
          %1496 = sbr.rel (%p1494) target = $region100
        $region99: #{transformer_model_forward.1} parent=11 // pred_region
          %s1498 = ssub.s32 32, 32
          %1499 = vsyncadd [#allocation21], %s1498
          %s1500 = sshll.u32 [#allocation20], 4
          %s1501 = int_to_ptr.vmem [resolvable:$true] %s1500
          %1506 = dma.hbm_to_vmem [thread:$0]  %s47, 32, %s1501, [#allocation21], 16, 16, 1
        $region100: #{transformer_model_forward.1} parent=11 // pred_fallthru
          _
        // Predicated region
        $region101: #{transformer_model_forward.1} parent=11 // pred_check
          %p1507 = pneg %p675
        $region102: #{transformer_model_forward.1} parent=11 // pred_check_branch
          %1509 = sbr.rel (%p1507) target = $region104
        $region103: #{transformer_model_forward.1} parent=11 // pred_region
          %s1511 = ssub.s32 1024, 1024
          %1512 = vsyncadd [#allocation21], %s1511
          %s1513 = sshll.u32 [#allocation22], 4
          %s1514 = int_to_ptr.vmem [resolvable:$true] %s1513
          %1519 = dma.hbm_to_vmem [thread:$0]  %s49, 1024, %s1514, [#allocation21], 128, 128, 8
        $region104: #{transformer_model_forward.1} parent=11 // pred_fallthru
          _
        // Predicated region
        $region105: #{transformer_model_forward.1} parent=11 // pred_check
          %p1520 = pneg %p696
        $region106: #{transformer_model_forward.1} parent=11 // pred_check_branch
          %1522 = sbr.rel (%p1520) target = $region108
        $region107: #{transformer_model_forward.1} parent=11 // pred_region
          %s1524 = ssub.s32 32, 32
          %1525 = vsyncadd [#allocation24], %s1524
          %s1526 = sshll.u32 [#allocation23], 4
          %s1527 = int_to_ptr.vmem [resolvable:$true] %s1526
          %1532 = dma.hbm_to_vmem [thread:$0]  %s51, 32, %s1527, [#allocation24], 16, 16, 1
        $region108: #{transformer_model_forward.1} parent=11 // pred_fallthru
          _
        // Predicated region
        $region109: #{transformer_model_forward.1} parent=11 // pred_check
          %p1533 = pneg %p717
        $region110: #{transformer_model_forward.1} parent=11 // pred_check_branch
          %1535 = sbr.rel (%p1533) target = $region112
        $region111: #{transformer_model_forward.1} parent=11 // pred_region
          %s1537 = ssub.s32 1024, 1024
          %1538 = vsyncadd [#allocation24], %s1537
          %s1539 = sshll.u32 [#allocation25], 4
          %s1540 = int_to_ptr.vmem [resolvable:$true] %s1539
          %1545 = dma.hbm_to_vmem [thread:$0]  %s53, 1024, %s1540, [#allocation24], 128, 128, 8
        $region112: #{transformer_model_forward.1} parent=11 // pred_fallthru
          _
        // Predicated region
        $region113: #{transformer_model_forward.1} parent=11 // pred_check
          %p1546 = pneg %p738
        $region114: #{transformer_model_forward.1} parent=11 // pred_check_branch
          %1548 = sbr.rel (%p1546) target = $region116
        $region115: #{transformer_model_forward.1} parent=11 // pred_region
          %s1550 = ssub.s32 32, 32
          %1551 = vsyncadd [#allocation27], %s1550
          %s1552 = sshll.u32 [#allocation26], 4
          %s1553 = int_to_ptr.vmem [resolvable:$true] %s1552
          %1558 = dma.hbm_to_vmem [thread:$0]  %s55, 32, %s1553, [#allocation27], 16, 16, 1
        $region116: #{transformer_model_forward.1} parent=11 // pred_fallthru
          _
        // Predicated region
        $region117: #{transformer_model_forward.1} parent=11 // pred_check
          %p1559 = pneg %p759
        $region118: #{transformer_model_forward.1} parent=11 // pred_check_branch
          %1561 = sbr.rel (%p1559) target = $region120
        $region119: #{transformer_model_forward.1} parent=11 // pred_region
          %s1563 = ssub.s32 1024, 1024
          %1564 = vsyncadd [#allocation27], %s1563
          %s1565 = sshll.u32 [#allocation28], 4
          %s1566 = int_to_ptr.vmem [resolvable:$true] %s1565
          %1571 = dma.hbm_to_vmem [thread:$0]  %s57, 1024, %s1566, [#allocation27], 128, 128, 8
        $region120: #{transformer_model_forward.1} parent=11 // pred_fallthru
          _
        // Predicated region
        $region121: #{transformer_model_forward.1} parent=11 // pred_check
          %p1572 = pneg %p780
        $region122: #{transformer_model_forward.1} parent=11 // pred_check_branch
          %1574 = sbr.rel (%p1572) target = $region124
        $region123: #{transformer_model_forward.1} parent=11 // pred_region
          %s1576 = ssub.s32 32, 32
          %1577 = vsyncadd [#allocation30], %s1576
          %s1578 = sshll.u32 [#allocation29], 4
          %s1579 = int_to_ptr.vmem [resolvable:$true] %s1578
          %1584 = dma.hbm_to_vmem [thread:$0]  %s59, 32, %s1579, [#allocation30], 16, 16, 1
        $region124: #{transformer_model_forward.1} parent=11 // pred_fallthru
          _
        // Predicated region
        $region125: #{transformer_model_forward.1} parent=11 // pred_check
          %p1585 = pneg %p801
        $region126: #{transformer_model_forward.1} parent=11 // pred_check_branch
          %1587 = sbr.rel (%p1585) target = $region128
        $region127: #{transformer_model_forward.1} parent=11 // pred_region
          %s1589 = ssub.s32 1024, 1024
          %1590 = vsyncadd [#allocation30], %s1589
          %s1591 = sshll.u32 [#allocation31], 4
          %s1592 = int_to_ptr.vmem [resolvable:$true] %s1591
          %1597 = dma.hbm_to_vmem [thread:$0]  %s61, 1024, %s1592, [#allocation30], 128, 128, 8
        $region128: #{transformer_model_forward.1} parent=11 // pred_fallthru
          _
        // Predicated region
        $region129: #{transformer_model_forward.1} parent=11 // pred_check
          %p1598 = pneg %p822
        $region130: #{transformer_model_forward.1} parent=11 // pred_check_branch
          %1600 = sbr.rel (%p1598) target = $region132
        $region131: #{transformer_model_forward.1} parent=11 // pred_region
          %s1602 = ssub.s32 32, 32
          %1603 = vsyncadd [#allocation33], %s1602
          %s1604 = sshll.u32 [#allocation32], 4
          %s1605 = int_to_ptr.vmem [resolvable:$true] %s1604
          %1610 = dma.hbm_to_vmem [thread:$0]  %s63, 32, %s1605, [#allocation33], 16, 16, 1
        $region132: #{transformer_model_forward.1} parent=11 // pred_fallthru
          _
        // Predicated region
        $region133: #{transformer_model_forward.1} parent=11 // pred_check
          %p1611 = pneg %p843
        $region134: #{transformer_model_forward.1} parent=11 // pred_check_branch
          %1613 = sbr.rel (%p1611) target = $region136
        $region135: #{transformer_model_forward.1} parent=11 // pred_region
          %s1615 = ssub.s32 1024, 1024
          %1616 = vsyncadd [#allocation33], %s1615
          %s1617 = sshll.u32 [#allocation34], 4
          %s1618 = int_to_ptr.vmem [resolvable:$true] %s1617
          %1623 = dma.hbm_to_vmem [thread:$0]  %s65, 1024, %s1618, [#allocation33], 128, 128, 8
        $region136: #{transformer_model_forward.1} parent=11 // pred_fallthru
          _
        // Predicated region
        $region137: #{transformer_model_forward.1} parent=11 // pred_check
          %p1624 = pneg %p864
        $region138: #{transformer_model_forward.1} parent=11 // pred_check_branch
          %1626 = sbr.rel (%p1624) target = $region140
        $region139: #{transformer_model_forward.1} parent=11 // pred_region
          %s1628 = ssub.s32 32, 32
          %1629 = vsyncadd [#allocation36], %s1628
          %s1630 = sshll.u32 [#allocation35], 4
          %s1631 = int_to_ptr.vmem [resolvable:$true] %s1630
          %1636 = dma.hbm_to_vmem [thread:$0]  %s67, 32, %s1631, [#allocation36], 16, 16, 1
        $region140: #{transformer_model_forward.1} parent=11 // pred_fallthru
          _
        // Predicated region
        $region141: #{transformer_model_forward.1} parent=11 // pred_check
          %p1637 = pneg %p885
        $region142: #{transformer_model_forward.1} parent=11 // pred_check_branch
          %1639 = sbr.rel (%p1637) target = $region144
        $region143: #{transformer_model_forward.1} parent=11 // pred_region
          %s1641 = ssub.s32 1024, 1024
          %1642 = vsyncadd [#allocation36], %s1641
          %s1643 = sshll.u32 [#allocation37], 4
          %s1644 = int_to_ptr.vmem [resolvable:$true] %s1643
          %1649 = dma.hbm_to_vmem [thread:$0]  %s69, 1024, %s1644, [#allocation36], 128, 128, 8
        $region144: #{transformer_model_forward.1} parent=11 // pred_fallthru
          _
        // Predicated region
        $region145: #{transformer_model_forward.1} parent=11 // pred_check
          %p1650 = pneg %p906
        $region146: #{transformer_model_forward.1} parent=11 // pred_check_branch
          %1652 = sbr.rel (%p1650) target = $region148
        $region147: #{transformer_model_forward.1} parent=11 // pred_region
          %s1654 = ssub.s32 32, 32
          %1655 = vsyncadd [#allocation39], %s1654
          %s1656 = sshll.u32 [#allocation38], 4
          %s1657 = int_to_ptr.vmem [resolvable:$true] %s1656
          %1662 = dma.hbm_to_vmem [thread:$0]  %s71, 32, %s1657, [#allocation39], 16, 16, 1
        $region148: #{transformer_model_forward.1} parent=11 // pred_fallthru
          _
        // Predicated region
        $region149: #{transformer_model_forward.1} parent=11 // pred_check
          %p1663 = pneg %p927
        $region150: #{transformer_model_forward.1} parent=11 // pred_check_branch
          %1665 = sbr.rel (%p1663) target = $region152
        $region151: #{transformer_model_forward.1} parent=11 // pred_region
          %s1667 = ssub.s32 1024, 1024
          %1668 = vsyncadd [#allocation39], %s1667
          %s1669 = sshll.u32 [#allocation40], 4
          %s1670 = int_to_ptr.vmem [resolvable:$true] %s1669
          %1675 = dma.hbm_to_vmem [thread:$0]  %s73, 1024, %s1670, [#allocation39], 128, 128, 8
        $region152: #{transformer_model_forward.1} parent=11 // pred_fallthru
          _
        // Predicated region
        $region153: #{transformer_model_forward.1} parent=11 // pred_check
          %p1676 = pneg %p948
        $region154: #{transformer_model_forward.1} parent=11 // pred_check_branch
          %1678 = sbr.rel (%p1676) target = $region156
        $region155: #{transformer_model_forward.1} parent=11 // pred_region
          %s1680 = ssub.s32 32, 32
          %1681 = vsyncadd [#allocation42], %s1680
          %s1682 = sshll.u32 [#allocation41], 4
          %s1683 = int_to_ptr.vmem [resolvable:$true] %s1682
          %1688 = dma.hbm_to_vmem [thread:$0]  %s75, 32, %s1683, [#allocation42], 16, 16, 1
        $region156: #{transformer_model_forward.1} parent=11 // pred_fallthru
          _
        // Predicated region
        $region157: #{transformer_model_forward.1} parent=11 // pred_check
          %p1689 = pneg %p969
        $region158: #{transformer_model_forward.1} parent=11 // pred_check_branch
          %1691 = sbr.rel (%p1689) target = $region160
        $region159: #{transformer_model_forward.1} parent=11 // pred_region
          %s1693 = ssub.s32 1024, 1024
          %1694 = vsyncadd [#allocation42], %s1693
          %s1695 = sshll.u32 [#allocation43], 4
          %s1696 = int_to_ptr.vmem [resolvable:$true] %s1695
          %1701 = dma.hbm_to_vmem [thread:$0]  %s77, 1024, %s1696, [#allocation42], 128, 128, 8
        $region160: #{transformer_model_forward.1} parent=11 // pred_fallthru
          _
        // Predicated region
        $region161: #{transformer_model_forward.1} parent=11 // pred_check
          %p1702 = pneg %p990
        $region162: #{transformer_model_forward.1} parent=11 // pred_check_branch
          %1704 = sbr.rel (%p1702) target = $region164
        $region163: #{transformer_model_forward.1} parent=11 // pred_region
          %s1706 = ssub.s32 32, 32
          %1707 = vsyncadd [#allocation45], %s1706
          %s1708 = sshll.u32 [#allocation44], 4
          %s1709 = int_to_ptr.vmem [resolvable:$true] %s1708
          %1714 = dma.hbm_to_vmem [thread:$0]  %s79, 32, %s1709, [#allocation45], 16, 16, 1
        $region164: #{transformer_model_forward.1} parent=11 // pred_fallthru
          _
        // Predicated region
        $region165: #{transformer_model_forward.1} parent=11 // pred_check
          %p1715 = pneg %p1011
        $region166: #{transformer_model_forward.1} parent=11 // pred_check_branch
          %1717 = sbr.rel (%p1715) target = $region168
        $region167: #{transformer_model_forward.1} parent=11 // pred_region
          %s1719 = ssub.s32 1024, 1024
          %1720 = vsyncadd [#allocation45], %s1719
          %s1721 = sshll.u32 [#allocation46], 4
          %s1722 = int_to_ptr.vmem [resolvable:$true] %s1721
          %1727 = dma.hbm_to_vmem [thread:$0]  %s81, 1024, %s1722, [#allocation45], 128, 128, 8
        $region168: #{transformer_model_forward.1} parent=11 // pred_fallthru
          _
        // Predicated region
        $region169: #{transformer_model_forward.1} parent=11 // pred_check
          %p1728 = pneg %p1032
        $region170: #{transformer_model_forward.1} parent=11 // pred_check_branch
          %1730 = sbr.rel (%p1728) target = $region172
        $region171: #{transformer_model_forward.1} parent=11 // pred_region
          %s1732 = ssub.s32 32, 32
          %1733 = vsyncadd [#allocation48], %s1732
          %s1734 = sshll.u32 [#allocation47], 4
          %s1735 = int_to_ptr.vmem [resolvable:$true] %s1734
          %1740 = dma.hbm_to_vmem [thread:$0]  %s83, 32, %s1735, [#allocation48], 16, 16, 1
        $region172: #{transformer_model_forward.1} parent=11 // pred_fallthru
          _
        // Predicated region
        $region173: #{transformer_model_forward.1} parent=11 // pred_check
          %p1741 = pneg %p1053
        $region174: #{transformer_model_forward.1} parent=11 // pred_check_branch
          %1743 = sbr.rel (%p1741) target = $region176
        $region175: #{transformer_model_forward.1} parent=11 // pred_region
          %s1745 = ssub.s32 1024, 1024
          %1746 = vsyncadd [#allocation48], %s1745
          %s1747 = sshll.u32 [#allocation49], 4
          %s1748 = int_to_ptr.vmem [resolvable:$true] %s1747
          %1753 = dma.hbm_to_vmem [thread:$0]  %s85, 1024, %s1748, [#allocation48], 128, 128, 8
        $region176: #{transformer_model_forward.1} parent=11 // pred_fallthru
          _
        // Predicated region
        $region177: #{transformer_model_forward.1} parent=11 // pred_check
          %p1754 = pneg %p1074
        $region178: #{transformer_model_forward.1} parent=11 // pred_check_branch
          %1756 = sbr.rel (%p1754) target = $region180
        $region179: #{transformer_model_forward.1} parent=11 // pred_region
          %s1758 = ssub.s32 32, 32
          %1759 = vsyncadd [#allocation51], %s1758
          %s1760 = sshll.u32 [#allocation50], 4
          %s1761 = int_to_ptr.vmem [resolvable:$true] %s1760
          %1766 = dma.hbm_to_vmem [thread:$0]  %s87, 32, %s1761, [#allocation51], 16, 16, 1
        $region180: #{transformer_model_forward.1} parent=11 // pred_fallthru
          _
        // Predicated region
        $region181: #{transformer_model_forward.1} parent=11 // pred_check
          %p1767 = pneg %p1095
        $region182: #{transformer_model_forward.1} parent=11 // pred_check_branch
          %1769 = sbr.rel (%p1767) target = $region184
        $region183: #{transformer_model_forward.1} parent=11 // pred_region
          %s1771 = ssub.s32 32, 32
          %1772 = vsyncadd [#allocation51], %s1771
          %s1773 = sshll.u32 [#allocation52], 4
          %s1774 = int_to_ptr.vmem [resolvable:$true] %s1773
          %1779 = dma.hbm_to_vmem [thread:$0]  %s89, 32, %s1774, [#allocation51], 16, 16, 1
        $region184: #{transformer_model_forward.1} parent=11 // pred_fallthru
          _
        // Predicated region
        $region185: #{transformer_model_forward.1} parent=11 // pred_check
          %p1780 = pneg %p1116
        $region186: #{transformer_model_forward.1} parent=11 // pred_check_branch
          %1782 = sbr.rel (%p1780) target = $region188
        $region187: #{transformer_model_forward.1} parent=11 // pred_region
          %s1784 = ssub.s32 32, 32
          %1785 = vsyncadd [#allocation54], %s1784
          %s1786 = sshll.u32 [#allocation53], 4
          %s1787 = int_to_ptr.vmem [resolvable:$true] %s1786
          %1792 = dma.hbm_to_vmem [thread:$0]  %s91, 32, %s1787, [#allocation54], 16, 16, 1
        $region188: #{transformer_model_forward.1} parent=11 // pred_fallthru
          _
        // Predicated region
        $region189: #{transformer_model_forward.1} parent=11 // pred_check
          %p1793 = pneg %p1137
        $region190: #{transformer_model_forward.1} parent=11 // pred_check_branch
          %1795 = sbr.rel (%p1793) target = $region192
        $region191: #{transformer_model_forward.1} parent=11 // pred_region
          %s1797 = ssub.s32 32, 32
          %1798 = vsyncadd [#allocation54], %s1797
          %s1799 = sshll.u32 [#allocation55], 4
          %s1800 = int_to_ptr.vmem [resolvable:$true] %s1799
          %1805 = dma.hbm_to_vmem [thread:$0]  %s93, 32, %s1800, [#allocation54], 16, 16, 1
        $region192: #{transformer_model_forward.1} parent=11 // pred_fallthru
          _
        // Predicated region
        $region193: #{transformer_model_forward.1} parent=11 // pred_check
          %p1806 = pneg %p1158
        $region194: #{transformer_model_forward.1} parent=11 // pred_check_branch
          %1808 = sbr.rel (%p1806) target = $region196
        $region195: #{transformer_model_forward.1} parent=11 // pred_region
          %s1810 = ssub.s32 32, 32
          %1811 = vsyncadd [#allocation57], %s1810
          %s1812 = sshll.u32 [#allocation56], 4
          %s1813 = int_to_ptr.vmem [resolvable:$true] %s1812
          %1818 = dma.hbm_to_vmem [thread:$0]  %s95, 32, %s1813, [#allocation57], 16, 16, 1
        $region196: #{transformer_model_forward.1} parent=11 // pred_fallthru
          _
        // Predicated region
        $region197: #{transformer_model_forward.1} parent=11 // pred_check
          %p1819 = pneg %p1179
        $region198: #{transformer_model_forward.1} parent=11 // pred_check_branch
          %1821 = sbr.rel (%p1819) target = $region200
        $region199: #{transformer_model_forward.1} parent=11 // pred_region
          %s1823 = ssub.s32 32, 32
          %1824 = vsyncadd [#allocation57], %s1823
          %s1825 = sshll.u32 [#allocation58], 4
          %s1826 = int_to_ptr.vmem [resolvable:$true] %s1825
          %1831 = dma.hbm_to_vmem [thread:$0]  %s97, 32, %s1826, [#allocation57], 16, 16, 1
        $region200: #{transformer_model_forward.1} parent=11 // pred_fallthru
          _
        // Predicated region
        $region201: #{transformer_model_forward.1} parent=11 // pred_check
          %p1832 = pneg %p1200
        $region202: #{transformer_model_forward.1} parent=11 // pred_check_branch
          %1834 = sbr.rel (%p1832) target = $region204
        $region203: #{transformer_model_forward.1} parent=11 // pred_region
          %s1836 = ssub.s32 32, 32
          %1837 = vsyncadd [#allocation60], %s1836
          %s1838 = sshll.u32 [#allocation59], 4
          %s1839 = int_to_ptr.vmem [resolvable:$true] %s1838
          %1844 = dma.hbm_to_vmem [thread:$0]  %s99, 32, %s1839, [#allocation60], 16, 16, 1
        $region204: #{transformer_model_forward.1} parent=11 // pred_fallthru
          _
        // Predicated region
        $region205: #{transformer_model_forward.1} parent=11 // pred_check
          %p1845 = pneg %p1221
        $region206: #{transformer_model_forward.1} parent=11 // pred_check_branch
          %1847 = sbr.rel (%p1845) target = $region208
        $region207: #{transformer_model_forward.1} parent=11 // pred_region
          %s1849 = ssub.s32 16, 16
          %1850 = vsyncadd [#allocation60], %s1849
          %s1852 = sshll.u32 [#allocation61], 4
          %s1853 = int_to_ptr.vmem [resolvable:$true] %s1852
          %1855 = dma.hbm_to_vmem [thread:$0]  %s101, 16, %s1853, [#allocation60]
        $region208: #{transformer_model_forward.1} parent=11 // pred_fallthru
          _
        // Predicated region
        $region209: #{transformer_model_forward.1} parent=11 // pred_check
          %p1856 = pneg %p1242
        $region210: #{transformer_model_forward.1} parent=11 // pred_check_branch
          %1858 = sbr.rel (%p1856) target = $region212
        $region211: #{transformer_model_forward.1} parent=11 // pred_region
          %s1860 = ssub.s32 16, 16
          %1861 = vsyncadd [#allocation63], %s1860
          %s1863 = sshll.u32 [#allocation62], 4
          %s1864 = int_to_ptr.vmem [resolvable:$true] %s1863
          %1866 = dma.hbm_to_vmem [thread:$0]  %s103, 16, %s1864, [#allocation63]
        $region212: #{transformer_model_forward.1} parent=11 // pred_fallthru
          _
        // Predicated region
        $region213: #{transformer_model_forward.1} parent=11 // pred_check
          %p1867 = pneg %p1263
        $region214: #{transformer_model_forward.1} parent=11 // pred_check_branch
          %1869 = sbr.rel (%p1867) target = $region216
        $region215: #{transformer_model_forward.1} parent=11 // pred_region
          %s1871 = ssub.s32 16, 16
          %1872 = vsyncadd [#allocation63], %s1871
          %s1874 = sshll.u32 [#allocation64], 4
          %s1875 = int_to_ptr.vmem [resolvable:$true] %s1874
          %1877 = dma.hbm_to_vmem [thread:$0]  %s105, 16, %s1875, [#allocation63]
        $region216: #{transformer_model_forward.1} parent=11 // pred_fallthru
          _
        // Predicated region
        $region217: #{transformer_model_forward.1} parent=11 // pred_check
          %p1878 = pneg %p1284
        $region218: #{transformer_model_forward.1} parent=11 // pred_check_branch
          %1880 = sbr.rel (%p1878) target = $region220
        $region219: #{transformer_model_forward.1} parent=11 // pred_region
          %s1882 = ssub.s32 16, 16
          %1883 = vsyncadd [#allocation66], %s1882
          %s1885 = sshll.u32 [#allocation65], 4
          %s1886 = int_to_ptr.vmem [resolvable:$true] %s1885
          %1888 = dma.hbm_to_vmem [thread:$0]  %s107, 16, %s1886, [#allocation66]
        $region220: #{transformer_model_forward.1} parent=11 // pred_fallthru
          _
      $region12: #{transformer_model_forward.1} parent=5 // pred_fallthru
        _
      %p1889 = scmp.lt.s32.totalorder %s140, 2
      // Predicated region
      $region221: #{transformer_model_forward.1} parent=5 // pred_check
        %p1890 = pneg %p1889
      $region222: #{transformer_model_forward.1} parent=5 // pred_check_branch
        %1892 = sbr.rel (%p1890) target = $region224
      $region223: #{transformer_model_forward.1} parent=5 // pred_region
        // Predicated region
        $region225: #{transformer_model_forward.1} parent=223 // pred_check
          %p1893 = pneg %p160
        $region226: #{transformer_model_forward.1} parent=223 // pred_check_branch
          %1895 = sbr.rel (%p1893) target = $region228
        $region227: #{transformer_model_forward.1} parent=223 // pred_region
          %p1896 = scmp.lt.s32.totalorder %s140, 1
          %s1897 = scalar_select %p1896, %s140, 1
          %s1898 = smul.addr %s1897, 8
          %s1899 = scalar_lea.vmem %s1, %s1898
        $region228: #{transformer_model_forward.1} parent=223 // pred_fallthru
          _
        // Predicated region
        $region229: #{transformer_model_forward.1} parent=223 // pred_check
          %p1900 = pneg %p186
        $region230: #{transformer_model_forward.1} parent=223 // pred_check_branch
          %1902 = sbr.rel (%p1900) target = $region232
        $region231: #{transformer_model_forward.1} parent=223 // pred_region
          %p1903 = scmp.lt.s32.totalorder %s140, 1
          %s1904 = scalar_select %p1903, %s140, 1
          %s1905 = smul.addr %s1904, 8
          %s1906 = scalar_lea.vmem %s3, %s1905
        $region232: #{transformer_model_forward.1} parent=223 // pred_fallthru
          _
      $region224: #{transformer_model_forward.1} parent=5 // pred_fallthru
        _
      %p1907 = scmp.le.s32.totalorder 1, %s140
      %p1908 = scmp.lt.s32.totalorder %s140, 3
      %p1909 = pnand %p1907, %p1908
      %p1910 = pneg %p1909
      // Predicated region
      $region233: #{transformer_model_forward.1} parent=5 // pred_check
        _
      $region234: #{transformer_model_forward.1} parent=5 // pred_check_branch
        %1912 = sbr.rel (%p1909) target = $region236
      $region235: #{transformer_model_forward.1} parent=5 // pred_region
        %s1913 = ssub.s32 %s140, 1
        // Predicated region
        $region237: #{transformer_model_forward.1} parent=235 // pred_check
          %p1914 = pneg %p276
        $region238: #{transformer_model_forward.1} parent=235 // pred_check_branch
          %1916 = sbr.rel (%p1914) target = $region240
        $region239: #{transformer_model_forward.1} parent=235 // pred_region
          %1917 = dma.done [#allocation3], 16
        $region240: #{transformer_model_forward.1} parent=235 // pred_fallthru
          _
        // Predicated region
        $region241: #{transformer_model_forward.1} parent=235 // pred_check
          %p1918 = pneg %p318
        $region242: #{transformer_model_forward.1} parent=235 // pred_check_branch
          %1920 = sbr.rel (%p1918) target = $region244
        $region243: #{transformer_model_forward.1} parent=235 // pred_region
          %1921 = dma.done [#allocation6], 16
        $region244: #{transformer_model_forward.1} parent=235 // pred_fallthru
          _
        // Predicated region
        $region245: #{transformer_model_forward.1} parent=235 // pred_check
          %p1922 = pneg %p402
        $region246: #{transformer_model_forward.1} parent=235 // pred_check_branch
          %1924 = sbr.rel (%p1922) target = $region248
        $region247: #{transformer_model_forward.1} parent=235 // pred_region
          %1925 = dma.done [#allocation6], 32
        $region248: #{transformer_model_forward.1} parent=235 // pred_fallthru
          _
        // Predicated region
        $region249: #{transformer_model_forward.1} parent=235 // pred_check
          %p1926 = pneg %p444
        $region250: #{transformer_model_forward.1} parent=235 // pred_check_branch
          %1928 = sbr.rel (%p1926) target = $region252
        $region251: #{transformer_model_forward.1} parent=235 // pred_region
          %1929 = dma.done [#allocation9], 32
        $region252: #{transformer_model_forward.1} parent=235 // pred_fallthru
          _
        // Predicated region
        $region253: #{transformer_model_forward.1} parent=235 // pred_check
          %p1930 = pneg %p486
        $region254: #{transformer_model_forward.1} parent=235 // pred_check_branch
          %1932 = sbr.rel (%p1930) target = $region256
        $region255: #{transformer_model_forward.1} parent=235 // pred_region
          %1933 = dma.done [#allocation9], 32
        $region256: #{transformer_model_forward.1} parent=235 // pred_fallthru
          _
        // Predicated region
        $region257: #{transformer_model_forward.1} parent=235 // pred_check
          %p1934 = pneg %p507
        $region258: #{transformer_model_forward.1} parent=235 // pred_check_branch
          %1936 = sbr.rel (%p1934) target = $region260
        $region259: #{transformer_model_forward.1} parent=235 // pred_region
          %1937 = dma.done [#allocation12], 1024
        $region260: #{transformer_model_forward.1} parent=235 // pred_fallthru
          _
        // Predicated region
        $region261: #{transformer_model_forward.1} parent=235 // pred_check
          %p1938 = pneg %p528
        $region262: #{transformer_model_forward.1} parent=235 // pred_check_branch
          %1940 = sbr.rel (%p1938) target = $region264
        $region263: #{transformer_model_forward.1} parent=235 // pred_region
          %1941 = dma.done [#allocation12], 32
        $region264: #{transformer_model_forward.1} parent=235 // pred_fallthru
          _
        // Predicated region
        $region265: #{transformer_model_forward.1} parent=235 // pred_check
          %p1942 = pneg %p570
        $region266: #{transformer_model_forward.1} parent=235 // pred_check_branch
          %1944 = sbr.rel (%p1942) target = $region268
        $region267: #{transformer_model_forward.1} parent=235 // pred_region
          %1945 = dma.done [#allocation15], 32
        $region268: #{transformer_model_forward.1} parent=235 // pred_fallthru
          _
        // Predicated region
        $region269: #{transformer_model_forward.1} parent=235 // pred_check
          %p1946 = pneg %p591
        $region270: #{transformer_model_forward.1} parent=235 // pred_check_branch
          %1948 = sbr.rel (%p1946) target = $region272
        $region271: #{transformer_model_forward.1} parent=235 // pred_region
          %1949 = dma.done [#allocation15], 32
        $region272: #{transformer_model_forward.1} parent=235 // pred_fallthru
          _
        // Predicated region
        $region273: #{transformer_model_forward.1} parent=235 // pred_check
          %p1950 = pneg %p612
        $region274: #{transformer_model_forward.1} parent=235 // pred_check_branch
          %1952 = sbr.rel (%p1950) target = $region276
        $region275: #{transformer_model_forward.1} parent=235 // pred_region
          %1953 = dma.done [#allocation18], 32
        $region276: #{transformer_model_forward.1} parent=235 // pred_fallthru
          _
        // Predicated region
        $region277: #{transformer_model_forward.1} parent=235 // pred_check
          %p1954 = pneg %p633
        $region278: #{transformer_model_forward.1} parent=235 // pred_check_branch
          %1956 = sbr.rel (%p1954) target = $region280
        $region279: #{transformer_model_forward.1} parent=235 // pred_region
          %1957 = dma.done [#allocation18], 32
        $region280: #{transformer_model_forward.1} parent=235 // pred_fallthru
          _
        // Predicated region
        $region281: #{transformer_model_forward.1} parent=235 // pred_check
          %p1958 = pneg %p654
        $region282: #{transformer_model_forward.1} parent=235 // pred_check_branch
          %1960 = sbr.rel (%p1958) target = $region284
        $region283: #{transformer_model_forward.1} parent=235 // pred_region
          %1961 = dma.done [#allocation21], 32
        $region284: #{transformer_model_forward.1} parent=235 // pred_fallthru
          _
        // Predicated region
        $region285: #{transformer_model_forward.1} parent=235 // pred_check
          %p1962 = pneg %p675
        $region286: #{transformer_model_forward.1} parent=235 // pred_check_branch
          %1964 = sbr.rel (%p1962) target = $region288
        $region287: #{transformer_model_forward.1} parent=235 // pred_region
          %1965 = dma.done [#allocation21], 1024
        $region288: #{transformer_model_forward.1} parent=235 // pred_fallthru
          _
        // Predicated region
        $region289: #{transformer_model_forward.1} parent=235 // pred_check
          %p1966 = pneg %p696
        $region290: #{transformer_model_forward.1} parent=235 // pred_check_branch
          %1968 = sbr.rel (%p1966) target = $region292
        $region291: #{transformer_model_forward.1} parent=235 // pred_region
          %1969 = dma.done [#allocation24], 32
        $region292: #{transformer_model_forward.1} parent=235 // pred_fallthru
          _
        // Predicated region
        $region293: #{transformer_model_forward.1} parent=235 // pred_check
          %p1970 = pneg %p717
        $region294: #{transformer_model_forward.1} parent=235 // pred_check_branch
          %1972 = sbr.rel (%p1970) target = $region296
        $region295: #{transformer_model_forward.1} parent=235 // pred_region
          %1973 = dma.done [#allocation24], 1024
        $region296: #{transformer_model_forward.1} parent=235 // pred_fallthru
          _
        // Predicated region
        $region297: #{transformer_model_forward.1} parent=235 // pred_check
          %p1974 = pneg %p738
        $region298: #{transformer_model_forward.1} parent=235 // pred_check_branch
          %1976 = sbr.rel (%p1974) target = $region300
        $region299: #{transformer_model_forward.1} parent=235 // pred_region
          %1977 = dma.done [#allocation27], 32
        $region300: #{transformer_model_forward.1} parent=235 // pred_fallthru
          _
        // Predicated region
        $region301: #{transformer_model_forward.1} parent=235 // pred_check
          %p1978 = pneg %p759
        $region302: #{transformer_model_forward.1} parent=235 // pred_check_branch
          %1980 = sbr.rel (%p1978) target = $region304
        $region303: #{transformer_model_forward.1} parent=235 // pred_region
          %1981 = dma.done [#allocation27], 1024
        $region304: #{transformer_model_forward.1} parent=235 // pred_fallthru
          _
        // Predicated region
        $region305: #{transformer_model_forward.1} parent=235 // pred_check
          %p1982 = pneg %p780
        $region306: #{transformer_model_forward.1} parent=235 // pred_check_branch
          %1984 = sbr.rel (%p1982) target = $region308
        $region307: #{transformer_model_forward.1} parent=235 // pred_region
          %1985 = dma.done [#allocation30], 32
        $region308: #{transformer_model_forward.1} parent=235 // pred_fallthru
          _
        // Predicated region
        $region309: #{transformer_model_forward.1} parent=235 // pred_check
          %p1986 = pneg %p801
        $region310: #{transformer_model_forward.1} parent=235 // pred_check_branch
          %1988 = sbr.rel (%p1986) target = $region312
        $region311: #{transformer_model_forward.1} parent=235 // pred_region
          %1989 = dma.done [#allocation30], 1024
        $region312: #{transformer_model_forward.1} parent=235 // pred_fallthru
          _
        // Predicated region
        $region313: #{transformer_model_forward.1} parent=235 // pred_check
          %p1990 = pneg %p822
        $region314: #{transformer_model_forward.1} parent=235 // pred_check_branch
          %1992 = sbr.rel (%p1990) target = $region316
        $region315: #{transformer_model_forward.1} parent=235 // pred_region
          %1993 = dma.done [#allocation33], 32
        $region316: #{transformer_model_forward.1} parent=235 // pred_fallthru
          _
        // Predicated region
        $region317: #{transformer_model_forward.1} parent=235 // pred_check
          %p1994 = pneg %p843
        $region318: #{transformer_model_forward.1} parent=235 // pred_check_branch
          %1996 = sbr.rel (%p1994) target = $region320
        $region319: #{transformer_model_forward.1} parent=235 // pred_region
          %1997 = dma.done [#allocation33], 1024
        $region320: #{transformer_model_forward.1} parent=235 // pred_fallthru
          _
        // Predicated region
        $region321: #{transformer_model_forward.1} parent=235 // pred_check
          %p1998 = pneg %p864
        $region322: #{transformer_model_forward.1} parent=235 // pred_check_branch
          %2000 = sbr.rel (%p1998) target = $region324
        $region323: #{transformer_model_forward.1} parent=235 // pred_region
          %2001 = dma.done [#allocation36], 32
        $region324: #{transformer_model_forward.1} parent=235 // pred_fallthru
          _
        // Predicated region
        $region325: #{transformer_model_forward.1} parent=235 // pred_check
          %p2002 = pneg %p885
        $region326: #{transformer_model_forward.1} parent=235 // pred_check_branch
          %2004 = sbr.rel (%p2002) target = $region328
        $region327: #{transformer_model_forward.1} parent=235 // pred_region
          %2005 = dma.done [#allocation36], 1024
        $region328: #{transformer_model_forward.1} parent=235 // pred_fallthru
          _
        // Predicated region
        $region329: #{transformer_model_forward.1} parent=235 // pred_check
          %p2006 = pneg %p906
        $region330: #{transformer_model_forward.1} parent=235 // pred_check_branch
          %2008 = sbr.rel (%p2006) target = $region332
        $region331: #{transformer_model_forward.1} parent=235 // pred_region
          %2009 = dma.done [#allocation39], 32
        $region332: #{transformer_model_forward.1} parent=235 // pred_fallthru
          _
        // Predicated region
        $region333: #{transformer_model_forward.1} parent=235 // pred_check
          %p2010 = pneg %p927
        $region334: #{transformer_model_forward.1} parent=235 // pred_check_branch
          %2012 = sbr.rel (%p2010) target = $region336
        $region335: #{transformer_model_forward.1} parent=235 // pred_region
          %2013 = dma.done [#allocation39], 1024
        $region336: #{transformer_model_forward.1} parent=235 // pred_fallthru
          _
        // Predicated region
        $region337: #{transformer_model_forward.1} parent=235 // pred_check
          %p2014 = pneg %p948
        $region338: #{transformer_model_forward.1} parent=235 // pred_check_branch
          %2016 = sbr.rel (%p2014) target = $region340
        $region339: #{transformer_model_forward.1} parent=235 // pred_region
          %2017 = dma.done [#allocation42], 32
        $region340: #{transformer_model_forward.1} parent=235 // pred_fallthru
          _
        // Predicated region
        $region341: #{transformer_model_forward.1} parent=235 // pred_check
          %p2018 = pneg %p969
        $region342: #{transformer_model_forward.1} parent=235 // pred_check_branch
          %2020 = sbr.rel (%p2018) target = $region344
        $region343: #{transformer_model_forward.1} parent=235 // pred_region
          %2021 = dma.done [#allocation42], 1024
        $region344: #{transformer_model_forward.1} parent=235 // pred_fallthru
          _
        // Predicated region
        $region345: #{transformer_model_forward.1} parent=235 // pred_check
          %p2022 = pneg %p990
        $region346: #{transformer_model_forward.1} parent=235 // pred_check_branch
          %2024 = sbr.rel (%p2022) target = $region348
        $region347: #{transformer_model_forward.1} parent=235 // pred_region
          %2025 = dma.done [#allocation45], 32
        $region348: #{transformer_model_forward.1} parent=235 // pred_fallthru
          _
        // Predicated region
        $region349: #{transformer_model_forward.1} parent=235 // pred_check
          %p2026 = pneg %p1011
        $region350: #{transformer_model_forward.1} parent=235 // pred_check_branch
          %2028 = sbr.rel (%p2026) target = $region352
        $region351: #{transformer_model_forward.1} parent=235 // pred_region
          %2029 = dma.done [#allocation45], 1024
        $region352: #{transformer_model_forward.1} parent=235 // pred_fallthru
          _
        // Predicated region
        $region353: #{transformer_model_forward.1} parent=235 // pred_check
          %p2030 = pneg %p1032
        $region354: #{transformer_model_forward.1} parent=235 // pred_check_branch
          %2032 = sbr.rel (%p2030) target = $region356
        $region355: #{transformer_model_forward.1} parent=235 // pred_region
          %2033 = dma.done [#allocation48], 32
        $region356: #{transformer_model_forward.1} parent=235 // pred_fallthru
          _
        // Predicated region
        $region357: #{transformer_model_forward.1} parent=235 // pred_check
          %p2034 = pneg %p1053
        $region358: #{transformer_model_forward.1} parent=235 // pred_check_branch
          %2036 = sbr.rel (%p2034) target = $region360
        $region359: #{transformer_model_forward.1} parent=235 // pred_region
          %2037 = dma.done [#allocation48], 1024
        $region360: #{transformer_model_forward.1} parent=235 // pred_fallthru
          _
        // Predicated region
        $region361: #{transformer_model_forward.1} parent=235 // pred_check
          %p2038 = pneg %p1074
        $region362: #{transformer_model_forward.1} parent=235 // pred_check_branch
          %2040 = sbr.rel (%p2038) target = $region364
        $region363: #{transformer_model_forward.1} parent=235 // pred_region
          %2041 = dma.done [#allocation51], 32
        $region364: #{transformer_model_forward.1} parent=235 // pred_fallthru
          _
        // Predicated region
        $region365: #{transformer_model_forward.1} parent=235 // pred_check
          %p2042 = pneg %p1095
        $region366: #{transformer_model_forward.1} parent=235 // pred_check_branch
          %2044 = sbr.rel (%p2042) target = $region368
        $region367: #{transformer_model_forward.1} parent=235 // pred_region
          %2045 = dma.done [#allocation51], 32
        $region368: #{transformer_model_forward.1} parent=235 // pred_fallthru
          _
        // Predicated region
        $region369: #{transformer_model_forward.1} parent=235 // pred_check
          %p2046 = pneg %p1116
        $region370: #{transformer_model_forward.1} parent=235 // pred_check_branch
          %2048 = sbr.rel (%p2046) target = $region372
        $region371: #{transformer_model_forward.1} parent=235 // pred_region
          %2049 = dma.done [#allocation54], 32
        $region372: #{transformer_model_forward.1} parent=235 // pred_fallthru
          _
        // Predicated region
        $region373: #{transformer_model_forward.1} parent=235 // pred_check
          %p2050 = pneg %p1137
        $region374: #{transformer_model_forward.1} parent=235 // pred_check_branch
          %2052 = sbr.rel (%p2050) target = $region376
        $region375: #{transformer_model_forward.1} parent=235 // pred_region
          %2053 = dma.done [#allocation54], 32
        $region376: #{transformer_model_forward.1} parent=235 // pred_fallthru
          _
        // Predicated region
        $region377: #{transformer_model_forward.1} parent=235 // pred_check
          %p2054 = pneg %p1158
        $region378: #{transformer_model_forward.1} parent=235 // pred_check_branch
          %2056 = sbr.rel (%p2054) target = $region380
        $region379: #{transformer_model_forward.1} parent=235 // pred_region
          %2057 = dma.done [#allocation57], 32
        $region380: #{transformer_model_forward.1} parent=235 // pred_fallthru
          _
        // Predicated region
        $region381: #{transformer_model_forward.1} parent=235 // pred_check
          %p2058 = pneg %p1179
        $region382: #{transformer_model_forward.1} parent=235 // pred_check_branch
          %2060 = sbr.rel (%p2058) target = $region384
        $region383: #{transformer_model_forward.1} parent=235 // pred_region
          %2061 = dma.done [#allocation57], 32
        $region384: #{transformer_model_forward.1} parent=235 // pred_fallthru
          _
        // Predicated region
        $region385: #{transformer_model_forward.1} parent=235 // pred_check
          %p2062 = pneg %p1200
        $region386: #{transformer_model_forward.1} parent=235 // pred_check_branch
          %2064 = sbr.rel (%p2062) target = $region388
        $region387: #{transformer_model_forward.1} parent=235 // pred_region
          %2065 = dma.done [#allocation60], 32
        $region388: #{transformer_model_forward.1} parent=235 // pred_fallthru
          _
        // Predicated region
        $region389: #{transformer_model_forward.1} parent=235 // pred_check
          %p2066 = pneg %p1221
        $region390: #{transformer_model_forward.1} parent=235 // pred_check_branch
          %2068 = sbr.rel (%p2066) target = $region392
        $region391: #{transformer_model_forward.1} parent=235 // pred_region
          %2069 = dma.done [#allocation60], 16
        $region392: #{transformer_model_forward.1} parent=235 // pred_fallthru
          _
        // Predicated region
        $region393: #{transformer_model_forward.1} parent=235 // pred_check
          %p2070 = pneg %p1242
        $region394: #{transformer_model_forward.1} parent=235 // pred_check_branch
          %2072 = sbr.rel (%p2070) target = $region396
        $region395: #{transformer_model_forward.1} parent=235 // pred_region
          %2073 = dma.done [#allocation63], 16
        $region396: #{transformer_model_forward.1} parent=235 // pred_fallthru
          _
        // Predicated region
        $region397: #{transformer_model_forward.1} parent=235 // pred_check
          %p2074 = pneg %p1263
        $region398: #{transformer_model_forward.1} parent=235 // pred_check_branch
          %2076 = sbr.rel (%p2074) target = $region400
        $region399: #{transformer_model_forward.1} parent=235 // pred_region
          %2077 = dma.done [#allocation63], 16
        $region400: #{transformer_model_forward.1} parent=235 // pred_fallthru
          _
        // Predicated region
        $region401: #{transformer_model_forward.1} parent=235 // pred_check
          %p2078 = pneg %p1284
        $region402: #{transformer_model_forward.1} parent=235 // pred_check_branch
          %2080 = sbr.rel (%p2078) target = $region404
        $region403: #{transformer_model_forward.1} parent=235 // pred_region
          %2081 = dma.done [#allocation66], 16
        $region404: #{transformer_model_forward.1} parent=235 // pred_fallthru
          _
        %p2082 = scmp.lt.s32.totalorder %s145, 1
        %s2083 = scalar_select %p2082, %s145, 1
        %s2084 = smul.addr %s2083, 8
        %s2085 = scalar_lea.vmem %s1, %s2084
        %p2086 = pneg %p166
        %p2087 = pneg %p163
        %p2088 = scmp.lt.s32.totalorder %s145, 1
        %s2089 = scalar_select %p2088, %s145, 1
        %s2090 = smul.addr %s2089, 8
        %s2091 = scalar_lea.vmem %s3, %s2090
        %p2092 = pneg %p192
        %p2093 = pneg %p189
        %p2094 = pneg %p213
        %p2095 = pneg %p210
        %p2096 = pneg %p234
        %p2097 = pneg %p231
        %p2098 = pneg %p255
        %p2099 = pneg %p252
        %p2100 = pneg %p276
        %p2101 = pneg %p273
        %p2102 = pneg %p297
        %p2103 = pneg %p294
        %p2104 = pneg %p318
        %p2105 = pneg %p315
        %p2106 = pneg %p339
        %p2107 = pneg %p336
        %p2108 = pneg %p360
        %p2109 = pneg %p357
        %p2110 = pneg %p381
        %p2111 = pneg %p378
        %p2112 = pneg %p402
        %p2113 = pneg %p399
        %p2114 = pneg %p423
        %p2115 = pneg %p420
        %p2116 = pneg %p444
        %p2117 = pneg %p441
        %p2118 = pneg %p465
        %p2119 = pneg %p462
        %p2120 = pneg %p486
        %p2121 = pneg %p483
        %p2122 = pneg %p507
        %p2123 = pneg %p504
        %p2124 = pneg %p528
        %p2125 = pneg %p525
        %p2126 = pneg %p549
        %p2127 = pneg %p546
        %p2128 = pneg %p570
        %p2129 = pneg %p567
        %p2130 = pneg %p591
        %p2131 = pneg %p588
        %p2132 = pneg %p612
        %p2133 = pneg %p609
        %p2134 = pneg %p633
        %p2135 = pneg %p630
        %p2136 = pneg %p654
        %p2137 = pneg %p651
        %p2138 = pneg %p675
        %p2139 = pneg %p672
        %p2140 = pneg %p696
        %p2141 = pneg %p693
        %p2142 = pneg %p717
        %p2143 = pneg %p714
        %p2144 = pneg %p738
        %p2145 = pneg %p735
        %p2146 = pneg %p759
        %p2147 = pneg %p756
        %p2148 = pneg %p780
        %p2149 = pneg %p777
        %p2150 = pneg %p801
        %p2151 = pneg %p798
        %p2152 = pneg %p822
        %p2153 = pneg %p819
        %p2154 = pneg %p843
        %p2155 = pneg %p840
        %p2156 = pneg %p864
        %p2157 = pneg %p861
        %p2158 = pneg %p885
        %p2159 = pneg %p882
        %p2160 = pneg %p906
        %p2161 = pneg %p903
        %p2162 = pneg %p927
        %p2163 = pneg %p924
        %p2164 = pneg %p948
        %p2165 = pneg %p945
        %p2166 = pneg %p969
        %p2167 = pneg %p966
        %p2168 = pneg %p990
        %p2169 = pneg %p987
        %p2170 = pneg %p1011
        %p2171 = pneg %p1008
        %p2172 = pneg %p1032
        %p2173 = pneg %p1029
        %p2174 = pneg %p1053
        %p2175 = pneg %p1050
        %p2176 = pneg %p1074
        %p2177 = pneg %p1071
        %p2178 = pneg %p1095
        %p2179 = pneg %p1092
        %p2180 = pneg %p1116
        %p2181 = pneg %p1113
        %p2182 = pneg %p1137
        %p2183 = pneg %p1134
        %p2184 = pneg %p1158
        %p2185 = pneg %p1155
        %p2186 = pneg %p1179
        %p2187 = pneg %p1176
        %p2188 = pneg %p1200
        %p2189 = pneg %p1197
        %p2190 = pneg %p1221
        %p2191 = pneg %p1218
        %p2192 = pneg %p1242
        %p2193 = pneg %p1239
        %p2194 = pneg %p1263
        %p2195 = pneg %p1260
        %p2196 = pneg %p1284
        %p2197 = pneg %p1281
        %p2198 = pneg %p1310
        %p2199 = pneg %p1307
        %s2200 = sand.u32 %s1297, 1
        %s2201 = scalar_lea.sflag [#allocation4], %s2200
        %s2202 = sand.u32 %s1297, 1
        %s2203 = smul.addr %s2202, 8
        %s2204 = scalar_lea.vmem [#allocation67], %s2203
        %p2205 = scmp.lt.s32.totalorder %s145, 1
        %s2206 = scalar_select %p2205, %s145, 1
        %s2207 = smul.addr %s2206, 8
        %s2208 = scalar_lea.vmem %s1, %s2207
        %p2209 = scmp.lt.s32.totalorder %s145, 1
        %s2210 = scalar_select %p2209, %s145, 1
        %s2211 = smul.addr %s2210, 8
        %s2212 = scalar_lea.vmem %s3, %s2211
        %v2213 = vlaneseq
        %v2214 = vand.u32 %v2213, 127
        %vm2215 = vcmp.ge.s32.totalorder %v2214, 0
        %vm2216 = vcmp.lt.s32.totalorder %v2214, 8
        %vm2217 = vmand %vm2215, %vm2216
        %v2218 = vsel %vm2217, 1, 0
        %v2219 = vcvt.s32.f32 %v2218
        %vm2220 = vcmp.ge.s32.totalorder %v2214, 8
        %vm2221 = vcmp.lt.s32.totalorder %v2214, 16
        %vm2222 = vmand %vm2220, %vm2221
        %v2223 = vsel %vm2222, 1, 0
        %v2224 = vcvt.s32.f32 %v2223
        %vm2225 = vcmp.ge.s32.totalorder %v2214, 16
        %vm2226 = vcmp.lt.s32.totalorder %v2214, 24
        %vm2227 = vmand %vm2225, %vm2226
        %v2228 = vsel %vm2227, 1, 0
        %v2229 = vcvt.s32.f32 %v2228
        %vm2230 = vcmp.ge.s32.totalorder %v2214, 24
        %vm2231 = vcmp.lt.s32.totalorder %v2214, 32
        %vm2232 = vmand %vm2230, %vm2231
        %v2233 = vsel %vm2232, 1, 0
        %v2234 = vcvt.s32.f32 %v2233
        %vm2235 = vcmp.lt.s32.totalorder %v2214, 7
        %v2236 = vsel %vm2235, 0.0, -1e+09
        %v2237 = vlaneseq
        %v2238 = vshrl.u32 %v2237, 7
        %vm2239 = vcmp.ge.s32.totalorder %v2238, %v2214
        %v2240 = vsel %vm2239, 0.0, -1e+09
        %v2241 = vld [vmem:[%s2208] sm:$0xff]
        %v2242 = vld [vmem:[%s9] sm:$0xff]
        %v2243 = vld [vmem:[%s9 + $0x8] sm:$0xff]
        %v2244 = vld [vmem:[%s9 + $0x10] sm:$0xff]
        %v2245 = vld [vmem:[%s9 + $0x18] sm:$0xff]
        %v2246 = vld [vmem:[%s9 + $0x20] sm:$0xff]
        %v2247 = vld [vmem:[%s9 + $0x28] sm:$0xff]
        %v2248 = vld [vmem:[%s9 + $0x30] sm:$0x7f]
        %v2249 = vld [vmem:[#allocation2] sm:$0x1]
        %v2251 = vlaneseq
        %v2252 = vshrl.u32 %v2251, 7
        %v2253 = vsub.s32 0, %v2252
        %v2254 = vrot.slane %v2249, %v2253
        %vm2256 = vcmask 449536
        %v2258 = vsel %vm2256, %v2241, 0
        %vm2260 = vcmask 1046528
        %v2262 = vsel %vm2260, %v2248, 0
        %2264 = vmatprep.subr.mxu0 0.0
        %2265 = vmatpush1.msra.mxu0 0.0
        %2266 = vmatprep.subr.mxu0 0.0
        %2267 = vmatpush1.msra.mxu0 0.0
        %2268 = vmatprep.subr.mxu0 0.0
        %2269 = vmatpush1.msra.mxu0 0.0
        %2270 = vmatprep.subr.mxu0 0.0
        %2271 = vmatpush1.msra.mxu0 0.0
        %2272 = vmatprep.subr.mxu0 0.0
        %2273 = vmatpush1.msra.mxu0 0.0
        %2274 = vmatprep.subr.mxu0 0.0
        %2275 = vmatpush1.msra.mxu0 0.0
        %2276 = vmatprep.subr.mxu0 0.0
        %2277 = vmatpush1.msra.mxu0 0.0
        %2278 = vmatprep.subr.mxu0 0.0
        %2279 = vmatpush1.msra.mxu0 0.0
        %2280 = vmatprep.subr.mxu0 0.0
        %2281 = vmatpush1.msra.mxu0 0.0
        %2282 = vmatprep.subr.mxu0 0.0
        %2283 = vmatpush1.msra.mxu0 %v2262
        %2284 = vmatprep.subr.mxu0 0.0
        %2285 = vmatpush1.msra.mxu0 %v2247
        %2286 = vmatprep.subr.mxu0 0.0
        %2287 = vmatpush1.msra.mxu0 %v2246
        %2288 = vmatprep.subr.mxu0 0.0
        %2289 = vmatpush1.msra.mxu0 %v2245
        %2290 = vmatprep.subr.mxu0 0.0
        %2291 = vmatpush1.msra.mxu0 %v2244
        %2292 = vmatprep.subr.mxu0 0.0
        %2293 = vmatpush1.msra.mxu0 %v2243
        %2294 = vmatprep.subr.mxu0 0.0
        %2295 = vmatpush1.msra.mxu0 %v2242
        %2296 = vmatprep.subr.mxu0 0.0
        %2297 = vmatpush2.msra.mxu0 0.0
        %2298 = vmatprep.subr.mxu0 0.0
        %2299 = vmatpush2.msra.mxu0 0.0
        %2300 = vmatprep.subr.mxu0 0.0
        %2301 = vmatpush2.msra.mxu0 0.0
        %2302 = vmatprep.subr.mxu0 0.0
        %2303 = vmatpush2.msra.mxu0 0.0
        %2304 = vmatprep.subr.mxu0 0.0
        %2305 = vmatpush2.msra.mxu0 0.0
        %2306 = vmatprep.subr.mxu0 0.0
        %2307 = vmatpush2.msra.mxu0 0.0
        %2308 = vmatprep.subr.mxu0 0.0
        %2309 = vmatpush2.msra.mxu0 0.0
        %2310 = vmatprep.subr.mxu0 0.0
        %2311 = vmatpush2.msra.mxu0 0.0
        %2312 = vmatprep.subr.mxu0 0.0
        %2313 = vmatpush2.msra.mxu0 0.0
        %2314 = vmatprep.subr.mxu0 0.0
        %2315 = vmatpush2.msra.mxu0 0.0
        %2316 = vmatprep.subr.mxu0 0.0
        %2317 = vmatpush2.msra.mxu0 0.0
        %2318 = vmatprep.subr.mxu0 0.0
        %2319 = vmatpush2.msra.mxu0 0.0
        %2320 = vmatprep.subr.mxu0 0.0
        %2321 = vmatpush2.msra.mxu0 0.0
        %2322 = vmatprep.subr.mxu0 0.0
        %2323 = vmatpush2.msra.mxu0 0.0
        %2324 = vmatprep.subr.mxu0 0.0
        %2325 = vmatpush2.msra.mxu0 0.0
        %2326 = vmatprep.subr.mxu0 0.0
        %2327 = vmatpush2.msra.mxu0 0.0
        %2328 = vmatprep.mubr.f32.mxu0 0.0
        %2329 = vmatmul.mubr.f32.gmra.mxu0 %v2258
        %v2330 = vpop.f32.mrf.mxu0
        %v2331 = vadd.f32 %v2254, %v2330
        %v2332 = vpop.f32.mrf.mxu0
        %2333 = vdwg.mxu0
        %v2334 = vmul.f32 %v2331, 5.656854
        %v2335 = vld [vmem:[%s5] sm:$0xff]
        %v2336 = vadd.f32 %v2334, %v2335
        %v2337 = vld [vmem:[%s17] sm:$0xff]
        %v2338 = vld [vmem:[%s17 + $0x8] sm:$0xff]
        %v2339 = vld [vmem:[%s17 + $0x10] sm:$0xff]
        %v2340 = vld [vmem:[%s17 + $0x18] sm:$0xff]
        %v2341 = vld [vmem:[%s19] sm:$0x1]
        %v2343 = vlaneseq
        %v2344 = vshrl.u32 %v2343, 7
        %v2345 = vsub.s32 0, %v2344
        %v2346 = vrot.slane %v2341, %v2345
        %vm2348 = vcmask 261120
        %v2350 = vsel %vm2348, %v2336, 0
        %2352 = vmatprep.subr.mxu0 0.0
        %2353 = vmatpush1.msra.mxu0 0.0
        %2354 = vmatprep.subr.mxu0 0.0
        %2355 = vmatpush1.msra.mxu0 0.0
        %2356 = vmatprep.subr.mxu0 0.0
        %2357 = vmatpush1.msra.mxu0 0.0
        %2358 = vmatprep.subr.mxu0 0.0
        %2359 = vmatpush1.msra.mxu0 0.0
        %2360 = vmatprep.subr.mxu0 0.0
        %2361 = vmatpush1.msra.mxu0 0.0
        %2362 = vmatprep.subr.mxu0 0.0
        %2363 = vmatpush1.msra.mxu0 0.0
        %2364 = vmatprep.subr.mxu0 0.0
        %2365 = vmatpush1.msra.mxu0 0.0
        %2366 = vmatprep.subr.mxu0 0.0
        %2367 = vmatpush1.msra.mxu0 0.0
        %2368 = vmatprep.subr.mxu0 0.0
        %2369 = vmatpush1.msra.mxu0 0.0
        %2370 = vmatprep.subr.mxu0 0.0
        %2371 = vmatpush1.msra.mxu0 0.0
        %2372 = vmatprep.subr.mxu0 0.0
        %2373 = vmatpush1.msra.mxu0 0.0
        %2374 = vmatprep.subr.mxu0 0.0
        %2375 = vmatpush1.msra.mxu0 0.0
        %2376 = vmatprep.subr.mxu0 0.0
        %2377 = vmatpush1.msra.mxu0 %v2340
        %2378 = vmatprep.subr.mxu0 0.0
        %2379 = vmatpush1.msra.mxu0 %v2339
        %2380 = vmatprep.subr.mxu0 0.0
        %2381 = vmatpush1.msra.mxu0 %v2338
        %2382 = vmatprep.subr.mxu0 0.0
        %2383 = vmatpush1.msra.mxu0 %v2337
        %2384 = vmatprep.subr.mxu0 0.0
        %2385 = vmatpush2.msra.mxu0 0.0
        %2386 = vmatprep.subr.mxu0 0.0
        %2387 = vmatpush2.msra.mxu0 0.0
        %2388 = vmatprep.subr.mxu0 0.0
        %2389 = vmatpush2.msra.mxu0 0.0
        %2390 = vmatprep.subr.mxu0 0.0
        %2391 = vmatpush2.msra.mxu0 0.0
        %2392 = vmatprep.subr.mxu0 0.0
        %2393 = vmatpush2.msra.mxu0 0.0
        %2394 = vmatprep.subr.mxu0 0.0
        %2395 = vmatpush2.msra.mxu0 0.0
        %2396 = vmatprep.subr.mxu0 0.0
        %2397 = vmatpush2.msra.mxu0 0.0
        %2398 = vmatprep.subr.mxu0 0.0
        %2399 = vmatpush2.msra.mxu0 0.0
        %2400 = vmatprep.subr.mxu0 0.0
        %2401 = vmatpush2.msra.mxu0 0.0
        %2402 = vmatprep.subr.mxu0 0.0
        %2403 = vmatpush2.msra.mxu0 0.0
        %2404 = vmatprep.subr.mxu0 0.0
        %2405 = vmatpush2.msra.mxu0 0.0
        %2406 = vmatprep.subr.mxu0 0.0
        %2407 = vmatpush2.msra.mxu0 0.0
        %2408 = vmatprep.subr.mxu0 0.0
        %2409 = vmatpush2.msra.mxu0 0.0
        %2410 = vmatprep.subr.mxu0 0.0
        %2411 = vmatpush2.msra.mxu0 0.0
        %2412 = vmatprep.subr.mxu0 0.0
        %2413 = vmatpush2.msra.mxu0 0.0
        %2414 = vmatprep.subr.mxu0 0.0
        %2415 = vmatpush2.msra.mxu0 0.0
        %2416 = vmatprep.mubr.f32.mxu0 0.0
        %2417 = vmatmul.mubr.f32.gmra.mxu0 %v2350
        %v2418 = vpop.f32.mrf.mxu0
        %v2419 = vadd.f32 %v2346, %v2418
        %v2420 = vpop.f32.mrf.mxu0
        %2421 = vdwg.mxu0
        %v2422 = vld [vmem:[%s21] sm:$0xff]
        %v2423 = vld [vmem:[%s21 + $0x8] sm:$0xff]
        %v2424 = vld [vmem:[%s21 + $0x10] sm:$0xff]
        %v2425 = vld [vmem:[%s21 + $0x18] sm:$0xff]
        %v2426 = vld [vmem:[#allocation7] sm:$0x1]
        %v2428 = vlaneseq
        %v2429 = vshrl.u32 %v2428, 7
        %v2430 = vsub.s32 0, %v2429
        %v2431 = vrot.slane %v2426, %v2430
        %2433 = vmatprep.subr.mxu0 0.0
        %2434 = vmatpush1.msra.mxu0 0.0
        %2435 = vmatprep.subr.mxu0 0.0
        %2436 = vmatpush1.msra.mxu0 0.0
        %2437 = vmatprep.subr.mxu0 0.0
        %2438 = vmatpush1.msra.mxu0 0.0
        %2439 = vmatprep.subr.mxu0 0.0
        %2440 = vmatpush1.msra.mxu0 0.0
        %2441 = vmatprep.subr.mxu0 0.0
        %2442 = vmatpush1.msra.mxu0 0.0
        %2443 = vmatprep.subr.mxu0 0.0
        %2444 = vmatpush1.msra.mxu0 0.0
        %2445 = vmatprep.subr.mxu0 0.0
        %2446 = vmatpush1.msra.mxu0 0.0
        %2447 = vmatprep.subr.mxu0 0.0
        %2448 = vmatpush1.msra.mxu0 0.0
        %2449 = vmatprep.subr.mxu0 0.0
        %2450 = vmatpush1.msra.mxu0 0.0
        %2451 = vmatprep.subr.mxu0 0.0
        %2452 = vmatpush1.msra.mxu0 0.0
        %2453 = vmatprep.subr.mxu0 0.0
        %2454 = vmatpush1.msra.mxu0 0.0
        %2455 = vmatprep.subr.mxu0 0.0
        %2456 = vmatpush1.msra.mxu0 0.0
        %2457 = vmatprep.subr.mxu0 0.0
        %2458 = vmatpush1.msra.mxu0 %v2425
        %2459 = vmatprep.subr.mxu0 0.0
        %2460 = vmatpush1.msra.mxu0 %v2424
        %2461 = vmatprep.subr.mxu0 0.0
        %2462 = vmatpush1.msra.mxu0 %v2423
        %2463 = vmatprep.subr.mxu0 0.0
        %2464 = vmatpush1.msra.mxu0 %v2422
        %2465 = vmatprep.subr.mxu0 0.0
        %2466 = vmatpush2.msra.mxu0 0.0
        %2467 = vmatprep.subr.mxu0 0.0
        %2468 = vmatpush2.msra.mxu0 0.0
        %2469 = vmatprep.subr.mxu0 0.0
        %2470 = vmatpush2.msra.mxu0 0.0
        %2471 = vmatprep.subr.mxu0 0.0
        %2472 = vmatpush2.msra.mxu0 0.0
        %2473 = vmatprep.subr.mxu0 0.0
        %2474 = vmatpush2.msra.mxu0 0.0
        %2475 = vmatprep.subr.mxu0 0.0
        %2476 = vmatpush2.msra.mxu0 0.0
        %2477 = vmatprep.subr.mxu0 0.0
        %2478 = vmatpush2.msra.mxu0 0.0
        %2479 = vmatprep.subr.mxu0 0.0
        %2480 = vmatpush2.msra.mxu0 0.0
        %2481 = vmatprep.subr.mxu0 0.0
        %2482 = vmatpush2.msra.mxu0 0.0
        %2483 = vmatprep.subr.mxu0 0.0
        %2484 = vmatpush2.msra.mxu0 0.0
        %2485 = vmatprep.subr.mxu0 0.0
        %2486 = vmatpush2.msra.mxu0 0.0
        %2487 = vmatprep.subr.mxu0 0.0
        %2488 = vmatpush2.msra.mxu0 0.0
        %2489 = vmatprep.subr.mxu0 0.0
        %2490 = vmatpush2.msra.mxu0 0.0
        %2491 = vmatprep.subr.mxu0 0.0
        %2492 = vmatpush2.msra.mxu0 0.0
        %2493 = vmatprep.subr.mxu0 0.0
        %2494 = vmatpush2.msra.mxu0 0.0
        %2495 = vmatprep.subr.mxu0 0.0
        %2496 = vmatpush2.msra.mxu0 0.0
        %2497 = vmatprep.mubr.f32.mxu0 0.0
        %2498 = vmatmul.mubr.f32.gmra.mxu0 %v2350
        %v2499 = vpop.f32.mrf.mxu0
        %v2500 = vadd.f32 %v2431, %v2499
        %v2501 = vpop.f32.mrf.mxu0
        %2502 = vdwg.mxu0
        %v2503 = vld [vmem:[%s25] sm:$0xff]
        %v2504 = vld [vmem:[%s25 + $0x8] sm:$0xff]
        %v2505 = vld [vmem:[%s25 + $0x10] sm:$0xff]
        %v2506 = vld [vmem:[%s25 + $0x18] sm:$0xff]
        %v2507 = vld [vmem:[#allocation8] sm:$0x1]
        %v2509 = vlaneseq
        %v2510 = vshrl.u32 %v2509, 7
        %v2511 = vsub.s32 0, %v2510
        %v2512 = vrot.slane %v2507, %v2511
        %2514 = vmatprep.subr.mxu0 0.0
        %2515 = vmatpush1.msra.mxu0 0.0
        %2516 = vmatprep.subr.mxu0 0.0
        %2517 = vmatpush1.msra.mxu0 0.0
        %2518 = vmatprep.subr.mxu0 0.0
        %2519 = vmatpush1.msra.mxu0 0.0
        %2520 = vmatprep.subr.mxu0 0.0
        %2521 = vmatpush1.msra.mxu0 0.0
        %2522 = vmatprep.subr.mxu0 0.0
        %2523 = vmatpush1.msra.mxu0 0.0
        %2524 = vmatprep.subr.mxu0 0.0
        %2525 = vmatpush1.msra.mxu0 0.0
        %2526 = vmatprep.subr.mxu0 0.0
        %2527 = vmatpush1.msra.mxu0 0.0
        %2528 = vmatprep.subr.mxu0 0.0
        %2529 = vmatpush1.msra.mxu0 0.0
        %2530 = vmatprep.subr.mxu0 0.0
        %2531 = vmatpush1.msra.mxu0 0.0
        %2532 = vmatprep.subr.mxu0 0.0
        %2533 = vmatpush1.msra.mxu0 0.0
        %2534 = vmatprep.subr.mxu0 0.0
        %2535 = vmatpush1.msra.mxu0 0.0
        %2536 = vmatprep.subr.mxu0 0.0
        %2537 = vmatpush1.msra.mxu0 0.0
        %2538 = vmatprep.subr.mxu0 0.0
        %2539 = vmatpush1.msra.mxu0 %v2506
        %2540 = vmatprep.subr.mxu0 0.0
        %2541 = vmatpush1.msra.mxu0 %v2505
        %2542 = vmatprep.subr.mxu0 0.0
        %2543 = vmatpush1.msra.mxu0 %v2504
        %2544 = vmatprep.subr.mxu0 0.0
        %2545 = vmatpush1.msra.mxu0 %v2503
        %2546 = vmatprep.subr.mxu0 0.0
        %2547 = vmatpush2.msra.mxu0 0.0
        %2548 = vmatprep.subr.mxu0 0.0
        %2549 = vmatpush2.msra.mxu0 0.0
        %2550 = vmatprep.subr.mxu0 0.0
        %2551 = vmatpush2.msra.mxu0 0.0
        %2552 = vmatprep.subr.mxu0 0.0
        %2553 = vmatpush2.msra.mxu0 0.0
        %2554 = vmatprep.subr.mxu0 0.0
        %2555 = vmatpush2.msra.mxu0 0.0
        %2556 = vmatprep.subr.mxu0 0.0
        %2557 = vmatpush2.msra.mxu0 0.0
        %2558 = vmatprep.subr.mxu0 0.0
        %2559 = vmatpush2.msra.mxu0 0.0
        %2560 = vmatprep.subr.mxu0 0.0
        %2561 = vmatpush2.msra.mxu0 0.0
        %2562 = vmatprep.subr.mxu0 0.0
        %2563 = vmatpush2.msra.mxu0 0.0
        %2564 = vmatprep.subr.mxu0 0.0
        %2565 = vmatpush2.msra.mxu0 0.0
        %2566 = vmatprep.subr.mxu0 0.0
        %2567 = vmatpush2.msra.mxu0 0.0
        %2568 = vmatprep.subr.mxu0 0.0
        %2569 = vmatpush2.msra.mxu0 0.0
        %2570 = vmatprep.subr.mxu0 0.0
        %2571 = vmatpush2.msra.mxu0 0.0
        %2572 = vmatprep.subr.mxu0 0.0
        %2573 = vmatpush2.msra.mxu0 0.0
        %2574 = vmatprep.subr.mxu0 0.0
        %2575 = vmatpush2.msra.mxu0 0.0
        %2576 = vmatprep.subr.mxu0 0.0
        %2577 = vmatpush2.msra.mxu0 0.0
        %2578 = vmatprep.mubr.f32.mxu0 0.0
        %2579 = vmatmul.mubr.f32.gmra.mxu0 %v2350
        %v2580 = vpop.f32.mrf.mxu0
        %v2581 = vadd.f32 %v2512, %v2580
        %v2582 = vpop.f32.mrf.mxu0
        %2583 = vdwg.mxu0
        %v2584 = vld [vmem:[%s29] sm:$0xff]
        %v2585 = vld [vmem:[%s29 + $0x8] sm:$0xff]
        %v2586 = vld [vmem:[%s29 + $0x10] sm:$0xff]
        %v2587 = vld [vmem:[%s29 + $0x18] sm:$0xff]
        %v2588 = vld [vmem:[#allocation10] sm:$0x1]
        %v2589 = vmul.f32 %v2419, %v2219
        %v2590 = vmul.f32 %v2419, %v2224
        %v2591 = vmul.f32 %v2419, %v2229
        %v2592 = vmul.f32 %v2419, %v2234
        %v2594 = vsel %vm2348, %v2589, 0
        %v2597 = vsel %vm2348, %v2590, 0
        %v2600 = vsel %vm2348, %v2591, 0
        %v2603 = vsel %vm2348, %v2592, 0
        %v2606 = vsel %vm2348, %v2500, 0
        %2608 = vmatprep.subr.mxu0 0.0
        %2609 = vmatpush1.xpose.msra.mxu0 0.0
        %2610 = vmatprep.subr.mxu0 0.0
        %2611 = vmatpush1.xpose.msra.mxu0 0.0
        %2612 = vmatprep.subr.mxu0 0.0
        %2613 = vmatpush1.xpose.msra.mxu0 0.0
        %2614 = vmatprep.subr.mxu0 0.0
        %2615 = vmatpush1.xpose.msra.mxu0 0.0
        %2616 = vmatprep.subr.mxu0 0.0
        %2617 = vmatpush1.xpose.msra.mxu0 0.0
        %2618 = vmatprep.subr.mxu0 0.0
        %2619 = vmatpush1.xpose.msra.mxu0 0.0
        %2620 = vmatprep.subr.mxu0 0.0
        %2621 = vmatpush1.xpose.msra.mxu0 0.0
        %2622 = vmatprep.subr.mxu0 0.0
        %2623 = vmatpush1.xpose.msra.mxu0 0.0
        %2624 = vmatprep.subr.mxu0 0.0
        %2625 = vmatpush1.xpose.msra.mxu0 0.0
        %2626 = vmatprep.subr.mxu0 0.0
        %2627 = vmatpush1.xpose.msra.mxu0 0.0
        %2628 = vmatprep.subr.mxu0 0.0
        %2629 = vmatpush1.xpose.msra.mxu0 0.0
        %2630 = vmatprep.subr.mxu0 0.0
        %2631 = vmatpush1.xpose.msra.mxu0 0.0
        %2632 = vmatprep.subr.mxu0 0.0
        %2633 = vmatpush1.xpose.msra.mxu0 0.0
        %2634 = vmatprep.subr.mxu0 0.0
        %2635 = vmatpush1.xpose.msra.mxu0 0.0
        %2636 = vmatprep.subr.mxu0 0.0
        %2637 = vmatpush1.xpose.msra.mxu0 0.0
        %2638 = vmatprep.subr.mxu0 0.0
        %2639 = vmatpush1.xpose.msra.mxu0 %v2606
        %2640 = vmatprep.subr.mxu0 0.0
        %2641 = vmatpush2.xpose.msra.mxu0 0.0
        %2642 = vmatprep.subr.mxu0 0.0
        %2643 = vmatpush2.xpose.msra.mxu0 0.0
        %2644 = vmatprep.subr.mxu0 0.0
        %2645 = vmatpush2.xpose.msra.mxu0 0.0
        %2646 = vmatprep.subr.mxu0 0.0
        %2647 = vmatpush2.xpose.msra.mxu0 0.0
        %2648 = vmatprep.subr.mxu0 0.0
        %2649 = vmatpush2.xpose.msra.mxu0 0.0
        %2650 = vmatprep.subr.mxu0 0.0
        %2651 = vmatpush2.xpose.msra.mxu0 0.0
        %2652 = vmatprep.subr.mxu0 0.0
        %2653 = vmatpush2.xpose.msra.mxu0 0.0
        %2654 = vmatprep.subr.mxu0 0.0
        %2655 = vmatpush2.xpose.msra.mxu0 0.0
        %2656 = vmatprep.subr.mxu0 0.0
        %2657 = vmatpush2.xpose.msra.mxu0 0.0
        %2658 = vmatprep.subr.mxu0 0.0
        %2659 = vmatpush2.xpose.msra.mxu0 0.0
        %2660 = vmatprep.subr.mxu0 0.0
        %2661 = vmatpush2.xpose.msra.mxu0 0.0
        %2662 = vmatprep.subr.mxu0 0.0
        %2663 = vmatpush2.xpose.msra.mxu0 0.0
        %2664 = vmatprep.subr.mxu0 0.0
        %2665 = vmatpush2.xpose.msra.mxu0 0.0
        %2666 = vmatprep.subr.mxu0 0.0
        %2667 = vmatpush2.xpose.msra.mxu0 0.0
        %2668 = vmatprep.subr.mxu0 0.0
        %2669 = vmatpush2.xpose.msra.mxu0 0.0
        %2670 = vmatprep.subr.mxu0 0.0
        %2671 = vmatpush2.xpose.msra.mxu0 0.0
        %2672 = vmatprep.mubr.f32.mxu0 0.0
        %2673 = vmatmul.mubr.f32.gmra.mxu0 %v2594
        %v2674 = vpop.f32.mrf.mxu0
        %v2675 = vadd.f32 0.0, %v2674
        %v2676 = vpop.f32.mrf.mxu0
        %2677 = vmatprep.mubr.f32.mxu0 0.0
        %2678 = vmatmul.mubr.f32.gmra.mxu0 %v2597
        %v2679 = vpop.f32.mrf.mxu0
        %v2680 = vadd.f32 0.0, %v2679
        %v2681 = vpop.f32.mrf.mxu0
        %2682 = vmatprep.mubr.f32.mxu0 0.0
        %2683 = vmatmul.mubr.f32.gmra.mxu0 %v2600
        %v2684 = vpop.f32.mrf.mxu0
        %v2685 = vadd.f32 0.0, %v2684
        %v2686 = vpop.f32.mrf.mxu0
        %2687 = vmatprep.mubr.f32.mxu0 0.0
        %2688 = vmatmul.mubr.f32.gmra.mxu0 %v2603
        %v2689 = vpop.f32.mrf.mxu0
        %v2690 = vadd.f32 0.0, %v2689
        %v2691 = vpop.f32.mrf.mxu0
        %2692 = vdwg.mxu0
        %v2693 = vmul.f32 %v2675, 0.35355338
        %v2694 = vmul.f32 %v2680, 0.35355338
        %v2695 = vmul.f32 %v2685, 0.35355338
        %v2696 = vmul.f32 %v2690, 0.35355338
        %v2697 = vadd.f32 %v2693, %v2236
        %v2698 = vadd.f32 %v2694, %v2236
        %v2699 = vadd.f32 %v2695, %v2236
        %v2700 = vadd.f32 %v2696, %v2236
        %vm2701 = vcmask 64512
        %v2702 = vsel %vm2701, %v2697, -inf
        %2703 = vmax.xlane.f32.xlu0 %v2702
        %v2704 = vpop.xlane.xlu0 %2703
        %v2705 = vsel %vm2701, %v2698, -inf
        %2706 = vmax.xlane.f32.xlu0 %v2705
        %v2707 = vpop.xlane.xlu0 %2706
        %v2708 = vsel %vm2701, %v2699, -inf
        %2709 = vmax.xlane.f32.xlu0 %v2708
        %v2710 = vpop.xlane.xlu0 %2709
        %v2711 = vsel %vm2701, %v2700, -inf
        %2712 = vmax.xlane.f32.xlu0 %v2711
        %v2713 = vpop.xlane.xlu0 %2712
        %v2714 = vsub.f32 %v2697, %v2704
        %v2715 = vsub.f32 %v2698, %v2707
        %v2716 = vsub.f32 %v2699, %v2710
        %v2717 = vsub.f32 %v2700, %v2713
        %v2718 = vmul.f32 %v2714, 1.442695
        %v2719 = vpow.pop %v2718
        %v2720 = vmul.f32 %v2715, 1.442695
        %v2721 = vpow.pop %v2720
        %v2722 = vmul.f32 %v2716, 1.442695
        %v2723 = vpow.pop %v2722
        %v2724 = vmul.f32 %v2717, 1.442695
        %v2725 = vpow.pop %v2724
        %v2726 = vsel %vm2701, %v2719, 0.0
        %2727 = vadd.xlane.f32.xlu0 %v2726
        %v2728 = vpop.xlane.xlu0 %2727
        %v2729 = vsel %vm2701, %v2721, 0.0
        %2730 = vadd.xlane.f32.xlu0 %v2729
        %v2731 = vpop.xlane.xlu0 %2730
        %v2732 = vsel %vm2701, %v2723, 0.0
        %2733 = vadd.xlane.f32.xlu0 %v2732
        %v2734 = vpop.xlane.xlu0 %2733
        %v2735 = vsel %vm2701, %v2725, 0.0
        %2736 = vadd.xlane.f32.xlu0 %v2735
        %v2737 = vpop.xlane.xlu0 %2736
        %v2738 = vrcp.pop %v2728
        %v2739 = vmul.f32 %v2719, %v2738
        %v2740 = vrcp.pop %v2731
        %v2741 = vmul.f32 %v2721, %v2740
        %v2742 = vrcp.pop %v2734
        %v2743 = vmul.f32 %v2723, %v2742
        %v2744 = vrcp.pop %v2737
        %v2745 = vmul.f32 %v2725, %v2744
        %v2747 = vsel %vm2701, %v2739, 0
        %v2750 = vsel %vm2701, %v2741, 0
        %v2753 = vsel %vm2701, %v2743, 0
        %v2756 = vsel %vm2701, %v2745, 0
        %2758 = vmatprep.subr.mxu0 0.0
        %2759 = vmatpush1.msra.mxu0 0.0
        %2760 = vmatprep.subr.mxu0 0.0
        %2761 = vmatpush1.msra.mxu0 0.0
        %2762 = vmatprep.subr.mxu0 0.0
        %2763 = vmatpush1.msra.mxu0 0.0
        %2764 = vmatprep.subr.mxu0 0.0
        %2765 = vmatpush1.msra.mxu0 0.0
        %2766 = vmatprep.subr.mxu0 0.0
        %2767 = vmatpush1.msra.mxu0 0.0
        %2768 = vmatprep.subr.mxu0 0.0
        %2769 = vmatpush1.msra.mxu0 0.0
        %2770 = vmatprep.subr.mxu0 0.0
        %2771 = vmatpush1.msra.mxu0 0.0
        %2772 = vmatprep.subr.mxu0 0.0
        %2773 = vmatpush1.msra.mxu0 0.0
        %2774 = vmatprep.subr.mxu0 0.0
        %2775 = vmatpush1.msra.mxu0 0.0
        %2776 = vmatprep.subr.mxu0 0.0
        %2777 = vmatpush1.msra.mxu0 0.0
        %2778 = vmatprep.subr.mxu0 0.0
        %2779 = vmatpush1.msra.mxu0 0.0
        %2780 = vmatprep.subr.mxu0 0.0
        %2781 = vmatpush1.msra.mxu0 0.0
        %2782 = vmatprep.subr.mxu0 0.0
        %2783 = vmatpush1.msra.mxu0 0.0
        %2784 = vmatprep.subr.mxu0 0.0
        %2785 = vmatpush1.msra.mxu0 0.0
        %2786 = vmatprep.subr.mxu0 0.0
        %2787 = vmatpush1.msra.mxu0 0.0
        %2788 = vmatprep.subr.mxu0 0.0
        %2789 = vmatpush1.msra.mxu0 %v2581
        %2790 = vmatprep.subr.mxu0 0.0
        %2791 = vmatpush2.msra.mxu0 0.0
        %2792 = vmatprep.subr.mxu0 0.0
        %2793 = vmatpush2.msra.mxu0 0.0
        %2794 = vmatprep.subr.mxu0 0.0
        %2795 = vmatpush2.msra.mxu0 0.0
        %2796 = vmatprep.subr.mxu0 0.0
        %2797 = vmatpush2.msra.mxu0 0.0
        %2798 = vmatprep.subr.mxu0 0.0
        %2799 = vmatpush2.msra.mxu0 0.0
        %2800 = vmatprep.subr.mxu0 0.0
        %2801 = vmatpush2.msra.mxu0 0.0
        %2802 = vmatprep.subr.mxu0 0.0
        %2803 = vmatpush2.msra.mxu0 0.0
        %2804 = vmatprep.subr.mxu0 0.0
        %2805 = vmatpush2.msra.mxu0 0.0
        %2806 = vmatprep.subr.mxu0 0.0
        %2807 = vmatpush2.msra.mxu0 0.0
        %2808 = vmatprep.subr.mxu0 0.0
        %2809 = vmatpush2.msra.mxu0 0.0
        %2810 = vmatprep.subr.mxu0 0.0
        %2811 = vmatpush2.msra.mxu0 0.0
        %2812 = vmatprep.subr.mxu0 0.0
        %2813 = vmatpush2.msra.mxu0 0.0
        %2814 = vmatprep.subr.mxu0 0.0
        %2815 = vmatpush2.msra.mxu0 0.0
        %2816 = vmatprep.subr.mxu0 0.0
        %2817 = vmatpush2.msra.mxu0 0.0
        %2818 = vmatprep.subr.mxu0 0.0
        %2819 = vmatpush2.msra.mxu0 0.0
        %2820 = vmatprep.subr.mxu0 0.0
        %2821 = vmatpush2.msra.mxu0 0.0
        %2822 = vmatprep.mubr.f32.mxu0 0.0
        %2823 = vmatmul.mubr.f32.gmra.mxu0 %v2747
        %v2824 = vpop.f32.mrf.mxu0
        %v2825 = vadd.f32 0.0, %v2824
        %v2826 = vpop.f32.mrf.mxu0
        %2827 = vmatprep.mubr.f32.mxu0 0.0
        %2828 = vmatmul.mubr.f32.gmra.mxu0 %v2750
        %v2829 = vpop.f32.mrf.mxu0
        %v2830 = vadd.f32 0.0, %v2829
        %v2831 = vpop.f32.mrf.mxu0
        %2832 = vmatprep.mubr.f32.mxu0 0.0
        %2833 = vmatmul.mubr.f32.gmra.mxu0 %v2753
        %v2834 = vpop.f32.mrf.mxu0
        %v2835 = vadd.f32 0.0, %v2834
        %v2836 = vpop.f32.mrf.mxu0
        %2837 = vmatprep.mubr.f32.mxu0 0.0
        %2838 = vmatmul.mubr.f32.gmra.mxu0 %v2756
        %v2839 = vpop.f32.mrf.mxu0
        %v2840 = vadd.f32 0.0, %v2839
        %v2841 = vpop.f32.mrf.mxu0
        %2842 = vdwg.mxu0
        %v2843 = vmul.f32 %v2825, %v2219
        %v2844 = vmul.f32 %v2830, %v2224
        %v2845 = vmul.f32 %v2835, %v2229
        %v2846 = vmul.f32 %v2840, %v2234
        %v2847 = vadd.f32 %v2843, %v2844
        %v2848 = vadd.f32 %v2847, %v2845
        %v2849 = vadd.f32 %v2848, %v2846
        %v2851 = vlaneseq
        %v2852 = vshrl.u32 %v2851, 7
        %v2853 = vsub.s32 0, %v2852
        %v2854 = vrot.slane %v2588, %v2853
        %v2857 = vsel %vm2348, %v2849, 0
        %2859 = vmatprep.subr.mxu0 0.0
        %2860 = vmatpush1.msra.mxu0 0.0
        %2861 = vmatprep.subr.mxu0 0.0
        %2862 = vmatpush1.msra.mxu0 0.0
        %2863 = vmatprep.subr.mxu0 0.0
        %2864 = vmatpush1.msra.mxu0 0.0
        %2865 = vmatprep.subr.mxu0 0.0
        %2866 = vmatpush1.msra.mxu0 0.0
        %2867 = vmatprep.subr.mxu0 0.0
        %2868 = vmatpush1.msra.mxu0 0.0
        %2869 = vmatprep.subr.mxu0 0.0
        %2870 = vmatpush1.msra.mxu0 0.0
        %2871 = vmatprep.subr.mxu0 0.0
        %2872 = vmatpush1.msra.mxu0 0.0
        %2873 = vmatprep.subr.mxu0 0.0
        %2874 = vmatpush1.msra.mxu0 0.0
        %2875 = vmatprep.subr.mxu0 0.0
        %2876 = vmatpush1.msra.mxu0 0.0
        %2877 = vmatprep.subr.mxu0 0.0
        %2878 = vmatpush1.msra.mxu0 0.0
        %2879 = vmatprep.subr.mxu0 0.0
        %2880 = vmatpush1.msra.mxu0 0.0
        %2881 = vmatprep.subr.mxu0 0.0
        %2882 = vmatpush1.msra.mxu0 0.0
        %2883 = vmatprep.subr.mxu0 0.0
        %2884 = vmatpush1.msra.mxu0 %v2587
        %2885 = vmatprep.subr.mxu0 0.0
        %2886 = vmatpush1.msra.mxu0 %v2586
        %2887 = vmatprep.subr.mxu0 0.0
        %2888 = vmatpush1.msra.mxu0 %v2585
        %2889 = vmatprep.subr.mxu0 0.0
        %2890 = vmatpush1.msra.mxu0 %v2584
        %2891 = vmatprep.subr.mxu0 0.0
        %2892 = vmatpush2.msra.mxu0 0.0
        %2893 = vmatprep.subr.mxu0 0.0
        %2894 = vmatpush2.msra.mxu0 0.0
        %2895 = vmatprep.subr.mxu0 0.0
        %2896 = vmatpush2.msra.mxu0 0.0
        %2897 = vmatprep.subr.mxu0 0.0
        %2898 = vmatpush2.msra.mxu0 0.0
        %2899 = vmatprep.subr.mxu0 0.0
        %2900 = vmatpush2.msra.mxu0 0.0
        %2901 = vmatprep.subr.mxu0 0.0
        %2902 = vmatpush2.msra.mxu0 0.0
        %2903 = vmatprep.subr.mxu0 0.0
        %2904 = vmatpush2.msra.mxu0 0.0
        %2905 = vmatprep.subr.mxu0 0.0
        %2906 = vmatpush2.msra.mxu0 0.0
        %2907 = vmatprep.subr.mxu0 0.0
        %2908 = vmatpush2.msra.mxu0 0.0
        %2909 = vmatprep.subr.mxu0 0.0
        %2910 = vmatpush2.msra.mxu0 0.0
        %2911 = vmatprep.subr.mxu0 0.0
        %2912 = vmatpush2.msra.mxu0 0.0
        %2913 = vmatprep.subr.mxu0 0.0
        %2914 = vmatpush2.msra.mxu0 0.0
        %2915 = vmatprep.subr.mxu0 0.0
        %2916 = vmatpush2.msra.mxu0 0.0
        %2917 = vmatprep.subr.mxu0 0.0
        %2918 = vmatpush2.msra.mxu0 0.0
        %2919 = vmatprep.subr.mxu0 0.0
        %2920 = vmatpush2.msra.mxu0 0.0
        %2921 = vmatprep.subr.mxu0 0.0
        %2922 = vmatpush2.msra.mxu0 0.0
        %2923 = vmatprep.mubr.f32.mxu0 0.0
        %2924 = vmatmul.mubr.f32.gmra.mxu0 %v2857
        %v2925 = vpop.f32.mrf.mxu0
        %v2926 = vadd.f32 %v2854, %v2925
        %v2927 = vpop.f32.mrf.mxu0
        %2928 = vdwg.mxu0
        %v2929 = vadd.f32 %v2336, %v2926
        %v2930 = vld [vmem:[#allocation16] sm:$0x1]
        %v2931 = vld [vmem:[#allocation17] sm:$0x1]
        %v2932 = vsel %vm2348, %v2929, 0.0
        %2933 = vadd.xlane.f32.xlu0 %v2932
        %v2934 = vpop.xlane.xlu0 %2933
        %v2935 = vrcp.pop 32.0
        %v2936 = vmul.f32 %v2934, %v2935
        %v2937 = vsub.f32 %v2929, %v2936
        %v2938 = vmul.f32 %v2937, %v2937
        %v2939 = vsel %vm2348, %v2938, 0.0
        %2940 = vadd.xlane.f32.xlu0 %v2939
        %v2941 = vpop.xlane.xlu0 %2940
        %v2942 = vmul.f32 %v2941, %v2935
        %v2943 = vadd.f32 %v2942, 1e-05
        %v2944 = vrsqrt.pop %v2943
        %v2945 = vmul.f32 %v2937, %v2944
        %v2947 = vlaneseq
        %v2948 = vshrl.u32 %v2947, 7
        %v2949 = vsub.s32 0, %v2948
        %v2950 = vrot.slane %v2930, %v2949
        %v2952 = vmul.f32 %v2945, %v2950
        %v2954 = vlaneseq
        %v2955 = vshrl.u32 %v2954, 7
        %v2956 = vsub.s32 0, %v2955
        %v2957 = vrot.slane %v2931, %v2956
        %v2959 = vadd.f32 %v2952, %v2957
        %v2960 = vld [vmem:[#allocation11] sm:$0xff]
        %v2961 = vld [vmem:[#allocation11 + $0x8] sm:$0xff]
        %v2962 = vld [vmem:[#allocation11 + $0x10] sm:$0xff]
        %v2963 = vld [vmem:[#allocation11 + $0x18] sm:$0xff]
        %v2964 = vld [vmem:[#allocation13] sm:$0x1]
        %v2966 = vlaneseq
        %v2967 = vshrl.u32 %v2966, 7
        %v2968 = vsub.s32 0, %v2967
        %v2969 = vrot.slane %v2964, %v2968
        %v2972 = vsel %vm2348, %v2959, 0
        %2974 = vmatprep.subr.mxu0 0.0
        %2975 = vmatpush1.msra.mxu0 0.0
        %2976 = vmatprep.subr.mxu0 0.0
        %2977 = vmatpush1.msra.mxu0 0.0
        %2978 = vmatprep.subr.mxu0 0.0
        %2979 = vmatpush1.msra.mxu0 0.0
        %2980 = vmatprep.subr.mxu0 0.0
        %2981 = vmatpush1.msra.mxu0 0.0
        %2982 = vmatprep.subr.mxu0 0.0
        %2983 = vmatpush1.msra.mxu0 0.0
        %2984 = vmatprep.subr.mxu0 0.0
        %2985 = vmatpush1.msra.mxu0 0.0
        %2986 = vmatprep.subr.mxu0 0.0
        %2987 = vmatpush1.msra.mxu0 0.0
        %2988 = vmatprep.subr.mxu0 0.0
        %2989 = vmatpush1.msra.mxu0 0.0
        %2990 = vmatprep.subr.mxu0 0.0
        %2991 = vmatpush1.msra.mxu0 0.0
        %2992 = vmatprep.subr.mxu0 0.0
        %2993 = vmatpush1.msra.mxu0 0.0
        %2994 = vmatprep.subr.mxu0 0.0
        %2995 = vmatpush1.msra.mxu0 0.0
        %2996 = vmatprep.subr.mxu0 0.0
        %2997 = vmatpush1.msra.mxu0 0.0
        %2998 = vmatprep.subr.mxu0 0.0
        %2999 = vmatpush1.msra.mxu0 %v2963
        %3000 = vmatprep.subr.mxu0 0.0
        %3001 = vmatpush1.msra.mxu0 %v2962
        %3002 = vmatprep.subr.mxu0 0.0
        %3003 = vmatpush1.msra.mxu0 %v2961
        %3004 = vmatprep.subr.mxu0 0.0
        %3005 = vmatpush1.msra.mxu0 %v2960
        %3006 = vmatprep.subr.mxu0 0.0
        %3007 = vmatpush2.msra.mxu0 0.0
        %3008 = vmatprep.subr.mxu0 0.0
        %3009 = vmatpush2.msra.mxu0 0.0
        %3010 = vmatprep.subr.mxu0 0.0
        %3011 = vmatpush2.msra.mxu0 0.0
        %3012 = vmatprep.subr.mxu0 0.0
        %3013 = vmatpush2.msra.mxu0 0.0
        %3014 = vmatprep.subr.mxu0 0.0
        %3015 = vmatpush2.msra.mxu0 0.0
        %3016 = vmatprep.subr.mxu0 0.0
        %3017 = vmatpush2.msra.mxu0 0.0
        %3018 = vmatprep.subr.mxu0 0.0
        %3019 = vmatpush2.msra.mxu0 0.0
        %3020 = vmatprep.subr.mxu0 0.0
        %3021 = vmatpush2.msra.mxu0 0.0
        %3022 = vmatprep.subr.mxu0 0.0
        %3023 = vmatpush2.msra.mxu0 0.0
        %3024 = vmatprep.subr.mxu0 0.0
        %3025 = vmatpush2.msra.mxu0 0.0
        %3026 = vmatprep.subr.mxu0 0.0
        %3027 = vmatpush2.msra.mxu0 0.0
        %3028 = vmatprep.subr.mxu0 0.0
        %3029 = vmatpush2.msra.mxu0 0.0
        %3030 = vmatprep.subr.mxu0 0.0
        %3031 = vmatpush2.msra.mxu0 0.0
        %3032 = vmatprep.subr.mxu0 0.0
        %3033 = vmatpush2.msra.mxu0 0.0
        %3034 = vmatprep.subr.mxu0 0.0
        %3035 = vmatpush2.msra.mxu0 0.0
        %3036 = vmatprep.subr.mxu0 0.0
        %3037 = vmatpush2.msra.mxu0 0.0
        %3038 = vmatprep.mubr.f32.mxu0 0.0
        %3039 = vmatmul.mubr.f32.gmra.mxu0 %v2972
        %v3040 = vpop.f32.mrf.mxu0
        %v3041 = vadd.f32 %v2969, %v3040
        %v3042 = vpop.f32.mrf.mxu0
        %3043 = vdwg.mxu0
        %v3044 = vmax.f32 %v3041, 0.0
        %v3045 = vld [vmem:[%s37] sm:$0xff]
        %v3046 = vld [vmem:[%s37 + $0x8] sm:$0xff]
        %v3047 = vld [vmem:[%s37 + $0x10] sm:$0xff]
        %v3048 = vld [vmem:[%s37 + $0x18] sm:$0xff]
        %v3049 = vld [vmem:[#allocation14] sm:$0x1]
        %v3051 = vlaneseq
        %v3052 = vshrl.u32 %v3051, 7
        %v3053 = vsub.s32 0, %v3052
        %v3054 = vrot.slane %v3049, %v3053
        %v3057 = vsel %vm2348, %v3044, 0
        %3059 = vmatprep.subr.mxu0 0.0
        %3060 = vmatpush1.msra.mxu0 0.0
        %3061 = vmatprep.subr.mxu0 0.0
        %3062 = vmatpush1.msra.mxu0 0.0
        %3063 = vmatprep.subr.mxu0 0.0
        %3064 = vmatpush1.msra.mxu0 0.0
        %3065 = vmatprep.subr.mxu0 0.0
        %3066 = vmatpush1.msra.mxu0 0.0
        %3067 = vmatprep.subr.mxu0 0.0
        %3068 = vmatpush1.msra.mxu0 0.0
        %3069 = vmatprep.subr.mxu0 0.0
        %3070 = vmatpush1.msra.mxu0 0.0
        %3071 = vmatprep.subr.mxu0 0.0
        %3072 = vmatpush1.msra.mxu0 0.0
        %3073 = vmatprep.subr.mxu0 0.0
        %3074 = vmatpush1.msra.mxu0 0.0
        %3075 = vmatprep.subr.mxu0 0.0
        %3076 = vmatpush1.msra.mxu0 0.0
        %3077 = vmatprep.subr.mxu0 0.0
        %3078 = vmatpush1.msra.mxu0 0.0
        %3079 = vmatprep.subr.mxu0 0.0
        %3080 = vmatpush1.msra.mxu0 0.0
        %3081 = vmatprep.subr.mxu0 0.0
        %3082 = vmatpush1.msra.mxu0 0.0
        %3083 = vmatprep.subr.mxu0 0.0
        %3084 = vmatpush1.msra.mxu0 %v3048
        %3085 = vmatprep.subr.mxu0 0.0
        %3086 = vmatpush1.msra.mxu0 %v3047
        %3087 = vmatprep.subr.mxu0 0.0
        %3088 = vmatpush1.msra.mxu0 %v3046
        %3089 = vmatprep.subr.mxu0 0.0
        %3090 = vmatpush1.msra.mxu0 %v3045
        %3091 = vmatprep.subr.mxu0 0.0
        %3092 = vmatpush2.msra.mxu0 0.0
        %3093 = vmatprep.subr.mxu0 0.0
        %3094 = vmatpush2.msra.mxu0 0.0
        %3095 = vmatprep.subr.mxu0 0.0
        %3096 = vmatpush2.msra.mxu0 0.0
        %3097 = vmatprep.subr.mxu0 0.0
        %3098 = vmatpush2.msra.mxu0 0.0
        %3099 = vmatprep.subr.mxu0 0.0
        %3100 = vmatpush2.msra.mxu0 0.0
        %3101 = vmatprep.subr.mxu0 0.0
        %3102 = vmatpush2.msra.mxu0 0.0
        %3103 = vmatprep.subr.mxu0 0.0
        %3104 = vmatpush2.msra.mxu0 0.0
        %3105 = vmatprep.subr.mxu0 0.0
        %3106 = vmatpush2.msra.mxu0 0.0
        %3107 = vmatprep.subr.mxu0 0.0
        %3108 = vmatpush2.msra.mxu0 0.0
        %3109 = vmatprep.subr.mxu0 0.0
        %3110 = vmatpush2.msra.mxu0 0.0
        %3111 = vmatprep.subr.mxu0 0.0
        %3112 = vmatpush2.msra.mxu0 0.0
        %3113 = vmatprep.subr.mxu0 0.0
        %3114 = vmatpush2.msra.mxu0 0.0
        %3115 = vmatprep.subr.mxu0 0.0
        %3116 = vmatpush2.msra.mxu0 0.0
        %3117 = vmatprep.subr.mxu0 0.0
        %3118 = vmatpush2.msra.mxu0 0.0
        %3119 = vmatprep.subr.mxu0 0.0
        %3120 = vmatpush2.msra.mxu0 0.0
        %3121 = vmatprep.subr.mxu0 0.0
        %3122 = vmatpush2.msra.mxu0 0.0
        %3123 = vmatprep.mubr.f32.mxu0 0.0
        %3124 = vmatmul.mubr.f32.gmra.mxu0 %v3057
        %v3125 = vpop.f32.mrf.mxu0
        %v3126 = vadd.f32 %v3054, %v3125
        %v3127 = vpop.f32.mrf.mxu0
        %3128 = vdwg.mxu0
        %v3129 = vadd.f32 %v2959, %v3126
        %v3130 = vld [vmem:[#allocation19] sm:$0x1]
        %v3131 = vld [vmem:[#allocation20] sm:$0x1]
        %v3132 = vsel %vm2348, %v3129, 0.0
        %3133 = vadd.xlane.f32.xlu0 %v3132
        %v3134 = vpop.xlane.xlu0 %3133
        %v3135 = vmul.f32 %v3134, %v2935
        %v3136 = vsub.f32 %v3129, %v3135
        %v3137 = vmul.f32 %v3136, %v3136
        %v3138 = vsel %vm2348, %v3137, 0.0
        %3139 = vadd.xlane.f32.xlu0 %v3138
        %v3140 = vpop.xlane.xlu0 %3139
        %v3141 = vmul.f32 %v3140, %v2935
        %v3142 = vadd.f32 %v3141, 1e-05
        %v3143 = vrsqrt.pop %v3142
        %v3144 = vmul.f32 %v3136, %v3143
        %v3146 = vlaneseq
        %v3147 = vshrl.u32 %v3146, 7
        %v3148 = vsub.s32 0, %v3147
        %v3149 = vrot.slane %v3130, %v3148
        %v3151 = vmul.f32 %v3144, %v3149
        %v3153 = vlaneseq
        %v3154 = vshrl.u32 %v3153, 7
        %v3155 = vsub.s32 0, %v3154
        %v3156 = vrot.slane %v3131, %v3155
        %v3158 = vadd.f32 %v3151, %v3156
        %s3159 = scalar_lea.vmem %s17, 32
        %v3160 = vld [vmem:[%s3159] sm:$0xff]
        %v3161 = vld [vmem:[%s3159 + $0x8] sm:$0xff]
        %v3162 = vld [vmem:[%s3159 + $0x10] sm:$0xff]
        %v3163 = vld [vmem:[%s3159 + $0x18] sm:$0xff]
        %s3164 = scalar_lea.vmem %s19, 1
        %v3165 = vld [vmem:[%s3164] sm:$0x1]
        %v3167 = vlaneseq
        %v3168 = vshrl.u32 %v3167, 7
        %v3169 = vsub.s32 0, %v3168
        %v3170 = vrot.slane %v3165, %v3169
        %v3173 = vsel %vm2348, %v3158, 0
        %3175 = vmatprep.subr.mxu0 0.0
        %3176 = vmatpush1.msra.mxu0 0.0
        %3177 = vmatprep.subr.mxu0 0.0
        %3178 = vmatpush1.msra.mxu0 0.0
        %3179 = vmatprep.subr.mxu0 0.0
        %3180 = vmatpush1.msra.mxu0 0.0
        %3181 = vmatprep.subr.mxu0 0.0
        %3182 = vmatpush1.msra.mxu0 0.0
        %3183 = vmatprep.subr.mxu0 0.0
        %3184 = vmatpush1.msra.mxu0 0.0
        %3185 = vmatprep.subr.mxu0 0.0
        %3186 = vmatpush1.msra.mxu0 0.0
        %3187 = vmatprep.subr.mxu0 0.0
        %3188 = vmatpush1.msra.mxu0 0.0
        %3189 = vmatprep.subr.mxu0 0.0
        %3190 = vmatpush1.msra.mxu0 0.0
        %3191 = vmatprep.subr.mxu0 0.0
        %3192 = vmatpush1.msra.mxu0 0.0
        %3193 = vmatprep.subr.mxu0 0.0
        %3194 = vmatpush1.msra.mxu0 0.0
        %3195 = vmatprep.subr.mxu0 0.0
        %3196 = vmatpush1.msra.mxu0 0.0
        %3197 = vmatprep.subr.mxu0 0.0
        %3198 = vmatpush1.msra.mxu0 0.0
        %3199 = vmatprep.subr.mxu0 0.0
        %3200 = vmatpush1.msra.mxu0 %v3163
        %3201 = vmatprep.subr.mxu0 0.0
        %3202 = vmatpush1.msra.mxu0 %v3162
        %3203 = vmatprep.subr.mxu0 0.0
        %3204 = vmatpush1.msra.mxu0 %v3161
        %3205 = vmatprep.subr.mxu0 0.0
        %3206 = vmatpush1.msra.mxu0 %v3160
        %3207 = vmatprep.subr.mxu0 0.0
        %3208 = vmatpush2.msra.mxu0 0.0
        %3209 = vmatprep.subr.mxu0 0.0
        %3210 = vmatpush2.msra.mxu0 0.0
        %3211 = vmatprep.subr.mxu0 0.0
        %3212 = vmatpush2.msra.mxu0 0.0
        %3213 = vmatprep.subr.mxu0 0.0
        %3214 = vmatpush2.msra.mxu0 0.0
        %3215 = vmatprep.subr.mxu0 0.0
        %3216 = vmatpush2.msra.mxu0 0.0
        %3217 = vmatprep.subr.mxu0 0.0
        %3218 = vmatpush2.msra.mxu0 0.0
        %3219 = vmatprep.subr.mxu0 0.0
        %3220 = vmatpush2.msra.mxu0 0.0
        %3221 = vmatprep.subr.mxu0 0.0
        %3222 = vmatpush2.msra.mxu0 0.0
        %3223 = vmatprep.subr.mxu0 0.0
        %3224 = vmatpush2.msra.mxu0 0.0
        %3225 = vmatprep.subr.mxu0 0.0
        %3226 = vmatpush2.msra.mxu0 0.0
        %3227 = vmatprep.subr.mxu0 0.0
        %3228 = vmatpush2.msra.mxu0 0.0
        %3229 = vmatprep.subr.mxu0 0.0
        %3230 = vmatpush2.msra.mxu0 0.0
        %3231 = vmatprep.subr.mxu0 0.0
        %3232 = vmatpush2.msra.mxu0 0.0
        %3233 = vmatprep.subr.mxu0 0.0
        %3234 = vmatpush2.msra.mxu0 0.0
        %3235 = vmatprep.subr.mxu0 0.0
        %3236 = vmatpush2.msra.mxu0 0.0
        %3237 = vmatprep.subr.mxu0 0.0
        %3238 = vmatpush2.msra.mxu0 0.0
        %3239 = vmatprep.mubr.f32.mxu0 0.0
        %3240 = vmatmul.mubr.f32.gmra.mxu0 %v3173
        %v3241 = vpop.f32.mrf.mxu0
        %v3242 = vadd.f32 %v3170, %v3241
        %v3243 = vpop.f32.mrf.mxu0
        %3244 = vdwg.mxu0
        %s3245 = scalar_lea.vmem %s21, 32
        %v3246 = vld [vmem:[%s3245] sm:$0xff]
        %v3247 = vld [vmem:[%s3245 + $0x8] sm:$0xff]
        %v3248 = vld [vmem:[%s3245 + $0x10] sm:$0xff]
        %v3249 = vld [vmem:[%s3245 + $0x18] sm:$0xff]
        %s3250 = scalar_lea.vmem [#allocation7], 1
        %v3251 = vld [vmem:[%s3250] sm:$0x1]
        %v3253 = vlaneseq
        %v3254 = vshrl.u32 %v3253, 7
        %v3255 = vsub.s32 0, %v3254
        %v3256 = vrot.slane %v3251, %v3255
        %3258 = vmatprep.subr.mxu0 0.0
        %3259 = vmatpush1.msra.mxu0 0.0
        %3260 = vmatprep.subr.mxu0 0.0
        %3261 = vmatpush1.msra.mxu0 0.0
        %3262 = vmatprep.subr.mxu0 0.0
        %3263 = vmatpush1.msra.mxu0 0.0
        %3264 = vmatprep.subr.mxu0 0.0
        %3265 = vmatpush1.msra.mxu0 0.0
        %3266 = vmatprep.subr.mxu0 0.0
        %3267 = vmatpush1.msra.mxu0 0.0
        %3268 = vmatprep.subr.mxu0 0.0
        %3269 = vmatpush1.msra.mxu0 0.0
        %3270 = vmatprep.subr.mxu0 0.0
        %3271 = vmatpush1.msra.mxu0 0.0
        %3272 = vmatprep.subr.mxu0 0.0
        %3273 = vmatpush1.msra.mxu0 0.0
        %3274 = vmatprep.subr.mxu0 0.0
        %3275 = vmatpush1.msra.mxu0 0.0
        %3276 = vmatprep.subr.mxu0 0.0
        %3277 = vmatpush1.msra.mxu0 0.0
        %3278 = vmatprep.subr.mxu0 0.0
        %3279 = vmatpush1.msra.mxu0 0.0
        %3280 = vmatprep.subr.mxu0 0.0
        %3281 = vmatpush1.msra.mxu0 0.0
        %3282 = vmatprep.subr.mxu0 0.0
        %3283 = vmatpush1.msra.mxu0 %v3249
        %3284 = vmatprep.subr.mxu0 0.0
        %3285 = vmatpush1.msra.mxu0 %v3248
        %3286 = vmatprep.subr.mxu0 0.0
        %3287 = vmatpush1.msra.mxu0 %v3247
        %3288 = vmatprep.subr.mxu0 0.0
        %3289 = vmatpush1.msra.mxu0 %v3246
        %3290 = vmatprep.subr.mxu0 0.0
        %3291 = vmatpush2.msra.mxu0 0.0
        %3292 = vmatprep.subr.mxu0 0.0
        %3293 = vmatpush2.msra.mxu0 0.0
        %3294 = vmatprep.subr.mxu0 0.0
        %3295 = vmatpush2.msra.mxu0 0.0
        %3296 = vmatprep.subr.mxu0 0.0
        %3297 = vmatpush2.msra.mxu0 0.0
        %3298 = vmatprep.subr.mxu0 0.0
        %3299 = vmatpush2.msra.mxu0 0.0
        %3300 = vmatprep.subr.mxu0 0.0
        %3301 = vmatpush2.msra.mxu0 0.0
        %3302 = vmatprep.subr.mxu0 0.0
        %3303 = vmatpush2.msra.mxu0 0.0
        %3304 = vmatprep.subr.mxu0 0.0
        %3305 = vmatpush2.msra.mxu0 0.0
        %3306 = vmatprep.subr.mxu0 0.0
        %3307 = vmatpush2.msra.mxu0 0.0
        %3308 = vmatprep.subr.mxu0 0.0
        %3309 = vmatpush2.msra.mxu0 0.0
        %3310 = vmatprep.subr.mxu0 0.0
        %3311 = vmatpush2.msra.mxu0 0.0
        %3312 = vmatprep.subr.mxu0 0.0
        %3313 = vmatpush2.msra.mxu0 0.0
        %3314 = vmatprep.subr.mxu0 0.0
        %3315 = vmatpush2.msra.mxu0 0.0
        %3316 = vmatprep.subr.mxu0 0.0
        %3317 = vmatpush2.msra.mxu0 0.0
        %3318 = vmatprep.subr.mxu0 0.0
        %3319 = vmatpush2.msra.mxu0 0.0
        %3320 = vmatprep.subr.mxu0 0.0
        %3321 = vmatpush2.msra.mxu0 0.0
        %3322 = vmatprep.mubr.f32.mxu0 0.0
        %3323 = vmatmul.mubr.f32.gmra.mxu0 %v3173
        %v3324 = vpop.f32.mrf.mxu0
        %v3325 = vadd.f32 %v3256, %v3324
        %v3326 = vpop.f32.mrf.mxu0
        %3327 = vdwg.mxu0
        %s3328 = scalar_lea.vmem %s25, 32
        %v3329 = vld [vmem:[%s3328] sm:$0xff]
        %v3330 = vld [vmem:[%s3328 + $0x8] sm:$0xff]
        %v3331 = vld [vmem:[%s3328 + $0x10] sm:$0xff]
        %v3332 = vld [vmem:[%s3328 + $0x18] sm:$0xff]
        %s3333 = scalar_lea.vmem [#allocation8], 1
        %v3334 = vld [vmem:[%s3333] sm:$0x1]
        %v3336 = vlaneseq
        %v3337 = vshrl.u32 %v3336, 7
        %v3338 = vsub.s32 0, %v3337
        %v3339 = vrot.slane %v3334, %v3338
        %3341 = vmatprep.subr.mxu0 0.0
        %3342 = vmatpush1.msra.mxu0 0.0
        %3343 = vmatprep.subr.mxu0 0.0
        %3344 = vmatpush1.msra.mxu0 0.0
        %3345 = vmatprep.subr.mxu0 0.0
        %3346 = vmatpush1.msra.mxu0 0.0
        %3347 = vmatprep.subr.mxu0 0.0
        %3348 = vmatpush1.msra.mxu0 0.0
        %3349 = vmatprep.subr.mxu0 0.0
        %3350 = vmatpush1.msra.mxu0 0.0
        %3351 = vmatprep.subr.mxu0 0.0
        %3352 = vmatpush1.msra.mxu0 0.0
        %3353 = vmatprep.subr.mxu0 0.0
        %3354 = vmatpush1.msra.mxu0 0.0
        %3355 = vmatprep.subr.mxu0 0.0
        %3356 = vmatpush1.msra.mxu0 0.0
        %3357 = vmatprep.subr.mxu0 0.0
        %3358 = vmatpush1.msra.mxu0 0.0
        %3359 = vmatprep.subr.mxu0 0.0
        %3360 = vmatpush1.msra.mxu0 0.0
        %3361 = vmatprep.subr.mxu0 0.0
        %3362 = vmatpush1.msra.mxu0 0.0
        %3363 = vmatprep.subr.mxu0 0.0
        %3364 = vmatpush1.msra.mxu0 0.0
        %3365 = vmatprep.subr.mxu0 0.0
        %3366 = vmatpush1.msra.mxu0 %v3332
        %3367 = vmatprep.subr.mxu0 0.0
        %3368 = vmatpush1.msra.mxu0 %v3331
        %3369 = vmatprep.subr.mxu0 0.0
        %3370 = vmatpush1.msra.mxu0 %v3330
        %3371 = vmatprep.subr.mxu0 0.0
        %3372 = vmatpush1.msra.mxu0 %v3329
        %3373 = vmatprep.subr.mxu0 0.0
        %3374 = vmatpush2.msra.mxu0 0.0
        %3375 = vmatprep.subr.mxu0 0.0
        %3376 = vmatpush2.msra.mxu0 0.0
        %3377 = vmatprep.subr.mxu0 0.0
        %3378 = vmatpush2.msra.mxu0 0.0
        %3379 = vmatprep.subr.mxu0 0.0
        %3380 = vmatpush2.msra.mxu0 0.0
        %3381 = vmatprep.subr.mxu0 0.0
        %3382 = vmatpush2.msra.mxu0 0.0
        %3383 = vmatprep.subr.mxu0 0.0
        %3384 = vmatpush2.msra.mxu0 0.0
        %3385 = vmatprep.subr.mxu0 0.0
        %3386 = vmatpush2.msra.mxu0 0.0
        %3387 = vmatprep.subr.mxu0 0.0
        %3388 = vmatpush2.msra.mxu0 0.0
        %3389 = vmatprep.subr.mxu0 0.0
        %3390 = vmatpush2.msra.mxu0 0.0
        %3391 = vmatprep.subr.mxu0 0.0
        %3392 = vmatpush2.msra.mxu0 0.0
        %3393 = vmatprep.subr.mxu0 0.0
        %3394 = vmatpush2.msra.mxu0 0.0
        %3395 = vmatprep.subr.mxu0 0.0
        %3396 = vmatpush2.msra.mxu0 0.0
        %3397 = vmatprep.subr.mxu0 0.0
        %3398 = vmatpush2.msra.mxu0 0.0
        %3399 = vmatprep.subr.mxu0 0.0
        %3400 = vmatpush2.msra.mxu0 0.0
        %3401 = vmatprep.subr.mxu0 0.0
        %3402 = vmatpush2.msra.mxu0 0.0
        %3403 = vmatprep.subr.mxu0 0.0
        %3404 = vmatpush2.msra.mxu0 0.0
        %3405 = vmatprep.mubr.f32.mxu0 0.0
        %3406 = vmatmul.mubr.f32.gmra.mxu0 %v3173
        %v3407 = vpop.f32.mrf.mxu0
        %v3408 = vadd.f32 %v3339, %v3407
        %v3409 = vpop.f32.mrf.mxu0
        %3410 = vdwg.mxu0
        %s3411 = scalar_lea.vmem %s29, 32
        %v3412 = vld [vmem:[%s3411] sm:$0xff]
        %v3413 = vld [vmem:[%s3411 + $0x8] sm:$0xff]
        %v3414 = vld [vmem:[%s3411 + $0x10] sm:$0xff]
        %v3415 = vld [vmem:[%s3411 + $0x18] sm:$0xff]
        %s3416 = scalar_lea.vmem [#allocation10], 1
        %v3417 = vld [vmem:[%s3416] sm:$0x1]
        %v3418 = vmul.f32 %v3242, %v2219
        %v3419 = vmul.f32 %v3242, %v2224
        %v3420 = vmul.f32 %v3242, %v2229
        %v3421 = vmul.f32 %v3242, %v2234
        %v3423 = vsel %vm2348, %v3418, 0
        %v3426 = vsel %vm2348, %v3419, 0
        %v3429 = vsel %vm2348, %v3420, 0
        %v3432 = vsel %vm2348, %v3421, 0
        %v3435 = vsel %vm2348, %v3325, 0
        %3437 = vmatprep.subr.mxu0 0.0
        %3438 = vmatpush1.xpose.msra.mxu0 0.0
        %3439 = vmatprep.subr.mxu0 0.0
        %3440 = vmatpush1.xpose.msra.mxu0 0.0
        %3441 = vmatprep.subr.mxu0 0.0
        %3442 = vmatpush1.xpose.msra.mxu0 0.0
        %3443 = vmatprep.subr.mxu0 0.0
        %3444 = vmatpush1.xpose.msra.mxu0 0.0
        %3445 = vmatprep.subr.mxu0 0.0
        %3446 = vmatpush1.xpose.msra.mxu0 0.0
        %3447 = vmatprep.subr.mxu0 0.0
        %3448 = vmatpush1.xpose.msra.mxu0 0.0
        %3449 = vmatprep.subr.mxu0 0.0
        %3450 = vmatpush1.xpose.msra.mxu0 0.0
        %3451 = vmatprep.subr.mxu0 0.0
        %3452 = vmatpush1.xpose.msra.mxu0 0.0
        %3453 = vmatprep.subr.mxu0 0.0
        %3454 = vmatpush1.xpose.msra.mxu0 0.0
        %3455 = vmatprep.subr.mxu0 0.0
        %3456 = vmatpush1.xpose.msra.mxu0 0.0
        %3457 = vmatprep.subr.mxu0 0.0
        %3458 = vmatpush1.xpose.msra.mxu0 0.0
        %3459 = vmatprep.subr.mxu0 0.0
        %3460 = vmatpush1.xpose.msra.mxu0 0.0
        %3461 = vmatprep.subr.mxu0 0.0
        %3462 = vmatpush1.xpose.msra.mxu0 0.0
        %3463 = vmatprep.subr.mxu0 0.0
        %3464 = vmatpush1.xpose.msra.mxu0 0.0
        %3465 = vmatprep.subr.mxu0 0.0
        %3466 = vmatpush1.xpose.msra.mxu0 0.0
        %3467 = vmatprep.subr.mxu0 0.0
        %3468 = vmatpush1.xpose.msra.mxu0 %v3435
        %3469 = vmatprep.subr.mxu0 0.0
        %3470 = vmatpush2.xpose.msra.mxu0 0.0
        %3471 = vmatprep.subr.mxu0 0.0
        %3472 = vmatpush2.xpose.msra.mxu0 0.0
        %3473 = vmatprep.subr.mxu0 0.0
        %3474 = vmatpush2.xpose.msra.mxu0 0.0
        %3475 = vmatprep.subr.mxu0 0.0
        %3476 = vmatpush2.xpose.msra.mxu0 0.0
        %3477 = vmatprep.subr.mxu0 0.0
        %3478 = vmatpush2.xpose.msra.mxu0 0.0
        %3479 = vmatprep.subr.mxu0 0.0
        %3480 = vmatpush2.xpose.msra.mxu0 0.0
        %3481 = vmatprep.subr.mxu0 0.0
        %3482 = vmatpush2.xpose.msra.mxu0 0.0
        %3483 = vmatprep.subr.mxu0 0.0
        %3484 = vmatpush2.xpose.msra.mxu0 0.0
        %3485 = vmatprep.subr.mxu0 0.0
        %3486 = vmatpush2.xpose.msra.mxu0 0.0
        %3487 = vmatprep.subr.mxu0 0.0
        %3488 = vmatpush2.xpose.msra.mxu0 0.0
        %3489 = vmatprep.subr.mxu0 0.0
        %3490 = vmatpush2.xpose.msra.mxu0 0.0
        %3491 = vmatprep.subr.mxu0 0.0
        %3492 = vmatpush2.xpose.msra.mxu0 0.0
        %3493 = vmatprep.subr.mxu0 0.0
        %3494 = vmatpush2.xpose.msra.mxu0 0.0
        %3495 = vmatprep.subr.mxu0 0.0
        %3496 = vmatpush2.xpose.msra.mxu0 0.0
        %3497 = vmatprep.subr.mxu0 0.0
        %3498 = vmatpush2.xpose.msra.mxu0 0.0
        %3499 = vmatprep.subr.mxu0 0.0
        %3500 = vmatpush2.xpose.msra.mxu0 0.0
        %3501 = vmatprep.mubr.f32.mxu0 0.0
        %3502 = vmatmul.mubr.f32.gmra.mxu0 %v3423
        %v3503 = vpop.f32.mrf.mxu0
        %v3504 = vadd.f32 0.0, %v3503
        %v3505 = vpop.f32.mrf.mxu0
        %3506 = vmatprep.mubr.f32.mxu0 0.0
        %3507 = vmatmul.mubr.f32.gmra.mxu0 %v3426
        %v3508 = vpop.f32.mrf.mxu0
        %v3509 = vadd.f32 0.0, %v3508
        %v3510 = vpop.f32.mrf.mxu0
        %3511 = vmatprep.mubr.f32.mxu0 0.0
        %3512 = vmatmul.mubr.f32.gmra.mxu0 %v3429
        %v3513 = vpop.f32.mrf.mxu0
        %v3514 = vadd.f32 0.0, %v3513
        %v3515 = vpop.f32.mrf.mxu0
        %3516 = vmatprep.mubr.f32.mxu0 0.0
        %3517 = vmatmul.mubr.f32.gmra.mxu0 %v3432
        %v3518 = vpop.f32.mrf.mxu0
        %v3519 = vadd.f32 0.0, %v3518
        %v3520 = vpop.f32.mrf.mxu0
        %3521 = vdwg.mxu0
        %v3522 = vmul.f32 %v3504, 0.35355338
        %v3523 = vmul.f32 %v3509, 0.35355338
        %v3524 = vmul.f32 %v3514, 0.35355338
        %v3525 = vmul.f32 %v3519, 0.35355338
        %v3526 = vadd.f32 %v3522, %v2236
        %v3527 = vadd.f32 %v3523, %v2236
        %v3528 = vadd.f32 %v3524, %v2236
        %v3529 = vadd.f32 %v3525, %v2236
        %v3530 = vsel %vm2701, %v3526, -inf
        %3531 = vmax.xlane.f32.xlu0 %v3530
        %v3532 = vpop.xlane.xlu0 %3531
        %v3533 = vsel %vm2701, %v3527, -inf
        %3534 = vmax.xlane.f32.xlu0 %v3533
        %v3535 = vpop.xlane.xlu0 %3534
        %v3536 = vsel %vm2701, %v3528, -inf
        %3537 = vmax.xlane.f32.xlu0 %v3536
        %v3538 = vpop.xlane.xlu0 %3537
        %v3539 = vsel %vm2701, %v3529, -inf
        %3540 = vmax.xlane.f32.xlu0 %v3539
        %v3541 = vpop.xlane.xlu0 %3540
        %v3542 = vsub.f32 %v3526, %v3532
        %v3543 = vsub.f32 %v3527, %v3535
        %v3544 = vsub.f32 %v3528, %v3538
        %v3545 = vsub.f32 %v3529, %v3541
        %v3546 = vmul.f32 %v3542, 1.442695
        %v3547 = vpow.pop %v3546
        %v3548 = vmul.f32 %v3543, 1.442695
        %v3549 = vpow.pop %v3548
        %v3550 = vmul.f32 %v3544, 1.442695
        %v3551 = vpow.pop %v3550
        %v3552 = vmul.f32 %v3545, 1.442695
        %v3553 = vpow.pop %v3552
        %v3554 = vsel %vm2701, %v3547, 0.0
        %3555 = vadd.xlane.f32.xlu0 %v3554
        %v3556 = vpop.xlane.xlu0 %3555
        %v3557 = vsel %vm2701, %v3549, 0.0
        %3558 = vadd.xlane.f32.xlu0 %v3557
        %v3559 = vpop.xlane.xlu0 %3558
        %v3560 = vsel %vm2701, %v3551, 0.0
        %3561 = vadd.xlane.f32.xlu0 %v3560
        %v3562 = vpop.xlane.xlu0 %3561
        %v3563 = vsel %vm2701, %v3553, 0.0
        %3564 = vadd.xlane.f32.xlu0 %v3563
        %v3565 = vpop.xlane.xlu0 %3564
        %v3566 = vrcp.pop %v3556
        %v3567 = vmul.f32 %v3547, %v3566
        %v3568 = vrcp.pop %v3559
        %v3569 = vmul.f32 %v3549, %v3568
        %v3570 = vrcp.pop %v3562
        %v3571 = vmul.f32 %v3551, %v3570
        %v3572 = vrcp.pop %v3565
        %v3573 = vmul.f32 %v3553, %v3572
        %v3575 = vsel %vm2701, %v3567, 0
        %v3578 = vsel %vm2701, %v3569, 0
        %v3581 = vsel %vm2701, %v3571, 0
        %v3584 = vsel %vm2701, %v3573, 0
        %3586 = vmatprep.subr.mxu0 0.0
        %3587 = vmatpush1.msra.mxu0 0.0
        %3588 = vmatprep.subr.mxu0 0.0
        %3589 = vmatpush1.msra.mxu0 0.0
        %3590 = vmatprep.subr.mxu0 0.0
        %3591 = vmatpush1.msra.mxu0 0.0
        %3592 = vmatprep.subr.mxu0 0.0
        %3593 = vmatpush1.msra.mxu0 0.0
        %3594 = vmatprep.subr.mxu0 0.0
        %3595 = vmatpush1.msra.mxu0 0.0
        %3596 = vmatprep.subr.mxu0 0.0
        %3597 = vmatpush1.msra.mxu0 0.0
        %3598 = vmatprep.subr.mxu0 0.0
        %3599 = vmatpush1.msra.mxu0 0.0
        %3600 = vmatprep.subr.mxu0 0.0
        %3601 = vmatpush1.msra.mxu0 0.0
        %3602 = vmatprep.subr.mxu0 0.0
        %3603 = vmatpush1.msra.mxu0 0.0
        %3604 = vmatprep.subr.mxu0 0.0
        %3605 = vmatpush1.msra.mxu0 0.0
        %3606 = vmatprep.subr.mxu0 0.0
        %3607 = vmatpush1.msra.mxu0 0.0
        %3608 = vmatprep.subr.mxu0 0.0
        %3609 = vmatpush1.msra.mxu0 0.0
        %3610 = vmatprep.subr.mxu0 0.0
        %3611 = vmatpush1.msra.mxu0 0.0
        %3612 = vmatprep.subr.mxu0 0.0
        %3613 = vmatpush1.msra.mxu0 0.0
        %3614 = vmatprep.subr.mxu0 0.0
        %3615 = vmatpush1.msra.mxu0 0.0
        %3616 = vmatprep.subr.mxu0 0.0
        %3617 = vmatpush1.msra.mxu0 %v3408
        %3618 = vmatprep.subr.mxu0 0.0
        %3619 = vmatpush2.msra.mxu0 0.0
        %3620 = vmatprep.subr.mxu0 0.0
        %3621 = vmatpush2.msra.mxu0 0.0
        %3622 = vmatprep.subr.mxu0 0.0
        %3623 = vmatpush2.msra.mxu0 0.0
        %3624 = vmatprep.subr.mxu0 0.0
        %3625 = vmatpush2.msra.mxu0 0.0
        %3626 = vmatprep.subr.mxu0 0.0
        %3627 = vmatpush2.msra.mxu0 0.0
        %3628 = vmatprep.subr.mxu0 0.0
        %3629 = vmatpush2.msra.mxu0 0.0
        %3630 = vmatprep.subr.mxu0 0.0
        %3631 = vmatpush2.msra.mxu0 0.0
        %3632 = vmatprep.subr.mxu0 0.0
        %3633 = vmatpush2.msra.mxu0 0.0
        %3634 = vmatprep.subr.mxu0 0.0
        %3635 = vmatpush2.msra.mxu0 0.0
        %3636 = vmatprep.subr.mxu0 0.0
        %3637 = vmatpush2.msra.mxu0 0.0
        %3638 = vmatprep.subr.mxu0 0.0
        %3639 = vmatpush2.msra.mxu0 0.0
        %3640 = vmatprep.subr.mxu0 0.0
        %3641 = vmatpush2.msra.mxu0 0.0
        %3642 = vmatprep.subr.mxu0 0.0
        %3643 = vmatpush2.msra.mxu0 0.0
        %3644 = vmatprep.subr.mxu0 0.0
        %3645 = vmatpush2.msra.mxu0 0.0
        %3646 = vmatprep.subr.mxu0 0.0
        %3647 = vmatpush2.msra.mxu0 0.0
        %3648 = vmatprep.subr.mxu0 0.0
        %3649 = vmatpush2.msra.mxu0 0.0
        %3650 = vmatprep.mubr.f32.mxu0 0.0
        %3651 = vmatmul.mubr.f32.gmra.mxu0 %v3575
        %v3652 = vpop.f32.mrf.mxu0
        %v3653 = vadd.f32 0.0, %v3652
        %v3654 = vpop.f32.mrf.mxu0
        %3655 = vmatprep.mubr.f32.mxu0 0.0
        %3656 = vmatmul.mubr.f32.gmra.mxu0 %v3578
        %v3657 = vpop.f32.mrf.mxu0
        %v3658 = vadd.f32 0.0, %v3657
        %v3659 = vpop.f32.mrf.mxu0
        %3660 = vmatprep.mubr.f32.mxu0 0.0
        %3661 = vmatmul.mubr.f32.gmra.mxu0 %v3581
        %v3662 = vpop.f32.mrf.mxu0
        %v3663 = vadd.f32 0.0, %v3662
        %v3664 = vpop.f32.mrf.mxu0
        %3665 = vmatprep.mubr.f32.mxu0 0.0
        %3666 = vmatmul.mubr.f32.gmra.mxu0 %v3584
        %v3667 = vpop.f32.mrf.mxu0
        %v3668 = vadd.f32 0.0, %v3667
        %v3669 = vpop.f32.mrf.mxu0
        %3670 = vdwg.mxu0
        %v3671 = vmul.f32 %v3653, %v2219
        %v3672 = vmul.f32 %v3658, %v2224
        %v3673 = vmul.f32 %v3663, %v2229
        %v3674 = vmul.f32 %v3668, %v2234
        %v3675 = vadd.f32 %v3671, %v3672
        %v3676 = vadd.f32 %v3675, %v3673
        %v3677 = vadd.f32 %v3676, %v3674
        %v3679 = vlaneseq
        %v3680 = vshrl.u32 %v3679, 7
        %v3681 = vsub.s32 0, %v3680
        %v3682 = vrot.slane %v3417, %v3681
        %v3685 = vsel %vm2348, %v3677, 0
        %3687 = vmatprep.subr.mxu0 0.0
        %3688 = vmatpush1.msra.mxu0 0.0
        %3689 = vmatprep.subr.mxu0 0.0
        %3690 = vmatpush1.msra.mxu0 0.0
        %3691 = vmatprep.subr.mxu0 0.0
        %3692 = vmatpush1.msra.mxu0 0.0
        %3693 = vmatprep.subr.mxu0 0.0
        %3694 = vmatpush1.msra.mxu0 0.0
        %3695 = vmatprep.subr.mxu0 0.0
        %3696 = vmatpush1.msra.mxu0 0.0
        %3697 = vmatprep.subr.mxu0 0.0
        %3698 = vmatpush1.msra.mxu0 0.0
        %3699 = vmatprep.subr.mxu0 0.0
        %3700 = vmatpush1.msra.mxu0 0.0
        %3701 = vmatprep.subr.mxu0 0.0
        %3702 = vmatpush1.msra.mxu0 0.0
        %3703 = vmatprep.subr.mxu0 0.0
        %3704 = vmatpush1.msra.mxu0 0.0
        %3705 = vmatprep.subr.mxu0 0.0
        %3706 = vmatpush1.msra.mxu0 0.0
        %3707 = vmatprep.subr.mxu0 0.0
        %3708 = vmatpush1.msra.mxu0 0.0
        %3709 = vmatprep.subr.mxu0 0.0
        %3710 = vmatpush1.msra.mxu0 0.0
        %3711 = vmatprep.subr.mxu0 0.0
        %3712 = vmatpush1.msra.mxu0 %v3415
        %3713 = vmatprep.subr.mxu0 0.0
        %3714 = vmatpush1.msra.mxu0 %v3414
        %3715 = vmatprep.subr.mxu0 0.0
        %3716 = vmatpush1.msra.mxu0 %v3413
        %3717 = vmatprep.subr.mxu0 0.0
        %3718 = vmatpush1.msra.mxu0 %v3412
        %3719 = vmatprep.subr.mxu0 0.0
        %3720 = vmatpush2.msra.mxu0 0.0
        %3721 = vmatprep.subr.mxu0 0.0
        %3722 = vmatpush2.msra.mxu0 0.0
        %3723 = vmatprep.subr.mxu0 0.0
        %3724 = vmatpush2.msra.mxu0 0.0
        %3725 = vmatprep.subr.mxu0 0.0
        %3726 = vmatpush2.msra.mxu0 0.0
        %3727 = vmatprep.subr.mxu0 0.0
        %3728 = vmatpush2.msra.mxu0 0.0
        %3729 = vmatprep.subr.mxu0 0.0
        %3730 = vmatpush2.msra.mxu0 0.0
        %3731 = vmatprep.subr.mxu0 0.0
        %3732 = vmatpush2.msra.mxu0 0.0
        %3733 = vmatprep.subr.mxu0 0.0
        %3734 = vmatpush2.msra.mxu0 0.0
        %3735 = vmatprep.subr.mxu0 0.0
        %3736 = vmatpush2.msra.mxu0 0.0
        %3737 = vmatprep.subr.mxu0 0.0
        %3738 = vmatpush2.msra.mxu0 0.0
        %3739 = vmatprep.subr.mxu0 0.0
        %3740 = vmatpush2.msra.mxu0 0.0
        %3741 = vmatprep.subr.mxu0 0.0
        %3742 = vmatpush2.msra.mxu0 0.0
        %3743 = vmatprep.subr.mxu0 0.0
        %3744 = vmatpush2.msra.mxu0 0.0
        %3745 = vmatprep.subr.mxu0 0.0
        %3746 = vmatpush2.msra.mxu0 0.0
        %3747 = vmatprep.subr.mxu0 0.0
        %3748 = vmatpush2.msra.mxu0 0.0
        %3749 = vmatprep.subr.mxu0 0.0
        %3750 = vmatpush2.msra.mxu0 0.0
        %3751 = vmatprep.mubr.f32.mxu0 0.0
        %3752 = vmatmul.mubr.f32.gmra.mxu0 %v3685
        %v3753 = vpop.f32.mrf.mxu0
        %v3754 = vadd.f32 %v3682, %v3753
        %v3755 = vpop.f32.mrf.mxu0
        %3756 = vdwg.mxu0
        %v3757 = vadd.f32 %v3158, %v3754
        %s3758 = scalar_lea.vmem [#allocation16], 1
        %v3759 = vld [vmem:[%s3758] sm:$0x1]
        %s3760 = scalar_lea.vmem [#allocation17], 1
        %v3761 = vld [vmem:[%s3760] sm:$0x1]
        %v3762 = vsel %vm2348, %v3757, 0.0
        %3763 = vadd.xlane.f32.xlu0 %v3762
        %v3764 = vpop.xlane.xlu0 %3763
        %v3765 = vmul.f32 %v3764, %v2935
        %v3766 = vsub.f32 %v3757, %v3765
        %v3767 = vmul.f32 %v3766, %v3766
        %v3768 = vsel %vm2348, %v3767, 0.0
        %3769 = vadd.xlane.f32.xlu0 %v3768
        %v3770 = vpop.xlane.xlu0 %3769
        %v3771 = vmul.f32 %v3770, %v2935
        %v3772 = vadd.f32 %v3771, 1e-05
        %v3773 = vrsqrt.pop %v3772
        %v3774 = vmul.f32 %v3766, %v3773
        %v3776 = vlaneseq
        %v3777 = vshrl.u32 %v3776, 7
        %v3778 = vsub.s32 0, %v3777
        %v3779 = vrot.slane %v3759, %v3778
        %v3781 = vmul.f32 %v3774, %v3779
        %v3783 = vlaneseq
        %v3784 = vshrl.u32 %v3783, 7
        %v3785 = vsub.s32 0, %v3784
        %v3786 = vrot.slane %v3761, %v3785
        %v3788 = vadd.f32 %v3781, %v3786
        %s3789 = scalar_lea.vmem [#allocation11], 32
        %v3790 = vld [vmem:[%s3789] sm:$0xff]
        %v3791 = vld [vmem:[%s3789 + $0x8] sm:$0xff]
        %v3792 = vld [vmem:[%s3789 + $0x10] sm:$0xff]
        %v3793 = vld [vmem:[%s3789 + $0x18] sm:$0xff]
        %s3794 = scalar_lea.vmem [#allocation13], 1
        %v3795 = vld [vmem:[%s3794] sm:$0x1]
        %v3797 = vlaneseq
        %v3798 = vshrl.u32 %v3797, 7
        %v3799 = vsub.s32 0, %v3798
        %v3800 = vrot.slane %v3795, %v3799
        %v3803 = vsel %vm2348, %v3788, 0
        %3805 = vmatprep.subr.mxu0 0.0
        %3806 = vmatpush1.msra.mxu0 0.0
        %3807 = vmatprep.subr.mxu0 0.0
        %3808 = vmatpush1.msra.mxu0 0.0
        %3809 = vmatprep.subr.mxu0 0.0
        %3810 = vmatpush1.msra.mxu0 0.0
        %3811 = vmatprep.subr.mxu0 0.0
        %3812 = vmatpush1.msra.mxu0 0.0
        %3813 = vmatprep.subr.mxu0 0.0
        %3814 = vmatpush1.msra.mxu0 0.0
        %3815 = vmatprep.subr.mxu0 0.0
        %3816 = vmatpush1.msra.mxu0 0.0
        %3817 = vmatprep.subr.mxu0 0.0
        %3818 = vmatpush1.msra.mxu0 0.0
        %3819 = vmatprep.subr.mxu0 0.0
        %3820 = vmatpush1.msra.mxu0 0.0
        %3821 = vmatprep.subr.mxu0 0.0
        %3822 = vmatpush1.msra.mxu0 0.0
        %3823 = vmatprep.subr.mxu0 0.0
        %3824 = vmatpush1.msra.mxu0 0.0
        %3825 = vmatprep.subr.mxu0 0.0
        %3826 = vmatpush1.msra.mxu0 0.0
        %3827 = vmatprep.subr.mxu0 0.0
        %3828 = vmatpush1.msra.mxu0 0.0
        %3829 = vmatprep.subr.mxu0 0.0
        %3830 = vmatpush1.msra.mxu0 %v3793
        %3831 = vmatprep.subr.mxu0 0.0
        %3832 = vmatpush1.msra.mxu0 %v3792
        %3833 = vmatprep.subr.mxu0 0.0
        %3834 = vmatpush1.msra.mxu0 %v3791
        %3835 = vmatprep.subr.mxu0 0.0
        %3836 = vmatpush1.msra.mxu0 %v3790
        %3837 = vmatprep.subr.mxu0 0.0
        %3838 = vmatpush2.msra.mxu0 0.0
        %3839 = vmatprep.subr.mxu0 0.0
        %3840 = vmatpush2.msra.mxu0 0.0
        %3841 = vmatprep.subr.mxu0 0.0
        %3842 = vmatpush2.msra.mxu0 0.0
        %3843 = vmatprep.subr.mxu0 0.0
        %3844 = vmatpush2.msra.mxu0 0.0
        %3845 = vmatprep.subr.mxu0 0.0
        %3846 = vmatpush2.msra.mxu0 0.0
        %3847 = vmatprep.subr.mxu0 0.0
        %3848 = vmatpush2.msra.mxu0 0.0
        %3849 = vmatprep.subr.mxu0 0.0
        %3850 = vmatpush2.msra.mxu0 0.0
        %3851 = vmatprep.subr.mxu0 0.0
        %3852 = vmatpush2.msra.mxu0 0.0
        %3853 = vmatprep.subr.mxu0 0.0
        %3854 = vmatpush2.msra.mxu0 0.0
        %3855 = vmatprep.subr.mxu0 0.0
        %3856 = vmatpush2.msra.mxu0 0.0
        %3857 = vmatprep.subr.mxu0 0.0
        %3858 = vmatpush2.msra.mxu0 0.0
        %3859 = vmatprep.subr.mxu0 0.0
        %3860 = vmatpush2.msra.mxu0 0.0
        %3861 = vmatprep.subr.mxu0 0.0
        %3862 = vmatpush2.msra.mxu0 0.0
        %3863 = vmatprep.subr.mxu0 0.0
        %3864 = vmatpush2.msra.mxu0 0.0
        %3865 = vmatprep.subr.mxu0 0.0
        %3866 = vmatpush2.msra.mxu0 0.0
        %3867 = vmatprep.subr.mxu0 0.0
        %3868 = vmatpush2.msra.mxu0 0.0
        %3869 = vmatprep.mubr.f32.mxu0 0.0
        %3870 = vmatmul.mubr.f32.gmra.mxu0 %v3803
        %v3871 = vpop.f32.mrf.mxu0
        %v3872 = vadd.f32 %v3800, %v3871
        %v3873 = vpop.f32.mrf.mxu0
        %3874 = vdwg.mxu0
        %v3875 = vmax.f32 %v3872, 0.0
        %s3876 = scalar_lea.vmem %s37, 32
        %v3877 = vld [vmem:[%s3876] sm:$0xff]
        %v3878 = vld [vmem:[%s3876 + $0x8] sm:$0xff]
        %v3879 = vld [vmem:[%s3876 + $0x10] sm:$0xff]
        %v3880 = vld [vmem:[%s3876 + $0x18] sm:$0xff]
        %s3881 = scalar_lea.vmem [#allocation14], 1
        %v3882 = vld [vmem:[%s3881] sm:$0x1]
        %v3884 = vlaneseq
        %v3885 = vshrl.u32 %v3884, 7
        %v3886 = vsub.s32 0, %v3885
        %v3887 = vrot.slane %v3882, %v3886
        %v3890 = vsel %vm2348, %v3875, 0
        %3892 = vmatprep.subr.mxu0 0.0
        %3893 = vmatpush1.msra.mxu0 0.0
        %3894 = vmatprep.subr.mxu0 0.0
        %3895 = vmatpush1.msra.mxu0 0.0
        %3896 = vmatprep.subr.mxu0 0.0
        %3897 = vmatpush1.msra.mxu0 0.0
        %3898 = vmatprep.subr.mxu0 0.0
        %3899 = vmatpush1.msra.mxu0 0.0
        %3900 = vmatprep.subr.mxu0 0.0
        %3901 = vmatpush1.msra.mxu0 0.0
        %3902 = vmatprep.subr.mxu0 0.0
        %3903 = vmatpush1.msra.mxu0 0.0
        %3904 = vmatprep.subr.mxu0 0.0
        %3905 = vmatpush1.msra.mxu0 0.0
        %3906 = vmatprep.subr.mxu0 0.0
        %3907 = vmatpush1.msra.mxu0 0.0
        %3908 = vmatprep.subr.mxu0 0.0
        %3909 = vmatpush1.msra.mxu0 0.0
        %3910 = vmatprep.subr.mxu0 0.0
        %3911 = vmatpush1.msra.mxu0 0.0
        %3912 = vmatprep.subr.mxu0 0.0
        %3913 = vmatpush1.msra.mxu0 0.0
        %3914 = vmatprep.subr.mxu0 0.0
        %3915 = vmatpush1.msra.mxu0 0.0
        %3916 = vmatprep.subr.mxu0 0.0
        %3917 = vmatpush1.msra.mxu0 %v3880
        %3918 = vmatprep.subr.mxu0 0.0
        %3919 = vmatpush1.msra.mxu0 %v3879
        %3920 = vmatprep.subr.mxu0 0.0
        %3921 = vmatpush1.msra.mxu0 %v3878
        %3922 = vmatprep.subr.mxu0 0.0
        %3923 = vmatpush1.msra.mxu0 %v3877
        %3924 = vmatprep.subr.mxu0 0.0
        %3925 = vmatpush2.msra.mxu0 0.0
        %3926 = vmatprep.subr.mxu0 0.0
        %3927 = vmatpush2.msra.mxu0 0.0
        %3928 = vmatprep.subr.mxu0 0.0
        %3929 = vmatpush2.msra.mxu0 0.0
        %3930 = vmatprep.subr.mxu0 0.0
        %3931 = vmatpush2.msra.mxu0 0.0
        %3932 = vmatprep.subr.mxu0 0.0
        %3933 = vmatpush2.msra.mxu0 0.0
        %3934 = vmatprep.subr.mxu0 0.0
        %3935 = vmatpush2.msra.mxu0 0.0
        %3936 = vmatprep.subr.mxu0 0.0
        %3937 = vmatpush2.msra.mxu0 0.0
        %3938 = vmatprep.subr.mxu0 0.0
        %3939 = vmatpush2.msra.mxu0 0.0
        %3940 = vmatprep.subr.mxu0 0.0
        %3941 = vmatpush2.msra.mxu0 0.0
        %3942 = vmatprep.subr.mxu0 0.0
        %3943 = vmatpush2.msra.mxu0 0.0
        %3944 = vmatprep.subr.mxu0 0.0
        %3945 = vmatpush2.msra.mxu0 0.0
        %3946 = vmatprep.subr.mxu0 0.0
        %3947 = vmatpush2.msra.mxu0 0.0
        %3948 = vmatprep.subr.mxu0 0.0
        %3949 = vmatpush2.msra.mxu0 0.0
        %3950 = vmatprep.subr.mxu0 0.0
        %3951 = vmatpush2.msra.mxu0 0.0
        %3952 = vmatprep.subr.mxu0 0.0
        %3953 = vmatpush2.msra.mxu0 0.0
        %3954 = vmatprep.subr.mxu0 0.0
        %3955 = vmatpush2.msra.mxu0 0.0
        %3956 = vmatprep.mubr.f32.mxu0 0.0
        %3957 = vmatmul.mubr.f32.gmra.mxu0 %v3890
        %v3958 = vpop.f32.mrf.mxu0
        %v3959 = vadd.f32 %v3887, %v3958
        %v3960 = vpop.f32.mrf.mxu0
        %3961 = vdwg.mxu0
        %v3962 = vadd.f32 %v3788, %v3959
        %s3963 = scalar_lea.vmem [#allocation19], 1
        %v3964 = vld [vmem:[%s3963] sm:$0x1]
        %s3965 = scalar_lea.vmem [#allocation20], 1
        %v3966 = vld [vmem:[%s3965] sm:$0x1]
        %v3967 = vsel %vm2348, %v3962, 0.0
        %3968 = vadd.xlane.f32.xlu0 %v3967
        %v3969 = vpop.xlane.xlu0 %3968
        %v3970 = vmul.f32 %v3969, %v2935
        %v3971 = vsub.f32 %v3962, %v3970
        %v3972 = vmul.f32 %v3971, %v3971
        %v3973 = vsel %vm2348, %v3972, 0.0
        %3974 = vadd.xlane.f32.xlu0 %v3973
        %v3975 = vpop.xlane.xlu0 %3974
        %v3976 = vmul.f32 %v3975, %v2935
        %v3977 = vadd.f32 %v3976, 1e-05
        %v3978 = vrsqrt.pop %v3977
        %v3979 = vmul.f32 %v3971, %v3978
        %v3981 = vlaneseq
        %v3982 = vshrl.u32 %v3981, 7
        %v3983 = vsub.s32 0, %v3982
        %v3984 = vrot.slane %v3964, %v3983
        %v3986 = vmul.f32 %v3979, %v3984
        %v3988 = vlaneseq
        %v3989 = vshrl.u32 %v3988, 7
        %v3990 = vsub.s32 0, %v3989
        %v3991 = vrot.slane %v3966, %v3990
        %v3993 = vadd.f32 %v3986, %v3991
        %v3994 = vld [vmem:[#allocation61] sm:$0x1]
        %v3995 = vld [vmem:[#allocation62] sm:$0x1]
        %v3996 = vsel %vm2348, %v3993, 0.0
        %3997 = vadd.xlane.f32.xlu0 %v3996
        %v3998 = vpop.xlane.xlu0 %3997
        %v3999 = vmul.f32 %v3998, %v2935
        %v4000 = vsub.f32 %v3993, %v3999
        %v4001 = vmul.f32 %v4000, %v4000
        %v4002 = vsel %vm2348, %v4001, 0.0
        %4003 = vadd.xlane.f32.xlu0 %v4002
        %v4004 = vpop.xlane.xlu0 %4003
        %v4005 = vmul.f32 %v4004, %v2935
        %v4006 = vadd.f32 %v4005, 1e-05
        %v4007 = vrsqrt.pop %v4006
        %v4008 = vmul.f32 %v4000, %v4007
        %v4010 = vlaneseq
        %v4011 = vshrl.u32 %v4010, 7
        %v4012 = vsub.s32 0, %v4011
        %v4013 = vrot.slane %v3994, %v4012
        %v4015 = vmul.f32 %v4008, %v4013
        %v4017 = vlaneseq
        %v4018 = vshrl.u32 %v4017, 7
        %v4019 = vsub.s32 0, %v4018
        %v4020 = vrot.slane %v3995, %v4019
        %v4022 = vadd.f32 %v4015, %v4020
        %v4023 = vld [vmem:[%s2212] sm:$0xff]
        %v4025 = vsel %vm2256, %v4023, 0
        %4027 = vmatprep.subr.mxu0 0.0
        %4028 = vmatpush1.msra.mxu0 0.0
        %4029 = vmatprep.subr.mxu0 0.0
        %4030 = vmatpush1.msra.mxu0 0.0
        %4031 = vmatprep.subr.mxu0 0.0
        %4032 = vmatpush1.msra.mxu0 0.0
        %4033 = vmatprep.subr.mxu0 0.0
        %4034 = vmatpush1.msra.mxu0 0.0
        %4035 = vmatprep.subr.mxu0 0.0
        %4036 = vmatpush1.msra.mxu0 0.0
        %4037 = vmatprep.subr.mxu0 0.0
        %4038 = vmatpush1.msra.mxu0 0.0
        %4039 = vmatprep.subr.mxu0 0.0
        %4040 = vmatpush1.msra.mxu0 0.0
        %4041 = vmatprep.subr.mxu0 0.0
        %4042 = vmatpush1.msra.mxu0 0.0
        %4043 = vmatprep.subr.mxu0 0.0
        %4044 = vmatpush1.msra.mxu0 0.0
        %4045 = vmatprep.subr.mxu0 0.0
        %4046 = vmatpush1.msra.mxu0 %v2262
        %4047 = vmatprep.subr.mxu0 0.0
        %4048 = vmatpush1.msra.mxu0 %v2247
        %4049 = vmatprep.subr.mxu0 0.0
        %4050 = vmatpush1.msra.mxu0 %v2246
        %4051 = vmatprep.subr.mxu0 0.0
        %4052 = vmatpush1.msra.mxu0 %v2245
        %4053 = vmatprep.subr.mxu0 0.0
        %4054 = vmatpush1.msra.mxu0 %v2244
        %4055 = vmatprep.subr.mxu0 0.0
        %4056 = vmatpush1.msra.mxu0 %v2243
        %4057 = vmatprep.subr.mxu0 0.0
        %4058 = vmatpush1.msra.mxu0 %v2242
        %4059 = vmatprep.subr.mxu0 0.0
        %4060 = vmatpush2.msra.mxu0 0.0
        %4061 = vmatprep.subr.mxu0 0.0
        %4062 = vmatpush2.msra.mxu0 0.0
        %4063 = vmatprep.subr.mxu0 0.0
        %4064 = vmatpush2.msra.mxu0 0.0
        %4065 = vmatprep.subr.mxu0 0.0
        %4066 = vmatpush2.msra.mxu0 0.0
        %4067 = vmatprep.subr.mxu0 0.0
        %4068 = vmatpush2.msra.mxu0 0.0
        %4069 = vmatprep.subr.mxu0 0.0
        %4070 = vmatpush2.msra.mxu0 0.0
        %4071 = vmatprep.subr.mxu0 0.0
        %4072 = vmatpush2.msra.mxu0 0.0
        %4073 = vmatprep.subr.mxu0 0.0
        %4074 = vmatpush2.msra.mxu0 0.0
        %4075 = vmatprep.subr.mxu0 0.0
        %4076 = vmatpush2.msra.mxu0 0.0
        %4077 = vmatprep.subr.mxu0 0.0
        %4078 = vmatpush2.msra.mxu0 0.0
        %4079 = vmatprep.subr.mxu0 0.0
        %4080 = vmatpush2.msra.mxu0 0.0
        %4081 = vmatprep.subr.mxu0 0.0
        %4082 = vmatpush2.msra.mxu0 0.0
        %4083 = vmatprep.subr.mxu0 0.0
        %4084 = vmatpush2.msra.mxu0 0.0
        %4085 = vmatprep.subr.mxu0 0.0
        %4086 = vmatpush2.msra.mxu0 0.0
        %4087 = vmatprep.subr.mxu0 0.0
        %4088 = vmatpush2.msra.mxu0 0.0
        %4089 = vmatprep.subr.mxu0 0.0
        %4090 = vmatpush2.msra.mxu0 0.0
        %4091 = vmatprep.mubr.f32.mxu0 0.0
        %4092 = vmatmul.mubr.f32.gmra.mxu0 %v4025
        %v4093 = vpop.f32.mrf.mxu0
        %v4094 = vadd.f32 %v2254, %v4093
        %v4095 = vpop.f32.mrf.mxu0
        %4096 = vdwg.mxu0
        %v4097 = vmul.f32 %v4094, 5.656854
        %v4098 = vld [vmem:[%s7] sm:$0xff]
        %v4099 = vadd.f32 %v4097, %v4098
        %v4100 = vld [vmem:[#allocation22] sm:$0xff]
        %v4101 = vld [vmem:[#allocation22 + $0x8] sm:$0xff]
        %v4102 = vld [vmem:[#allocation22 + $0x10] sm:$0xff]
        %v4103 = vld [vmem:[#allocation22 + $0x18] sm:$0xff]
        %v4104 = vld [vmem:[#allocation23] sm:$0x1]
        %v4106 = vlaneseq
        %v4107 = vshrl.u32 %v4106, 7
        %v4108 = vsub.s32 0, %v4107
        %v4109 = vrot.slane %v4104, %v4108
        %v4112 = vsel %vm2348, %v4099, 0
        %4114 = vmatprep.subr.mxu0 0.0
        %4115 = vmatpush1.msra.mxu0 0.0
        %4116 = vmatprep.subr.mxu0 0.0
        %4117 = vmatpush1.msra.mxu0 0.0
        %4118 = vmatprep.subr.mxu0 0.0
        %4119 = vmatpush1.msra.mxu0 0.0
        %4120 = vmatprep.subr.mxu0 0.0
        %4121 = vmatpush1.msra.mxu0 0.0
        %4122 = vmatprep.subr.mxu0 0.0
        %4123 = vmatpush1.msra.mxu0 0.0
        %4124 = vmatprep.subr.mxu0 0.0
        %4125 = vmatpush1.msra.mxu0 0.0
        %4126 = vmatprep.subr.mxu0 0.0
        %4127 = vmatpush1.msra.mxu0 0.0
        %4128 = vmatprep.subr.mxu0 0.0
        %4129 = vmatpush1.msra.mxu0 0.0
        %4130 = vmatprep.subr.mxu0 0.0
        %4131 = vmatpush1.msra.mxu0 0.0
        %4132 = vmatprep.subr.mxu0 0.0
        %4133 = vmatpush1.msra.mxu0 0.0
        %4134 = vmatprep.subr.mxu0 0.0
        %4135 = vmatpush1.msra.mxu0 0.0
        %4136 = vmatprep.subr.mxu0 0.0
        %4137 = vmatpush1.msra.mxu0 0.0
        %4138 = vmatprep.subr.mxu0 0.0
        %4139 = vmatpush1.msra.mxu0 %v4103
        %4140 = vmatprep.subr.mxu0 0.0
        %4141 = vmatpush1.msra.mxu0 %v4102
        %4142 = vmatprep.subr.mxu0 0.0
        %4143 = vmatpush1.msra.mxu0 %v4101
        %4144 = vmatprep.subr.mxu0 0.0
        %4145 = vmatpush1.msra.mxu0 %v4100
        %4146 = vmatprep.subr.mxu0 0.0
        %4147 = vmatpush2.msra.mxu0 0.0
        %4148 = vmatprep.subr.mxu0 0.0
        %4149 = vmatpush2.msra.mxu0 0.0
        %4150 = vmatprep.subr.mxu0 0.0
        %4151 = vmatpush2.msra.mxu0 0.0
        %4152 = vmatprep.subr.mxu0 0.0
        %4153 = vmatpush2.msra.mxu0 0.0
        %4154 = vmatprep.subr.mxu0 0.0
        %4155 = vmatpush2.msra.mxu0 0.0
        %4156 = vmatprep.subr.mxu0 0.0
        %4157 = vmatpush2.msra.mxu0 0.0
        %4158 = vmatprep.subr.mxu0 0.0
        %4159 = vmatpush2.msra.mxu0 0.0
        %4160 = vmatprep.subr.mxu0 0.0
        %4161 = vmatpush2.msra.mxu0 0.0
        %4162 = vmatprep.subr.mxu0 0.0
        %4163 = vmatpush2.msra.mxu0 0.0
        %4164 = vmatprep.subr.mxu0 0.0
        %4165 = vmatpush2.msra.mxu0 0.0
        %4166 = vmatprep.subr.mxu0 0.0
        %4167 = vmatpush2.msra.mxu0 0.0
        %4168 = vmatprep.subr.mxu0 0.0
        %4169 = vmatpush2.msra.mxu0 0.0
        %4170 = vmatprep.subr.mxu0 0.0
        %4171 = vmatpush2.msra.mxu0 0.0
        %4172 = vmatprep.subr.mxu0 0.0
        %4173 = vmatpush2.msra.mxu0 0.0
        %4174 = vmatprep.subr.mxu0 0.0
        %4175 = vmatpush2.msra.mxu0 0.0
        %4176 = vmatprep.subr.mxu0 0.0
        %4177 = vmatpush2.msra.mxu0 0.0
        %4178 = vmatprep.mubr.f32.mxu0 0.0
        %4179 = vmatmul.mubr.f32.gmra.mxu0 %v4112
        %v4180 = vpop.f32.mrf.mxu0
        %v4181 = vadd.f32 %v4109, %v4180
        %v4182 = vpop.f32.mrf.mxu0
        %4183 = vdwg.mxu0
        %v4184 = vld [vmem:[#allocation25] sm:$0xff]
        %v4185 = vld [vmem:[#allocation25 + $0x8] sm:$0xff]
        %v4186 = vld [vmem:[#allocation25 + $0x10] sm:$0xff]
        %v4187 = vld [vmem:[#allocation25 + $0x18] sm:$0xff]
        %v4188 = vld [vmem:[#allocation26] sm:$0x1]
        %v4190 = vlaneseq
        %v4191 = vshrl.u32 %v4190, 7
        %v4192 = vsub.s32 0, %v4191
        %v4193 = vrot.slane %v4188, %v4192
        %4195 = vmatprep.subr.mxu0 0.0
        %4196 = vmatpush1.msra.mxu0 0.0
        %4197 = vmatprep.subr.mxu0 0.0
        %4198 = vmatpush1.msra.mxu0 0.0
        %4199 = vmatprep.subr.mxu0 0.0
        %4200 = vmatpush1.msra.mxu0 0.0
        %4201 = vmatprep.subr.mxu0 0.0
        %4202 = vmatpush1.msra.mxu0 0.0
        %4203 = vmatprep.subr.mxu0 0.0
        %4204 = vmatpush1.msra.mxu0 0.0
        %4205 = vmatprep.subr.mxu0 0.0
        %4206 = vmatpush1.msra.mxu0 0.0
        %4207 = vmatprep.subr.mxu0 0.0
        %4208 = vmatpush1.msra.mxu0 0.0
        %4209 = vmatprep.subr.mxu0 0.0
        %4210 = vmatpush1.msra.mxu0 0.0
        %4211 = vmatprep.subr.mxu0 0.0
        %4212 = vmatpush1.msra.mxu0 0.0
        %4213 = vmatprep.subr.mxu0 0.0
        %4214 = vmatpush1.msra.mxu0 0.0
        %4215 = vmatprep.subr.mxu0 0.0
        %4216 = vmatpush1.msra.mxu0 0.0
        %4217 = vmatprep.subr.mxu0 0.0
        %4218 = vmatpush1.msra.mxu0 0.0
        %4219 = vmatprep.subr.mxu0 0.0
        %4220 = vmatpush1.msra.mxu0 %v4187
        %4221 = vmatprep.subr.mxu0 0.0
        %4222 = vmatpush1.msra.mxu0 %v4186
        %4223 = vmatprep.subr.mxu0 0.0
        %4224 = vmatpush1.msra.mxu0 %v4185
        %4225 = vmatprep.subr.mxu0 0.0
        %4226 = vmatpush1.msra.mxu0 %v4184
        %4227 = vmatprep.subr.mxu0 0.0
        %4228 = vmatpush2.msra.mxu0 0.0
        %4229 = vmatprep.subr.mxu0 0.0
        %4230 = vmatpush2.msra.mxu0 0.0
        %4231 = vmatprep.subr.mxu0 0.0
        %4232 = vmatpush2.msra.mxu0 0.0
        %4233 = vmatprep.subr.mxu0 0.0
        %4234 = vmatpush2.msra.mxu0 0.0
        %4235 = vmatprep.subr.mxu0 0.0
        %4236 = vmatpush2.msra.mxu0 0.0
        %4237 = vmatprep.subr.mxu0 0.0
        %4238 = vmatpush2.msra.mxu0 0.0
        %4239 = vmatprep.subr.mxu0 0.0
        %4240 = vmatpush2.msra.mxu0 0.0
        %4241 = vmatprep.subr.mxu0 0.0
        %4242 = vmatpush2.msra.mxu0 0.0
        %4243 = vmatprep.subr.mxu0 0.0
        %4244 = vmatpush2.msra.mxu0 0.0
        %4245 = vmatprep.subr.mxu0 0.0
        %4246 = vmatpush2.msra.mxu0 0.0
        %4247 = vmatprep.subr.mxu0 0.0
        %4248 = vmatpush2.msra.mxu0 0.0
        %4249 = vmatprep.subr.mxu0 0.0
        %4250 = vmatpush2.msra.mxu0 0.0
        %4251 = vmatprep.subr.mxu0 0.0
        %4252 = vmatpush2.msra.mxu0 0.0
        %4253 = vmatprep.subr.mxu0 0.0
        %4254 = vmatpush2.msra.mxu0 0.0
        %4255 = vmatprep.subr.mxu0 0.0
        %4256 = vmatpush2.msra.mxu0 0.0
        %4257 = vmatprep.subr.mxu0 0.0
        %4258 = vmatpush2.msra.mxu0 0.0
        %4259 = vmatprep.mubr.f32.mxu0 0.0
        %4260 = vmatmul.mubr.f32.gmra.mxu0 %v4112
        %v4261 = vpop.f32.mrf.mxu0
        %v4262 = vadd.f32 %v4193, %v4261
        %v4263 = vpop.f32.mrf.mxu0
        %4264 = vdwg.mxu0
        %v4265 = vld [vmem:[#allocation28] sm:$0xff]
        %v4266 = vld [vmem:[#allocation28 + $0x8] sm:$0xff]
        %v4267 = vld [vmem:[#allocation28 + $0x10] sm:$0xff]
        %v4268 = vld [vmem:[#allocation28 + $0x18] sm:$0xff]
        %v4269 = vld [vmem:[#allocation29] sm:$0x1]
        %v4271 = vlaneseq
        %v4272 = vshrl.u32 %v4271, 7
        %v4273 = vsub.s32 0, %v4272
        %v4274 = vrot.slane %v4269, %v4273
        %4276 = vmatprep.subr.mxu0 0.0
        %4277 = vmatpush1.msra.mxu0 0.0
        %4278 = vmatprep.subr.mxu0 0.0
        %4279 = vmatpush1.msra.mxu0 0.0
        %4280 = vmatprep.subr.mxu0 0.0
        %4281 = vmatpush1.msra.mxu0 0.0
        %4282 = vmatprep.subr.mxu0 0.0
        %4283 = vmatpush1.msra.mxu0 0.0
        %4284 = vmatprep.subr.mxu0 0.0
        %4285 = vmatpush1.msra.mxu0 0.0
        %4286 = vmatprep.subr.mxu0 0.0
        %4287 = vmatpush1.msra.mxu0 0.0
        %4288 = vmatprep.subr.mxu0 0.0
        %4289 = vmatpush1.msra.mxu0 0.0
        %4290 = vmatprep.subr.mxu0 0.0
        %4291 = vmatpush1.msra.mxu0 0.0
        %4292 = vmatprep.subr.mxu0 0.0
        %4293 = vmatpush1.msra.mxu0 0.0
        %4294 = vmatprep.subr.mxu0 0.0
        %4295 = vmatpush1.msra.mxu0 0.0
        %4296 = vmatprep.subr.mxu0 0.0
        %4297 = vmatpush1.msra.mxu0 0.0
        %4298 = vmatprep.subr.mxu0 0.0
        %4299 = vmatpush1.msra.mxu0 0.0
        %4300 = vmatprep.subr.mxu0 0.0
        %4301 = vmatpush1.msra.mxu0 %v4268
        %4302 = vmatprep.subr.mxu0 0.0
        %4303 = vmatpush1.msra.mxu0 %v4267
        %4304 = vmatprep.subr.mxu0 0.0
        %4305 = vmatpush1.msra.mxu0 %v4266
        %4306 = vmatprep.subr.mxu0 0.0
        %4307 = vmatpush1.msra.mxu0 %v4265
        %4308 = vmatprep.subr.mxu0 0.0
        %4309 = vmatpush2.msra.mxu0 0.0
        %4310 = vmatprep.subr.mxu0 0.0
        %4311 = vmatpush2.msra.mxu0 0.0
        %4312 = vmatprep.subr.mxu0 0.0
        %4313 = vmatpush2.msra.mxu0 0.0
        %4314 = vmatprep.subr.mxu0 0.0
        %4315 = vmatpush2.msra.mxu0 0.0
        %4316 = vmatprep.subr.mxu0 0.0
        %4317 = vmatpush2.msra.mxu0 0.0
        %4318 = vmatprep.subr.mxu0 0.0
        %4319 = vmatpush2.msra.mxu0 0.0
        %4320 = vmatprep.subr.mxu0 0.0
        %4321 = vmatpush2.msra.mxu0 0.0
        %4322 = vmatprep.subr.mxu0 0.0
        %4323 = vmatpush2.msra.mxu0 0.0
        %4324 = vmatprep.subr.mxu0 0.0
        %4325 = vmatpush2.msra.mxu0 0.0
        %4326 = vmatprep.subr.mxu0 0.0
        %4327 = vmatpush2.msra.mxu0 0.0
        %4328 = vmatprep.subr.mxu0 0.0
        %4329 = vmatpush2.msra.mxu0 0.0
        %4330 = vmatprep.subr.mxu0 0.0
        %4331 = vmatpush2.msra.mxu0 0.0
        %4332 = vmatprep.subr.mxu0 0.0
        %4333 = vmatpush2.msra.mxu0 0.0
        %4334 = vmatprep.subr.mxu0 0.0
        %4335 = vmatpush2.msra.mxu0 0.0
        %4336 = vmatprep.subr.mxu0 0.0
        %4337 = vmatpush2.msra.mxu0 0.0
        %4338 = vmatprep.subr.mxu0 0.0
        %4339 = vmatpush2.msra.mxu0 0.0
        %4340 = vmatprep.mubr.f32.mxu0 0.0
        %4341 = vmatmul.mubr.f32.gmra.mxu0 %v4112
        %v4342 = vpop.f32.mrf.mxu0
        %v4343 = vadd.f32 %v4274, %v4342
        %v4344 = vpop.f32.mrf.mxu0
        %4345 = vdwg.mxu0
        %v4346 = vld [vmem:[#allocation31] sm:$0xff]
        %v4347 = vld [vmem:[#allocation31 + $0x8] sm:$0xff]
        %v4348 = vld [vmem:[#allocation31 + $0x10] sm:$0xff]
        %v4349 = vld [vmem:[#allocation31 + $0x18] sm:$0xff]
        %v4350 = vld [vmem:[#allocation32] sm:$0x1]
        %v4351 = vmul.f32 %v4181, %v2219
        %v4352 = vmul.f32 %v4181, %v2224
        %v4353 = vmul.f32 %v4181, %v2229
        %v4354 = vmul.f32 %v4181, %v2234
        %v4356 = vsel %vm2348, %v4351, 0
        %v4359 = vsel %vm2348, %v4352, 0
        %v4362 = vsel %vm2348, %v4353, 0
        %v4365 = vsel %vm2348, %v4354, 0
        %v4368 = vsel %vm2348, %v4262, 0
        %4370 = vmatprep.subr.mxu0 0.0
        %4371 = vmatpush1.xpose.msra.mxu0 0.0
        %4372 = vmatprep.subr.mxu0 0.0
        %4373 = vmatpush1.xpose.msra.mxu0 0.0
        %4374 = vmatprep.subr.mxu0 0.0
        %4375 = vmatpush1.xpose.msra.mxu0 0.0
        %4376 = vmatprep.subr.mxu0 0.0
        %4377 = vmatpush1.xpose.msra.mxu0 0.0
        %4378 = vmatprep.subr.mxu0 0.0
        %4379 = vmatpush1.xpose.msra.mxu0 0.0
        %4380 = vmatprep.subr.mxu0 0.0
        %4381 = vmatpush1.xpose.msra.mxu0 0.0
        %4382 = vmatprep.subr.mxu0 0.0
        %4383 = vmatpush1.xpose.msra.mxu0 0.0
        %4384 = vmatprep.subr.mxu0 0.0
        %4385 = vmatpush1.xpose.msra.mxu0 0.0
        %4386 = vmatprep.subr.mxu0 0.0
        %4387 = vmatpush1.xpose.msra.mxu0 0.0
        %4388 = vmatprep.subr.mxu0 0.0
        %4389 = vmatpush1.xpose.msra.mxu0 0.0
        %4390 = vmatprep.subr.mxu0 0.0
        %4391 = vmatpush1.xpose.msra.mxu0 0.0
        %4392 = vmatprep.subr.mxu0 0.0
        %4393 = vmatpush1.xpose.msra.mxu0 0.0
        %4394 = vmatprep.subr.mxu0 0.0
        %4395 = vmatpush1.xpose.msra.mxu0 0.0
        %4396 = vmatprep.subr.mxu0 0.0
        %4397 = vmatpush1.xpose.msra.mxu0 0.0
        %4398 = vmatprep.subr.mxu0 0.0
        %4399 = vmatpush1.xpose.msra.mxu0 0.0
        %4400 = vmatprep.subr.mxu0 0.0
        %4401 = vmatpush1.xpose.msra.mxu0 %v4368
        %4402 = vmatprep.subr.mxu0 0.0
        %4403 = vmatpush2.xpose.msra.mxu0 0.0
        %4404 = vmatprep.subr.mxu0 0.0
        %4405 = vmatpush2.xpose.msra.mxu0 0.0
        %4406 = vmatprep.subr.mxu0 0.0
        %4407 = vmatpush2.xpose.msra.mxu0 0.0
        %4408 = vmatprep.subr.mxu0 0.0
        %4409 = vmatpush2.xpose.msra.mxu0 0.0
        %4410 = vmatprep.subr.mxu0 0.0
        %4411 = vmatpush2.xpose.msra.mxu0 0.0
        %4412 = vmatprep.subr.mxu0 0.0
        %4413 = vmatpush2.xpose.msra.mxu0 0.0
        %4414 = vmatprep.subr.mxu0 0.0
        %4415 = vmatpush2.xpose.msra.mxu0 0.0
        %4416 = vmatprep.subr.mxu0 0.0
        %4417 = vmatpush2.xpose.msra.mxu0 0.0
        %4418 = vmatprep.subr.mxu0 0.0
        %4419 = vmatpush2.xpose.msra.mxu0 0.0
        %4420 = vmatprep.subr.mxu0 0.0
        %4421 = vmatpush2.xpose.msra.mxu0 0.0
        %4422 = vmatprep.subr.mxu0 0.0
        %4423 = vmatpush2.xpose.msra.mxu0 0.0
        %4424 = vmatprep.subr.mxu0 0.0
        %4425 = vmatpush2.xpose.msra.mxu0 0.0
        %4426 = vmatprep.subr.mxu0 0.0
        %4427 = vmatpush2.xpose.msra.mxu0 0.0
        %4428 = vmatprep.subr.mxu0 0.0
        %4429 = vmatpush2.xpose.msra.mxu0 0.0
        %4430 = vmatprep.subr.mxu0 0.0
        %4431 = vmatpush2.xpose.msra.mxu0 0.0
        %4432 = vmatprep.subr.mxu0 0.0
        %4433 = vmatpush2.xpose.msra.mxu0 0.0
        %4434 = vmatprep.mubr.f32.mxu0 0.0
        %4435 = vmatmul.mubr.f32.gmra.mxu0 %v4356
        %v4436 = vpop.f32.mrf.mxu0
        %v4437 = vadd.f32 0.0, %v4436
        %v4438 = vpop.f32.mrf.mxu0
        %4439 = vmatprep.mubr.f32.mxu0 0.0
        %4440 = vmatmul.mubr.f32.gmra.mxu0 %v4359
        %v4441 = vpop.f32.mrf.mxu0
        %v4442 = vadd.f32 0.0, %v4441
        %v4443 = vpop.f32.mrf.mxu0
        %4444 = vmatprep.mubr.f32.mxu0 0.0
        %4445 = vmatmul.mubr.f32.gmra.mxu0 %v4362
        %v4446 = vpop.f32.mrf.mxu0
        %v4447 = vadd.f32 0.0, %v4446
        %v4448 = vpop.f32.mrf.mxu0
        %4449 = vmatprep.mubr.f32.mxu0 0.0
        %4450 = vmatmul.mubr.f32.gmra.mxu0 %v4365
        %v4451 = vpop.f32.mrf.mxu0
        %v4452 = vadd.f32 0.0, %v4451
        %v4453 = vpop.f32.mrf.mxu0
        %4454 = vdwg.mxu0
        %v4455 = vmul.f32 %v4437, 0.35355338
        %v4456 = vmul.f32 %v4442, 0.35355338
        %v4457 = vmul.f32 %v4447, 0.35355338
        %v4458 = vmul.f32 %v4452, 0.35355338
        %v4459 = vadd.f32 %v4455, %v2240
        %v4460 = vadd.f32 %v4456, %v2240
        %v4461 = vadd.f32 %v4457, %v2240
        %v4462 = vadd.f32 %v4458, %v2240
        %v4463 = vsel %vm2701, %v4459, -inf
        %4464 = vmax.xlane.f32.xlu0 %v4463
        %v4465 = vpop.xlane.xlu0 %4464
        %v4466 = vsel %vm2701, %v4460, -inf
        %4467 = vmax.xlane.f32.xlu0 %v4466
        %v4468 = vpop.xlane.xlu0 %4467
        %v4469 = vsel %vm2701, %v4461, -inf
        %4470 = vmax.xlane.f32.xlu0 %v4469
        %v4471 = vpop.xlane.xlu0 %4470
        %v4472 = vsel %vm2701, %v4462, -inf
        %4473 = vmax.xlane.f32.xlu0 %v4472
        %v4474 = vpop.xlane.xlu0 %4473
        %v4475 = vsub.f32 %v4459, %v4465
        %v4476 = vsub.f32 %v4460, %v4468
        %v4477 = vsub.f32 %v4461, %v4471
        %v4478 = vsub.f32 %v4462, %v4474
        %v4479 = vmul.f32 %v4475, 1.442695
        %v4480 = vpow.pop %v4479
        %v4481 = vmul.f32 %v4476, 1.442695
        %v4482 = vpow.pop %v4481
        %v4483 = vmul.f32 %v4477, 1.442695
        %v4484 = vpow.pop %v4483
        %v4485 = vmul.f32 %v4478, 1.442695
        %v4486 = vpow.pop %v4485
        %v4487 = vsel %vm2701, %v4480, 0.0
        %4488 = vadd.xlane.f32.xlu0 %v4487
        %v4489 = vpop.xlane.xlu0 %4488
        %v4490 = vsel %vm2701, %v4482, 0.0
        %4491 = vadd.xlane.f32.xlu0 %v4490
        %v4492 = vpop.xlane.xlu0 %4491
        %v4493 = vsel %vm2701, %v4484, 0.0
        %4494 = vadd.xlane.f32.xlu0 %v4493
        %v4495 = vpop.xlane.xlu0 %4494
        %v4496 = vsel %vm2701, %v4486, 0.0
        %4497 = vadd.xlane.f32.xlu0 %v4496
        %v4498 = vpop.xlane.xlu0 %4497
        %v4499 = vrcp.pop %v4489
        %v4500 = vmul.f32 %v4480, %v4499
        %v4501 = vrcp.pop %v4492
        %v4502 = vmul.f32 %v4482, %v4501
        %v4503 = vrcp.pop %v4495
        %v4504 = vmul.f32 %v4484, %v4503
        %v4505 = vrcp.pop %v4498
        %v4506 = vmul.f32 %v4486, %v4505
        %v4508 = vsel %vm2701, %v4500, 0
        %v4511 = vsel %vm2701, %v4502, 0
        %v4514 = vsel %vm2701, %v4504, 0
        %v4517 = vsel %vm2701, %v4506, 0
        %4519 = vmatprep.subr.mxu0 0.0
        %4520 = vmatpush1.msra.mxu0 0.0
        %4521 = vmatprep.subr.mxu0 0.0
        %4522 = vmatpush1.msra.mxu0 0.0
        %4523 = vmatprep.subr.mxu0 0.0
        %4524 = vmatpush1.msra.mxu0 0.0
        %4525 = vmatprep.subr.mxu0 0.0
        %4526 = vmatpush1.msra.mxu0 0.0
        %4527 = vmatprep.subr.mxu0 0.0
        %4528 = vmatpush1.msra.mxu0 0.0
        %4529 = vmatprep.subr.mxu0 0.0
        %4530 = vmatpush1.msra.mxu0 0.0
        %4531 = vmatprep.subr.mxu0 0.0
        %4532 = vmatpush1.msra.mxu0 0.0
        %4533 = vmatprep.subr.mxu0 0.0
        %4534 = vmatpush1.msra.mxu0 0.0
        %4535 = vmatprep.subr.mxu0 0.0
        %4536 = vmatpush1.msra.mxu0 0.0
        %4537 = vmatprep.subr.mxu0 0.0
        %4538 = vmatpush1.msra.mxu0 0.0
        %4539 = vmatprep.subr.mxu0 0.0
        %4540 = vmatpush1.msra.mxu0 0.0
        %4541 = vmatprep.subr.mxu0 0.0
        %4542 = vmatpush1.msra.mxu0 0.0
        %4543 = vmatprep.subr.mxu0 0.0
        %4544 = vmatpush1.msra.mxu0 0.0
        %4545 = vmatprep.subr.mxu0 0.0
        %4546 = vmatpush1.msra.mxu0 0.0
        %4547 = vmatprep.subr.mxu0 0.0
        %4548 = vmatpush1.msra.mxu0 0.0
        %4549 = vmatprep.subr.mxu0 0.0
        %4550 = vmatpush1.msra.mxu0 %v4343
        %4551 = vmatprep.subr.mxu0 0.0
        %4552 = vmatpush2.msra.mxu0 0.0
        %4553 = vmatprep.subr.mxu0 0.0
        %4554 = vmatpush2.msra.mxu0 0.0
        %4555 = vmatprep.subr.mxu0 0.0
        %4556 = vmatpush2.msra.mxu0 0.0
        %4557 = vmatprep.subr.mxu0 0.0
        %4558 = vmatpush2.msra.mxu0 0.0
        %4559 = vmatprep.subr.mxu0 0.0
        %4560 = vmatpush2.msra.mxu0 0.0
        %4561 = vmatprep.subr.mxu0 0.0
        %4562 = vmatpush2.msra.mxu0 0.0
        %4563 = vmatprep.subr.mxu0 0.0
        %4564 = vmatpush2.msra.mxu0 0.0
        %4565 = vmatprep.subr.mxu0 0.0
        %4566 = vmatpush2.msra.mxu0 0.0
        %4567 = vmatprep.subr.mxu0 0.0
        %4568 = vmatpush2.msra.mxu0 0.0
        %4569 = vmatprep.subr.mxu0 0.0
        %4570 = vmatpush2.msra.mxu0 0.0
        %4571 = vmatprep.subr.mxu0 0.0
        %4572 = vmatpush2.msra.mxu0 0.0
        %4573 = vmatprep.subr.mxu0 0.0
        %4574 = vmatpush2.msra.mxu0 0.0
        %4575 = vmatprep.subr.mxu0 0.0
        %4576 = vmatpush2.msra.mxu0 0.0
        %4577 = vmatprep.subr.mxu0 0.0
        %4578 = vmatpush2.msra.mxu0 0.0
        %4579 = vmatprep.subr.mxu0 0.0
        %4580 = vmatpush2.msra.mxu0 0.0
        %4581 = vmatprep.subr.mxu0 0.0
        %4582 = vmatpush2.msra.mxu0 0.0
        %4583 = vmatprep.mubr.f32.mxu0 0.0
        %4584 = vmatmul.mubr.f32.gmra.mxu0 %v4508
        %v4585 = vpop.f32.mrf.mxu0
        %v4586 = vadd.f32 0.0, %v4585
        %v4587 = vpop.f32.mrf.mxu0
        %4588 = vmatprep.mubr.f32.mxu0 0.0
        %4589 = vmatmul.mubr.f32.gmra.mxu0 %v4511
        %v4590 = vpop.f32.mrf.mxu0
        %v4591 = vadd.f32 0.0, %v4590
        %v4592 = vpop.f32.mrf.mxu0
        %4593 = vmatprep.mubr.f32.mxu0 0.0
        %4594 = vmatmul.mubr.f32.gmra.mxu0 %v4514
        %v4595 = vpop.f32.mrf.mxu0
        %v4596 = vadd.f32 0.0, %v4595
        %v4597 = vpop.f32.mrf.mxu0
        %4598 = vmatprep.mubr.f32.mxu0 0.0
        %4599 = vmatmul.mubr.f32.gmra.mxu0 %v4517
        %v4600 = vpop.f32.mrf.mxu0
        %v4601 = vadd.f32 0.0, %v4600
        %v4602 = vpop.f32.mrf.mxu0
        %4603 = vdwg.mxu0
        %v4604 = vmul.f32 %v4586, %v2219
        %v4605 = vmul.f32 %v4591, %v2224
        %v4606 = vmul.f32 %v4596, %v2229
        %v4607 = vmul.f32 %v4601, %v2234
        %v4608 = vadd.f32 %v4604, %v4605
        %v4609 = vadd.f32 %v4608, %v4606
        %v4610 = vadd.f32 %v4609, %v4607
        %v4612 = vlaneseq
        %v4613 = vshrl.u32 %v4612, 7
        %v4614 = vsub.s32 0, %v4613
        %v4615 = vrot.slane %v4350, %v4614
        %v4618 = vsel %vm2348, %v4610, 0
        %4620 = vmatprep.subr.mxu0 0.0
        %4621 = vmatpush1.msra.mxu0 0.0
        %4622 = vmatprep.subr.mxu0 0.0
        %4623 = vmatpush1.msra.mxu0 0.0
        %4624 = vmatprep.subr.mxu0 0.0
        %4625 = vmatpush1.msra.mxu0 0.0
        %4626 = vmatprep.subr.mxu0 0.0
        %4627 = vmatpush1.msra.mxu0 0.0
        %4628 = vmatprep.subr.mxu0 0.0
        %4629 = vmatpush1.msra.mxu0 0.0
        %4630 = vmatprep.subr.mxu0 0.0
        %4631 = vmatpush1.msra.mxu0 0.0
        %4632 = vmatprep.subr.mxu0 0.0
        %4633 = vmatpush1.msra.mxu0 0.0
        %4634 = vmatprep.subr.mxu0 0.0
        %4635 = vmatpush1.msra.mxu0 0.0
        %4636 = vmatprep.subr.mxu0 0.0
        %4637 = vmatpush1.msra.mxu0 0.0
        %4638 = vmatprep.subr.mxu0 0.0
        %4639 = vmatpush1.msra.mxu0 0.0
        %4640 = vmatprep.subr.mxu0 0.0
        %4641 = vmatpush1.msra.mxu0 0.0
        %4642 = vmatprep.subr.mxu0 0.0
        %4643 = vmatpush1.msra.mxu0 0.0
        %4644 = vmatprep.subr.mxu0 0.0
        %4645 = vmatpush1.msra.mxu0 %v4349
        %4646 = vmatprep.subr.mxu0 0.0
        %4647 = vmatpush1.msra.mxu0 %v4348
        %4648 = vmatprep.subr.mxu0 0.0
        %4649 = vmatpush1.msra.mxu0 %v4347
        %4650 = vmatprep.subr.mxu0 0.0
        %4651 = vmatpush1.msra.mxu0 %v4346
        %4652 = vmatprep.subr.mxu0 0.0
        %4653 = vmatpush2.msra.mxu0 0.0
        %4654 = vmatprep.subr.mxu0 0.0
        %4655 = vmatpush2.msra.mxu0 0.0
        %4656 = vmatprep.subr.mxu0 0.0
        %4657 = vmatpush2.msra.mxu0 0.0
        %4658 = vmatprep.subr.mxu0 0.0
        %4659 = vmatpush2.msra.mxu0 0.0
        %4660 = vmatprep.subr.mxu0 0.0
        %4661 = vmatpush2.msra.mxu0 0.0
        %4662 = vmatprep.subr.mxu0 0.0
        %4663 = vmatpush2.msra.mxu0 0.0
        %4664 = vmatprep.subr.mxu0 0.0
        %4665 = vmatpush2.msra.mxu0 0.0
        %4666 = vmatprep.subr.mxu0 0.0
        %4667 = vmatpush2.msra.mxu0 0.0
        %4668 = vmatprep.subr.mxu0 0.0
        %4669 = vmatpush2.msra.mxu0 0.0
        %4670 = vmatprep.subr.mxu0 0.0
        %4671 = vmatpush2.msra.mxu0 0.0
        %4672 = vmatprep.subr.mxu0 0.0
        %4673 = vmatpush2.msra.mxu0 0.0
        %4674 = vmatprep.subr.mxu0 0.0
        %4675 = vmatpush2.msra.mxu0 0.0
        %4676 = vmatprep.subr.mxu0 0.0
        %4677 = vmatpush2.msra.mxu0 0.0
        %4678 = vmatprep.subr.mxu0 0.0
        %4679 = vmatpush2.msra.mxu0 0.0
        %4680 = vmatprep.subr.mxu0 0.0
        %4681 = vmatpush2.msra.mxu0 0.0
        %4682 = vmatprep.subr.mxu0 0.0
        %4683 = vmatpush2.msra.mxu0 0.0
        %4684 = vmatprep.mubr.f32.mxu0 0.0
        %4685 = vmatmul.mubr.f32.gmra.mxu0 %v4618
        %v4686 = vpop.f32.mrf.mxu0
        %v4687 = vadd.f32 %v4615, %v4686
        %v4688 = vpop.f32.mrf.mxu0
        %4689 = vdwg.mxu0
        %v4690 = vadd.f32 %v4099, %v4687
        %v4691 = vld [vmem:[#allocation52] sm:$0x1]
        %v4692 = vld [vmem:[#allocation53] sm:$0x1]
        %v4693 = vsel %vm2348, %v4690, 0.0
        %4694 = vadd.xlane.f32.xlu0 %v4693
        %v4695 = vpop.xlane.xlu0 %4694
        %v4696 = vmul.f32 %v4695, %v2935
        %v4697 = vsub.f32 %v4690, %v4696
        %v4698 = vmul.f32 %v4697, %v4697
        %v4699 = vsel %vm2348, %v4698, 0.0
        %4700 = vadd.xlane.f32.xlu0 %v4699
        %v4701 = vpop.xlane.xlu0 %4700
        %v4702 = vmul.f32 %v4701, %v2935
        %v4703 = vadd.f32 %v4702, 1e-05
        %v4704 = vrsqrt.pop %v4703
        %v4705 = vmul.f32 %v4697, %v4704
        %v4707 = vlaneseq
        %v4708 = vshrl.u32 %v4707, 7
        %v4709 = vsub.s32 0, %v4708
        %v4710 = vrot.slane %v4691, %v4709
        %v4712 = vmul.f32 %v4705, %v4710
        %v4714 = vlaneseq
        %v4715 = vshrl.u32 %v4714, 7
        %v4716 = vsub.s32 0, %v4715
        %v4717 = vrot.slane %v4692, %v4716
        %v4719 = vadd.f32 %v4712, %v4717
        %v4720 = vld [vmem:[#allocation34] sm:$0xff]
        %v4721 = vld [vmem:[#allocation34 + $0x8] sm:$0xff]
        %v4722 = vld [vmem:[#allocation34 + $0x10] sm:$0xff]
        %v4723 = vld [vmem:[#allocation34 + $0x18] sm:$0xff]
        %v4724 = vld [vmem:[#allocation35] sm:$0x1]
        %v4726 = vlaneseq
        %v4727 = vshrl.u32 %v4726, 7
        %v4728 = vsub.s32 0, %v4727
        %v4729 = vrot.slane %v4724, %v4728
        %v4732 = vsel %vm2348, %v4719, 0
        %4734 = vmatprep.subr.mxu0 0.0
        %4735 = vmatpush1.msra.mxu0 0.0
        %4736 = vmatprep.subr.mxu0 0.0
        %4737 = vmatpush1.msra.mxu0 0.0
        %4738 = vmatprep.subr.mxu0 0.0
        %4739 = vmatpush1.msra.mxu0 0.0
        %4740 = vmatprep.subr.mxu0 0.0
        %4741 = vmatpush1.msra.mxu0 0.0
        %4742 = vmatprep.subr.mxu0 0.0
        %4743 = vmatpush1.msra.mxu0 0.0
        %4744 = vmatprep.subr.mxu0 0.0
        %4745 = vmatpush1.msra.mxu0 0.0
        %4746 = vmatprep.subr.mxu0 0.0
        %4747 = vmatpush1.msra.mxu0 0.0
        %4748 = vmatprep.subr.mxu0 0.0
        %4749 = vmatpush1.msra.mxu0 0.0
        %4750 = vmatprep.subr.mxu0 0.0
        %4751 = vmatpush1.msra.mxu0 0.0
        %4752 = vmatprep.subr.mxu0 0.0
        %4753 = vmatpush1.msra.mxu0 0.0
        %4754 = vmatprep.subr.mxu0 0.0
        %4755 = vmatpush1.msra.mxu0 0.0
        %4756 = vmatprep.subr.mxu0 0.0
        %4757 = vmatpush1.msra.mxu0 0.0
        %4758 = vmatprep.subr.mxu0 0.0
        %4759 = vmatpush1.msra.mxu0 %v4723
        %4760 = vmatprep.subr.mxu0 0.0
        %4761 = vmatpush1.msra.mxu0 %v4722
        %4762 = vmatprep.subr.mxu0 0.0
        %4763 = vmatpush1.msra.mxu0 %v4721
        %4764 = vmatprep.subr.mxu0 0.0
        %4765 = vmatpush1.msra.mxu0 %v4720
        %4766 = vmatprep.subr.mxu0 0.0
        %4767 = vmatpush2.msra.mxu0 0.0
        %4768 = vmatprep.subr.mxu0 0.0
        %4769 = vmatpush2.msra.mxu0 0.0
        %4770 = vmatprep.subr.mxu0 0.0
        %4771 = vmatpush2.msra.mxu0 0.0
        %4772 = vmatprep.subr.mxu0 0.0
        %4773 = vmatpush2.msra.mxu0 0.0
        %4774 = vmatprep.subr.mxu0 0.0
        %4775 = vmatpush2.msra.mxu0 0.0
        %4776 = vmatprep.subr.mxu0 0.0
        %4777 = vmatpush2.msra.mxu0 0.0
        %4778 = vmatprep.subr.mxu0 0.0
        %4779 = vmatpush2.msra.mxu0 0.0
        %4780 = vmatprep.subr.mxu0 0.0
        %4781 = vmatpush2.msra.mxu0 0.0
        %4782 = vmatprep.subr.mxu0 0.0
        %4783 = vmatpush2.msra.mxu0 0.0
        %4784 = vmatprep.subr.mxu0 0.0
        %4785 = vmatpush2.msra.mxu0 0.0
        %4786 = vmatprep.subr.mxu0 0.0
        %4787 = vmatpush2.msra.mxu0 0.0
        %4788 = vmatprep.subr.mxu0 0.0
        %4789 = vmatpush2.msra.mxu0 0.0
        %4790 = vmatprep.subr.mxu0 0.0
        %4791 = vmatpush2.msra.mxu0 0.0
        %4792 = vmatprep.subr.mxu0 0.0
        %4793 = vmatpush2.msra.mxu0 0.0
        %4794 = vmatprep.subr.mxu0 0.0
        %4795 = vmatpush2.msra.mxu0 0.0
        %4796 = vmatprep.subr.mxu0 0.0
        %4797 = vmatpush2.msra.mxu0 0.0
        %4798 = vmatprep.mubr.f32.mxu0 0.0
        %4799 = vmatmul.mubr.f32.gmra.mxu0 %v4732
        %v4800 = vpop.f32.mrf.mxu0
        %v4801 = vadd.f32 %v4729, %v4800
        %v4802 = vpop.f32.mrf.mxu0
        %4803 = vdwg.mxu0
        %v4804 = vld [vmem:[#allocation37] sm:$0xff]
        %v4805 = vld [vmem:[#allocation37 + $0x8] sm:$0xff]
        %v4806 = vld [vmem:[#allocation37 + $0x10] sm:$0xff]
        %v4807 = vld [vmem:[#allocation37 + $0x18] sm:$0xff]
        %v4808 = vld [vmem:[#allocation38] sm:$0x1]
        %v4810 = vlaneseq
        %v4811 = vshrl.u32 %v4810, 7
        %v4812 = vsub.s32 0, %v4811
        %v4813 = vrot.slane %v4808, %v4812
        %v4816 = vsel %vm2348, %v4022, 0
        %4818 = vmatprep.subr.mxu0 0.0
        %4819 = vmatpush1.msra.mxu0 0.0
        %4820 = vmatprep.subr.mxu0 0.0
        %4821 = vmatpush1.msra.mxu0 0.0
        %4822 = vmatprep.subr.mxu0 0.0
        %4823 = vmatpush1.msra.mxu0 0.0
        %4824 = vmatprep.subr.mxu0 0.0
        %4825 = vmatpush1.msra.mxu0 0.0
        %4826 = vmatprep.subr.mxu0 0.0
        %4827 = vmatpush1.msra.mxu0 0.0
        %4828 = vmatprep.subr.mxu0 0.0
        %4829 = vmatpush1.msra.mxu0 0.0
        %4830 = vmatprep.subr.mxu0 0.0
        %4831 = vmatpush1.msra.mxu0 0.0
        %4832 = vmatprep.subr.mxu0 0.0
        %4833 = vmatpush1.msra.mxu0 0.0
        %4834 = vmatprep.subr.mxu0 0.0
        %4835 = vmatpush1.msra.mxu0 0.0
        %4836 = vmatprep.subr.mxu0 0.0
        %4837 = vmatpush1.msra.mxu0 0.0
        %4838 = vmatprep.subr.mxu0 0.0
        %4839 = vmatpush1.msra.mxu0 0.0
        %4840 = vmatprep.subr.mxu0 0.0
        %4841 = vmatpush1.msra.mxu0 0.0
        %4842 = vmatprep.subr.mxu0 0.0
        %4843 = vmatpush1.msra.mxu0 %v4807
        %4844 = vmatprep.subr.mxu0 0.0
        %4845 = vmatpush1.msra.mxu0 %v4806
        %4846 = vmatprep.subr.mxu0 0.0
        %4847 = vmatpush1.msra.mxu0 %v4805
        %4848 = vmatprep.subr.mxu0 0.0
        %4849 = vmatpush1.msra.mxu0 %v4804
        %4850 = vmatprep.subr.mxu0 0.0
        %4851 = vmatpush2.msra.mxu0 0.0
        %4852 = vmatprep.subr.mxu0 0.0
        %4853 = vmatpush2.msra.mxu0 0.0
        %4854 = vmatprep.subr.mxu0 0.0
        %4855 = vmatpush2.msra.mxu0 0.0
        %4856 = vmatprep.subr.mxu0 0.0
        %4857 = vmatpush2.msra.mxu0 0.0
        %4858 = vmatprep.subr.mxu0 0.0
        %4859 = vmatpush2.msra.mxu0 0.0
        %4860 = vmatprep.subr.mxu0 0.0
        %4861 = vmatpush2.msra.mxu0 0.0
        %4862 = vmatprep.subr.mxu0 0.0
        %4863 = vmatpush2.msra.mxu0 0.0
        %4864 = vmatprep.subr.mxu0 0.0
        %4865 = vmatpush2.msra.mxu0 0.0
        %4866 = vmatprep.subr.mxu0 0.0
        %4867 = vmatpush2.msra.mxu0 0.0
        %4868 = vmatprep.subr.mxu0 0.0
        %4869 = vmatpush2.msra.mxu0 0.0
        %4870 = vmatprep.subr.mxu0 0.0
        %4871 = vmatpush2.msra.mxu0 0.0
        %4872 = vmatprep.subr.mxu0 0.0
        %4873 = vmatpush2.msra.mxu0 0.0
        %4874 = vmatprep.subr.mxu0 0.0
        %4875 = vmatpush2.msra.mxu0 0.0
        %4876 = vmatprep.subr.mxu0 0.0
        %4877 = vmatpush2.msra.mxu0 0.0
        %4878 = vmatprep.subr.mxu0 0.0
        %4879 = vmatpush2.msra.mxu0 0.0
        %4880 = vmatprep.subr.mxu0 0.0
        %4881 = vmatpush2.msra.mxu0 0.0
        %4882 = vmatprep.mubr.f32.mxu0 0.0
        %4883 = vmatmul.mubr.f32.gmra.mxu0 %v4816
        %v4884 = vpop.f32.mrf.mxu0
        %v4885 = vadd.f32 %v4813, %v4884
        %v4886 = vpop.f32.mrf.mxu0
        %4887 = vdwg.mxu0
        %v4888 = vld [vmem:[#allocation40] sm:$0xff]
        %v4889 = vld [vmem:[#allocation40 + $0x8] sm:$0xff]
        %v4890 = vld [vmem:[#allocation40 + $0x10] sm:$0xff]
        %v4891 = vld [vmem:[#allocation40 + $0x18] sm:$0xff]
        %v4892 = vld [vmem:[#allocation41] sm:$0x1]
        %v4894 = vlaneseq
        %v4895 = vshrl.u32 %v4894, 7
        %v4896 = vsub.s32 0, %v4895
        %v4897 = vrot.slane %v4892, %v4896
        %4899 = vmatprep.subr.mxu0 0.0
        %4900 = vmatpush1.msra.mxu0 0.0
        %4901 = vmatprep.subr.mxu0 0.0
        %4902 = vmatpush1.msra.mxu0 0.0
        %4903 = vmatprep.subr.mxu0 0.0
        %4904 = vmatpush1.msra.mxu0 0.0
        %4905 = vmatprep.subr.mxu0 0.0
        %4906 = vmatpush1.msra.mxu0 0.0
        %4907 = vmatprep.subr.mxu0 0.0
        %4908 = vmatpush1.msra.mxu0 0.0
        %4909 = vmatprep.subr.mxu0 0.0
        %4910 = vmatpush1.msra.mxu0 0.0
        %4911 = vmatprep.subr.mxu0 0.0
        %4912 = vmatpush1.msra.mxu0 0.0
        %4913 = vmatprep.subr.mxu0 0.0
        %4914 = vmatpush1.msra.mxu0 0.0
        %4915 = vmatprep.subr.mxu0 0.0
        %4916 = vmatpush1.msra.mxu0 0.0
        %4917 = vmatprep.subr.mxu0 0.0
        %4918 = vmatpush1.msra.mxu0 0.0
        %4919 = vmatprep.subr.mxu0 0.0
        %4920 = vmatpush1.msra.mxu0 0.0
        %4921 = vmatprep.subr.mxu0 0.0
        %4922 = vmatpush1.msra.mxu0 0.0
        %4923 = vmatprep.subr.mxu0 0.0
        %4924 = vmatpush1.msra.mxu0 %v4891
        %4925 = vmatprep.subr.mxu0 0.0
        %4926 = vmatpush1.msra.mxu0 %v4890
        %4927 = vmatprep.subr.mxu0 0.0
        %4928 = vmatpush1.msra.mxu0 %v4889
        %4929 = vmatprep.subr.mxu0 0.0
        %4930 = vmatpush1.msra.mxu0 %v4888
        %4931 = vmatprep.subr.mxu0 0.0
        %4932 = vmatpush2.msra.mxu0 0.0
        %4933 = vmatprep.subr.mxu0 0.0
        %4934 = vmatpush2.msra.mxu0 0.0
        %4935 = vmatprep.subr.mxu0 0.0
        %4936 = vmatpush2.msra.mxu0 0.0
        %4937 = vmatprep.subr.mxu0 0.0
        %4938 = vmatpush2.msra.mxu0 0.0
        %4939 = vmatprep.subr.mxu0 0.0
        %4940 = vmatpush2.msra.mxu0 0.0
        %4941 = vmatprep.subr.mxu0 0.0
        %4942 = vmatpush2.msra.mxu0 0.0
        %4943 = vmatprep.subr.mxu0 0.0
        %4944 = vmatpush2.msra.mxu0 0.0
        %4945 = vmatprep.subr.mxu0 0.0
        %4946 = vmatpush2.msra.mxu0 0.0
        %4947 = vmatprep.subr.mxu0 0.0
        %4948 = vmatpush2.msra.mxu0 0.0
        %4949 = vmatprep.subr.mxu0 0.0
        %4950 = vmatpush2.msra.mxu0 0.0
        %4951 = vmatprep.subr.mxu0 0.0
        %4952 = vmatpush2.msra.mxu0 0.0
        %4953 = vmatprep.subr.mxu0 0.0
        %4954 = vmatpush2.msra.mxu0 0.0
        %4955 = vmatprep.subr.mxu0 0.0
        %4956 = vmatpush2.msra.mxu0 0.0
        %4957 = vmatprep.subr.mxu0 0.0
        %4958 = vmatpush2.msra.mxu0 0.0
        %4959 = vmatprep.subr.mxu0 0.0
        %4960 = vmatpush2.msra.mxu0 0.0
        %4961 = vmatprep.subr.mxu0 0.0
        %4962 = vmatpush2.msra.mxu0 0.0
        %4963 = vmatprep.mubr.f32.mxu0 0.0
        %4964 = vmatmul.mubr.f32.gmra.mxu0 %v4816
        %v4965 = vpop.f32.mrf.mxu0
        %v4966 = vadd.f32 %v4897, %v4965
        %v4967 = vpop.f32.mrf.mxu0
        %4968 = vdwg.mxu0
        %v4969 = vld [vmem:[#allocation43] sm:$0xff]
        %v4970 = vld [vmem:[#allocation43 + $0x8] sm:$0xff]
        %v4971 = vld [vmem:[#allocation43 + $0x10] sm:$0xff]
        %v4972 = vld [vmem:[#allocation43 + $0x18] sm:$0xff]
        %v4973 = vld [vmem:[#allocation44] sm:$0x1]
        %v4974 = vmul.f32 %v4801, %v2219
        %v4975 = vmul.f32 %v4801, %v2224
        %v4976 = vmul.f32 %v4801, %v2229
        %v4977 = vmul.f32 %v4801, %v2234
        %v4979 = vsel %vm2348, %v4974, 0
        %v4982 = vsel %vm2348, %v4975, 0
        %v4985 = vsel %vm2348, %v4976, 0
        %v4988 = vsel %vm2348, %v4977, 0
        %v4991 = vsel %vm2348, %v4885, 0
        %4993 = vmatprep.subr.mxu0 0.0
        %4994 = vmatpush1.xpose.msra.mxu0 0.0
        %4995 = vmatprep.subr.mxu0 0.0
        %4996 = vmatpush1.xpose.msra.mxu0 0.0
        %4997 = vmatprep.subr.mxu0 0.0
        %4998 = vmatpush1.xpose.msra.mxu0 0.0
        %4999 = vmatprep.subr.mxu0 0.0
        %5000 = vmatpush1.xpose.msra.mxu0 0.0
        %5001 = vmatprep.subr.mxu0 0.0
        %5002 = vmatpush1.xpose.msra.mxu0 0.0
        %5003 = vmatprep.subr.mxu0 0.0
        %5004 = vmatpush1.xpose.msra.mxu0 0.0
        %5005 = vmatprep.subr.mxu0 0.0
        %5006 = vmatpush1.xpose.msra.mxu0 0.0
        %5007 = vmatprep.subr.mxu0 0.0
        %5008 = vmatpush1.xpose.msra.mxu0 0.0
        %5009 = vmatprep.subr.mxu0 0.0
        %5010 = vmatpush1.xpose.msra.mxu0 0.0
        %5011 = vmatprep.subr.mxu0 0.0
        %5012 = vmatpush1.xpose.msra.mxu0 0.0
        %5013 = vmatprep.subr.mxu0 0.0
        %5014 = vmatpush1.xpose.msra.mxu0 0.0
        %5015 = vmatprep.subr.mxu0 0.0
        %5016 = vmatpush1.xpose.msra.mxu0 0.0
        %5017 = vmatprep.subr.mxu0 0.0
        %5018 = vmatpush1.xpose.msra.mxu0 0.0
        %5019 = vmatprep.subr.mxu0 0.0
        %5020 = vmatpush1.xpose.msra.mxu0 0.0
        %5021 = vmatprep.subr.mxu0 0.0
        %5022 = vmatpush1.xpose.msra.mxu0 0.0
        %5023 = vmatprep.subr.mxu0 0.0
        %5024 = vmatpush1.xpose.msra.mxu0 %v4991
        %5025 = vmatprep.subr.mxu0 0.0
        %5026 = vmatpush2.xpose.msra.mxu0 0.0
        %5027 = vmatprep.subr.mxu0 0.0
        %5028 = vmatpush2.xpose.msra.mxu0 0.0
        %5029 = vmatprep.subr.mxu0 0.0
        %5030 = vmatpush2.xpose.msra.mxu0 0.0
        %5031 = vmatprep.subr.mxu0 0.0
        %5032 = vmatpush2.xpose.msra.mxu0 0.0
        %5033 = vmatprep.subr.mxu0 0.0
        %5034 = vmatpush2.xpose.msra.mxu0 0.0
        %5035 = vmatprep.subr.mxu0 0.0
        %5036 = vmatpush2.xpose.msra.mxu0 0.0
        %5037 = vmatprep.subr.mxu0 0.0
        %5038 = vmatpush2.xpose.msra.mxu0 0.0
        %5039 = vmatprep.subr.mxu0 0.0
        %5040 = vmatpush2.xpose.msra.mxu0 0.0
        %5041 = vmatprep.subr.mxu0 0.0
        %5042 = vmatpush2.xpose.msra.mxu0 0.0
        %5043 = vmatprep.subr.mxu0 0.0
        %5044 = vmatpush2.xpose.msra.mxu0 0.0
        %5045 = vmatprep.subr.mxu0 0.0
        %5046 = vmatpush2.xpose.msra.mxu0 0.0
        %5047 = vmatprep.subr.mxu0 0.0
        %5048 = vmatpush2.xpose.msra.mxu0 0.0
        %5049 = vmatprep.subr.mxu0 0.0
        %5050 = vmatpush2.xpose.msra.mxu0 0.0
        %5051 = vmatprep.subr.mxu0 0.0
        %5052 = vmatpush2.xpose.msra.mxu0 0.0
        %5053 = vmatprep.subr.mxu0 0.0
        %5054 = vmatpush2.xpose.msra.mxu0 0.0
        %5055 = vmatprep.subr.mxu0 0.0
        %5056 = vmatpush2.xpose.msra.mxu0 0.0
        %5057 = vmatprep.mubr.f32.mxu0 0.0
        %5058 = vmatmul.mubr.f32.gmra.mxu0 %v4979
        %v5059 = vpop.f32.mrf.mxu0
        %v5060 = vadd.f32 0.0, %v5059
        %v5061 = vpop.f32.mrf.mxu0
        %5062 = vmatprep.mubr.f32.mxu0 0.0
        %5063 = vmatmul.mubr.f32.gmra.mxu0 %v4982
        %v5064 = vpop.f32.mrf.mxu0
        %v5065 = vadd.f32 0.0, %v5064
        %v5066 = vpop.f32.mrf.mxu0
        %5067 = vmatprep.mubr.f32.mxu0 0.0
        %5068 = vmatmul.mubr.f32.gmra.mxu0 %v4985
        %v5069 = vpop.f32.mrf.mxu0
        %v5070 = vadd.f32 0.0, %v5069
        %v5071 = vpop.f32.mrf.mxu0
        %5072 = vmatprep.mubr.f32.mxu0 0.0
        %5073 = vmatmul.mubr.f32.gmra.mxu0 %v4988
        %v5074 = vpop.f32.mrf.mxu0
        %v5075 = vadd.f32 0.0, %v5074
        %v5076 = vpop.f32.mrf.mxu0
        %5077 = vdwg.mxu0
        %v5078 = vmul.f32 %v5060, 0.35355338
        %v5079 = vmul.f32 %v5065, 0.35355338
        %v5080 = vmul.f32 %v5070, 0.35355338
        %v5081 = vmul.f32 %v5075, 0.35355338
        %v5082 = vadd.f32 %v5078, %v2236
        %v5083 = vadd.f32 %v5079, %v2236
        %v5084 = vadd.f32 %v5080, %v2236
        %v5085 = vadd.f32 %v5081, %v2236
        %v5086 = vsel %vm2701, %v5082, -inf
        %5087 = vmax.xlane.f32.xlu0 %v5086
        %v5088 = vpop.xlane.xlu0 %5087
        %v5089 = vsel %vm2701, %v5083, -inf
        %5090 = vmax.xlane.f32.xlu0 %v5089
        %v5091 = vpop.xlane.xlu0 %5090
        %v5092 = vsel %vm2701, %v5084, -inf
        %5093 = vmax.xlane.f32.xlu0 %v5092
        %v5094 = vpop.xlane.xlu0 %5093
        %v5095 = vsel %vm2701, %v5085, -inf
        %5096 = vmax.xlane.f32.xlu0 %v5095
        %v5097 = vpop.xlane.xlu0 %5096
        %v5098 = vsub.f32 %v5082, %v5088
        %v5099 = vsub.f32 %v5083, %v5091
        %v5100 = vsub.f32 %v5084, %v5094
        %v5101 = vsub.f32 %v5085, %v5097
        %v5102 = vmul.f32 %v5098, 1.442695
        %v5103 = vpow.pop %v5102
        %v5104 = vmul.f32 %v5099, 1.442695
        %v5105 = vpow.pop %v5104
        %v5106 = vmul.f32 %v5100, 1.442695
        %v5107 = vpow.pop %v5106
        %v5108 = vmul.f32 %v5101, 1.442695
        %v5109 = vpow.pop %v5108
        %v5110 = vsel %vm2701, %v5103, 0.0
        %5111 = vadd.xlane.f32.xlu0 %v5110
        %v5112 = vpop.xlane.xlu0 %5111
        %v5113 = vsel %vm2701, %v5105, 0.0
        %5114 = vadd.xlane.f32.xlu0 %v5113
        %v5115 = vpop.xlane.xlu0 %5114
        %v5116 = vsel %vm2701, %v5107, 0.0
        %5117 = vadd.xlane.f32.xlu0 %v5116
        %v5118 = vpop.xlane.xlu0 %5117
        %v5119 = vsel %vm2701, %v5109, 0.0
        %5120 = vadd.xlane.f32.xlu0 %v5119
        %v5121 = vpop.xlane.xlu0 %5120
        %v5122 = vrcp.pop %v5112
        %v5123 = vmul.f32 %v5103, %v5122
        %v5124 = vrcp.pop %v5115
        %v5125 = vmul.f32 %v5105, %v5124
        %v5126 = vrcp.pop %v5118
        %v5127 = vmul.f32 %v5107, %v5126
        %v5128 = vrcp.pop %v5121
        %v5129 = vmul.f32 %v5109, %v5128
        %v5131 = vsel %vm2701, %v5123, 0
        %v5134 = vsel %vm2701, %v5125, 0
        %v5137 = vsel %vm2701, %v5127, 0
        %v5140 = vsel %vm2701, %v5129, 0
        %5142 = vmatprep.subr.mxu0 0.0
        %5143 = vmatpush1.msra.mxu0 0.0
        %5144 = vmatprep.subr.mxu0 0.0
        %5145 = vmatpush1.msra.mxu0 0.0
        %5146 = vmatprep.subr.mxu0 0.0
        %5147 = vmatpush1.msra.mxu0 0.0
        %5148 = vmatprep.subr.mxu0 0.0
        %5149 = vmatpush1.msra.mxu0 0.0
        %5150 = vmatprep.subr.mxu0 0.0
        %5151 = vmatpush1.msra.mxu0 0.0
        %5152 = vmatprep.subr.mxu0 0.0
        %5153 = vmatpush1.msra.mxu0 0.0
        %5154 = vmatprep.subr.mxu0 0.0
        %5155 = vmatpush1.msra.mxu0 0.0
        %5156 = vmatprep.subr.mxu0 0.0
        %5157 = vmatpush1.msra.mxu0 0.0
        %5158 = vmatprep.subr.mxu0 0.0
        %5159 = vmatpush1.msra.mxu0 0.0
        %5160 = vmatprep.subr.mxu0 0.0
        %5161 = vmatpush1.msra.mxu0 0.0
        %5162 = vmatprep.subr.mxu0 0.0
        %5163 = vmatpush1.msra.mxu0 0.0
        %5164 = vmatprep.subr.mxu0 0.0
        %5165 = vmatpush1.msra.mxu0 0.0
        %5166 = vmatprep.subr.mxu0 0.0
        %5167 = vmatpush1.msra.mxu0 0.0
        %5168 = vmatprep.subr.mxu0 0.0
        %5169 = vmatpush1.msra.mxu0 0.0
        %5170 = vmatprep.subr.mxu0 0.0
        %5171 = vmatpush1.msra.mxu0 0.0
        %5172 = vmatprep.subr.mxu0 0.0
        %5173 = vmatpush1.msra.mxu0 %v4966
        %5174 = vmatprep.subr.mxu0 0.0
        %5175 = vmatpush2.msra.mxu0 0.0
        %5176 = vmatprep.subr.mxu0 0.0
        %5177 = vmatpush2.msra.mxu0 0.0
        %5178 = vmatprep.subr.mxu0 0.0
        %5179 = vmatpush2.msra.mxu0 0.0
        %5180 = vmatprep.subr.mxu0 0.0
        %5181 = vmatpush2.msra.mxu0 0.0
        %5182 = vmatprep.subr.mxu0 0.0
        %5183 = vmatpush2.msra.mxu0 0.0
        %5184 = vmatprep.subr.mxu0 0.0
        %5185 = vmatpush2.msra.mxu0 0.0
        %5186 = vmatprep.subr.mxu0 0.0
        %5187 = vmatpush2.msra.mxu0 0.0
        %5188 = vmatprep.subr.mxu0 0.0
        %5189 = vmatpush2.msra.mxu0 0.0
        %5190 = vmatprep.subr.mxu0 0.0
        %5191 = vmatpush2.msra.mxu0 0.0
        %5192 = vmatprep.subr.mxu0 0.0
        %5193 = vmatpush2.msra.mxu0 0.0
        %5194 = vmatprep.subr.mxu0 0.0
        %5195 = vmatpush2.msra.mxu0 0.0
        %5196 = vmatprep.subr.mxu0 0.0
        %5197 = vmatpush2.msra.mxu0 0.0
        %5198 = vmatprep.subr.mxu0 0.0
        %5199 = vmatpush2.msra.mxu0 0.0
        %5200 = vmatprep.subr.mxu0 0.0
        %5201 = vmatpush2.msra.mxu0 0.0
        %5202 = vmatprep.subr.mxu0 0.0
        %5203 = vmatpush2.msra.mxu0 0.0
        %5204 = vmatprep.subr.mxu0 0.0
        %5205 = vmatpush2.msra.mxu0 0.0
        %5206 = vmatprep.mubr.f32.mxu0 0.0
        %5207 = vmatmul.mubr.f32.gmra.mxu0 %v5131
        %v5208 = vpop.f32.mrf.mxu0
        %v5209 = vadd.f32 0.0, %v5208
        %v5210 = vpop.f32.mrf.mxu0
        %5211 = vmatprep.mubr.f32.mxu0 0.0
        %5212 = vmatmul.mubr.f32.gmra.mxu0 %v5134
        %v5213 = vpop.f32.mrf.mxu0
        %v5214 = vadd.f32 0.0, %v5213
        %v5215 = vpop.f32.mrf.mxu0
        %5216 = vmatprep.mubr.f32.mxu0 0.0
        %5217 = vmatmul.mubr.f32.gmra.mxu0 %v5137
        %v5218 = vpop.f32.mrf.mxu0
        %v5219 = vadd.f32 0.0, %v5218
        %v5220 = vpop.f32.mrf.mxu0
        %5221 = vmatprep.mubr.f32.mxu0 0.0
        %5222 = vmatmul.mubr.f32.gmra.mxu0 %v5140
        %v5223 = vpop.f32.mrf.mxu0
        %v5224 = vadd.f32 0.0, %v5223
        %v5225 = vpop.f32.mrf.mxu0
        %5226 = vdwg.mxu0
        %v5227 = vmul.f32 %v5209, %v2219
        %v5228 = vmul.f32 %v5214, %v2224
        %v5229 = vmul.f32 %v5219, %v2229
        %v5230 = vmul.f32 %v5224, %v2234
        %v5231 = vadd.f32 %v5227, %v5228
        %v5232 = vadd.f32 %v5231, %v5229
        %v5233 = vadd.f32 %v5232, %v5230
        %v5235 = vlaneseq
        %v5236 = vshrl.u32 %v5235, 7
        %v5237 = vsub.s32 0, %v5236
        %v5238 = vrot.slane %v4973, %v5237
        %v5241 = vsel %vm2348, %v5233, 0
        %5243 = vmatprep.subr.mxu0 0.0
        %5244 = vmatpush1.msra.mxu0 0.0
        %5245 = vmatprep.subr.mxu0 0.0
        %5246 = vmatpush1.msra.mxu0 0.0
        %5247 = vmatprep.subr.mxu0 0.0
        %5248 = vmatpush1.msra.mxu0 0.0
        %5249 = vmatprep.subr.mxu0 0.0
        %5250 = vmatpush1.msra.mxu0 0.0
        %5251 = vmatprep.subr.mxu0 0.0
        %5252 = vmatpush1.msra.mxu0 0.0
        %5253 = vmatprep.subr.mxu0 0.0
        %5254 = vmatpush1.msra.mxu0 0.0
        %5255 = vmatprep.subr.mxu0 0.0
        %5256 = vmatpush1.msra.mxu0 0.0
        %5257 = vmatprep.subr.mxu0 0.0
        %5258 = vmatpush1.msra.mxu0 0.0
        %5259 = vmatprep.subr.mxu0 0.0
        %5260 = vmatpush1.msra.mxu0 0.0
        %5261 = vmatprep.subr.mxu0 0.0
        %5262 = vmatpush1.msra.mxu0 0.0
        %5263 = vmatprep.subr.mxu0 0.0
        %5264 = vmatpush1.msra.mxu0 0.0
        %5265 = vmatprep.subr.mxu0 0.0
        %5266 = vmatpush1.msra.mxu0 0.0
        %5267 = vmatprep.subr.mxu0 0.0
        %5268 = vmatpush1.msra.mxu0 %v4972
        %5269 = vmatprep.subr.mxu0 0.0
        %5270 = vmatpush1.msra.mxu0 %v4971
        %5271 = vmatprep.subr.mxu0 0.0
        %5272 = vmatpush1.msra.mxu0 %v4970
        %5273 = vmatprep.subr.mxu0 0.0
        %5274 = vmatpush1.msra.mxu0 %v4969
        %5275 = vmatprep.subr.mxu0 0.0
        %5276 = vmatpush2.msra.mxu0 0.0
        %5277 = vmatprep.subr.mxu0 0.0
        %5278 = vmatpush2.msra.mxu0 0.0
        %5279 = vmatprep.subr.mxu0 0.0
        %5280 = vmatpush2.msra.mxu0 0.0
        %5281 = vmatprep.subr.mxu0 0.0
        %5282 = vmatpush2.msra.mxu0 0.0
        %5283 = vmatprep.subr.mxu0 0.0
        %5284 = vmatpush2.msra.mxu0 0.0
        %5285 = vmatprep.subr.mxu0 0.0
        %5286 = vmatpush2.msra.mxu0 0.0
        %5287 = vmatprep.subr.mxu0 0.0
        %5288 = vmatpush2.msra.mxu0 0.0
        %5289 = vmatprep.subr.mxu0 0.0
        %5290 = vmatpush2.msra.mxu0 0.0
        %5291 = vmatprep.subr.mxu0 0.0
        %5292 = vmatpush2.msra.mxu0 0.0
        %5293 = vmatprep.subr.mxu0 0.0
        %5294 = vmatpush2.msra.mxu0 0.0
        %5295 = vmatprep.subr.mxu0 0.0
        %5296 = vmatpush2.msra.mxu0 0.0
        %5297 = vmatprep.subr.mxu0 0.0
        %5298 = vmatpush2.msra.mxu0 0.0
        %5299 = vmatprep.subr.mxu0 0.0
        %5300 = vmatpush2.msra.mxu0 0.0
        %5301 = vmatprep.subr.mxu0 0.0
        %5302 = vmatpush2.msra.mxu0 0.0
        %5303 = vmatprep.subr.mxu0 0.0
        %5304 = vmatpush2.msra.mxu0 0.0
        %5305 = vmatprep.subr.mxu0 0.0
        %5306 = vmatpush2.msra.mxu0 0.0
        %5307 = vmatprep.mubr.f32.mxu0 0.0
        %5308 = vmatmul.mubr.f32.gmra.mxu0 %v5241
        %v5309 = vpop.f32.mrf.mxu0
        %v5310 = vadd.f32 %v5238, %v5309
        %v5311 = vpop.f32.mrf.mxu0
        %5312 = vdwg.mxu0
        %v5313 = vadd.f32 %v4719, %v5310
        %v5314 = vld [vmem:[#allocation55] sm:$0x1]
        %v5315 = vld [vmem:[#allocation56] sm:$0x1]
        %v5316 = vsel %vm2348, %v5313, 0.0
        %5317 = vadd.xlane.f32.xlu0 %v5316
        %v5318 = vpop.xlane.xlu0 %5317
        %v5319 = vmul.f32 %v5318, %v2935
        %v5320 = vsub.f32 %v5313, %v5319
        %v5321 = vmul.f32 %v5320, %v5320
        %v5322 = vsel %vm2348, %v5321, 0.0
        %5323 = vadd.xlane.f32.xlu0 %v5322
        %v5324 = vpop.xlane.xlu0 %5323
        %v5325 = vmul.f32 %v5324, %v2935
        %v5326 = vadd.f32 %v5325, 1e-05
        %v5327 = vrsqrt.pop %v5326
        %v5328 = vmul.f32 %v5320, %v5327
        %v5330 = vlaneseq
        %v5331 = vshrl.u32 %v5330, 7
        %v5332 = vsub.s32 0, %v5331
        %v5333 = vrot.slane %v5314, %v5332
        %v5335 = vmul.f32 %v5328, %v5333
        %v5337 = vlaneseq
        %v5338 = vshrl.u32 %v5337, 7
        %v5339 = vsub.s32 0, %v5338
        %v5340 = vrot.slane %v5315, %v5339
        %v5342 = vadd.f32 %v5335, %v5340
        %v5343 = vld [vmem:[#allocation46] sm:$0xff]
        %v5344 = vld [vmem:[#allocation46 + $0x8] sm:$0xff]
        %v5345 = vld [vmem:[#allocation46 + $0x10] sm:$0xff]
        %v5346 = vld [vmem:[#allocation46 + $0x18] sm:$0xff]
        %v5347 = vld [vmem:[#allocation47] sm:$0x1]
        %v5349 = vlaneseq
        %v5350 = vshrl.u32 %v5349, 7
        %v5351 = vsub.s32 0, %v5350
        %v5352 = vrot.slane %v5347, %v5351
        %v5355 = vsel %vm2348, %v5342, 0
        %5357 = vmatprep.subr.mxu0 0.0
        %5358 = vmatpush1.msra.mxu0 0.0
        %5359 = vmatprep.subr.mxu0 0.0
        %5360 = vmatpush1.msra.mxu0 0.0
        %5361 = vmatprep.subr.mxu0 0.0
        %5362 = vmatpush1.msra.mxu0 0.0
        %5363 = vmatprep.subr.mxu0 0.0
        %5364 = vmatpush1.msra.mxu0 0.0
        %5365 = vmatprep.subr.mxu0 0.0
        %5366 = vmatpush1.msra.mxu0 0.0
        %5367 = vmatprep.subr.mxu0 0.0
        %5368 = vmatpush1.msra.mxu0 0.0
        %5369 = vmatprep.subr.mxu0 0.0
        %5370 = vmatpush1.msra.mxu0 0.0
        %5371 = vmatprep.subr.mxu0 0.0
        %5372 = vmatpush1.msra.mxu0 0.0
        %5373 = vmatprep.subr.mxu0 0.0
        %5374 = vmatpush1.msra.mxu0 0.0
        %5375 = vmatprep.subr.mxu0 0.0
        %5376 = vmatpush1.msra.mxu0 0.0
        %5377 = vmatprep.subr.mxu0 0.0
        %5378 = vmatpush1.msra.mxu0 0.0
        %5379 = vmatprep.subr.mxu0 0.0
        %5380 = vmatpush1.msra.mxu0 0.0
        %5381 = vmatprep.subr.mxu0 0.0
        %5382 = vmatpush1.msra.mxu0 %v5346
        %5383 = vmatprep.subr.mxu0 0.0
        %5384 = vmatpush1.msra.mxu0 %v5345
        %5385 = vmatprep.subr.mxu0 0.0
        %5386 = vmatpush1.msra.mxu0 %v5344
        %5387 = vmatprep.subr.mxu0 0.0
        %5388 = vmatpush1.msra.mxu0 %v5343
        %5389 = vmatprep.subr.mxu0 0.0
        %5390 = vmatpush2.msra.mxu0 0.0
        %5391 = vmatprep.subr.mxu0 0.0
        %5392 = vmatpush2.msra.mxu0 0.0
        %5393 = vmatprep.subr.mxu0 0.0
        %5394 = vmatpush2.msra.mxu0 0.0
        %5395 = vmatprep.subr.mxu0 0.0
        %5396 = vmatpush2.msra.mxu0 0.0
        %5397 = vmatprep.subr.mxu0 0.0
        %5398 = vmatpush2.msra.mxu0 0.0
        %5399 = vmatprep.subr.mxu0 0.0
        %5400 = vmatpush2.msra.mxu0 0.0
        %5401 = vmatprep.subr.mxu0 0.0
        %5402 = vmatpush2.msra.mxu0 0.0
        %5403 = vmatprep.subr.mxu0 0.0
        %5404 = vmatpush2.msra.mxu0 0.0
        %5405 = vmatprep.subr.mxu0 0.0
        %5406 = vmatpush2.msra.mxu0 0.0
        %5407 = vmatprep.subr.mxu0 0.0
        %5408 = vmatpush2.msra.mxu0 0.0
        %5409 = vmatprep.subr.mxu0 0.0
        %5410 = vmatpush2.msra.mxu0 0.0
        %5411 = vmatprep.subr.mxu0 0.0
        %5412 = vmatpush2.msra.mxu0 0.0
        %5413 = vmatprep.subr.mxu0 0.0
        %5414 = vmatpush2.msra.mxu0 0.0
        %5415 = vmatprep.subr.mxu0 0.0
        %5416 = vmatpush2.msra.mxu0 0.0
        %5417 = vmatprep.subr.mxu0 0.0
        %5418 = vmatpush2.msra.mxu0 0.0
        %5419 = vmatprep.subr.mxu0 0.0
        %5420 = vmatpush2.msra.mxu0 0.0
        %5421 = vmatprep.mubr.f32.mxu0 0.0
        %5422 = vmatmul.mubr.f32.gmra.mxu0 %v5355
        %v5423 = vpop.f32.mrf.mxu0
        %v5424 = vadd.f32 %v5352, %v5423
        %v5425 = vpop.f32.mrf.mxu0
        %5426 = vdwg.mxu0
        %v5427 = vmax.f32 %v5424, 0.0
        %v5428 = vld [vmem:[#allocation49] sm:$0xff]
        %v5429 = vld [vmem:[#allocation49 + $0x8] sm:$0xff]
        %v5430 = vld [vmem:[#allocation49 + $0x10] sm:$0xff]
        %v5431 = vld [vmem:[#allocation49 + $0x18] sm:$0xff]
        %v5432 = vld [vmem:[#allocation50] sm:$0x1]
        %v5434 = vlaneseq
        %v5435 = vshrl.u32 %v5434, 7
        %v5436 = vsub.s32 0, %v5435
        %v5437 = vrot.slane %v5432, %v5436
        %v5440 = vsel %vm2348, %v5427, 0
        %5442 = vmatprep.subr.mxu0 0.0
        %5443 = vmatpush1.msra.mxu0 0.0
        %5444 = vmatprep.subr.mxu0 0.0
        %5445 = vmatpush1.msra.mxu0 0.0
        %5446 = vmatprep.subr.mxu0 0.0
        %5447 = vmatpush1.msra.mxu0 0.0
        %5448 = vmatprep.subr.mxu0 0.0
        %5449 = vmatpush1.msra.mxu0 0.0
        %5450 = vmatprep.subr.mxu0 0.0
        %5451 = vmatpush1.msra.mxu0 0.0
        %5452 = vmatprep.subr.mxu0 0.0
        %5453 = vmatpush1.msra.mxu0 0.0
        %5454 = vmatprep.subr.mxu0 0.0
        %5455 = vmatpush1.msra.mxu0 0.0
        %5456 = vmatprep.subr.mxu0 0.0
        %5457 = vmatpush1.msra.mxu0 0.0
        %5458 = vmatprep.subr.mxu0 0.0
        %5459 = vmatpush1.msra.mxu0 0.0
        %5460 = vmatprep.subr.mxu0 0.0
        %5461 = vmatpush1.msra.mxu0 0.0
        %5462 = vmatprep.subr.mxu0 0.0
        %5463 = vmatpush1.msra.mxu0 0.0
        %5464 = vmatprep.subr.mxu0 0.0
        %5465 = vmatpush1.msra.mxu0 0.0
        %5466 = vmatprep.subr.mxu0 0.0
        %5467 = vmatpush1.msra.mxu0 %v5431
        %5468 = vmatprep.subr.mxu0 0.0
        %5469 = vmatpush1.msra.mxu0 %v5430
        %5470 = vmatprep.subr.mxu0 0.0
        %5471 = vmatpush1.msra.mxu0 %v5429
        %5472 = vmatprep.subr.mxu0 0.0
        %5473 = vmatpush1.msra.mxu0 %v5428
        %5474 = vmatprep.subr.mxu0 0.0
        %5475 = vmatpush2.msra.mxu0 0.0
        %5476 = vmatprep.subr.mxu0 0.0
        %5477 = vmatpush2.msra.mxu0 0.0
        %5478 = vmatprep.subr.mxu0 0.0
        %5479 = vmatpush2.msra.mxu0 0.0
        %5480 = vmatprep.subr.mxu0 0.0
        %5481 = vmatpush2.msra.mxu0 0.0
        %5482 = vmatprep.subr.mxu0 0.0
        %5483 = vmatpush2.msra.mxu0 0.0
        %5484 = vmatprep.subr.mxu0 0.0
        %5485 = vmatpush2.msra.mxu0 0.0
        %5486 = vmatprep.subr.mxu0 0.0
        %5487 = vmatpush2.msra.mxu0 0.0
        %5488 = vmatprep.subr.mxu0 0.0
        %5489 = vmatpush2.msra.mxu0 0.0
        %5490 = vmatprep.subr.mxu0 0.0
        %5491 = vmatpush2.msra.mxu0 0.0
        %5492 = vmatprep.subr.mxu0 0.0
        %5493 = vmatpush2.msra.mxu0 0.0
        %5494 = vmatprep.subr.mxu0 0.0
        %5495 = vmatpush2.msra.mxu0 0.0
        %5496 = vmatprep.subr.mxu0 0.0
        %5497 = vmatpush2.msra.mxu0 0.0
        %5498 = vmatprep.subr.mxu0 0.0
        %5499 = vmatpush2.msra.mxu0 0.0
        %5500 = vmatprep.subr.mxu0 0.0
        %5501 = vmatpush2.msra.mxu0 0.0
        %5502 = vmatprep.subr.mxu0 0.0
        %5503 = vmatpush2.msra.mxu0 0.0
        %5504 = vmatprep.subr.mxu0 0.0
        %5505 = vmatpush2.msra.mxu0 0.0
        %5506 = vmatprep.mubr.f32.mxu0 0.0
        %5507 = vmatmul.mubr.f32.gmra.mxu0 %v5440
        %v5508 = vpop.f32.mrf.mxu0
        %v5509 = vadd.f32 %v5437, %v5508
        %v5510 = vpop.f32.mrf.mxu0
        %5511 = vdwg.mxu0
        %v5512 = vadd.f32 %v5342, %v5509
        %v5513 = vld [vmem:[#allocation58] sm:$0x1]
        %v5514 = vld [vmem:[#allocation59] sm:$0x1]
        %v5515 = vsel %vm2348, %v5512, 0.0
        %5516 = vadd.xlane.f32.xlu0 %v5515
        %v5517 = vpop.xlane.xlu0 %5516
        %v5518 = vmul.f32 %v5517, %v2935
        %v5519 = vsub.f32 %v5512, %v5518
        %v5520 = vmul.f32 %v5519, %v5519
        %v5521 = vsel %vm2348, %v5520, 0.0
        %5522 = vadd.xlane.f32.xlu0 %v5521
        %v5523 = vpop.xlane.xlu0 %5522
        %v5524 = vmul.f32 %v5523, %v2935
        %v5525 = vadd.f32 %v5524, 1e-05
        %v5526 = vrsqrt.pop %v5525
        %v5527 = vmul.f32 %v5519, %v5526
        %v5529 = vlaneseq
        %v5530 = vshrl.u32 %v5529, 7
        %v5531 = vsub.s32 0, %v5530
        %v5532 = vrot.slane %v5513, %v5531
        %v5534 = vmul.f32 %v5527, %v5532
        %v5536 = vlaneseq
        %v5537 = vshrl.u32 %v5536, 7
        %v5538 = vsub.s32 0, %v5537
        %v5539 = vrot.slane %v5514, %v5538
        %v5541 = vadd.f32 %v5534, %v5539
        %s5542 = scalar_lea.vmem [#allocation22], 32
        %v5543 = vld [vmem:[%s5542] sm:$0xff]
        %v5544 = vld [vmem:[%s5542 + $0x8] sm:$0xff]
        %v5545 = vld [vmem:[%s5542 + $0x10] sm:$0xff]
        %v5546 = vld [vmem:[%s5542 + $0x18] sm:$0xff]
        %s5547 = scalar_lea.vmem [#allocation23], 1
        %v5548 = vld [vmem:[%s5547] sm:$0x1]
        %v5550 = vlaneseq
        %v5551 = vshrl.u32 %v5550, 7
        %v5552 = vsub.s32 0, %v5551
        %v5553 = vrot.slane %v5548, %v5552
        %v5556 = vsel %vm2348, %v5541, 0
        %5558 = vmatprep.subr.mxu0 0.0
        %5559 = vmatpush1.msra.mxu0 0.0
        %5560 = vmatprep.subr.mxu0 0.0
        %5561 = vmatpush1.msra.mxu0 0.0
        %5562 = vmatprep.subr.mxu0 0.0
        %5563 = vmatpush1.msra.mxu0 0.0
        %5564 = vmatprep.subr.mxu0 0.0
        %5565 = vmatpush1.msra.mxu0 0.0
        %5566 = vmatprep.subr.mxu0 0.0
        %5567 = vmatpush1.msra.mxu0 0.0
        %5568 = vmatprep.subr.mxu0 0.0
        %5569 = vmatpush1.msra.mxu0 0.0
        %5570 = vmatprep.subr.mxu0 0.0
        %5571 = vmatpush1.msra.mxu0 0.0
        %5572 = vmatprep.subr.mxu0 0.0
        %5573 = vmatpush1.msra.mxu0 0.0
        %5574 = vmatprep.subr.mxu0 0.0
        %5575 = vmatpush1.msra.mxu0 0.0
        %5576 = vmatprep.subr.mxu0 0.0
        %5577 = vmatpush1.msra.mxu0 0.0
        %5578 = vmatprep.subr.mxu0 0.0
        %5579 = vmatpush1.msra.mxu0 0.0
        %5580 = vmatprep.subr.mxu0 0.0
        %5581 = vmatpush1.msra.mxu0 0.0
        %5582 = vmatprep.subr.mxu0 0.0
        %5583 = vmatpush1.msra.mxu0 %v5546
        %5584 = vmatprep.subr.mxu0 0.0
        %5585 = vmatpush1.msra.mxu0 %v5545
        %5586 = vmatprep.subr.mxu0 0.0
        %5587 = vmatpush1.msra.mxu0 %v5544
        %5588 = vmatprep.subr.mxu0 0.0
        %5589 = vmatpush1.msra.mxu0 %v5543
        %5590 = vmatprep.subr.mxu0 0.0
        %5591 = vmatpush2.msra.mxu0 0.0
        %5592 = vmatprep.subr.mxu0 0.0
        %5593 = vmatpush2.msra.mxu0 0.0
        %5594 = vmatprep.subr.mxu0 0.0
        %5595 = vmatpush2.msra.mxu0 0.0
        %5596 = vmatprep.subr.mxu0 0.0
        %5597 = vmatpush2.msra.mxu0 0.0
        %5598 = vmatprep.subr.mxu0 0.0
        %5599 = vmatpush2.msra.mxu0 0.0
        %5600 = vmatprep.subr.mxu0 0.0
        %5601 = vmatpush2.msra.mxu0 0.0
        %5602 = vmatprep.subr.mxu0 0.0
        %5603 = vmatpush2.msra.mxu0 0.0
        %5604 = vmatprep.subr.mxu0 0.0
        %5605 = vmatpush2.msra.mxu0 0.0
        %5606 = vmatprep.subr.mxu0 0.0
        %5607 = vmatpush2.msra.mxu0 0.0
        %5608 = vmatprep.subr.mxu0 0.0
        %5609 = vmatpush2.msra.mxu0 0.0
        %5610 = vmatprep.subr.mxu0 0.0
        %5611 = vmatpush2.msra.mxu0 0.0
        %5612 = vmatprep.subr.mxu0 0.0
        %5613 = vmatpush2.msra.mxu0 0.0
        %5614 = vmatprep.subr.mxu0 0.0
        %5615 = vmatpush2.msra.mxu0 0.0
        %5616 = vmatprep.subr.mxu0 0.0
        %5617 = vmatpush2.msra.mxu0 0.0
        %5618 = vmatprep.subr.mxu0 0.0
        %5619 = vmatpush2.msra.mxu0 0.0
        %5620 = vmatprep.subr.mxu0 0.0
        %5621 = vmatpush2.msra.mxu0 0.0
        %5622 = vmatprep.mubr.f32.mxu0 0.0
        %5623 = vmatmul.mubr.f32.gmra.mxu0 %v5556
        %v5624 = vpop.f32.mrf.mxu0
        %v5625 = vadd.f32 %v5553, %v5624
        %v5626 = vpop.f32.mrf.mxu0
        %5627 = vdwg.mxu0
        %s5628 = scalar_lea.vmem [#allocation25], 32
        %v5629 = vld [vmem:[%s5628] sm:$0xff]
        %v5630 = vld [vmem:[%s5628 + $0x8] sm:$0xff]
        %v5631 = vld [vmem:[%s5628 + $0x10] sm:$0xff]
        %v5632 = vld [vmem:[%s5628 + $0x18] sm:$0xff]
        %s5633 = scalar_lea.vmem [#allocation26], 1
        %v5634 = vld [vmem:[%s5633] sm:$0x1]
        %v5636 = vlaneseq
        %v5637 = vshrl.u32 %v5636, 7
        %v5638 = vsub.s32 0, %v5637
        %v5639 = vrot.slane %v5634, %v5638
        %5641 = vmatprep.subr.mxu0 0.0
        %5642 = vmatpush1.msra.mxu0 0.0
        %5643 = vmatprep.subr.mxu0 0.0
        %5644 = vmatpush1.msra.mxu0 0.0
        %5645 = vmatprep.subr.mxu0 0.0
        %5646 = vmatpush1.msra.mxu0 0.0
        %5647 = vmatprep.subr.mxu0 0.0
        %5648 = vmatpush1.msra.mxu0 0.0
        %5649 = vmatprep.subr.mxu0 0.0
        %5650 = vmatpush1.msra.mxu0 0.0
        %5651 = vmatprep.subr.mxu0 0.0
        %5652 = vmatpush1.msra.mxu0 0.0
        %5653 = vmatprep.subr.mxu0 0.0
        %5654 = vmatpush1.msra.mxu0 0.0
        %5655 = vmatprep.subr.mxu0 0.0
        %5656 = vmatpush1.msra.mxu0 0.0
        %5657 = vmatprep.subr.mxu0 0.0
        %5658 = vmatpush1.msra.mxu0 0.0
        %5659 = vmatprep.subr.mxu0 0.0
        %5660 = vmatpush1.msra.mxu0 0.0
        %5661 = vmatprep.subr.mxu0 0.0
        %5662 = vmatpush1.msra.mxu0 0.0
        %5663 = vmatprep.subr.mxu0 0.0
        %5664 = vmatpush1.msra.mxu0 0.0
        %5665 = vmatprep.subr.mxu0 0.0
        %5666 = vmatpush1.msra.mxu0 %v5632
        %5667 = vmatprep.subr.mxu0 0.0
        %5668 = vmatpush1.msra.mxu0 %v5631
        %5669 = vmatprep.subr.mxu0 0.0
        %5670 = vmatpush1.msra.mxu0 %v5630
        %5671 = vmatprep.subr.mxu0 0.0
        %5672 = vmatpush1.msra.mxu0 %v5629
        %5673 = vmatprep.subr.mxu0 0.0
        %5674 = vmatpush2.msra.mxu0 0.0
        %5675 = vmatprep.subr.mxu0 0.0
        %5676 = vmatpush2.msra.mxu0 0.0
        %5677 = vmatprep.subr.mxu0 0.0
        %5678 = vmatpush2.msra.mxu0 0.0
        %5679 = vmatprep.subr.mxu0 0.0
        %5680 = vmatpush2.msra.mxu0 0.0
        %5681 = vmatprep.subr.mxu0 0.0
        %5682 = vmatpush2.msra.mxu0 0.0
        %5683 = vmatprep.subr.mxu0 0.0
        %5684 = vmatpush2.msra.mxu0 0.0
        %5685 = vmatprep.subr.mxu0 0.0
        %5686 = vmatpush2.msra.mxu0 0.0
        %5687 = vmatprep.subr.mxu0 0.0
        %5688 = vmatpush2.msra.mxu0 0.0
        %5689 = vmatprep.subr.mxu0 0.0
        %5690 = vmatpush2.msra.mxu0 0.0
        %5691 = vmatprep.subr.mxu0 0.0
        %5692 = vmatpush2.msra.mxu0 0.0
        %5693 = vmatprep.subr.mxu0 0.0
        %5694 = vmatpush2.msra.mxu0 0.0
        %5695 = vmatprep.subr.mxu0 0.0
        %5696 = vmatpush2.msra.mxu0 0.0
        %5697 = vmatprep.subr.mxu0 0.0
        %5698 = vmatpush2.msra.mxu0 0.0
        %5699 = vmatprep.subr.mxu0 0.0
        %5700 = vmatpush2.msra.mxu0 0.0
        %5701 = vmatprep.subr.mxu0 0.0
        %5702 = vmatpush2.msra.mxu0 0.0
        %5703 = vmatprep.subr.mxu0 0.0
        %5704 = vmatpush2.msra.mxu0 0.0
        %5705 = vmatprep.mubr.f32.mxu0 0.0
        %5706 = vmatmul.mubr.f32.gmra.mxu0 %v5556
        %v5707 = vpop.f32.mrf.mxu0
        %v5708 = vadd.f32 %v5639, %v5707
        %v5709 = vpop.f32.mrf.mxu0
        %5710 = vdwg.mxu0
        %s5711 = scalar_lea.vmem [#allocation28], 32
        %v5712 = vld [vmem:[%s5711] sm:$0xff]
        %v5713 = vld [vmem:[%s5711 + $0x8] sm:$0xff]
        %v5714 = vld [vmem:[%s5711 + $0x10] sm:$0xff]
        %v5715 = vld [vmem:[%s5711 + $0x18] sm:$0xff]
        %s5716 = scalar_lea.vmem [#allocation29], 1
        %v5717 = vld [vmem:[%s5716] sm:$0x1]
        %v5719 = vlaneseq
        %v5720 = vshrl.u32 %v5719, 7
        %v5721 = vsub.s32 0, %v5720
        %v5722 = vrot.slane %v5717, %v5721
        %5724 = vmatprep.subr.mxu0 0.0
        %5725 = vmatpush1.msra.mxu0 0.0
        %5726 = vmatprep.subr.mxu0 0.0
        %5727 = vmatpush1.msra.mxu0 0.0
        %5728 = vmatprep.subr.mxu0 0.0
        %5729 = vmatpush1.msra.mxu0 0.0
        %5730 = vmatprep.subr.mxu0 0.0
        %5731 = vmatpush1.msra.mxu0 0.0
        %5732 = vmatprep.subr.mxu0 0.0
        %5733 = vmatpush1.msra.mxu0 0.0
        %5734 = vmatprep.subr.mxu0 0.0
        %5735 = vmatpush1.msra.mxu0 0.0
        %5736 = vmatprep.subr.mxu0 0.0
        %5737 = vmatpush1.msra.mxu0 0.0
        %5738 = vmatprep.subr.mxu0 0.0
        %5739 = vmatpush1.msra.mxu0 0.0
        %5740 = vmatprep.subr.mxu0 0.0
        %5741 = vmatpush1.msra.mxu0 0.0
        %5742 = vmatprep.subr.mxu0 0.0
        %5743 = vmatpush1.msra.mxu0 0.0
        %5744 = vmatprep.subr.mxu0 0.0
        %5745 = vmatpush1.msra.mxu0 0.0
        %5746 = vmatprep.subr.mxu0 0.0
        %5747 = vmatpush1.msra.mxu0 0.0
        %5748 = vmatprep.subr.mxu0 0.0
        %5749 = vmatpush1.msra.mxu0 %v5715
        %5750 = vmatprep.subr.mxu0 0.0
        %5751 = vmatpush1.msra.mxu0 %v5714
        %5752 = vmatprep.subr.mxu0 0.0
        %5753 = vmatpush1.msra.mxu0 %v5713
        %5754 = vmatprep.subr.mxu0 0.0
        %5755 = vmatpush1.msra.mxu0 %v5712
        %5756 = vmatprep.subr.mxu0 0.0
        %5757 = vmatpush2.msra.mxu0 0.0
        %5758 = vmatprep.subr.mxu0 0.0
        %5759 = vmatpush2.msra.mxu0 0.0
        %5760 = vmatprep.subr.mxu0 0.0
        %5761 = vmatpush2.msra.mxu0 0.0
        %5762 = vmatprep.subr.mxu0 0.0
        %5763 = vmatpush2.msra.mxu0 0.0
        %5764 = vmatprep.subr.mxu0 0.0
        %5765 = vmatpush2.msra.mxu0 0.0
        %5766 = vmatprep.subr.mxu0 0.0
        %5767 = vmatpush2.msra.mxu0 0.0
        %5768 = vmatprep.subr.mxu0 0.0
        %5769 = vmatpush2.msra.mxu0 0.0
        %5770 = vmatprep.subr.mxu0 0.0
        %5771 = vmatpush2.msra.mxu0 0.0
        %5772 = vmatprep.subr.mxu0 0.0
        %5773 = vmatpush2.msra.mxu0 0.0
        %5774 = vmatprep.subr.mxu0 0.0
        %5775 = vmatpush2.msra.mxu0 0.0
        %5776 = vmatprep.subr.mxu0 0.0
        %5777 = vmatpush2.msra.mxu0 0.0
        %5778 = vmatprep.subr.mxu0 0.0
        %5779 = vmatpush2.msra.mxu0 0.0
        %5780 = vmatprep.subr.mxu0 0.0
        %5781 = vmatpush2.msra.mxu0 0.0
        %5782 = vmatprep.subr.mxu0 0.0
        %5783 = vmatpush2.msra.mxu0 0.0
        %5784 = vmatprep.subr.mxu0 0.0
        %5785 = vmatpush2.msra.mxu0 0.0
        %5786 = vmatprep.subr.mxu0 0.0
        %5787 = vmatpush2.msra.mxu0 0.0
        %5788 = vmatprep.mubr.f32.mxu0 0.0
        %5789 = vmatmul.mubr.f32.gmra.mxu0 %v5556
        %v5790 = vpop.f32.mrf.mxu0
        %v5791 = vadd.f32 %v5722, %v5790
        %v5792 = vpop.f32.mrf.mxu0
        %5793 = vdwg.mxu0
        %s5794 = scalar_lea.vmem [#allocation31], 32
        %v5795 = vld [vmem:[%s5794] sm:$0xff]
        %v5796 = vld [vmem:[%s5794 + $0x8] sm:$0xff]
        %v5797 = vld [vmem:[%s5794 + $0x10] sm:$0xff]
        %v5798 = vld [vmem:[%s5794 + $0x18] sm:$0xff]
        %s5799 = scalar_lea.vmem [#allocation32], 1
        %v5800 = vld [vmem:[%s5799] sm:$0x1]
        %v5801 = vmul.f32 %v5625, %v2219
        %v5802 = vmul.f32 %v5625, %v2224
        %v5803 = vmul.f32 %v5625, %v2229
        %v5804 = vmul.f32 %v5625, %v2234
        %v5806 = vsel %vm2348, %v5801, 0
        %v5809 = vsel %vm2348, %v5802, 0
        %v5812 = vsel %vm2348, %v5803, 0
        %v5815 = vsel %vm2348, %v5804, 0
        %v5818 = vsel %vm2348, %v5708, 0
        %5820 = vmatprep.subr.mxu0 0.0
        %5821 = vmatpush1.xpose.msra.mxu0 0.0
        %5822 = vmatprep.subr.mxu0 0.0
        %5823 = vmatpush1.xpose.msra.mxu0 0.0
        %5824 = vmatprep.subr.mxu0 0.0
        %5825 = vmatpush1.xpose.msra.mxu0 0.0
        %5826 = vmatprep.subr.mxu0 0.0
        %5827 = vmatpush1.xpose.msra.mxu0 0.0
        %5828 = vmatprep.subr.mxu0 0.0
        %5829 = vmatpush1.xpose.msra.mxu0 0.0
        %5830 = vmatprep.subr.mxu0 0.0
        %5831 = vmatpush1.xpose.msra.mxu0 0.0
        %5832 = vmatprep.subr.mxu0 0.0
        %5833 = vmatpush1.xpose.msra.mxu0 0.0
        %5834 = vmatprep.subr.mxu0 0.0
        %5835 = vmatpush1.xpose.msra.mxu0 0.0
        %5836 = vmatprep.subr.mxu0 0.0
        %5837 = vmatpush1.xpose.msra.mxu0 0.0
        %5838 = vmatprep.subr.mxu0 0.0
        %5839 = vmatpush1.xpose.msra.mxu0 0.0
        %5840 = vmatprep.subr.mxu0 0.0
        %5841 = vmatpush1.xpose.msra.mxu0 0.0
        %5842 = vmatprep.subr.mxu0 0.0
        %5843 = vmatpush1.xpose.msra.mxu0 0.0
        %5844 = vmatprep.subr.mxu0 0.0
        %5845 = vmatpush1.xpose.msra.mxu0 0.0
        %5846 = vmatprep.subr.mxu0 0.0
        %5847 = vmatpush1.xpose.msra.mxu0 0.0
        %5848 = vmatprep.subr.mxu0 0.0
        %5849 = vmatpush1.xpose.msra.mxu0 0.0
        %5850 = vmatprep.subr.mxu0 0.0
        %5851 = vmatpush1.xpose.msra.mxu0 %v5818
        %5852 = vmatprep.subr.mxu0 0.0
        %5853 = vmatpush2.xpose.msra.mxu0 0.0
        %5854 = vmatprep.subr.mxu0 0.0
        %5855 = vmatpush2.xpose.msra.mxu0 0.0
        %5856 = vmatprep.subr.mxu0 0.0
        %5857 = vmatpush2.xpose.msra.mxu0 0.0
        %5858 = vmatprep.subr.mxu0 0.0
        %5859 = vmatpush2.xpose.msra.mxu0 0.0
        %5860 = vmatprep.subr.mxu0 0.0
        %5861 = vmatpush2.xpose.msra.mxu0 0.0
        %5862 = vmatprep.subr.mxu0 0.0
        %5863 = vmatpush2.xpose.msra.mxu0 0.0
        %5864 = vmatprep.subr.mxu0 0.0
        %5865 = vmatpush2.xpose.msra.mxu0 0.0
        %5866 = vmatprep.subr.mxu0 0.0
        %5867 = vmatpush2.xpose.msra.mxu0 0.0
        %5868 = vmatprep.subr.mxu0 0.0
        %5869 = vmatpush2.xpose.msra.mxu0 0.0
        %5870 = vmatprep.subr.mxu0 0.0
        %5871 = vmatpush2.xpose.msra.mxu0 0.0
        %5872 = vmatprep.subr.mxu0 0.0
        %5873 = vmatpush2.xpose.msra.mxu0 0.0
        %5874 = vmatprep.subr.mxu0 0.0
        %5875 = vmatpush2.xpose.msra.mxu0 0.0
        %5876 = vmatprep.subr.mxu0 0.0
        %5877 = vmatpush2.xpose.msra.mxu0 0.0
        %5878 = vmatprep.subr.mxu0 0.0
        %5879 = vmatpush2.xpose.msra.mxu0 0.0
        %5880 = vmatprep.subr.mxu0 0.0
        %5881 = vmatpush2.xpose.msra.mxu0 0.0
        %5882 = vmatprep.subr.mxu0 0.0
        %5883 = vmatpush2.xpose.msra.mxu0 0.0
        %5884 = vmatprep.mubr.f32.mxu0 0.0
        %5885 = vmatmul.mubr.f32.gmra.mxu0 %v5806
        %v5886 = vpop.f32.mrf.mxu0
        %v5887 = vadd.f32 0.0, %v5886
        %v5888 = vpop.f32.mrf.mxu0
        %5889 = vmatprep.mubr.f32.mxu0 0.0
        %5890 = vmatmul.mubr.f32.gmra.mxu0 %v5809
        %v5891 = vpop.f32.mrf.mxu0
        %v5892 = vadd.f32 0.0, %v5891
        %v5893 = vpop.f32.mrf.mxu0
        %5894 = vmatprep.mubr.f32.mxu0 0.0
        %5895 = vmatmul.mubr.f32.gmra.mxu0 %v5812
        %v5896 = vpop.f32.mrf.mxu0
        %v5897 = vadd.f32 0.0, %v5896
        %v5898 = vpop.f32.mrf.mxu0
        %5899 = vmatprep.mubr.f32.mxu0 0.0
        %5900 = vmatmul.mubr.f32.gmra.mxu0 %v5815
        %v5901 = vpop.f32.mrf.mxu0
        %v5902 = vadd.f32 0.0, %v5901
        %v5903 = vpop.f32.mrf.mxu0
        %5904 = vdwg.mxu0
        %v5905 = vmul.f32 %v5887, 0.35355338
        %v5906 = vmul.f32 %v5892, 0.35355338
        %v5907 = vmul.f32 %v5897, 0.35355338
        %v5908 = vmul.f32 %v5902, 0.35355338
        %v5909 = vadd.f32 %v5905, %v2240
        %v5910 = vadd.f32 %v5906, %v2240
        %v5911 = vadd.f32 %v5907, %v2240
        %v5912 = vadd.f32 %v5908, %v2240
        %v5913 = vsel %vm2701, %v5909, -inf
        %5914 = vmax.xlane.f32.xlu0 %v5913
        %v5915 = vpop.xlane.xlu0 %5914
        %v5916 = vsel %vm2701, %v5910, -inf
        %5917 = vmax.xlane.f32.xlu0 %v5916
        %v5918 = vpop.xlane.xlu0 %5917
        %v5919 = vsel %vm2701, %v5911, -inf
        %5920 = vmax.xlane.f32.xlu0 %v5919
        %v5921 = vpop.xlane.xlu0 %5920
        %v5922 = vsel %vm2701, %v5912, -inf
        %5923 = vmax.xlane.f32.xlu0 %v5922
        %v5924 = vpop.xlane.xlu0 %5923
        %v5925 = vsub.f32 %v5909, %v5915
        %v5926 = vsub.f32 %v5910, %v5918
        %v5927 = vsub.f32 %v5911, %v5921
        %v5928 = vsub.f32 %v5912, %v5924
        %v5929 = vmul.f32 %v5925, 1.442695
        %v5930 = vpow.pop %v5929
        %v5931 = vmul.f32 %v5926, 1.442695
        %v5932 = vpow.pop %v5931
        %v5933 = vmul.f32 %v5927, 1.442695
        %v5934 = vpow.pop %v5933
        %v5935 = vmul.f32 %v5928, 1.442695
        %v5936 = vpow.pop %v5935
        %v5937 = vsel %vm2701, %v5930, 0.0
        %5938 = vadd.xlane.f32.xlu0 %v5937
        %v5939 = vpop.xlane.xlu0 %5938
        %v5940 = vsel %vm2701, %v5932, 0.0
        %5941 = vadd.xlane.f32.xlu0 %v5940
        %v5942 = vpop.xlane.xlu0 %5941
        %v5943 = vsel %vm2701, %v5934, 0.0
        %5944 = vadd.xlane.f32.xlu0 %v5943
        %v5945 = vpop.xlane.xlu0 %5944
        %v5946 = vsel %vm2701, %v5936, 0.0
        %5947 = vadd.xlane.f32.xlu0 %v5946
        %v5948 = vpop.xlane.xlu0 %5947
        %v5949 = vrcp.pop %v5939
        %v5950 = vmul.f32 %v5930, %v5949
        %v5951 = vrcp.pop %v5942
        %v5952 = vmul.f32 %v5932, %v5951
        %v5953 = vrcp.pop %v5945
        %v5954 = vmul.f32 %v5934, %v5953
        %v5955 = vrcp.pop %v5948
        %v5956 = vmul.f32 %v5936, %v5955
        %v5958 = vsel %vm2701, %v5950, 0
        %v5961 = vsel %vm2701, %v5952, 0
        %v5964 = vsel %vm2701, %v5954, 0
        %v5967 = vsel %vm2701, %v5956, 0
        %5969 = vmatprep.subr.mxu0 0.0
        %5970 = vmatpush1.msra.mxu0 0.0
        %5971 = vmatprep.subr.mxu0 0.0
        %5972 = vmatpush1.msra.mxu0 0.0
        %5973 = vmatprep.subr.mxu0 0.0
        %5974 = vmatpush1.msra.mxu0 0.0
        %5975 = vmatprep.subr.mxu0 0.0
        %5976 = vmatpush1.msra.mxu0 0.0
        %5977 = vmatprep.subr.mxu0 0.0
        %5978 = vmatpush1.msra.mxu0 0.0
        %5979 = vmatprep.subr.mxu0 0.0
        %5980 = vmatpush1.msra.mxu0 0.0
        %5981 = vmatprep.subr.mxu0 0.0
        %5982 = vmatpush1.msra.mxu0 0.0
        %5983 = vmatprep.subr.mxu0 0.0
        %5984 = vmatpush1.msra.mxu0 0.0
        %5985 = vmatprep.subr.mxu0 0.0
        %5986 = vmatpush1.msra.mxu0 0.0
        %5987 = vmatprep.subr.mxu0 0.0
        %5988 = vmatpush1.msra.mxu0 0.0
        %5989 = vmatprep.subr.mxu0 0.0
        %5990 = vmatpush1.msra.mxu0 0.0
        %5991 = vmatprep.subr.mxu0 0.0
        %5992 = vmatpush1.msra.mxu0 0.0
        %5993 = vmatprep.subr.mxu0 0.0
        %5994 = vmatpush1.msra.mxu0 0.0
        %5995 = vmatprep.subr.mxu0 0.0
        %5996 = vmatpush1.msra.mxu0 0.0
        %5997 = vmatprep.subr.mxu0 0.0
        %5998 = vmatpush1.msra.mxu0 0.0
        %5999 = vmatprep.subr.mxu0 0.0
        %6000 = vmatpush1.msra.mxu0 %v5791
        %6001 = vmatprep.subr.mxu0 0.0
        %6002 = vmatpush2.msra.mxu0 0.0
        %6003 = vmatprep.subr.mxu0 0.0
        %6004 = vmatpush2.msra.mxu0 0.0
        %6005 = vmatprep.subr.mxu0 0.0
        %6006 = vmatpush2.msra.mxu0 0.0
        %6007 = vmatprep.subr.mxu0 0.0
        %6008 = vmatpush2.msra.mxu0 0.0
        %6009 = vmatprep.subr.mxu0 0.0
        %6010 = vmatpush2.msra.mxu0 0.0
        %6011 = vmatprep.subr.mxu0 0.0
        %6012 = vmatpush2.msra.mxu0 0.0
        %6013 = vmatprep.subr.mxu0 0.0
        %6014 = vmatpush2.msra.mxu0 0.0
        %6015 = vmatprep.subr.mxu0 0.0
        %6016 = vmatpush2.msra.mxu0 0.0
        %6017 = vmatprep.subr.mxu0 0.0
        %6018 = vmatpush2.msra.mxu0 0.0
        %6019 = vmatprep.subr.mxu0 0.0
        %6020 = vmatpush2.msra.mxu0 0.0
        %6021 = vmatprep.subr.mxu0 0.0
        %6022 = vmatpush2.msra.mxu0 0.0
        %6023 = vmatprep.subr.mxu0 0.0
        %6024 = vmatpush2.msra.mxu0 0.0
        %6025 = vmatprep.subr.mxu0 0.0
        %6026 = vmatpush2.msra.mxu0 0.0
        %6027 = vmatprep.subr.mxu0 0.0
        %6028 = vmatpush2.msra.mxu0 0.0
        %6029 = vmatprep.subr.mxu0 0.0
        %6030 = vmatpush2.msra.mxu0 0.0
        %6031 = vmatprep.subr.mxu0 0.0
        %6032 = vmatpush2.msra.mxu0 0.0
        %6033 = vmatprep.mubr.f32.mxu0 0.0
        %6034 = vmatmul.mubr.f32.gmra.mxu0 %v5958
        %v6035 = vpop.f32.mrf.mxu0
        %v6036 = vadd.f32 0.0, %v6035
        %v6037 = vpop.f32.mrf.mxu0
        %6038 = vmatprep.mubr.f32.mxu0 0.0
        %6039 = vmatmul.mubr.f32.gmra.mxu0 %v5961
        %v6040 = vpop.f32.mrf.mxu0
        %v6041 = vadd.f32 0.0, %v6040
        %v6042 = vpop.f32.mrf.mxu0
        %6043 = vmatprep.mubr.f32.mxu0 0.0
        %6044 = vmatmul.mubr.f32.gmra.mxu0 %v5964
        %v6045 = vpop.f32.mrf.mxu0
        %v6046 = vadd.f32 0.0, %v6045
        %v6047 = vpop.f32.mrf.mxu0
        %6048 = vmatprep.mubr.f32.mxu0 0.0
        %6049 = vmatmul.mubr.f32.gmra.mxu0 %v5967
        %v6050 = vpop.f32.mrf.mxu0
        %v6051 = vadd.f32 0.0, %v6050
        %v6052 = vpop.f32.mrf.mxu0
        %6053 = vdwg.mxu0
        %v6054 = vmul.f32 %v6036, %v2219
        %v6055 = vmul.f32 %v6041, %v2224
        %v6056 = vmul.f32 %v6046, %v2229
        %v6057 = vmul.f32 %v6051, %v2234
        %v6058 = vadd.f32 %v6054, %v6055
        %v6059 = vadd.f32 %v6058, %v6056
        %v6060 = vadd.f32 %v6059, %v6057
        %v6062 = vlaneseq
        %v6063 = vshrl.u32 %v6062, 7
        %v6064 = vsub.s32 0, %v6063
        %v6065 = vrot.slane %v5800, %v6064
        %v6068 = vsel %vm2348, %v6060, 0
        %6070 = vmatprep.subr.mxu0 0.0
        %6071 = vmatpush1.msra.mxu0 0.0
        %6072 = vmatprep.subr.mxu0 0.0
        %6073 = vmatpush1.msra.mxu0 0.0
        %6074 = vmatprep.subr.mxu0 0.0
        %6075 = vmatpush1.msra.mxu0 0.0
        %6076 = vmatprep.subr.mxu0 0.0
        %6077 = vmatpush1.msra.mxu0 0.0
        %6078 = vmatprep.subr.mxu0 0.0
        %6079 = vmatpush1.msra.mxu0 0.0
        %6080 = vmatprep.subr.mxu0 0.0
        %6081 = vmatpush1.msra.mxu0 0.0
        %6082 = vmatprep.subr.mxu0 0.0
        %6083 = vmatpush1.msra.mxu0 0.0
        %6084 = vmatprep.subr.mxu0 0.0
        %6085 = vmatpush1.msra.mxu0 0.0
        %6086 = vmatprep.subr.mxu0 0.0
        %6087 = vmatpush1.msra.mxu0 0.0
        %6088 = vmatprep.subr.mxu0 0.0
        %6089 = vmatpush1.msra.mxu0 0.0
        %6090 = vmatprep.subr.mxu0 0.0
        %6091 = vmatpush1.msra.mxu0 0.0
        %6092 = vmatprep.subr.mxu0 0.0
        %6093 = vmatpush1.msra.mxu0 0.0
        %6094 = vmatprep.subr.mxu0 0.0
        %6095 = vmatpush1.msra.mxu0 %v5798
        %6096 = vmatprep.subr.mxu0 0.0
        %6097 = vmatpush1.msra.mxu0 %v5797
        %6098 = vmatprep.subr.mxu0 0.0
        %6099 = vmatpush1.msra.mxu0 %v5796
        %6100 = vmatprep.subr.mxu0 0.0
        %6101 = vmatpush1.msra.mxu0 %v5795
        %6102 = vmatprep.subr.mxu0 0.0
        %6103 = vmatpush2.msra.mxu0 0.0
        %6104 = vmatprep.subr.mxu0 0.0
        %6105 = vmatpush2.msra.mxu0 0.0
        %6106 = vmatprep.subr.mxu0 0.0
        %6107 = vmatpush2.msra.mxu0 0.0
        %6108 = vmatprep.subr.mxu0 0.0
        %6109 = vmatpush2.msra.mxu0 0.0
        %6110 = vmatprep.subr.mxu0 0.0
        %6111 = vmatpush2.msra.mxu0 0.0
        %6112 = vmatprep.subr.mxu0 0.0
        %6113 = vmatpush2.msra.mxu0 0.0
        %6114 = vmatprep.subr.mxu0 0.0
        %6115 = vmatpush2.msra.mxu0 0.0
        %6116 = vmatprep.subr.mxu0 0.0
        %6117 = vmatpush2.msra.mxu0 0.0
        %6118 = vmatprep.subr.mxu0 0.0
        %6119 = vmatpush2.msra.mxu0 0.0
        %6120 = vmatprep.subr.mxu0 0.0
        %6121 = vmatpush2.msra.mxu0 0.0
        %6122 = vmatprep.subr.mxu0 0.0
        %6123 = vmatpush2.msra.mxu0 0.0
        %6124 = vmatprep.subr.mxu0 0.0
        %6125 = vmatpush2.msra.mxu0 0.0
        %6126 = vmatprep.subr.mxu0 0.0
        %6127 = vmatpush2.msra.mxu0 0.0
        %6128 = vmatprep.subr.mxu0 0.0
        %6129 = vmatpush2.msra.mxu0 0.0
        %6130 = vmatprep.subr.mxu0 0.0
        %6131 = vmatpush2.msra.mxu0 0.0
        %6132 = vmatprep.subr.mxu0 0.0
        %6133 = vmatpush2.msra.mxu0 0.0
        %6134 = vmatprep.mubr.f32.mxu0 0.0
        %6135 = vmatmul.mubr.f32.gmra.mxu0 %v6068
        %v6136 = vpop.f32.mrf.mxu0
        %v6137 = vadd.f32 %v6065, %v6136
        %v6138 = vpop.f32.mrf.mxu0
        %6139 = vdwg.mxu0
        %v6140 = vadd.f32 %v5541, %v6137
        %s6141 = scalar_lea.vmem [#allocation52], 1
        %v6142 = vld [vmem:[%s6141] sm:$0x1]
        %s6143 = scalar_lea.vmem [#allocation53], 1
        %v6144 = vld [vmem:[%s6143] sm:$0x1]
        %v6145 = vsel %vm2348, %v6140, 0.0
        %6146 = vadd.xlane.f32.xlu0 %v6145
        %v6147 = vpop.xlane.xlu0 %6146
        %v6148 = vmul.f32 %v6147, %v2935
        %v6149 = vsub.f32 %v6140, %v6148
        %v6150 = vmul.f32 %v6149, %v6149
        %v6151 = vsel %vm2348, %v6150, 0.0
        %6152 = vadd.xlane.f32.xlu0 %v6151
        %v6153 = vpop.xlane.xlu0 %6152
        %v6154 = vmul.f32 %v6153, %v2935
        %v6155 = vadd.f32 %v6154, 1e-05
        %v6156 = vrsqrt.pop %v6155
        %v6157 = vmul.f32 %v6149, %v6156
        %v6159 = vlaneseq
        %v6160 = vshrl.u32 %v6159, 7
        %v6161 = vsub.s32 0, %v6160
        %v6162 = vrot.slane %v6142, %v6161
        %v6164 = vmul.f32 %v6157, %v6162
        %v6166 = vlaneseq
        %v6167 = vshrl.u32 %v6166, 7
        %v6168 = vsub.s32 0, %v6167
        %v6169 = vrot.slane %v6144, %v6168
        %v6171 = vadd.f32 %v6164, %v6169
        %s6172 = scalar_lea.vmem [#allocation34], 32
        %v6173 = vld [vmem:[%s6172] sm:$0xff]
        %v6174 = vld [vmem:[%s6172 + $0x8] sm:$0xff]
        %v6175 = vld [vmem:[%s6172 + $0x10] sm:$0xff]
        %v6176 = vld [vmem:[%s6172 + $0x18] sm:$0xff]
        %s6177 = scalar_lea.vmem [#allocation35], 1
        %v6178 = vld [vmem:[%s6177] sm:$0x1]
        %v6180 = vlaneseq
        %v6181 = vshrl.u32 %v6180, 7
        %v6182 = vsub.s32 0, %v6181
        %v6183 = vrot.slane %v6178, %v6182
        %v6186 = vsel %vm2348, %v6171, 0
        %6188 = vmatprep.subr.mxu0 0.0
        %6189 = vmatpush1.msra.mxu0 0.0
        %6190 = vmatprep.subr.mxu0 0.0
        %6191 = vmatpush1.msra.mxu0 0.0
        %6192 = vmatprep.subr.mxu0 0.0
        %6193 = vmatpush1.msra.mxu0 0.0
        %6194 = vmatprep.subr.mxu0 0.0
        %6195 = vmatpush1.msra.mxu0 0.0
        %6196 = vmatprep.subr.mxu0 0.0
        %6197 = vmatpush1.msra.mxu0 0.0
        %6198 = vmatprep.subr.mxu0 0.0
        %6199 = vmatpush1.msra.mxu0 0.0
        %6200 = vmatprep.subr.mxu0 0.0
        %6201 = vmatpush1.msra.mxu0 0.0
        %6202 = vmatprep.subr.mxu0 0.0
        %6203 = vmatpush1.msra.mxu0 0.0
        %6204 = vmatprep.subr.mxu0 0.0
        %6205 = vmatpush1.msra.mxu0 0.0
        %6206 = vmatprep.subr.mxu0 0.0
        %6207 = vmatpush1.msra.mxu0 0.0
        %6208 = vmatprep.subr.mxu0 0.0
        %6209 = vmatpush1.msra.mxu0 0.0
        %6210 = vmatprep.subr.mxu0 0.0
        %6211 = vmatpush1.msra.mxu0 0.0
        %6212 = vmatprep.subr.mxu0 0.0
        %6213 = vmatpush1.msra.mxu0 %v6176
        %6214 = vmatprep.subr.mxu0 0.0
        %6215 = vmatpush1.msra.mxu0 %v6175
        %6216 = vmatprep.subr.mxu0 0.0
        %6217 = vmatpush1.msra.mxu0 %v6174
        %6218 = vmatprep.subr.mxu0 0.0
        %6219 = vmatpush1.msra.mxu0 %v6173
        %6220 = vmatprep.subr.mxu0 0.0
        %6221 = vmatpush2.msra.mxu0 0.0
        %6222 = vmatprep.subr.mxu0 0.0
        %6223 = vmatpush2.msra.mxu0 0.0
        %6224 = vmatprep.subr.mxu0 0.0
        %6225 = vmatpush2.msra.mxu0 0.0
        %6226 = vmatprep.subr.mxu0 0.0
        %6227 = vmatpush2.msra.mxu0 0.0
        %6228 = vmatprep.subr.mxu0 0.0
        %6229 = vmatpush2.msra.mxu0 0.0
        %6230 = vmatprep.subr.mxu0 0.0
        %6231 = vmatpush2.msra.mxu0 0.0
        %6232 = vmatprep.subr.mxu0 0.0
        %6233 = vmatpush2.msra.mxu0 0.0
        %6234 = vmatprep.subr.mxu0 0.0
        %6235 = vmatpush2.msra.mxu0 0.0
        %6236 = vmatprep.subr.mxu0 0.0
        %6237 = vmatpush2.msra.mxu0 0.0
        %6238 = vmatprep.subr.mxu0 0.0
        %6239 = vmatpush2.msra.mxu0 0.0
        %6240 = vmatprep.subr.mxu0 0.0
        %6241 = vmatpush2.msra.mxu0 0.0
        %6242 = vmatprep.subr.mxu0 0.0
        %6243 = vmatpush2.msra.mxu0 0.0
        %6244 = vmatprep.subr.mxu0 0.0
        %6245 = vmatpush2.msra.mxu0 0.0
        %6246 = vmatprep.subr.mxu0 0.0
        %6247 = vmatpush2.msra.mxu0 0.0
        %6248 = vmatprep.subr.mxu0 0.0
        %6249 = vmatpush2.msra.mxu0 0.0
        %6250 = vmatprep.subr.mxu0 0.0
        %6251 = vmatpush2.msra.mxu0 0.0
        %6252 = vmatprep.mubr.f32.mxu0 0.0
        %6253 = vmatmul.mubr.f32.gmra.mxu0 %v6186
        %v6254 = vpop.f32.mrf.mxu0
        %v6255 = vadd.f32 %v6183, %v6254
        %v6256 = vpop.f32.mrf.mxu0
        %6257 = vdwg.mxu0
        %s6258 = scalar_lea.vmem [#allocation37], 32
        %v6259 = vld [vmem:[%s6258] sm:$0xff]
        %v6260 = vld [vmem:[%s6258 + $0x8] sm:$0xff]
        %v6261 = vld [vmem:[%s6258 + $0x10] sm:$0xff]
        %v6262 = vld [vmem:[%s6258 + $0x18] sm:$0xff]
        %s6263 = scalar_lea.vmem [#allocation38], 1
        %v6264 = vld [vmem:[%s6263] sm:$0x1]
        %v6266 = vlaneseq
        %v6267 = vshrl.u32 %v6266, 7
        %v6268 = vsub.s32 0, %v6267
        %v6269 = vrot.slane %v6264, %v6268
        %6271 = vmatprep.subr.mxu0 0.0
        %6272 = vmatpush1.msra.mxu0 0.0
        %6273 = vmatprep.subr.mxu0 0.0
        %6274 = vmatpush1.msra.mxu0 0.0
        %6275 = vmatprep.subr.mxu0 0.0
        %6276 = vmatpush1.msra.mxu0 0.0
        %6277 = vmatprep.subr.mxu0 0.0
        %6278 = vmatpush1.msra.mxu0 0.0
        %6279 = vmatprep.subr.mxu0 0.0
        %6280 = vmatpush1.msra.mxu0 0.0
        %6281 = vmatprep.subr.mxu0 0.0
        %6282 = vmatpush1.msra.mxu0 0.0
        %6283 = vmatprep.subr.mxu0 0.0
        %6284 = vmatpush1.msra.mxu0 0.0
        %6285 = vmatprep.subr.mxu0 0.0
        %6286 = vmatpush1.msra.mxu0 0.0
        %6287 = vmatprep.subr.mxu0 0.0
        %6288 = vmatpush1.msra.mxu0 0.0
        %6289 = vmatprep.subr.mxu0 0.0
        %6290 = vmatpush1.msra.mxu0 0.0
        %6291 = vmatprep.subr.mxu0 0.0
        %6292 = vmatpush1.msra.mxu0 0.0
        %6293 = vmatprep.subr.mxu0 0.0
        %6294 = vmatpush1.msra.mxu0 0.0
        %6295 = vmatprep.subr.mxu0 0.0
        %6296 = vmatpush1.msra.mxu0 %v6262
        %6297 = vmatprep.subr.mxu0 0.0
        %6298 = vmatpush1.msra.mxu0 %v6261
        %6299 = vmatprep.subr.mxu0 0.0
        %6300 = vmatpush1.msra.mxu0 %v6260
        %6301 = vmatprep.subr.mxu0 0.0
        %6302 = vmatpush1.msra.mxu0 %v6259
        %6303 = vmatprep.subr.mxu0 0.0
        %6304 = vmatpush2.msra.mxu0 0.0
        %6305 = vmatprep.subr.mxu0 0.0
        %6306 = vmatpush2.msra.mxu0 0.0
        %6307 = vmatprep.subr.mxu0 0.0
        %6308 = vmatpush2.msra.mxu0 0.0
        %6309 = vmatprep.subr.mxu0 0.0
        %6310 = vmatpush2.msra.mxu0 0.0
        %6311 = vmatprep.subr.mxu0 0.0
        %6312 = vmatpush2.msra.mxu0 0.0
        %6313 = vmatprep.subr.mxu0 0.0
        %6314 = vmatpush2.msra.mxu0 0.0
        %6315 = vmatprep.subr.mxu0 0.0
        %6316 = vmatpush2.msra.mxu0 0.0
        %6317 = vmatprep.subr.mxu0 0.0
        %6318 = vmatpush2.msra.mxu0 0.0
        %6319 = vmatprep.subr.mxu0 0.0
        %6320 = vmatpush2.msra.mxu0 0.0
        %6321 = vmatprep.subr.mxu0 0.0
        %6322 = vmatpush2.msra.mxu0 0.0
        %6323 = vmatprep.subr.mxu0 0.0
        %6324 = vmatpush2.msra.mxu0 0.0
        %6325 = vmatprep.subr.mxu0 0.0
        %6326 = vmatpush2.msra.mxu0 0.0
        %6327 = vmatprep.subr.mxu0 0.0
        %6328 = vmatpush2.msra.mxu0 0.0
        %6329 = vmatprep.subr.mxu0 0.0
        %6330 = vmatpush2.msra.mxu0 0.0
        %6331 = vmatprep.subr.mxu0 0.0
        %6332 = vmatpush2.msra.mxu0 0.0
        %6333 = vmatprep.subr.mxu0 0.0
        %6334 = vmatpush2.msra.mxu0 0.0
        %6335 = vmatprep.mubr.f32.mxu0 0.0
        %6336 = vmatmul.mubr.f32.gmra.mxu0 %v4816
        %v6337 = vpop.f32.mrf.mxu0
        %v6338 = vadd.f32 %v6269, %v6337
        %v6339 = vpop.f32.mrf.mxu0
        %6340 = vdwg.mxu0
        %s6341 = scalar_lea.vmem [#allocation40], 32
        %v6342 = vld [vmem:[%s6341] sm:$0xff]
        %v6343 = vld [vmem:[%s6341 + $0x8] sm:$0xff]
        %v6344 = vld [vmem:[%s6341 + $0x10] sm:$0xff]
        %v6345 = vld [vmem:[%s6341 + $0x18] sm:$0xff]
        %s6346 = scalar_lea.vmem [#allocation41], 1
        %v6347 = vld [vmem:[%s6346] sm:$0x1]
        %v6349 = vlaneseq
        %v6350 = vshrl.u32 %v6349, 7
        %v6351 = vsub.s32 0, %v6350
        %v6352 = vrot.slane %v6347, %v6351
        %6354 = vmatprep.subr.mxu0 0.0
        %6355 = vmatpush1.msra.mxu0 0.0
        %6356 = vmatprep.subr.mxu0 0.0
        %6357 = vmatpush1.msra.mxu0 0.0
        %6358 = vmatprep.subr.mxu0 0.0
        %6359 = vmatpush1.msra.mxu0 0.0
        %6360 = vmatprep.subr.mxu0 0.0
        %6361 = vmatpush1.msra.mxu0 0.0
        %6362 = vmatprep.subr.mxu0 0.0
        %6363 = vmatpush1.msra.mxu0 0.0
        %6364 = vmatprep.subr.mxu0 0.0
        %6365 = vmatpush1.msra.mxu0 0.0
        %6366 = vmatprep.subr.mxu0 0.0
        %6367 = vmatpush1.msra.mxu0 0.0
        %6368 = vmatprep.subr.mxu0 0.0
        %6369 = vmatpush1.msra.mxu0 0.0
        %6370 = vmatprep.subr.mxu0 0.0
        %6371 = vmatpush1.msra.mxu0 0.0
        %6372 = vmatprep.subr.mxu0 0.0
        %6373 = vmatpush1.msra.mxu0 0.0
        %6374 = vmatprep.subr.mxu0 0.0
        %6375 = vmatpush1.msra.mxu0 0.0
        %6376 = vmatprep.subr.mxu0 0.0
        %6377 = vmatpush1.msra.mxu0 0.0
        %6378 = vmatprep.subr.mxu0 0.0
        %6379 = vmatpush1.msra.mxu0 %v6345
        %6380 = vmatprep.subr.mxu0 0.0
        %6381 = vmatpush1.msra.mxu0 %v6344
        %6382 = vmatprep.subr.mxu0 0.0
        %6383 = vmatpush1.msra.mxu0 %v6343
        %6384 = vmatprep.subr.mxu0 0.0
        %6385 = vmatpush1.msra.mxu0 %v6342
        %6386 = vmatprep.subr.mxu0 0.0
        %6387 = vmatpush2.msra.mxu0 0.0
        %6388 = vmatprep.subr.mxu0 0.0
        %6389 = vmatpush2.msra.mxu0 0.0
        %6390 = vmatprep.subr.mxu0 0.0
        %6391 = vmatpush2.msra.mxu0 0.0
        %6392 = vmatprep.subr.mxu0 0.0
        %6393 = vmatpush2.msra.mxu0 0.0
        %6394 = vmatprep.subr.mxu0 0.0
        %6395 = vmatpush2.msra.mxu0 0.0
        %6396 = vmatprep.subr.mxu0 0.0
        %6397 = vmatpush2.msra.mxu0 0.0
        %6398 = vmatprep.subr.mxu0 0.0
        %6399 = vmatpush2.msra.mxu0 0.0
        %6400 = vmatprep.subr.mxu0 0.0
        %6401 = vmatpush2.msra.mxu0 0.0
        %6402 = vmatprep.subr.mxu0 0.0
        %6403 = vmatpush2.msra.mxu0 0.0
        %6404 = vmatprep.subr.mxu0 0.0
        %6405 = vmatpush2.msra.mxu0 0.0
        %6406 = vmatprep.subr.mxu0 0.0
        %6407 = vmatpush2.msra.mxu0 0.0
        %6408 = vmatprep.subr.mxu0 0.0
        %6409 = vmatpush2.msra.mxu0 0.0
        %6410 = vmatprep.subr.mxu0 0.0
        %6411 = vmatpush2.msra.mxu0 0.0
        %6412 = vmatprep.subr.mxu0 0.0
        %6413 = vmatpush2.msra.mxu0 0.0
        %6414 = vmatprep.subr.mxu0 0.0
        %6415 = vmatpush2.msra.mxu0 0.0
        %6416 = vmatprep.subr.mxu0 0.0
        %6417 = vmatpush2.msra.mxu0 0.0
        %6418 = vmatprep.mubr.f32.mxu0 0.0
        %6419 = vmatmul.mubr.f32.gmra.mxu0 %v4816
        %v6420 = vpop.f32.mrf.mxu0
        %v6421 = vadd.f32 %v6352, %v6420
        %v6422 = vpop.f32.mrf.mxu0
        %6423 = vdwg.mxu0
        %s6424 = scalar_lea.vmem [#allocation43], 32
        %v6425 = vld [vmem:[%s6424] sm:$0xff]
        %v6426 = vld [vmem:[%s6424 + $0x8] sm:$0xff]
        %v6427 = vld [vmem:[%s6424 + $0x10] sm:$0xff]
        %v6428 = vld [vmem:[%s6424 + $0x18] sm:$0xff]
        %s6429 = scalar_lea.vmem [#allocation44], 1
        %v6430 = vld [vmem:[%s6429] sm:$0x1]
        %v6431 = vmul.f32 %v6255, %v2219
        %v6432 = vmul.f32 %v6255, %v2224
        %v6433 = vmul.f32 %v6255, %v2229
        %v6434 = vmul.f32 %v6255, %v2234
        %v6436 = vsel %vm2348, %v6431, 0
        %v6439 = vsel %vm2348, %v6432, 0
        %v6442 = vsel %vm2348, %v6433, 0
        %v6445 = vsel %vm2348, %v6434, 0
        %v6448 = vsel %vm2348, %v6338, 0
        %6450 = vmatprep.subr.mxu0 0.0
        %6451 = vmatpush1.xpose.msra.mxu0 0.0
        %6452 = vmatprep.subr.mxu0 0.0
        %6453 = vmatpush1.xpose.msra.mxu0 0.0
        %6454 = vmatprep.subr.mxu0 0.0
        %6455 = vmatpush1.xpose.msra.mxu0 0.0
        %6456 = vmatprep.subr.mxu0 0.0
        %6457 = vmatpush1.xpose.msra.mxu0 0.0
        %6458 = vmatprep.subr.mxu0 0.0
        %6459 = vmatpush1.xpose.msra.mxu0 0.0
        %6460 = vmatprep.subr.mxu0 0.0
        %6461 = vmatpush1.xpose.msra.mxu0 0.0
        %6462 = vmatprep.subr.mxu0 0.0
        %6463 = vmatpush1.xpose.msra.mxu0 0.0
        %6464 = vmatprep.subr.mxu0 0.0
        %6465 = vmatpush1.xpose.msra.mxu0 0.0
        %6466 = vmatprep.subr.mxu0 0.0
        %6467 = vmatpush1.xpose.msra.mxu0 0.0
        %6468 = vmatprep.subr.mxu0 0.0
        %6469 = vmatpush1.xpose.msra.mxu0 0.0
        %6470 = vmatprep.subr.mxu0 0.0
        %6471 = vmatpush1.xpose.msra.mxu0 0.0
        %6472 = vmatprep.subr.mxu0 0.0
        %6473 = vmatpush1.xpose.msra.mxu0 0.0
        %6474 = vmatprep.subr.mxu0 0.0
        %6475 = vmatpush1.xpose.msra.mxu0 0.0
        %6476 = vmatprep.subr.mxu0 0.0
        %6477 = vmatpush1.xpose.msra.mxu0 0.0
        %6478 = vmatprep.subr.mxu0 0.0
        %6479 = vmatpush1.xpose.msra.mxu0 0.0
        %6480 = vmatprep.subr.mxu0 0.0
        %6481 = vmatpush1.xpose.msra.mxu0 %v6448
        %6482 = vmatprep.subr.mxu0 0.0
        %6483 = vmatpush2.xpose.msra.mxu0 0.0
        %6484 = vmatprep.subr.mxu0 0.0
        %6485 = vmatpush2.xpose.msra.mxu0 0.0
        %6486 = vmatprep.subr.mxu0 0.0
        %6487 = vmatpush2.xpose.msra.mxu0 0.0
        %6488 = vmatprep.subr.mxu0 0.0
        %6489 = vmatpush2.xpose.msra.mxu0 0.0
        %6490 = vmatprep.subr.mxu0 0.0
        %6491 = vmatpush2.xpose.msra.mxu0 0.0
        %6492 = vmatprep.subr.mxu0 0.0
        %6493 = vmatpush2.xpose.msra.mxu0 0.0
        %6494 = vmatprep.subr.mxu0 0.0
        %6495 = vmatpush2.xpose.msra.mxu0 0.0
        %6496 = vmatprep.subr.mxu0 0.0
        %6497 = vmatpush2.xpose.msra.mxu0 0.0
        %6498 = vmatprep.subr.mxu0 0.0
        %6499 = vmatpush2.xpose.msra.mxu0 0.0
        %6500 = vmatprep.subr.mxu0 0.0
        %6501 = vmatpush2.xpose.msra.mxu0 0.0
        %6502 = vmatprep.subr.mxu0 0.0
        %6503 = vmatpush2.xpose.msra.mxu0 0.0
        %6504 = vmatprep.subr.mxu0 0.0
        %6505 = vmatpush2.xpose.msra.mxu0 0.0
        %6506 = vmatprep.subr.mxu0 0.0
        %6507 = vmatpush2.xpose.msra.mxu0 0.0
        %6508 = vmatprep.subr.mxu0 0.0
        %6509 = vmatpush2.xpose.msra.mxu0 0.0
        %6510 = vmatprep.subr.mxu0 0.0
        %6511 = vmatpush2.xpose.msra.mxu0 0.0
        %6512 = vmatprep.subr.mxu0 0.0
        %6513 = vmatpush2.xpose.msra.mxu0 0.0
        %6514 = vmatprep.mubr.f32.mxu0 0.0
        %6515 = vmatmul.mubr.f32.gmra.mxu0 %v6436
        %v6516 = vpop.f32.mrf.mxu0
        %v6517 = vadd.f32 0.0, %v6516
        %v6518 = vpop.f32.mrf.mxu0
        %6519 = vmatprep.mubr.f32.mxu0 0.0
        %6520 = vmatmul.mubr.f32.gmra.mxu0 %v6439
        %v6521 = vpop.f32.mrf.mxu0
        %v6522 = vadd.f32 0.0, %v6521
        %v6523 = vpop.f32.mrf.mxu0
        %6524 = vmatprep.mubr.f32.mxu0 0.0
        %6525 = vmatmul.mubr.f32.gmra.mxu0 %v6442
        %v6526 = vpop.f32.mrf.mxu0
        %v6527 = vadd.f32 0.0, %v6526
        %v6528 = vpop.f32.mrf.mxu0
        %6529 = vmatprep.mubr.f32.mxu0 0.0
        %6530 = vmatmul.mubr.f32.gmra.mxu0 %v6445
        %v6531 = vpop.f32.mrf.mxu0
        %v6532 = vadd.f32 0.0, %v6531
        %v6533 = vpop.f32.mrf.mxu0
        %6534 = vdwg.mxu0
        %v6535 = vmul.f32 %v6517, 0.35355338
        %v6536 = vmul.f32 %v6522, 0.35355338
        %v6537 = vmul.f32 %v6527, 0.35355338
        %v6538 = vmul.f32 %v6532, 0.35355338
        %v6539 = vadd.f32 %v6535, %v2236
        %v6540 = vadd.f32 %v6536, %v2236
        %v6541 = vadd.f32 %v6537, %v2236
        %v6542 = vadd.f32 %v6538, %v2236
        %v6543 = vsel %vm2701, %v6539, -inf
        %6544 = vmax.xlane.f32.xlu0 %v6543
        %v6545 = vpop.xlane.xlu0 %6544
        %v6546 = vsel %vm2701, %v6540, -inf
        %6547 = vmax.xlane.f32.xlu0 %v6546
        %v6548 = vpop.xlane.xlu0 %6547
        %v6549 = vsel %vm2701, %v6541, -inf
        %6550 = vmax.xlane.f32.xlu0 %v6549
        %v6551 = vpop.xlane.xlu0 %6550
        %v6552 = vsel %vm2701, %v6542, -inf
        %6553 = vmax.xlane.f32.xlu0 %v6552
        %v6554 = vpop.xlane.xlu0 %6553
        %v6555 = vsub.f32 %v6539, %v6545
        %v6556 = vsub.f32 %v6540, %v6548
        %v6557 = vsub.f32 %v6541, %v6551
        %v6558 = vsub.f32 %v6542, %v6554
        %v6559 = vmul.f32 %v6555, 1.442695
        %v6560 = vpow.pop %v6559
        %v6561 = vmul.f32 %v6556, 1.442695
        %v6562 = vpow.pop %v6561
        %v6563 = vmul.f32 %v6557, 1.442695
        %v6564 = vpow.pop %v6563
        %v6565 = vmul.f32 %v6558, 1.442695
        %v6566 = vpow.pop %v6565
        %v6567 = vsel %vm2701, %v6560, 0.0
        %6568 = vadd.xlane.f32.xlu0 %v6567
        %v6569 = vpop.xlane.xlu0 %6568
        %v6570 = vsel %vm2701, %v6562, 0.0
        %6571 = vadd.xlane.f32.xlu0 %v6570
        %v6572 = vpop.xlane.xlu0 %6571
        %v6573 = vsel %vm2701, %v6564, 0.0
        %6574 = vadd.xlane.f32.xlu0 %v6573
        %v6575 = vpop.xlane.xlu0 %6574
        %v6576 = vsel %vm2701, %v6566, 0.0
        %6577 = vadd.xlane.f32.xlu0 %v6576
        %v6578 = vpop.xlane.xlu0 %6577
        %v6579 = vrcp.pop %v6569
        %v6580 = vmul.f32 %v6560, %v6579
        %v6581 = vrcp.pop %v6572
        %v6582 = vmul.f32 %v6562, %v6581
        %v6583 = vrcp.pop %v6575
        %v6584 = vmul.f32 %v6564, %v6583
        %v6585 = vrcp.pop %v6578
        %v6586 = vmul.f32 %v6566, %v6585
        %v6588 = vsel %vm2701, %v6580, 0
        %v6591 = vsel %vm2701, %v6582, 0
        %v6594 = vsel %vm2701, %v6584, 0
        %v6597 = vsel %vm2701, %v6586, 0
        %6599 = vmatprep.subr.mxu0 0.0
        %6600 = vmatpush1.msra.mxu0 0.0
        %6601 = vmatprep.subr.mxu0 0.0
        %6602 = vmatpush1.msra.mxu0 0.0
        %6603 = vmatprep.subr.mxu0 0.0
        %6604 = vmatpush1.msra.mxu0 0.0
        %6605 = vmatprep.subr.mxu0 0.0
        %6606 = vmatpush1.msra.mxu0 0.0
        %6607 = vmatprep.subr.mxu0 0.0
        %6608 = vmatpush1.msra.mxu0 0.0
        %6609 = vmatprep.subr.mxu0 0.0
        %6610 = vmatpush1.msra.mxu0 0.0
        %6611 = vmatprep.subr.mxu0 0.0
        %6612 = vmatpush1.msra.mxu0 0.0
        %6613 = vmatprep.subr.mxu0 0.0
        %6614 = vmatpush1.msra.mxu0 0.0
        %6615 = vmatprep.subr.mxu0 0.0
        %6616 = vmatpush1.msra.mxu0 0.0
        %6617 = vmatprep.subr.mxu0 0.0
        %6618 = vmatpush1.msra.mxu0 0.0
        %6619 = vmatprep.subr.mxu0 0.0
        %6620 = vmatpush1.msra.mxu0 0.0
        %6621 = vmatprep.subr.mxu0 0.0
        %6622 = vmatpush1.msra.mxu0 0.0
        %6623 = vmatprep.subr.mxu0 0.0
        %6624 = vmatpush1.msra.mxu0 0.0
        %6625 = vmatprep.subr.mxu0 0.0
        %6626 = vmatpush1.msra.mxu0 0.0
        %6627 = vmatprep.subr.mxu0 0.0
        %6628 = vmatpush1.msra.mxu0 0.0
        %6629 = vmatprep.subr.mxu0 0.0
        %6630 = vmatpush1.msra.mxu0 %v6421
        %6631 = vmatprep.subr.mxu0 0.0
        %6632 = vmatpush2.msra.mxu0 0.0
        %6633 = vmatprep.subr.mxu0 0.0
        %6634 = vmatpush2.msra.mxu0 0.0
        %6635 = vmatprep.subr.mxu0 0.0
        %6636 = vmatpush2.msra.mxu0 0.0
        %6637 = vmatprep.subr.mxu0 0.0
        %6638 = vmatpush2.msra.mxu0 0.0
        %6639 = vmatprep.subr.mxu0 0.0
        %6640 = vmatpush2.msra.mxu0 0.0
        %6641 = vmatprep.subr.mxu0 0.0
        %6642 = vmatpush2.msra.mxu0 0.0
        %6643 = vmatprep.subr.mxu0 0.0
        %6644 = vmatpush2.msra.mxu0 0.0
        %6645 = vmatprep.subr.mxu0 0.0
        %6646 = vmatpush2.msra.mxu0 0.0
        %6647 = vmatprep.subr.mxu0 0.0
        %6648 = vmatpush2.msra.mxu0 0.0
        %6649 = vmatprep.subr.mxu0 0.0
        %6650 = vmatpush2.msra.mxu0 0.0
        %6651 = vmatprep.subr.mxu0 0.0
        %6652 = vmatpush2.msra.mxu0 0.0
        %6653 = vmatprep.subr.mxu0 0.0
        %6654 = vmatpush2.msra.mxu0 0.0
        %6655 = vmatprep.subr.mxu0 0.0
        %6656 = vmatpush2.msra.mxu0 0.0
        %6657 = vmatprep.subr.mxu0 0.0
        %6658 = vmatpush2.msra.mxu0 0.0
        %6659 = vmatprep.subr.mxu0 0.0
        %6660 = vmatpush2.msra.mxu0 0.0
        %6661 = vmatprep.subr.mxu0 0.0
        %6662 = vmatpush2.msra.mxu0 0.0
        %6663 = vmatprep.mubr.f32.mxu0 0.0
        %6664 = vmatmul.mubr.f32.gmra.mxu0 %v6588
        %v6665 = vpop.f32.mrf.mxu0
        %v6666 = vadd.f32 0.0, %v6665
        %v6667 = vpop.f32.mrf.mxu0
        %6668 = vmatprep.mubr.f32.mxu0 0.0
        %6669 = vmatmul.mubr.f32.gmra.mxu0 %v6591
        %v6670 = vpop.f32.mrf.mxu0
        %v6671 = vadd.f32 0.0, %v6670
        %v6672 = vpop.f32.mrf.mxu0
        %6673 = vmatprep.mubr.f32.mxu0 0.0
        %6674 = vmatmul.mubr.f32.gmra.mxu0 %v6594
        %v6675 = vpop.f32.mrf.mxu0
        %v6676 = vadd.f32 0.0, %v6675
        %v6677 = vpop.f32.mrf.mxu0
        %6678 = vmatprep.mubr.f32.mxu0 0.0
        %6679 = vmatmul.mubr.f32.gmra.mxu0 %v6597
        %v6680 = vpop.f32.mrf.mxu0
        %v6681 = vadd.f32 0.0, %v6680
        %v6682 = vpop.f32.mrf.mxu0
        %6683 = vdwg.mxu0
        %v6684 = vmul.f32 %v6666, %v2219
        %v6685 = vmul.f32 %v6671, %v2224
        %v6686 = vmul.f32 %v6676, %v2229
        %v6687 = vmul.f32 %v6681, %v2234
        %v6688 = vadd.f32 %v6684, %v6685
        %v6689 = vadd.f32 %v6688, %v6686
        %v6690 = vadd.f32 %v6689, %v6687
        %v6692 = vlaneseq
        %v6693 = vshrl.u32 %v6692, 7
        %v6694 = vsub.s32 0, %v6693
        %v6695 = vrot.slane %v6430, %v6694
        %v6698 = vsel %vm2348, %v6690, 0
        %6700 = vmatprep.subr.mxu0 0.0
        %6701 = vmatpush1.msra.mxu0 0.0
        %6702 = vmatprep.subr.mxu0 0.0
        %6703 = vmatpush1.msra.mxu0 0.0
        %6704 = vmatprep.subr.mxu0 0.0
        %6705 = vmatpush1.msra.mxu0 0.0
        %6706 = vmatprep.subr.mxu0 0.0
        %6707 = vmatpush1.msra.mxu0 0.0
        %6708 = vmatprep.subr.mxu0 0.0
        %6709 = vmatpush1.msra.mxu0 0.0
        %6710 = vmatprep.subr.mxu0 0.0
        %6711 = vmatpush1.msra.mxu0 0.0
        %6712 = vmatprep.subr.mxu0 0.0
        %6713 = vmatpush1.msra.mxu0 0.0
        %6714 = vmatprep.subr.mxu0 0.0
        %6715 = vmatpush1.msra.mxu0 0.0
        %6716 = vmatprep.subr.mxu0 0.0
        %6717 = vmatpush1.msra.mxu0 0.0
        %6718 = vmatprep.subr.mxu0 0.0
        %6719 = vmatpush1.msra.mxu0 0.0
        %6720 = vmatprep.subr.mxu0 0.0
        %6721 = vmatpush1.msra.mxu0 0.0
        %6722 = vmatprep.subr.mxu0 0.0
        %6723 = vmatpush1.msra.mxu0 0.0
        %6724 = vmatprep.subr.mxu0 0.0
        %6725 = vmatpush1.msra.mxu0 %v6428
        %6726 = vmatprep.subr.mxu0 0.0
        %6727 = vmatpush1.msra.mxu0 %v6427
        %6728 = vmatprep.subr.mxu0 0.0
        %6729 = vmatpush1.msra.mxu0 %v6426
        %6730 = vmatprep.subr.mxu0 0.0
        %6731 = vmatpush1.msra.mxu0 %v6425
        %6732 = vmatprep.subr.mxu0 0.0
        %6733 = vmatpush2.msra.mxu0 0.0
        %6734 = vmatprep.subr.mxu0 0.0
        %6735 = vmatpush2.msra.mxu0 0.0
        %6736 = vmatprep.subr.mxu0 0.0
        %6737 = vmatpush2.msra.mxu0 0.0
        %6738 = vmatprep.subr.mxu0 0.0
        %6739 = vmatpush2.msra.mxu0 0.0
        %6740 = vmatprep.subr.mxu0 0.0
        %6741 = vmatpush2.msra.mxu0 0.0
        %6742 = vmatprep.subr.mxu0 0.0
        %6743 = vmatpush2.msra.mxu0 0.0
        %6744 = vmatprep.subr.mxu0 0.0
        %6745 = vmatpush2.msra.mxu0 0.0
        %6746 = vmatprep.subr.mxu0 0.0
        %6747 = vmatpush2.msra.mxu0 0.0
        %6748 = vmatprep.subr.mxu0 0.0
        %6749 = vmatpush2.msra.mxu0 0.0
        %6750 = vmatprep.subr.mxu0 0.0
        %6751 = vmatpush2.msra.mxu0 0.0
        %6752 = vmatprep.subr.mxu0 0.0
        %6753 = vmatpush2.msra.mxu0 0.0
        %6754 = vmatprep.subr.mxu0 0.0
        %6755 = vmatpush2.msra.mxu0 0.0
        %6756 = vmatprep.subr.mxu0 0.0
        %6757 = vmatpush2.msra.mxu0 0.0
        %6758 = vmatprep.subr.mxu0 0.0
        %6759 = vmatpush2.msra.mxu0 0.0
        %6760 = vmatprep.subr.mxu0 0.0
        %6761 = vmatpush2.msra.mxu0 0.0
        %6762 = vmatprep.subr.mxu0 0.0
        %6763 = vmatpush2.msra.mxu0 0.0
        %6764 = vmatprep.mubr.f32.mxu0 0.0
        %6765 = vmatmul.mubr.f32.gmra.mxu0 %v6698
        %v6766 = vpop.f32.mrf.mxu0
        %v6767 = vadd.f32 %v6695, %v6766
        %v6768 = vpop.f32.mrf.mxu0
        %6769 = vdwg.mxu0
        %v6770 = vadd.f32 %v6171, %v6767
        %s6771 = scalar_lea.vmem [#allocation55], 1
        %v6772 = vld [vmem:[%s6771] sm:$0x1]
        %s6773 = scalar_lea.vmem [#allocation56], 1
        %v6774 = vld [vmem:[%s6773] sm:$0x1]
        %v6775 = vsel %vm2348, %v6770, 0.0
        %6776 = vadd.xlane.f32.xlu0 %v6775
        %v6777 = vpop.xlane.xlu0 %6776
        %v6778 = vmul.f32 %v6777, %v2935
        %v6779 = vsub.f32 %v6770, %v6778
        %v6780 = vmul.f32 %v6779, %v6779
        %v6781 = vsel %vm2348, %v6780, 0.0
        %6782 = vadd.xlane.f32.xlu0 %v6781
        %v6783 = vpop.xlane.xlu0 %6782
        %v6784 = vmul.f32 %v6783, %v2935
        %v6785 = vadd.f32 %v6784, 1e-05
        %v6786 = vrsqrt.pop %v6785
        %v6787 = vmul.f32 %v6779, %v6786
        %v6789 = vlaneseq
        %v6790 = vshrl.u32 %v6789, 7
        %v6791 = vsub.s32 0, %v6790
        %v6792 = vrot.slane %v6772, %v6791
        %v6794 = vmul.f32 %v6787, %v6792
        %v6796 = vlaneseq
        %v6797 = vshrl.u32 %v6796, 7
        %v6798 = vsub.s32 0, %v6797
        %v6799 = vrot.slane %v6774, %v6798
        %v6801 = vadd.f32 %v6794, %v6799
        %s6802 = scalar_lea.vmem [#allocation46], 32
        %v6803 = vld [vmem:[%s6802] sm:$0xff]
        %v6804 = vld [vmem:[%s6802 + $0x8] sm:$0xff]
        %v6805 = vld [vmem:[%s6802 + $0x10] sm:$0xff]
        %v6806 = vld [vmem:[%s6802 + $0x18] sm:$0xff]
        %s6807 = scalar_lea.vmem [#allocation47], 1
        %v6808 = vld [vmem:[%s6807] sm:$0x1]
        %v6810 = vlaneseq
        %v6811 = vshrl.u32 %v6810, 7
        %v6812 = vsub.s32 0, %v6811
        %v6813 = vrot.slane %v6808, %v6812
        %v6816 = vsel %vm2348, %v6801, 0
        %6818 = vmatprep.subr.mxu0 0.0
        %6819 = vmatpush1.msra.mxu0 0.0
        %6820 = vmatprep.subr.mxu0 0.0
        %6821 = vmatpush1.msra.mxu0 0.0
        %6822 = vmatprep.subr.mxu0 0.0
        %6823 = vmatpush1.msra.mxu0 0.0
        %6824 = vmatprep.subr.mxu0 0.0
        %6825 = vmatpush1.msra.mxu0 0.0
        %6826 = vmatprep.subr.mxu0 0.0
        %6827 = vmatpush1.msra.mxu0 0.0
        %6828 = vmatprep.subr.mxu0 0.0
        %6829 = vmatpush1.msra.mxu0 0.0
        %6830 = vmatprep.subr.mxu0 0.0
        %6831 = vmatpush1.msra.mxu0 0.0
        %6832 = vmatprep.subr.mxu0 0.0
        %6833 = vmatpush1.msra.mxu0 0.0
        %6834 = vmatprep.subr.mxu0 0.0
        %6835 = vmatpush1.msra.mxu0 0.0
        %6836 = vmatprep.subr.mxu0 0.0
        %6837 = vmatpush1.msra.mxu0 0.0
        %6838 = vmatprep.subr.mxu0 0.0
        %6839 = vmatpush1.msra.mxu0 0.0
        %6840 = vmatprep.subr.mxu0 0.0
        %6841 = vmatpush1.msra.mxu0 0.0
        %6842 = vmatprep.subr.mxu0 0.0
        %6843 = vmatpush1.msra.mxu0 %v6806
        %6844 = vmatprep.subr.mxu0 0.0
        %6845 = vmatpush1.msra.mxu0 %v6805
        %6846 = vmatprep.subr.mxu0 0.0
        %6847 = vmatpush1.msra.mxu0 %v6804
        %6848 = vmatprep.subr.mxu0 0.0
        %6849 = vmatpush1.msra.mxu0 %v6803
        %6850 = vmatprep.subr.mxu0 0.0
        %6851 = vmatpush2.msra.mxu0 0.0
        %6852 = vmatprep.subr.mxu0 0.0
        %6853 = vmatpush2.msra.mxu0 0.0
        %6854 = vmatprep.subr.mxu0 0.0
        %6855 = vmatpush2.msra.mxu0 0.0
        %6856 = vmatprep.subr.mxu0 0.0
        %6857 = vmatpush2.msra.mxu0 0.0
        %6858 = vmatprep.subr.mxu0 0.0
        %6859 = vmatpush2.msra.mxu0 0.0
        %6860 = vmatprep.subr.mxu0 0.0
        %6861 = vmatpush2.msra.mxu0 0.0
        %6862 = vmatprep.subr.mxu0 0.0
        %6863 = vmatpush2.msra.mxu0 0.0
        %6864 = vmatprep.subr.mxu0 0.0
        %6865 = vmatpush2.msra.mxu0 0.0
        %6866 = vmatprep.subr.mxu0 0.0
        %6867 = vmatpush2.msra.mxu0 0.0
        %6868 = vmatprep.subr.mxu0 0.0
        %6869 = vmatpush2.msra.mxu0 0.0
        %6870 = vmatprep.subr.mxu0 0.0
        %6871 = vmatpush2.msra.mxu0 0.0
        %6872 = vmatprep.subr.mxu0 0.0
        %6873 = vmatpush2.msra.mxu0 0.0
        %6874 = vmatprep.subr.mxu0 0.0
        %6875 = vmatpush2.msra.mxu0 0.0
        %6876 = vmatprep.subr.mxu0 0.0
        %6877 = vmatpush2.msra.mxu0 0.0
        %6878 = vmatprep.subr.mxu0 0.0
        %6879 = vmatpush2.msra.mxu0 0.0
        %6880 = vmatprep.subr.mxu0 0.0
        %6881 = vmatpush2.msra.mxu0 0.0
        %6882 = vmatprep.mubr.f32.mxu0 0.0
        %6883 = vmatmul.mubr.f32.gmra.mxu0 %v6816
        %v6884 = vpop.f32.mrf.mxu0
        %v6885 = vadd.f32 %v6813, %v6884
        %v6886 = vpop.f32.mrf.mxu0
        %6887 = vdwg.mxu0
        %v6888 = vmax.f32 %v6885, 0.0
        %s6889 = scalar_lea.vmem [#allocation49], 32
        %v6890 = vld [vmem:[%s6889] sm:$0xff]
        %v6891 = vld [vmem:[%s6889 + $0x8] sm:$0xff]
        %v6892 = vld [vmem:[%s6889 + $0x10] sm:$0xff]
        %v6893 = vld [vmem:[%s6889 + $0x18] sm:$0xff]
        %s6894 = scalar_lea.vmem [#allocation50], 1
        %v6895 = vld [vmem:[%s6894] sm:$0x1]
        %v6897 = vlaneseq
        %v6898 = vshrl.u32 %v6897, 7
        %v6899 = vsub.s32 0, %v6898
        %v6900 = vrot.slane %v6895, %v6899
        %v6903 = vsel %vm2348, %v6888, 0
        %6905 = vmatprep.subr.mxu0 0.0
        %6906 = vmatpush1.msra.mxu0 0.0
        %6907 = vmatprep.subr.mxu0 0.0
        %6908 = vmatpush1.msra.mxu0 0.0
        %6909 = vmatprep.subr.mxu0 0.0
        %6910 = vmatpush1.msra.mxu0 0.0
        %6911 = vmatprep.subr.mxu0 0.0
        %6912 = vmatpush1.msra.mxu0 0.0
        %6913 = vmatprep.subr.mxu0 0.0
        %6914 = vmatpush1.msra.mxu0 0.0
        %6915 = vmatprep.subr.mxu0 0.0
        %6916 = vmatpush1.msra.mxu0 0.0
        %6917 = vmatprep.subr.mxu0 0.0
        %6918 = vmatpush1.msra.mxu0 0.0
        %6919 = vmatprep.subr.mxu0 0.0
        %6920 = vmatpush1.msra.mxu0 0.0
        %6921 = vmatprep.subr.mxu0 0.0
        %6922 = vmatpush1.msra.mxu0 0.0
        %6923 = vmatprep.subr.mxu0 0.0
        %6924 = vmatpush1.msra.mxu0 0.0
        %6925 = vmatprep.subr.mxu0 0.0
        %6926 = vmatpush1.msra.mxu0 0.0
        %6927 = vmatprep.subr.mxu0 0.0
        %6928 = vmatpush1.msra.mxu0 0.0
        %6929 = vmatprep.subr.mxu0 0.0
        %6930 = vmatpush1.msra.mxu0 %v6893
        %6931 = vmatprep.subr.mxu0 0.0
        %6932 = vmatpush1.msra.mxu0 %v6892
        %6933 = vmatprep.subr.mxu0 0.0
        %6934 = vmatpush1.msra.mxu0 %v6891
        %6935 = vmatprep.subr.mxu0 0.0
        %6936 = vmatpush1.msra.mxu0 %v6890
        %6937 = vmatprep.subr.mxu0 0.0
        %6938 = vmatpush2.msra.mxu0 0.0
        %6939 = vmatprep.subr.mxu0 0.0
        %6940 = vmatpush2.msra.mxu0 0.0
        %6941 = vmatprep.subr.mxu0 0.0
        %6942 = vmatpush2.msra.mxu0 0.0
        %6943 = vmatprep.subr.mxu0 0.0
        %6944 = vmatpush2.msra.mxu0 0.0
        %6945 = vmatprep.subr.mxu0 0.0
        %6946 = vmatpush2.msra.mxu0 0.0
        %6947 = vmatprep.subr.mxu0 0.0
        %6948 = vmatpush2.msra.mxu0 0.0
        %6949 = vmatprep.subr.mxu0 0.0
        %6950 = vmatpush2.msra.mxu0 0.0
        %6951 = vmatprep.subr.mxu0 0.0
        %6952 = vmatpush2.msra.mxu0 0.0
        %6953 = vmatprep.subr.mxu0 0.0
        %6954 = vmatpush2.msra.mxu0 0.0
        %6955 = vmatprep.subr.mxu0 0.0
        %6956 = vmatpush2.msra.mxu0 0.0
        %6957 = vmatprep.subr.mxu0 0.0
        %6958 = vmatpush2.msra.mxu0 0.0
        %6959 = vmatprep.subr.mxu0 0.0
        %6960 = vmatpush2.msra.mxu0 0.0
        %6961 = vmatprep.subr.mxu0 0.0
        %6962 = vmatpush2.msra.mxu0 0.0
        %6963 = vmatprep.subr.mxu0 0.0
        %6964 = vmatpush2.msra.mxu0 0.0
        %6965 = vmatprep.subr.mxu0 0.0
        %6966 = vmatpush2.msra.mxu0 0.0
        %6967 = vmatprep.subr.mxu0 0.0
        %6968 = vmatpush2.msra.mxu0 0.0
        %6969 = vmatprep.mubr.f32.mxu0 0.0
        %6970 = vmatmul.mubr.f32.gmra.mxu0 %v6903
        %v6971 = vpop.f32.mrf.mxu0
        %v6972 = vadd.f32 %v6900, %v6971
        %v6973 = vpop.f32.mrf.mxu0
        %6974 = vdwg.mxu0
        %v6975 = vadd.f32 %v6801, %v6972
        %s6976 = scalar_lea.vmem [#allocation58], 1
        %v6977 = vld [vmem:[%s6976] sm:$0x1]
        %s6978 = scalar_lea.vmem [#allocation59], 1
        %v6979 = vld [vmem:[%s6978] sm:$0x1]
        %v6980 = vsel %vm2348, %v6975, 0.0
        %6981 = vadd.xlane.f32.xlu0 %v6980
        %v6982 = vpop.xlane.xlu0 %6981
        %v6983 = vmul.f32 %v6982, %v2935
        %v6984 = vsub.f32 %v6975, %v6983
        %v6985 = vmul.f32 %v6984, %v6984
        %v6986 = vsel %vm2348, %v6985, 0.0
        %6987 = vadd.xlane.f32.xlu0 %v6986
        %v6988 = vpop.xlane.xlu0 %6987
        %v6989 = vmul.f32 %v6988, %v2935
        %v6990 = vadd.f32 %v6989, 1e-05
        %v6991 = vrsqrt.pop %v6990
        %v6992 = vmul.f32 %v6984, %v6991
        %v6994 = vlaneseq
        %v6995 = vshrl.u32 %v6994, 7
        %v6996 = vsub.s32 0, %v6995
        %v6997 = vrot.slane %v6977, %v6996
        %v6999 = vmul.f32 %v6992, %v6997
        %v7001 = vlaneseq
        %v7002 = vshrl.u32 %v7001, 7
        %v7003 = vsub.s32 0, %v7002
        %v7004 = vrot.slane %v6979, %v7003
        %v7006 = vadd.f32 %v6999, %v7004
        %v7007 = vld [vmem:[#allocation64] sm:$0x1]
        %v7008 = vld [vmem:[#allocation65] sm:$0x1]
        %v7009 = vsel %vm2348, %v7006, 0.0
        %7010 = vadd.xlane.f32.xlu0 %v7009
        %v7011 = vpop.xlane.xlu0 %7010
        %v7012 = vmul.f32 %v7011, %v2935
        %v7013 = vsub.f32 %v7006, %v7012
        %v7014 = vmul.f32 %v7013, %v7013
        %v7015 = vsel %vm2348, %v7014, 0.0
        %7016 = vadd.xlane.f32.xlu0 %v7015
        %v7017 = vpop.xlane.xlu0 %7016
        %v7018 = vmul.f32 %v7017, %v2935
        %v7019 = vadd.f32 %v7018, 1e-05
        %v7020 = vrsqrt.pop %v7019
        %v7021 = vmul.f32 %v7013, %v7020
        %v7023 = vlaneseq
        %v7024 = vshrl.u32 %v7023, 7
        %v7025 = vsub.s32 0, %v7024
        %v7026 = vrot.slane %v7007, %v7025
        %v7028 = vmul.f32 %v7021, %v7026
        %v7030 = vlaneseq
        %v7031 = vshrl.u32 %v7030, 7
        %v7032 = vsub.s32 0, %v7031
        %v7033 = vrot.slane %v7008, %v7032
        %v7035 = vadd.f32 %v7028, %v7033
        %v7036 = vld [vmem:[%s13] sm:$0xff]
        %v7037 = vld [vmem:[%s13 + $0x8] sm:$0xff]
        %v7038 = vld [vmem:[%s13 + $0x10] sm:$0xff]
        %v7039 = vld [vmem:[%s13 + $0x18] sm:$0xff]
        %v7040 = vld [vmem:[#allocation5] sm:$0x1]
        %v7042 = vlaneseq
        %v7043 = vshrl.u32 %v7042, 7
        %v7044 = vsub.s32 0, %v7043
        %v7045 = vrot.slane %v7040, %v7044
        %v7048 = vsel %vm2348, %v7035, 0
        %7050 = vmatprep.subr.mxu0 0.0
        %7051 = vmatpush1.msra.mxu0 0.0
        %7052 = vmatprep.subr.mxu0 0.0
        %7053 = vmatpush1.msra.mxu0 0.0
        %7054 = vmatprep.subr.mxu0 0.0
        %7055 = vmatpush1.msra.mxu0 0.0
        %7056 = vmatprep.subr.mxu0 0.0
        %7057 = vmatpush1.msra.mxu0 0.0
        %7058 = vmatprep.subr.mxu0 0.0
        %7059 = vmatpush1.msra.mxu0 0.0
        %7060 = vmatprep.subr.mxu0 0.0
        %7061 = vmatpush1.msra.mxu0 0.0
        %7062 = vmatprep.subr.mxu0 0.0
        %7063 = vmatpush1.msra.mxu0 0.0
        %7064 = vmatprep.subr.mxu0 0.0
        %7065 = vmatpush1.msra.mxu0 0.0
        %7066 = vmatprep.subr.mxu0 0.0
        %7067 = vmatpush1.msra.mxu0 0.0
        %7068 = vmatprep.subr.mxu0 0.0
        %7069 = vmatpush1.msra.mxu0 0.0
        %7070 = vmatprep.subr.mxu0 0.0
        %7071 = vmatpush1.msra.mxu0 0.0
        %7072 = vmatprep.subr.mxu0 0.0
        %7073 = vmatpush1.msra.mxu0 0.0
        %7074 = vmatprep.subr.mxu0 0.0
        %7075 = vmatpush1.msra.mxu0 %v7039
        %7076 = vmatprep.subr.mxu0 0.0
        %7077 = vmatpush1.msra.mxu0 %v7038
        %7078 = vmatprep.subr.mxu0 0.0
        %7079 = vmatpush1.msra.mxu0 %v7037
        %7080 = vmatprep.subr.mxu0 0.0
        %7081 = vmatpush1.msra.mxu0 %v7036
        %7082 = vmatprep.subr.mxu0 0.0
        %7083 = vmatpush2.msra.mxu0 0.0
        %7084 = vmatprep.subr.mxu0 0.0
        %7085 = vmatpush2.msra.mxu0 0.0
        %7086 = vmatprep.subr.mxu0 0.0
        %7087 = vmatpush2.msra.mxu0 0.0
        %7088 = vmatprep.subr.mxu0 0.0
        %7089 = vmatpush2.msra.mxu0 0.0
        %7090 = vmatprep.subr.mxu0 0.0
        %7091 = vmatpush2.msra.mxu0 0.0
        %7092 = vmatprep.subr.mxu0 0.0
        %7093 = vmatpush2.msra.mxu0 0.0
        %7094 = vmatprep.subr.mxu0 0.0
        %7095 = vmatpush2.msra.mxu0 0.0
        %7096 = vmatprep.subr.mxu0 0.0
        %7097 = vmatpush2.msra.mxu0 0.0
        %7098 = vmatprep.subr.mxu0 0.0
        %7099 = vmatpush2.msra.mxu0 0.0
        %7100 = vmatprep.subr.mxu0 0.0
        %7101 = vmatpush2.msra.mxu0 0.0
        %7102 = vmatprep.subr.mxu0 0.0
        %7103 = vmatpush2.msra.mxu0 0.0
        %7104 = vmatprep.subr.mxu0 0.0
        %7105 = vmatpush2.msra.mxu0 0.0
        %7106 = vmatprep.subr.mxu0 0.0
        %7107 = vmatpush2.msra.mxu0 0.0
        %7108 = vmatprep.subr.mxu0 0.0
        %7109 = vmatpush2.msra.mxu0 0.0
        %7110 = vmatprep.subr.mxu0 0.0
        %7111 = vmatpush2.msra.mxu0 0.0
        %7112 = vmatprep.subr.mxu0 0.0
        %7113 = vmatpush2.msra.mxu0 0.0
        %7114 = vmatprep.mubr.f32.mxu0 0.0
        %7115 = vmatmul.mubr.f32.gmra.mxu0 %v7048
        %v7116 = vpop.f32.mrf.mxu0
        %v7117 = vadd.f32 %v7045, %v7116
        %v7118 = vpop.f32.mrf.mxu0
        %7119 = vdwg.mxu0
        %7120 = vst [vmem:[%s2204] sm:$0xff] %v7117
        %s7121 = sand.u32 %s1297, 1
        %s7122 = scalar_lea.sflag [#allocation4], %s7121
        %s7123 = sand.u32 %s1297, 1
        %s7124 = smul.addr %s7123, 8
        %s7125 = scalar_lea.vmem [#allocation67], %s7124
        // Predicated region
        $region405: #{transformer_model_forward.1} parent=235 // pred_check
          %p7126 = pneg %p1307
        $region406: #{transformer_model_forward.1} parent=235 // pred_check_branch
          %7128 = sbr.rel (%p7126) target = $region408
        $region407: #{transformer_model_forward.1} parent=235 // pred_region
          %s7130 = ssub.s32 128, 128
          %7131 = vsyncadd %s7122, %s7130
          %s7132 = smul.addr %s145, 128
          %s7133 = scalar_lea.hbm %s109, %s7132
          %s7135 = sshll.u32 %s7125, 4
          %s7136 = int_to_ptr.vmem [resolvable:$true] %s7135
          %7138 = dma.vmem_to_hbm [thread:$0]  %s7136, 128, %s7133, %s7122
        $region408: #{transformer_model_forward.1} parent=235 // pred_fallthru
          _
      $region236: #{transformer_model_forward.1} parent=5 // pred_fallthru
        _
      %p7139 = scmp.le.s32.totalorder 2, %s140
      // Predicated region
      $region409: #{transformer_model_forward.1} parent=5 // pred_check
        %p7140 = pneg %p7139
      $region410: #{transformer_model_forward.1} parent=5 // pred_check_branch
        %7142 = sbr.rel (%p7140) target = $region412
      $region411: #{transformer_model_forward.1} parent=5 // pred_region
        %s7143 = ssub.s32 %s140, 2
        // Predicated region
        $region413: #{transformer_model_forward.1} parent=411 // pred_check
          %p7144 = pneg %p1313
        $region414: #{transformer_model_forward.1} parent=411 // pred_check_branch
          %7146 = sbr.rel (%p7144) target = $region416
        $region415: #{transformer_model_forward.1} parent=411 // pred_region
          %s7147 = sand.u32 %s1298, 1
          %s7148 = scalar_lea.sflag [#allocation4], %s7147
          %s7149 = sand.u32 %s1298, 1
          %s7150 = smul.addr %s7149, 8
          %s7151 = scalar_lea.vmem [#allocation67], %s7150
          %7152 = dma.done %s7148, 128
        $region416: #{transformer_model_forward.1} parent=411 // pred_fallthru
          _
      $region412: #{transformer_model_forward.1} parent=5 // pred_fallthru
        _
    $region6: #{transformer_model_forward.1} parent=1 // loop_footer
      %s144 = sadd.s32 1, %s140
    $region7: #{transformer_model_forward.1} parent=1 // loop_footer_branch
      %139 = sbr.rel target = $region3
    $region8: #{transformer_model_forward.1} parent=1 // loop_exit
      _
    %7153 = vsyncpa [#allocation3], 1
    %s7154 = scalar_lea.sflag [#allocation3], 1
    %7155 = vsyncpa %s7154, 1
    %7156 = vsyncpa [#allocation6], 1
    %7157 = vsyncpa [#allocation9], 1
    %7158 = vsyncpa [#allocation12], 1
    %7159 = vsyncpa [#allocation15], 1
    %7160 = vsyncpa [#allocation18], 1
    %7161 = vsyncpa [#allocation21], 1
    %7162 = vsyncpa [#allocation24], 1
    %7163 = vsyncpa [#allocation27], 1
    %7164 = vsyncpa [#allocation30], 1
    %7165 = vsyncpa [#allocation33], 1
    %7166 = vsyncpa [#allocation36], 1
    %7167 = vsyncpa [#allocation39], 1
    %7168 = vsyncpa [#allocation42], 1
    %7169 = vsyncpa [#allocation45], 1
    %7170 = vsyncpa [#allocation48], 1
    %7171 = vsyncpa [#allocation51], 1
    %7172 = vsyncpa [#allocation54], 1
    %7173 = vsyncpa [#allocation57], 1
    %7174 = vsyncpa [#allocation60], 1
    %7175 = vsyncpa [#allocation63], 1
    %7176 = vsyncpa [#allocation66], 1
    %7177 = vsyncpa [#allocation4], 1
    %s7178 = scalar_lea.sflag [#allocation4], 1
    %7179 = vsyncpa %s7178, 1

</llo_original>
